<compile_context>
chip_gen: v5e
topology: v5e:2x2
jax: 0.10.0
libtpu: 0.0.40
codegen_flags: <defaults>
</compile_context>

<pallas_src>
import functools

import jax
import jax.numpy as jnp
from jax.experimental import pallas as pl
from jax.experimental.pallas import tpu as pltpu


# ----------------------------------------------------------------------------
# Device-generation gating (host-side, static).
# ----------------------------------------------------------------------------
def _device_kind():
    try:
        return jax.devices()[0].device_kind.lower()
    except Exception:
        return ""


_KIND = _device_kind()
_IS_V7 = "v7" in _KIND
_IS_V5 = "v5" in _KIND

_VMEM_LIMIT = 48 * 1024 * 1024          # safe under v7x's 64 MiB physical VMEM
_TM_MM = 1024 if _IS_V7 else 2048       # M-tile for low-intensity standalone matmuls
_TM_FUSED = 512                         # M-tile for the MXU-bound fused H/32 chain
# Fold the 256->128->1024 head (no nonlinearity in between) into one 256->1024
# matmul on 256x256-MXU generations (v6e/v7x); keep it split on v5e (128x128 MXU).
_FOLD_HEAD = not _IS_V5


# ----------------------------------------------------------------------------
# Tiling helpers.
# ----------------------------------------------------------------------------
def _round_up(x, m):
    return (x + m - 1) // m * m


def _choose_tiling(m, tm_max):
    """Returns (TM, padded_M, grid_M).  Prefers a TM that divides M (no pad)."""
    tm_max = max(16, (tm_max // 16) * 16)
    if m <= tm_max:
        if _IS_V7 and m > 16:
            # v7x has 2 TensorCores: make the "parallel" grid at least 2 steps.
            tm = _round_up((m + 1) // 2, 16)
            return tm, 2 * tm, 2
        tm = _round_up(max(m, 1), 16)
        return tm, tm, 1
    t = tm_max
    while t >= 16:                      # largest multiple of 16 that divides M
        if m % t == 0:
            return t, m, m // t
        t -= 16
    mp = _round_up(m, tm_max)           # fall back to padding
    return tm_max, mp, mp // tm_max


def _pad_rows(x, mp):
    m = x.shape[0]
    if m == mp:
        return x
    return jnp.pad(x, ((0, mp - m), (0, 0)))


def _bias_row(b):
    return jnp.asarray(b, jnp.float32).reshape(1, -1)


# ----------------------------------------------------------------------------
# Kernel 1: y = relu?(x @ w + b), M-tiled (used for the bb3 backbone stub).
# ----------------------------------------------------------------------------
def _mm_bias_act_kernel(x_ref, w_ref, b_ref, o_ref, *, relu):
    acc = jnp.dot(x_ref[...], w_ref[...], preferred_element_type=jnp.float32)
    acc = acc + b_ref[...]                           # f32 epilogue (v5e-safe)
    if relu:
        acc = jnp.maximum(acc, 0.0)
    o_ref[...] = acc.astype(o_ref.dtype)


def matmul_bias(x, w, b, relu=False, out_dtype=jnp.bfloat16):
    """x: bf16 (M,K);  w: bf16 (K,N) pre-transposed;  b: f32 (1,N)."""
    m, k = x.shape
    n = w.shape[1]
    tm, mp, gm = _choose_tiling(m, _TM_MM)
    x_p = _pad_rows(x, mp)
    kern = functools.partial(_mm_bias_act_kernel, relu=relu)
    cost = pl.CostEstimate(
        flops=2 * mp * k * n,
        transcendentals=0,
        bytes_accessed=mp * k * 2 + k * n * 2
        + mp * n * jnp.dtype(out_dtype).itemsize)
    out = pl.pallas_call(
        kern,
        grid=(gm,),
        in_specs=[
            pl.BlockSpec((tm, k), lambda i: (i, 0)),
            pl.BlockSpec((k, n), lambda i: (0, 0)),
            pl.BlockSpec((1, n), lambda i: (0, 0)),
        ],
        out_specs=pl.BlockSpec((tm, n), lambda i: (i, 0)),
        out_shape=jax.ShapeDtypeStruct((mp, n), out_dtype),
        compiler_params=pltpu.CompilerParams(
            dimension_semantics=("parallel",),
            vmem_limit_bytes=_VMEM_LIMIT),
        cost_estimate=cost,
    )(x_p, w, b)
    return out if mp == m else out[:m]


# ----------------------------------------------------------------------------
# Kernel 2: fused H/32 chain.  Per M-tile of p3_s2d (1024 ch) compute
#   pool_4 = relu(x  W0 + b0)         (1024 -> 512)   [backbone stub bb4]
#   pool_5 = relu(p4 W1 + b1)         (512  -> 1024)  [backbone stub bb5]
#   c1     = relu(.. W2 + b2)         (1024 -> 256)   [conv6_1]
#   c2     = relu(.. W3 + b3)         (256  -> 256)   [conv6_2]
#   t-path:  folded   c2 Wt           (256  -> 1024)  [conv_7+u1+u2_t folded]
#            or split c2 W4+b4 -> Wt  (256->128->1024)
#   out    = t-path + pool_4 Wx + b5  (dec_u2 with [t | pool_4] concat fused)
# keeping every intermediate in VMEM.
# ----------------------------------------------------------------------------
def _fused_h32_kernel(*refs, fold_head):
    if fold_head:
        (x_ref, w0_ref, b0_ref, w1_ref, b1_ref, w2_ref, b2_ref, w3_ref, b3_ref,
         wt_ref, wx_ref, b5_ref, o_ref) = refs
    else:
        (x_ref, w0_ref, b0_ref, w1_ref, b1_ref, w2_ref, b2_ref, w3_ref, b3_ref,
         w4_ref, b4_ref, wt_ref, wx_ref, b5_ref, o_ref) = refs
    x = x_ref[...]                                               # bf16 (TM, 1024)
    p4 = jnp.dot(x, w0_ref[...], preferred_element_type=jnp.float32) + b0_ref[...]
    p4 = jnp.maximum(p4, 0.0).astype(jnp.bfloat16)               # pool_4 (stays in VMEM)
    h = jnp.dot(p4, w1_ref[...], preferred_element_type=jnp.float32) + b1_ref[...]
    h = jnp.maximum(h, 0.0)                                      # pool_5
    h = jnp.dot(h.astype(jnp.bfloat16), w2_ref[...],
                preferred_element_type=jnp.float32) + b2_ref[...]
    h = jnp.maximum(h, 0.0)                                      # conv6_1 (+Dropout=id)
    h = jnp.dot(h.astype(jnp.bfloat16), w3_ref[...],
                preferred_element_type=jnp.float32) + b3_ref[...]
    h = jnp.maximum(h, 0.0).astype(jnp.bfloat16)                 # conv6_2 (+Dropout=id)
    if fold_head:
        acc = jnp.dot(h, wt_ref[...], preferred_element_type=jnp.float32)
    else:
        t = jnp.dot(h, w4_ref[...], preferred_element_type=jnp.float32) + b4_ref[...]
        acc = jnp.dot(t.astype(jnp.bfloat16), wt_ref[...],
                      preferred_element_type=jnp.float32)
    acc = acc + jnp.dot(p4, wx_ref[...], preferred_element_type=jnp.float32)
    acc = acc + b5_ref[...]                                      # dec_u2 (pre d2s)
    o_ref[...] = acc.astype(o_ref.dtype)


def fused_h32_chain(x2d, ops, fold_head):
    m, k = x2d.shape
    n_out = 1024
    tm, mp, gm = _choose_tiling(m, _TM_FUSED)
    x_p = _pad_rows(x2d, mp)
    kern = functools.partial(_fused_h32_kernel, fold_head=fold_head)
    in_specs = [pl.BlockSpec((tm, k), lambda i: (i, 0))]
    in_specs += [pl.BlockSpec(o.shape, lambda i: (0, 0)) for o in ops]
    out = pl.pallas_call(
        kern,
        grid=(gm,),
        in_specs=in_specs,
        out_specs=pl.BlockSpec((tm, n_out), lambda i: (i, 0)),
        out_shape=jax.ShapeDtypeStruct((mp, n_out), jnp.bfloat16),
        compiler_params=pltpu.CompilerParams(
            dimension_semantics=("parallel",),
            vmem_limit_bytes=_VMEM_LIMIT),
    )(x_p, *ops)
    return out if mp == m else out[:m]


# ----------------------------------------------------------------------------
# Kernel 3: concat-fused matmul  y = a @ Wa + c @ Wc + b  (dec_u3 skip concat).
# ----------------------------------------------------------------------------
def _concat_mm_kernel(a_ref, c_ref, wa_ref, wc_ref, b_ref, o_ref):
    acc = jnp.dot(a_ref[...], wa_ref[...], preferred_element_type=jnp.float32)
    acc = acc + jnp.dot(c_ref[...], wc_ref[...], preferred_element_type=jnp.float32)
    acc = acc + b_ref[...]
    o_ref[...] = acc.astype(o_ref.dtype)


def concat_matmul_bias(a, c, wa, wc, b, out_dtype=jnp.bfloat16):
    m, ka = a.shape
    kc = c.shape[1]
    n = wa.shape[1]
    tm, mp, gm = _choose_tiling(m, _TM_MM)
    a_p = _pad_rows(a, mp)
    c_p = _pad_rows(c, mp)
    out = pl.pallas_call(
        _concat_mm_kernel,
        grid=(gm,),
        in_specs=[
            pl.BlockSpec((tm, ka), lambda i: (i, 0)),
            pl.BlockSpec((tm, kc), lambda i: (i, 0)),
            pl.BlockSpec((ka, n), lambda i: (0, 0)),
            pl.BlockSpec((kc, n), lambda i: (0, 0)),
            pl.BlockSpec((1, n), lambda i: (0, 0)),
        ],
        out_specs=pl.BlockSpec((tm, n), lambda i: (i, 0)),
        out_shape=jax.ShapeDtypeStruct((mp, n), out_dtype),
        compiler_params=pltpu.CompilerParams(
            dimension_semantics=("parallel",),
            vmem_limit_bytes=_VMEM_LIMIT),
    )(a_p, c_p, wa, wc, b)
    return out if mp == m else out[:m]


# ----------------------------------------------------------------------------
# Layout glue (plain JAX, bf16 data).
# ----------------------------------------------------------------------------
def space_to_depth(x_nhwc, k):
    n, h, w, c = x_nhwc.shape
    x = x_nhwc.reshape(n, h // k, k, w // k, k, c)
    x = x.transpose(0, 1, 3, 2, 4, 5)
    return x.reshape(n, h // k, w // k, k * k * c)


def depth_to_space(y_2d, n, h, w, cout, k):
    """(N*H*W, Cout*k*k) with (o, kh, kw) column order -> (N, H*k, W*k, Cout)."""
    y = y_2d.reshape(n, h, w, cout, k, k)
    y = y.transpose(0, 1, 4, 2, 5, 3)
    return y.reshape(n, h * k, w * k, cout)


# ----------------------------------------------------------------------------
# Deterministic parameter init (PyTorch-like uniform(+-1/sqrt(fan_in))).
# ----------------------------------------------------------------------------
def init_params(key):
    specs = {
        # DenseNet backbone stub projections (see TODO in forward):
        'bb3': ((256, 3 * 16 * 16, 1, 1), (256,)),     # -> pool_3_out, 256 ch
        'bb4': ((512, 4 * 256, 1, 1), (512,)),         # -> pool_4_out, 512 ch
        'bb5': ((1024, 512, 1, 1), (1024,)),           # -> pool_5_out, 1024 ch
        # conv6
        'conv6_1': ((256, 1024, 1, 1), (256,)),
        'conv6_2': ((256, 256, 1, 1), (256,)),
        # TableDecoder
        'dec_c7': ((256, 256, 1, 1), (256,)),          # Conv2d 1x1
        'dec_u1': ((256, 128, 1, 1), (128,)),          # ConvTranspose 1x1 s1
        'dec_u2': ((640, 256, 2, 2), (256,)),          # ConvTranspose 2x2 s2
        'dec_u3': ((512, 1, 16, 16), (1,)),            # ConvTranspose 16x16 s16
    }
    params = {}
    keys = jax.random.split(key, 2 * len(specs))
    for i, (name, (wshape, bshape)) in enumerate(specs.items()):
        fan_in = wshape[1] * wshape[2] * wshape[3]
        bound = 1.0 / (fan_in ** 0.5)
        params[name + '_w'] = jax.random.uniform(
            keys[2 * i], wshape, jnp.float32, -bound, bound)
        params[name + '_b'] = jax.random.uniform(
            keys[2 * i + 1], bshape, jnp.float32, -bound, bound)
    return params


# ----------------------------------------------------------------------------
# One-time weight preparation (hoisted out of the per-call forward).
# ----------------------------------------------------------------------------
def prepare_params(raw):
    """Pre-transpose to (Cin,Cout), pre-cast weights to bf16 / biases to f32
    (1,N), fold conv_7 @ upsample_1 (and optionally the folded head @ dec_u2_t),
    and split the dec_u2 / dec_u3 transposed-conv weights over their concats."""
    def conv1x1_w(name):
        w = raw[name + '_w']
        return w.reshape(w.shape[0], w.shape[1]).T.astype(jnp.bfloat16)

    p = {}
    p['bb3_w'], p['bb3_b'] = conv1x1_w('bb3'), _bias_row(raw['bb3_b'])
    p['bb4_w'], p['bb4_b'] = conv1x1_w('bb4'), _bias_row(raw['bb4_b'])
    p['bb5_w'], p['bb5_b'] = conv1x1_w('bb5'), _bias_row(raw['bb5_b'])
    p['c61_w'], p['c61_b'] = conv1x1_w('conv6_1'), _bias_row(raw['conv6_1_b'])
    p['c62_w'], p['c62_b'] = conv1x1_w('conv6_2'), _bias_row(raw['conv6_2_b'])

    # Decoder head: fold conv_7 (1x1, no ReLU) into upsample_1 (1x1 s1
    # transpose, no ReLU) -> one 256->128 affine map.
    w_c7 = raw['dec_c7_w'].reshape(256, 256).T                   # (Cin, Cout)
    w_u1 = raw['dec_u1_w'].reshape(256, 128)                     # transpose conv: (Cin, Cout)
    w_head = w_c7 @ w_u1                                         # (256, 128) f32
    b_head = raw['dec_c7_b'] @ w_u1 + raw['dec_u1_b']            # (128,)     f32

    # dec_u2 = ConvTranspose2d(640,256,2,2): as a matmul, columns are (o,kh,kw);
    # split rows over the [t(128) | pool_4(512)] concat.
    w_u2 = raw['dec_u2_w'].reshape(640, 256 * 4)
    w_u2_t, w_u2_p4 = w_u2[:128], w_u2[128:]
    b_u2 = jnp.repeat(raw['dec_u2_b'], 4)
    p['u2_px_w'] = w_u2_p4.astype(jnp.bfloat16)                  # (512, 1024)
    if _FOLD_HEAD:
        p['u2_t_w'] = (w_head @ w_u2_t).astype(jnp.bfloat16)     # (256, 1024)
        p['u2_b'] = _bias_row(b_head @ w_u2_t + b_u2)
    else:
        p['head_w'] = w_head.astype(jnp.bfloat16)                # (256, 128)
        p['head_b'] = _bias_row(b_head)
        p['u2_t_w'] = w_u2_t.astype(jnp.bfloat16)                # (128, 1024)
        p['u2_b'] = _bias_row(b_u2)

    # dec_u3 = ConvTranspose2d(512,1,16,16): split rows over [u2(256)|pool_3(256)].
    w_u3 = raw['dec_u3_w'].reshape(512, 256)
    p['u3_a_w'] = w_u3[:256].astype(jnp.bfloat16)
    p['u3_p3_w'] = w_u3[256:].astype(jnp.bfloat16)
    p['u3_b'] = _bias_row(jnp.repeat(raw['dec_u3_b'], 256))
    return p


# ----------------------------------------------------------------------------
# TableNet forward (takes prepared params; activations bf16 end-to-end).
# ----------------------------------------------------------------------------
def tablenet_forward(prep, x_nchw):
    x = jnp.transpose(x_nchw, (0, 2, 3, 1)).astype(jnp.bfloat16)  # NCHW -> NHWC, bf16
    n, h, w, _ = x.shape
    h16, w16 = h // 16, w // 16
    h32, w32 = h // 32, w // 32

    # ---- DenseNet backbone ----
    # TODO(synk): the pretrained torchvision densenet121.features backbone has
    # no self-contained Pallas equivalent; replaced by a shape/channel/stride-
    # faithful stub (space-to-depth patchify + 1x1 projections through the
    # Pallas matmul kernels) producing pool_3 (256ch, H/16); pool_4 (512ch) and
    # pool_5 (1024ch) at H/32 are produced inside the fused H/32 kernel.
    x_s2d = space_to_depth(x, 16)                                 # (N, H/16, W/16, 768)
    pool3_2d = matmul_bias(x_s2d.reshape(n * h16 * w16, 768),
                           prep['bb3_w'], prep['bb3_b'],
                           relu=True, out_dtype=jnp.bfloat16)     # (M16, 256)
    pool_3 = pool3_2d.reshape(n, h16, w16, 256)
    p3_s2d = space_to_depth(pool_3, 2)                            # (N, H/32, W/32, 1024)

    # ---- fused H/32 chain: bb4 -> bb5 -> conv6 -> head -> dec_u2 matmul ----
    if _FOLD_HEAD:
        ops = [prep['bb4_w'], prep['bb4_b'], prep['bb5_w'], prep['bb5_b'],
               prep['c61_w'], prep['c61_b'], prep['c62_w'], prep['c62_b'],
               prep['u2_t_w'], prep['u2_px_w'], prep['u2_b']]
    else:
        ops = [prep['bb4_w'], prep['bb4_b'], prep['bb5_w'], prep['bb5_b'],
               prep['c61_w'], prep['c61_b'], prep['c62_w'], prep['c62_b'],
               prep['head_w'], prep['head_b'],
               prep['u2_t_w'], prep['u2_px_w'], prep['u2_b']]
    u2_2d = fused_h32_chain(p3_s2d.reshape(n * h32 * w32, 1024),
                            ops, _FOLD_HEAD)                      # (M32, 1024) bf16
    u2 = depth_to_space(u2_2d, n, h32, w32, 256, 2)               # (N, H/16, W/16, 256)

    # ---- dec_u3 with the [u2 | pool_3] concat fused, then 16x depth-to-space --
    u3_2d = concat_matmul_bias(u2.reshape(n * h16 * w16, 256), pool3_2d,
                               prep['u3_a_w'], prep['u3_p3_w'], prep['u3_b'],
                               out_dtype=jnp.bfloat16)            # (M16, 256) bf16
    out = depth_to_space(u3_2d, n, h16, w16, 1, 16)               # (N, H, W, 1)

    return jnp.transpose(out, (0, 3, 1, 2)).astype(jnp.float32)   # (N, 1, H, W) f32


if __name__ == "__main__":
    key = jax.random.PRNGKey(0)
    pkey, xkey = jax.random.split(key)
    raw_params = init_params(pkey)
    prep = prepare_params(raw_params)      # one-time weight prep (hoisted)

    # Small input: batch=2, 3-channel image, 64x64 (must be divisible by 32).
    x = jax.random.normal(xkey, (2, 3, 64, 64), jnp.float32)

    fwd = jax.jit(tablenet_forward)
    out = fwd(prep, x)
    out = jax.block_until_ready(out)

    assert out.shape == (2, 1, 64, 64), out.shape
    assert out.dtype == jnp.float32
    assert bool(jnp.all(jnp.isfinite(out)))
    print("KERNEL_OK")
</pallas_src>

<mosaic_0001>
module attributes {stable_mosaic.version = 11 : i64} {
  func.func @_mm_bias_act_kernel(%arg0: i32, %arg1: memref<32x768xbf16, #tpu.memory_space<vmem>>, %arg2: memref<768x256xbf16, #tpu.memory_space<vmem>>, %arg3: memref<1x256xf32, #tpu.memory_space<vmem>>, %arg4: memref<32x256xbf16, #tpu.memory_space<vmem>>) attributes {dimension_semantics = [#tpu.dimension_semantics<parallel>], iteration_bounds = array<i64: 1>, scalar_prefetch = 0 : i64, scratch_operands = 0 : i64, tpu.core_type = #tpu.core_type<tc>, window_params = [{transform_indices = @transform_0, window_bounds = array<i64: 32, 768>}, {pipeline_mode = #tpu.pipeline_mode<synchronous>, transform_indices = @transform_1, window_bounds = array<i64: 768, 256>}, {pipeline_mode = #tpu.pipeline_mode<synchronous>, transform_indices = @transform_2, window_bounds = array<i64: 1, 256>}, {transform_indices = @transform_3, window_bounds = array<i64: 32, 256>}]} {
    %c0 = arith.constant 0 : index
    %c0_0 = arith.constant 0 : index
    %0 = vector.load %arg1[%c0, %c0_0] : memref<32x768xbf16, #tpu.memory_space<vmem>>, vector<32x768xbf16>
    %c0_1 = arith.constant 0 : index
    %c0_2 = arith.constant 0 : index
    %1 = vector.load %arg2[%c0_1, %c0_2] : memref<768x256xbf16, #tpu.memory_space<vmem>>, vector<768x256xbf16>
    %cst = arith.constant dense<0.000000e+00> : vector<32x256xf32>
    %2 = tpu.matmul %0, %1, %cst {dimension_numbers = #tpu.dot_dimension_numbers<[1], [0], [0], [1], [0, 0, 1, 1], [], []>} : vector<32x768xbf16>, vector<768x256xbf16>, vector<32x256xf32> -> vector<32x256xf32>
    %c0_3 = arith.constant 0 : index
    %c0_4 = arith.constant 0 : index
    %3 = vector.load %arg3[%c0_3, %c0_4] : memref<1x256xf32, #tpu.memory_space<vmem>>, vector<1x256xf32>
    %4 = vector.broadcast %3 : vector<1x256xf32> to vector<32x256xf32>
    %5 = arith.addf %2, %4 : vector<32x256xf32>
    %cst_5 = arith.constant 0.000000e+00 : f32
    %6 = vector.broadcast %cst_5 : f32 to vector<32x256xf32>
    %7 = arith.maximumf %5, %6 : vector<32x256xf32>
    %8 = arith.truncf %7 : vector<32x256xf32> to vector<32x256xbf16>
    %c0_6 = arith.constant 0 : index
    %c0_7 = arith.constant 0 : index
    %9 = vector.load %arg4[%c0_6, %c0_7] : memref<32x256xbf16, #tpu.memory_space<vmem>>, vector<32x256xbf16>
    tpu.vector_store %arg4[%c0_6, %c0_7], %8 {strides = array<i32>} : memref<32x256xbf16, #tpu.memory_space<vmem>>, vector<32x256xbf16>,
    return
  }
  func.func @transform_0(%arg0: i32) -> (i32, i32) {
    %c0_i32 = arith.constant 0 : i32
    %c0_i32_0 = arith.constant 0 : i32
    return %arg0, %c0_i32 : i32, i32
  }
  func.func @transform_1(%arg0: i32) -> (i32, i32) {
    %c0_i32 = arith.constant 0 : i32
    %c0_i32_0 = arith.constant 0 : i32
    %c0_i32_1 = arith.constant 0 : i32
    return %c0_i32, %c0_i32_0 : i32, i32
  }
  func.func @transform_2(%arg0: i32) -> (i32, i32) {
    %c0_i32 = arith.constant 0 : i32
    %c0_i32_0 = arith.constant 0 : i32
    %c0_i32_1 = arith.constant 0 : i32
    return %c0_i32, %c0_i32_0 : i32, i32
  }
  func.func @transform_3(%arg0: i32) -> (i32, i32) {
    %c0_i32 = arith.constant 0 : i32
    %c0_i32_0 = arith.constant 0 : i32
    return %arg0, %c0_i32 : i32, i32
  }
}

module attributes {stable_mosaic.version = 11 : i64} {
  func.func @_fused_h32_kernel(%arg0: i32, %arg1: memref<16x1024xbf16, #tpu.memory_space<vmem>>, %arg2: memref<1024x512xbf16, #tpu.memory_space<vmem>>, %arg3: memref<1x512xf32, #tpu.memory_space<vmem>>, %arg4: memref<512x1024xbf16, #tpu.memory_space<vmem>>, %arg5: memref<1x1024xf32, #tpu.memory_space<vmem>>, %arg6: memref<1024x256xbf16, #tpu.memory_space<vmem>>, %arg7: memref<1x256xf32, #tpu.memory_space<vmem>>, %arg8: memref<256x256xbf16, #tpu.memory_space<vmem>>, %arg9: memref<1x256xf32, #tpu.memory_space<vmem>>, %arg10: memref<256x1024xbf16, #tpu.memory_space<vmem>>, %arg11: memref<512x1024xbf16, #tpu.memory_space<vmem>>, %arg12: memref<1x1024xf32, #tpu.memory_space<vmem>>, %arg13: memref<16x1024xbf16, #tpu.memory_space<vmem>>) attributes {dimension_semantics = [#tpu.dimension_semantics<parallel>], iteration_bounds = array<i64: 1>, scalar_prefetch = 0 : i64, scratch_operands = 0 : i64, tpu.core_type = #tpu.core_type<tc>, window_params = [{transform_indices = @transform_0, window_bounds = array<i64: 16, 1024>}, {pipeline_mode = #tpu.pipeline_mode<synchronous>, transform_indices = @transform_1, window_bounds = array<i64: 1024, 512>}, {pipeline_mode = #tpu.pipeline_mode<synchronous>, transform_indices = @transform_2, window_bounds = array<i64: 1, 512>}, {pipeline_mode = #tpu.pipeline_mode<synchronous>, transform_indices = @transform_3, window_bounds = array<i64: 512, 1024>}, {pipeline_mode = #tpu.pipeline_mode<synchronous>, transform_indices = @transform_4, window_bounds = array<i64: 1, 1024>}, {pipeline_mode = #tpu.pipeline_mode<synchronous>, transform_indices = @transform_5, window_bounds = array<i64: 1024, 256>}, {pipeline_mode = #tpu.pipeline_mode<synchronous>, transform_indices = @transform_6, window_bounds = array<i64: 1, 256>}, {pipeline_mode = #tpu.pipeline_mode<synchronous>, transform_indices = @transform_7, window_bounds = array<i64: 256, 256>}, {pipeline_mode = #tpu.pipeline_mode<synchronous>, transform_indices = @transform_8, window_bounds = array<i64: 1, 256>}, {pipeline_mode = #tpu.pipeline_mode<synchronous>, transform_indices = @transform_9, window_bounds = array<i64: 256, 1024>}, {pipeline_mode = #tpu.pipeline_mode<synchronous>, transform_indices = @transform_10, window_bounds = array<i64: 512, 1024>}, {pipeline_mode = #tpu.pipeline_mode<synchronous>, transform_indices = @transform_11, window_bounds = array<i64: 1, 1024>}, {transform_indices = @transform_12, window_bounds = array<i64: 16, 1024>}]} {
    %c0 = arith.constant 0 : index
    %c0_0 = arith.constant 0 : index
    %0 = vector.load %arg1[%c0, %c0_0] : memref<16x1024xbf16, #tpu.memory_space<vmem>>, vector<16x1024xbf16>
    %c0_1 = arith.constant 0 : index
    %c0_2 = arith.constant 0 : index
    %1 = vector.load %arg2[%c0_1, %c0_2] : memref<1024x512xbf16, #tpu.memory_space<vmem>>, vector<1024x512xbf16>
    %cst = arith.constant dense<0.000000e+00> : vector<16x512xf32>
    %2 = tpu.matmul %0, %1, %cst {dimension_numbers = #tpu.dot_dimension_numbers<[1], [0], [0], [1], [0, 0, 1, 1], [], []>} : vector<16x1024xbf16>, vector<1024x512xbf16>, vector<16x512xf32> -> vector<16x512xf32>
    %c0_3 = arith.constant 0 : index
    %c0_4 = arith.constant 0 : index
    %3 = vector.load %arg3[%c0_3, %c0_4] : memref<1x512xf32, #tpu.memory_space<vmem>>, vector<1x512xf32>
    %4 = vector.broadcast %3 : vector<1x512xf32> to vector<16x512xf32>
    %5 = arith.addf %2, %4 : vector<16x512xf32>
    %cst_5 = arith.constant 0.000000e+00 : f32
    %6 = vector.broadcast %cst_5 : f32 to vector<16x512xf32>
    %7 = arith.maximumf %5, %6 : vector<16x512xf32>
    %8 = arith.truncf %7 : vector<16x512xf32> to vector<16x512xbf16>
    %c0_6 = arith.constant 0 : index
    %c0_7 = arith.constant 0 : index
    %9 = vector.load %arg4[%c0_6, %c0_7] : memref<512x1024xbf16, #tpu.memory_space<vmem>>, vector<512x1024xbf16>
    %cst_8 = arith.constant dense<0.000000e+00> : vector<16x1024xf32>
    %10 = tpu.matmul %8, %9, %cst_8 {dimension_numbers = #tpu.dot_dimension_numbers<[1], [0], [0], [1], [0, 0, 1, 1], [], []>} : vector<16x512xbf16>, vector<512x1024xbf16>, vector<16x1024xf32> -> vector<16x1024xf32>
    %c0_9 = arith.constant 0 : index
    %c0_10 = arith.constant 0 : index
    %11 = vector.load %arg5[%c0_9, %c0_10] : memref<1x1024xf32, #tpu.memory_space<vmem>>, vector<1x1024xf32>
    %12 = vector.broadcast %11 : vector<1x1024xf32> to vector<16x1024xf32>
    %13 = arith.addf %10, %12 : vector<16x1024xf32>
    %cst_11 = arith.constant 0.000000e+00 : f32
    %14 = vector.broadcast %cst_11 : f32 to vector<16x1024xf32>
    %15 = arith.maximumf %13, %14 : vector<16x1024xf32>
    %16 = arith.truncf %15 : vector<16x1024xf32> to vector<16x1024xbf16>
    %c0_12 = arith.constant 0 : index
    %c0_13 = arith.constant 0 : index
    %17 = vector.load %arg6[%c0_12, %c0_13] : memref<1024x256xbf16, #tpu.memory_space<vmem>>, vector<1024x256xbf16>
    %cst_14 = arith.constant dense<0.000000e+00> : vector<16x256xf32>
    %18 = tpu.matmul %16, %17, %cst_14 {dimension_numbers = #tpu.dot_dimension_numbers<[1], [0], [0], [1], [0, 0, 1, 1], [], []>} : vector<16x1024xbf16>, vector<1024x256xbf16>, vector<16x256xf32> -> vector<16x256xf32>
    %c0_15 = arith.constant 0 : index
    %c0_16 = arith.constant 0 : index
    %19 = vector.load %arg7[%c0_15, %c0_16] : memref<1x256xf32, #tpu.memory_space<vmem>>, vector<1x256xf32>
    %20 = vector.broadcast %19 : vector<1x256xf32> to vector<16x256xf32>
    %21 = arith.addf %18, %20 : vector<16x256xf32>
    %cst_17 = arith.constant 0.000000e+00 : f32
    %22 = vector.broadcast %cst_17 : f32 to vector<16x256xf32>
    %23 = arith.maximumf %21, %22 : vector<16x256xf32>
    %24 = arith.truncf %23 : vector<16x256xf32> to vector<16x256xbf16>
    %c0_18 = arith.constant 0 : index
    %c0_19 = arith.constant 0 : index
    %25 = vector.load %arg8[%c0_18, %c0_19] : memref<256x256xbf16, #tpu.memory_space<vmem>>, vector<256x256xbf16>
    %cst_20 = arith.constant dense<0.000000e+00> : vector<16x256xf32>
    %26 = tpu.matmul %24, %25, %cst_20 {dimension_numbers = #tpu.dot_dimension_numbers<[1], [0], [0], [1], [0, 0, 1, 1], [], []>} : vector<16x256xbf16>, vector<256x256xbf16>, vector<16x256xf32> -> vector<16x256xf32>
    %c0_21 = arith.constant 0 : index
    %c0_22 = arith.constant 0 : index
    %27 = vector.load %arg9[%c0_21, %c0_22] : memref<1x256xf32, #tpu.memory_space<vmem>>, vector<1x256xf32>
    %28 = vector.broadcast %27 : vector<1x256xf32> to vector<16x256xf32>
    %29 = arith.addf %26, %28 : vector<16x256xf32>
    %cst_23 = arith.constant 0.000000e+00 : f32
    %30 = vector.broadcast %cst_23 : f32 to vector<16x256xf32>
    %31 = arith.maximumf %29, %30 : vector<16x256xf32>
    %32 = arith.truncf %31 : vector<16x256xf32> to vector<16x256xbf16>
    %c0_24 = arith.constant 0 : index
    %c0_25 = arith.constant 0 : index
    %33 = vector.load %arg10[%c0_24, %c0_25] : memref<256x1024xbf16, #tpu.memory_space<vmem>>, vector<256x1024xbf16>
    %cst_26 = arith.constant dense<0.000000e+00> : vector<16x1024xf32>
    %34 = tpu.matmul %32, %33, %cst_26 {dimension_numbers = #tpu.dot_dimension_numbers<[1], [0], [0], [1], [0, 0, 1, 1], [], []>} : vector<16x256xbf16>, vector<256x1024xbf16>, vector<16x1024xf32> -> vector<16x1024xf32>
    %c0_27 = arith.constant 0 : index
    %c0_28 = arith.constant 0 : index
    %35 = vector.load %arg11[%c0_27, %c0_28] : memref<512x1024xbf16, #tpu.memory_space<vmem>>, vector<512x1024xbf16>
    %cst_29 = arith.constant dense<0.000000e+00> : vector<16x1024xf32>
    %36 = tpu.matmul %8, %35, %cst_29 {dimension_numbers = #tpu.dot_dimension_numbers<[1], [0], [0], [1], [0, 0, 1, 1], [], []>} : vector<16x512xbf16>, vector<512x1024xbf16>, vector<16x1024xf32> -> vector<16x1024xf32>
    %37 = arith.addf %34, %36 : vector<16x1024xf32>
    %c0_30 = arith.constant 0 : index
    %c0_31 = arith.constant 0 : index
    %38 = vector.load %arg12[%c0_30, %c0_31] : memref<1x1024xf32, #tpu.memory_space<vmem>>, vector<1x1024xf32>
    %39 = vector.broadcast %38 : vector<1x1024xf32> to vector<16x1024xf32>
    %40 = arith.addf %37, %39 : vector<16x1024xf32>
    %41 = arith.truncf %40 : vector<16x1024xf32> to vector<16x1024xbf16>
    %c0_32 = arith.constant 0 : index
    %c0_33 = arith.constant 0 : index
    %42 = vector.load %arg13[%c0_32, %c0_33] : memref<16x1024xbf16, #tpu.memory_space<vmem>>, vector<16x1024xbf16>
    tpu.vector_store %arg13[%c0_32, %c0_33], %41 {strides = array<i32>} : memref<16x1024xbf16, #tpu.memory_space<vmem>>, vector<16x1024xbf16>,
    return
  }
  func.func @transform_0(%arg0: i32) -> (i32, i32) {
    %c0_i32 = arith.constant 0 : i32
    %c0_i32_0 = arith.constant 0 : i32
    return %arg0, %c0_i32 : i32, i32
  }
  func.func @transform_1(%arg0: i32) -> (i32, i32) {
    %c0_i32 = arith.constant 0 : i32
    %c0_i32_0 = arith.constant 0 : i32
    %c0_i32_1 = arith.constant 0 : i32
    return %c0_i32, %c0_i32_0 : i32, i32
  }
  func.func @transform_2(%arg0: i32) -> (i32, i32) {
    %c0_i32 = arith.constant 0 : i32
    %c0_i32_0 = arith.constant 0 : i32
    %c0_i32_1 = arith.constant 0 : i32
    return %c0_i32, %c0_i32_0 : i32, i32
  }
  func.func @transform_3(%arg0: i32) -> (i32, i32) {
    %c0_i32 = arith.constant 0 : i32
    %c0_i32_0 = arith.constant 0 : i32
    %c0_i32_1 = arith.constant 0 : i32
    return %c0_i32, %c0_i32_0 : i32, i32
  }
  func.func @transform_4(%arg0: i32) -> (i32, i32) {
    %c0_i32 = arith.constant 0 : i32
    %c0_i32_0 = arith.constant 0 : i32
    %c0_i32_1 = arith.constant 0 : i32
    return %c0_i32, %c0_i32_0 : i32, i32
  }
  func.func @transform_5(%arg0: i32) -> (i32, i32) {
    %c0_i32 = arith.constant 0 : i32
    %c0_i32_0 = arith.constant 0 : i32
    %c0_i32_1 = arith.constant 0 : i32
    return %c0_i32, %c0_i32_0 : i32, i32
  }
  func.func @transform_6(%arg0: i32) -> (i32, i32) {
    %c0_i32 = arith.constant 0 : i32
    %c0_i32_0 = arith.constant 0 : i32
    %c0_i32_1 = arith.constant 0 : i32
    return %c0_i32, %c0_i32_0 : i32, i32
  }
  func.func @transform_7(%arg0: i32) -> (i32, i32) {
    %c0_i32 = arith.constant 0 : i32
    %c0_i32_0 = arith.constant 0 : i32
    %c0_i32_1 = arith.constant 0 : i32
    return %c0_i32, %c0_i32_0 : i32, i32
  }
  func.func @transform_8(%arg0: i32) -> (i32, i32) {
    %c0_i32 = arith.constant 0 : i32
    %c0_i32_0 = arith.constant 0 : i32
    %c0_i32_1 = arith.constant 0 : i32
    return %c0_i32, %c0_i32_0 : i32, i32
  }
  func.func @transform_9(%arg0: i32) -> (i32, i32) {
    %c0_i32 = arith.constant 0 : i32
    %c0_i32_0 = arith.constant 0 : i32
    %c0_i32_1 = arith.constant 0 : i32
    return %c0_i32, %c0_i32_0 : i32, i32
  }
  func.func @transform_10(%arg0: i32) -> (i32, i32) {
    %c0_i32 = arith.constant 0 : i32
    %c0_i32_0 = arith.constant 0 : i32
    %c0_i32_1 = arith.constant 0 : i32
    return %c0_i32, %c0_i32_0 : i32, i32
  }
  func.func @transform_11(%arg0: i32) -> (i32, i32) {
    %c0_i32 = arith.constant 0 : i32
    %c0_i32_0 = arith.constant 0 : i32
    %c0_i32_1 = arith.constant 0 : i32
    return %c0_i32, %c0_i32_0 : i32, i32
  }
  func.func @transform_12(%arg0: i32) -> (i32, i32) {
    %c0_i32 = arith.constant 0 : i32
    %c0_i32_0 = arith.constant 0 : i32
    return %arg0, %c0_i32 : i32, i32
  }
}

module attributes {stable_mosaic.version = 11 : i64} {
  func.func @_concat_mm_kernel(%arg0: i32, %arg1: memref<32x256xbf16, #tpu.memory_space<vmem>>, %arg2: memref<32x256xbf16, #tpu.memory_space<vmem>>, %arg3: memref<256x256xbf16, #tpu.memory_space<vmem>>, %arg4: memref<256x256xbf16, #tpu.memory_space<vmem>>, %arg5: memref<1x256xf32, #tpu.memory_space<vmem>>, %arg6: memref<32x256xbf16, #tpu.memory_space<vmem>>) attributes {dimension_semantics = [#tpu.dimension_semantics<parallel>], iteration_bounds = array<i64: 1>, scalar_prefetch = 0 : i64, scratch_operands = 0 : i64, tpu.core_type = #tpu.core_type<tc>, window_params = [{transform_indices = @transform_0, window_bounds = array<i64: 32, 256>}, {transform_indices = @transform_1, window_bounds = array<i64: 32, 256>}, {pipeline_mode = #tpu.pipeline_mode<synchronous>, transform_indices = @transform_2, window_bounds = array<i64: 256, 256>}, {pipeline_mode = #tpu.pipeline_mode<synchronous>, transform_indices = @transform_3, window_bounds = array<i64: 256, 256>}, {pipeline_mode = #tpu.pipeline_mode<synchronous>, transform_indices = @transform_4, window_bounds = array<i64: 1, 256>}, {transform_indices = @transform_5, window_bounds = array<i64: 32, 256>}]} {
    %c0 = arith.constant 0 : index
    %c0_0 = arith.constant 0 : index
    %0 = vector.load %arg1[%c0, %c0_0] : memref<32x256xbf16, #tpu.memory_space<vmem>>, vector<32x256xbf16>
    %c0_1 = arith.constant 0 : index
    %c0_2 = arith.constant 0 : index
    %1 = vector.load %arg3[%c0_1, %c0_2] : memref<256x256xbf16, #tpu.memory_space<vmem>>, vector<256x256xbf16>
    %cst = arith.constant dense<0.000000e+00> : vector<32x256xf32>
    %2 = tpu.matmul %0, %1, %cst {dimension_numbers = #tpu.dot_dimension_numbers<[1], [0], [0], [1], [0, 0, 1, 1], [], []>} : vector<32x256xbf16>, vector<256x256xbf16>, vector<32x256xf32> -> vector<32x256xf32>
    %c0_3 = arith.constant 0 : index
    %c0_4 = arith.constant 0 : index
    %3 = vector.load %arg2[%c0_3, %c0_4] : memref<32x256xbf16, #tpu.memory_space<vmem>>, vector<32x256xbf16>
    %c0_5 = arith.constant 0 : index
    %c0_6 = arith.constant 0 : index
    %4 = vector.load %arg4[%c0_5, %c0_6] : memref<256x256xbf16, #tpu.memory_space<vmem>>, vector<256x256xbf16>
    %cst_7 = arith.constant dense<0.000000e+00> : vector<32x256xf32>
    %5 = tpu.matmul %3, %4, %cst_7 {dimension_numbers = #tpu.dot_dimension_numbers<[1], [0], [0], [1], [0, 0, 1, 1], [], []>} : vector<32x256xbf16>, vector<256x256xbf16>, vector<32x256xf32> -> vector<32x256xf32>
    %6 = arith.addf %2, %5 : vector<32x256xf32>
    %c0_8 = arith.constant 0 : index
    %c0_9 = arith.constant 0 : index
    %7 = vector.load %arg5[%c0_8, %c0_9] : memref<1x256xf32, #tpu.memory_space<vmem>>, vector<1x256xf32>
    %8 = vector.broadcast %7 : vector<1x256xf32> to vector<32x256xf32>
    %9 = arith.addf %6, %8 : vector<32x256xf32>
    %10 = arith.truncf %9 : vector<32x256xf32> to vector<32x256xbf16>
    %c0_10 = arith.constant 0 : index
    %c0_11 = arith.constant 0 : index
    %11 = vector.load %arg6[%c0_10, %c0_11] : memref<32x256xbf16, #tpu.memory_space<vmem>>, vector<32x256xbf16>
    tpu.vector_store %arg6[%c0_10, %c0_11], %10 {strides = array<i32>} : memref<32x256xbf16, #tpu.memory_space<vmem>>, vector<32x256xbf16>,
    return
  }
  func.func @transform_0(%arg0: i32) -> (i32, i32) {
    %c0_i32 = arith.constant 0 : i32
    %c0_i32_0 = arith.constant 0 : i32
    return %arg0, %c0_i32 : i32, i32
  }
  func.func @transform_1(%arg0: i32) -> (i32, i32) {
    %c0_i32 = arith.constant 0 : i32
    %c0_i32_0 = arith.constant 0 : i32
    return %arg0, %c0_i32 : i32, i32
  }
  func.func @transform_2(%arg0: i32) -> (i32, i32) {
    %c0_i32 = arith.constant 0 : i32
    %c0_i32_0 = arith.constant 0 : i32
    %c0_i32_1 = arith.constant 0 : i32
    return %c0_i32, %c0_i32_0 : i32, i32
  }
  func.func @transform_3(%arg0: i32) -> (i32, i32) {
    %c0_i32 = arith.constant 0 : i32
    %c0_i32_0 = arith.constant 0 : i32
    %c0_i32_1 = arith.constant 0 : i32
    return %c0_i32, %c0_i32_0 : i32, i32
  }
  func.func @transform_4(%arg0: i32) -> (i32, i32) {
    %c0_i32 = arith.constant 0 : i32
    %c0_i32_0 = arith.constant 0 : i32
    %c0_i32_1 = arith.constant 0 : i32
    return %c0_i32, %c0_i32_0 : i32, i32
  }
  func.func @transform_5(%arg0: i32) -> (i32, i32) {
    %c0_i32 = arith.constant 0 : i32
    %c0_i32_0 = arith.constant 0 : i32
    return %arg0, %c0_i32 : i32, i32
  }
}

</mosaic_0001>

<llo_original>
// kernel: tablenet_forward.3
$region0: #{tablenet_forward.3}
  #allocation0 [shape = 'u32[]', space=smem, size = 0x4, offset = 0x4, fixed_abs, tag = 'smem constant byte address 0x4 - core index']
  #allocation1 [shape = 'u32[72,128]{1,0:T(1,128)}', space=vmem, size = 0x9000, scoped, tag = 'internal scratch']
  %s0 = inlined_call_operand.vmem [shape: bf16[32,768], index: 0, kind: input, shape index: {}]
  %s1 = inlined_call_operand.vmem [shape: bf16[768,256], index: 1, kind: input, shape index: {}]
  %s2 = inlined_call_operand.vmem [shape: f32[1,256], index: 2, kind: input, shape index: {}]
  %s3 = inlined_call_operand.vmem [shape: bf16[32,256], index: 3, kind: output, shape index: {}]
  %s4 = sld [smem:[#allocation0]]
  $region22: #{tablenet_forward.3} parent=0
    _
  %s6 = ssub.s32 1, %s4
  %s7 = scalar_select 0, %s6, %s4
  // Predicated region
  $region2: #{tablenet_forward.3} parent=0 // pred_check
    _
  $region3: #{tablenet_forward.3} parent=0 // pred_check_branch
    %9 = sbr.rel (0) target = $region5
  $region4: #{tablenet_forward.3} parent=0 // pred_region
    _
  $region5: #{tablenet_forward.3} parent=0 // pred_fallthru
    _
  // Predicated region
  $region6: #{tablenet_forward.3} parent=0 // pred_check
    _
  $region7: #{tablenet_forward.3} parent=0 // pred_check_branch
    %11 = sbr.rel (0) target = $region9
  $region8: #{tablenet_forward.3} parent=0 // pred_region
    _
  $region9: #{tablenet_forward.3} parent=0 // pred_fallthru
    _
  // Predicated region
  $region10: #{tablenet_forward.3} parent=0 // pred_check
    _
  $region11: #{tablenet_forward.3} parent=0 // pred_check_branch
    %13 = sbr.rel (0) target = $region13
  $region12: #{tablenet_forward.3} parent=0 // pred_region
    _
  $region13: #{tablenet_forward.3} parent=0 // pred_fallthru
    _
  %v14 = vld [vmem:[%s0] sm:$0xff]
  %v15 = vld [vmem:[%s0 + $0x8] sm:$0xff]
  %v16 = vld [vmem:[%s0 + $0x10] sm:$0xff]
  %v17 = vld [vmem:[%s0 + $0x18] sm:$0xff]
  %v18 = vld [vmem:[%s0 + $0x20] sm:$0xff]
  %v19 = vld [vmem:[%s0 + $0x28] sm:$0xff]
  %v20 = vld [vmem:[%s0 + $0x30] sm:$0xff]
  %v21 = vld [vmem:[%s0 + $0x38] sm:$0xff]
  %v22 = vld [vmem:[%s0 + $0x40] sm:$0xff]
  %v23 = vld [vmem:[%s0 + $0x48] sm:$0xff]
  %v24 = vld [vmem:[%s0 + $0x50] sm:$0xff]
  %v25 = vld [vmem:[%s0 + $0x58] sm:$0xff]
  %v26 = vld [vmem:[%s1] sm:$0xff]
  %v27 = vld [vmem:[%s1 + $0x8] sm:$0xff]
  %v28 = vld [vmem:[%s1 + $0x10] sm:$0xff]
  %v29 = vld [vmem:[%s1 + $0x18] sm:$0xff]
  %v30 = vld [vmem:[%s1 + $0x20] sm:$0xff]
  %v31 = vld [vmem:[%s1 + $0x28] sm:$0xff]
  %v32 = vld [vmem:[%s1 + $0x30] sm:$0xff]
  %v33 = vld [vmem:[%s1 + $0x38] sm:$0xff]
  %v34 = vld [vmem:[%s1 + $0x40] sm:$0xff]
  %v35 = vld [vmem:[%s1 + $0x48] sm:$0xff]
  %v36 = vld [vmem:[%s1 + $0x50] sm:$0xff]
  %v37 = vld [vmem:[%s1 + $0x58] sm:$0xff]
  %v38 = vld [vmem:[%s1 + $0x60] sm:$0xff]
  %v39 = vld [vmem:[%s1 + $0x68] sm:$0xff]
  %v40 = vld [vmem:[%s1 + $0x70] sm:$0xff]
  %v41 = vld [vmem:[%s1 + $0x78] sm:$0xff]
  %v42 = vld [vmem:[%s1 + $0x80] sm:$0xff]
  %v43 = vld [vmem:[%s1 + $0x88] sm:$0xff]
  %v44 = vld [vmem:[%s1 + $0x90] sm:$0xff]
  %v45 = vld [vmem:[%s1 + $0x98] sm:$0xff]
  %v46 = vld [vmem:[%s1 + $0xa0] sm:$0xff]
  %v47 = vld [vmem:[%s1 + $0xa8] sm:$0xff]
  %v48 = vld [vmem:[%s1 + $0xb0] sm:$0xff]
  %v49 = vld [vmem:[%s1 + $0xb8] sm:$0xff]
  %v50 = vld [vmem:[%s1 + $0xc0] sm:$0xff]
  %v51 = vld [vmem:[%s1 + $0xc8] sm:$0xff]
  %v52 = vld [vmem:[%s1 + $0xd0] sm:$0xff]
  %v53 = vld [vmem:[%s1 + $0xd8] sm:$0xff]
  %v54 = vld [vmem:[%s1 + $0xe0] sm:$0xff]
  %v55 = vld [vmem:[%s1 + $0xe8] sm:$0xff]
  %v56 = vld [vmem:[%s1 + $0xf0] sm:$0xff]
  %v57 = vld [vmem:[%s1 + $0xf8] sm:$0xff]
  %v58 = vld [vmem:[%s1 + $0x100] sm:$0xff]
  %v59 = vld [vmem:[%s1 + $0x108] sm:$0xff]
  %v60 = vld [vmem:[%s1 + $0x110] sm:$0xff]
  %v61 = vld [vmem:[%s1 + $0x118] sm:$0xff]
  %v62 = vld [vmem:[%s1 + $0x120] sm:$0xff]
  %v63 = vld [vmem:[%s1 + $0x128] sm:$0xff]
  %v64 = vld [vmem:[%s1 + $0x130] sm:$0xff]
  %v65 = vld [vmem:[%s1 + $0x138] sm:$0xff]
  %v66 = vld [vmem:[%s1 + $0x140] sm:$0xff]
  %v67 = vld [vmem:[%s1 + $0x148] sm:$0xff]
  %v68 = vld [vmem:[%s1 + $0x150] sm:$0xff]
  %v69 = vld [vmem:[%s1 + $0x158] sm:$0xff]
  %v70 = vld [vmem:[%s1 + $0x160] sm:$0xff]
  %v71 = vld [vmem:[%s1 + $0x168] sm:$0xff]
  %v72 = vld [vmem:[%s1 + $0x170] sm:$0xff]
  %v73 = vld [vmem:[%s1 + $0x178] sm:$0xff]
  %v74 = vld [vmem:[%s1 + $0x180] sm:$0xff]
  %v75 = vld [vmem:[%s1 + $0x188] sm:$0xff]
  %v76 = vld [vmem:[%s1 + $0x190] sm:$0xff]
  %v77 = vld [vmem:[%s1 + $0x198] sm:$0xff]
  %v78 = vld [vmem:[%s1 + $0x1a0] sm:$0xff]
  %v79 = vld [vmem:[%s1 + $0x1a8] sm:$0xff]
  %v80 = vld [vmem:[%s1 + $0x1b0] sm:$0xff]
  %v81 = vld [vmem:[%s1 + $0x1b8] sm:$0xff]
  %v82 = vld [vmem:[%s1 + $0x1c0] sm:$0xff]
  %v83 = vld [vmem:[%s1 + $0x1c8] sm:$0xff]
  %v84 = vld [vmem:[%s1 + $0x1d0] sm:$0xff]
  %v85 = vld [vmem:[%s1 + $0x1d8] sm:$0xff]
  %v86 = vld [vmem:[%s1 + $0x1e0] sm:$0xff]
  %v87 = vld [vmem:[%s1 + $0x1e8] sm:$0xff]
  %v88 = vld [vmem:[%s1 + $0x1f0] sm:$0xff]
  %v89 = vld [vmem:[%s1 + $0x1f8] sm:$0xff]
  %v90 = vld [vmem:[%s1 + $0x200] sm:$0xff]
  %v91 = vld [vmem:[%s1 + $0x208] sm:$0xff]
  %v92 = vld [vmem:[%s1 + $0x210] sm:$0xff]
  %v93 = vld [vmem:[%s1 + $0x218] sm:$0xff]
  %v94 = vld [vmem:[%s1 + $0x220] sm:$0xff]
  %v95 = vld [vmem:[%s1 + $0x228] sm:$0xff]
  %v96 = vld [vmem:[%s1 + $0x230] sm:$0xff]
  %v97 = vld [vmem:[%s1 + $0x238] sm:$0xff]
  %v98 = vld [vmem:[%s1 + $0x240] sm:$0xff]
  %v99 = vld [vmem:[%s1 + $0x248] sm:$0xff]
  %v100 = vld [vmem:[%s1 + $0x250] sm:$0xff]
  %v101 = vld [vmem:[%s1 + $0x258] sm:$0xff]
  %v102 = vld [vmem:[%s1 + $0x260] sm:$0xff]
  %v103 = vld [vmem:[%s1 + $0x268] sm:$0xff]
  %v104 = vld [vmem:[%s1 + $0x270] sm:$0xff]
  %v105 = vld [vmem:[%s1 + $0x278] sm:$0xff]
  %v106 = vld [vmem:[%s1 + $0x280] sm:$0xff]
  %v107 = vld [vmem:[%s1 + $0x288] sm:$0xff]
  %v108 = vld [vmem:[%s1 + $0x290] sm:$0xff]
  %v109 = vld [vmem:[%s1 + $0x298] sm:$0xff]
  %v110 = vld [vmem:[%s1 + $0x2a0] sm:$0xff]
  %v111 = vld [vmem:[%s1 + $0x2a8] sm:$0xff]
  %v112 = vld [vmem:[%s1 + $0x2b0] sm:$0xff]
  %v113 = vld [vmem:[%s1 + $0x2b8] sm:$0xff]
  %v114 = vld [vmem:[%s1 + $0x2c0] sm:$0xff]
  %v115 = vld [vmem:[%s1 + $0x2c8] sm:$0xff]
  %v116 = vld [vmem:[%s1 + $0x2d0] sm:$0xff]
  %v117 = vld [vmem:[%s1 + $0x2d8] sm:$0xff]
  %v118 = vld [vmem:[%s1 + $0x2e0] sm:$0xff]
  %v119 = vld [vmem:[%s1 + $0x2e8] sm:$0xff]
  %v120 = vld [vmem:[%s1 + $0x2f0] sm:$0xff]
  %v121 = vld [vmem:[%s1 + $0x2f8] sm:$0xff]
  %v122 = vld [vmem:[%s2] sm:$0x3]
  %v124 = vperm.slane %v122, 0
  %v125 = vperm.slane %v122, 1
  %v140 = vunpack.c.l.b16 %v14
  %v141 = vunpack.c.h.b16 %v14
  %v142 = vunpack.c.l.b16 %v15
  %v143 = vunpack.c.h.b16 %v15
  %v144 = vunpack.c.l.b16 %v16
  %v145 = vunpack.c.h.b16 %v16
  %v146 = vunpack.c.l.b16 %v17
  %v147 = vunpack.c.h.b16 %v17
  %v148 = vunpack.c.l.b16 %v18
  %v149 = vunpack.c.h.b16 %v18
  %v150 = vunpack.c.l.b16 %v19
  %v151 = vunpack.c.h.b16 %v19
  %v152 = vunpack.c.l.b16 %v20
  %v153 = vunpack.c.h.b16 %v20
  %v154 = vunpack.c.l.b16 %v21
  %v155 = vunpack.c.h.b16 %v21
  %v156 = vunpack.c.l.b16 %v22
  %v157 = vunpack.c.h.b16 %v22
  %v158 = vunpack.c.l.b16 %v23
  %v159 = vunpack.c.h.b16 %v23
  %v160 = vunpack.c.l.b16 %v24
  %v161 = vunpack.c.h.b16 %v24
  %v162 = vunpack.c.l.b16 %v25
  %v163 = vunpack.c.h.b16 %v25
  %v164 = vpack.c.b16 %v146, %v140
  %v165 = vpack.c.b16 %v147, %v141
  %v166 = vpack.c.b16 %v148, %v142
  %v167 = vpack.c.b16 %v149, %v143
  %v168 = vpack.c.b16 %v150, %v144
  %v169 = vpack.c.b16 %v151, %v145
  %v170 = vpack.c.b16 %v158, %v152
  %v171 = vpack.c.b16 %v159, %v153
  %v172 = vpack.c.b16 %v160, %v154
  %v173 = vpack.c.b16 %v161, %v155
  %v174 = vpack.c.b16 %v162, %v156
  %v175 = vpack.c.b16 %v163, %v157
  %v284 = vunpack.c.l.b16 %v26
  %v285 = vunpack.c.h.b16 %v26
  %v286 = vunpack.c.l.b16 %v27
  %v287 = vunpack.c.h.b16 %v27
  %v288 = vunpack.c.l.b16 %v28
  %v289 = vunpack.c.h.b16 %v28
  %v290 = vunpack.c.l.b16 %v29
  %v291 = vunpack.c.h.b16 %v29
  %v292 = vunpack.c.l.b16 %v30
  %v293 = vunpack.c.h.b16 %v30
  %v294 = vunpack.c.l.b16 %v31
  %v295 = vunpack.c.h.b16 %v31
  %v296 = vunpack.c.l.b16 %v32
  %v297 = vunpack.c.h.b16 %v32
  %v298 = vunpack.c.l.b16 %v33
  %v299 = vunpack.c.h.b16 %v33
  %v300 = vunpack.c.l.b16 %v34
  %v301 = vunpack.c.h.b16 %v34
  %v302 = vunpack.c.l.b16 %v35
  %v303 = vunpack.c.h.b16 %v35
  %v304 = vunpack.c.l.b16 %v36
  %v305 = vunpack.c.h.b16 %v36
  %v306 = vunpack.c.l.b16 %v37
  %v307 = vunpack.c.h.b16 %v37
  %v308 = vunpack.c.l.b16 %v38
  %v309 = vunpack.c.h.b16 %v38
  %v310 = vunpack.c.l.b16 %v39
  %v311 = vunpack.c.h.b16 %v39
  %v312 = vunpack.c.l.b16 %v40
  %v313 = vunpack.c.h.b16 %v40
  %v314 = vunpack.c.l.b16 %v41
  %v315 = vunpack.c.h.b16 %v41
  %v316 = vunpack.c.l.b16 %v42
  %v317 = vunpack.c.h.b16 %v42
  %v318 = vunpack.c.l.b16 %v43
  %v319 = vunpack.c.h.b16 %v43
  %v320 = vunpack.c.l.b16 %v44
  %v321 = vunpack.c.h.b16 %v44
  %v322 = vunpack.c.l.b16 %v45
  %v323 = vunpack.c.h.b16 %v45
  %v324 = vunpack.c.l.b16 %v46
  %v325 = vunpack.c.h.b16 %v46
  %v326 = vunpack.c.l.b16 %v47
  %v327 = vunpack.c.h.b16 %v47
  %v328 = vunpack.c.l.b16 %v48
  %v329 = vunpack.c.h.b16 %v48
  %v330 = vunpack.c.l.b16 %v49
  %v331 = vunpack.c.h.b16 %v49
  %v332 = vunpack.c.l.b16 %v50
  %v333 = vunpack.c.h.b16 %v50
  %v334 = vunpack.c.l.b16 %v51
  %v335 = vunpack.c.h.b16 %v51
  %v336 = vunpack.c.l.b16 %v52
  %v337 = vunpack.c.h.b16 %v52
  %v338 = vunpack.c.l.b16 %v53
  %v339 = vunpack.c.h.b16 %v53
  %v340 = vunpack.c.l.b16 %v54
  %v341 = vunpack.c.h.b16 %v54
  %v342 = vunpack.c.l.b16 %v55
  %v343 = vunpack.c.h.b16 %v55
  %v344 = vunpack.c.l.b16 %v56
  %v345 = vunpack.c.h.b16 %v56
  %v346 = vunpack.c.l.b16 %v57
  %v347 = vunpack.c.h.b16 %v57
  %v348 = vunpack.c.l.b16 %v58
  %v349 = vunpack.c.h.b16 %v58
  %v350 = vunpack.c.l.b16 %v59
  %v351 = vunpack.c.h.b16 %v59
  %v352 = vunpack.c.l.b16 %v60
  %v353 = vunpack.c.h.b16 %v60
  %v354 = vunpack.c.l.b16 %v61
  %v355 = vunpack.c.h.b16 %v61
  %v356 = vunpack.c.l.b16 %v62
  %v357 = vunpack.c.h.b16 %v62
  %v358 = vunpack.c.l.b16 %v63
  %v359 = vunpack.c.h.b16 %v63
  %v360 = vunpack.c.l.b16 %v64
  %v361 = vunpack.c.h.b16 %v64
  %v362 = vunpack.c.l.b16 %v65
  %v363 = vunpack.c.h.b16 %v65
  %v364 = vunpack.c.l.b16 %v66
  %v365 = vunpack.c.h.b16 %v66
  %v366 = vunpack.c.l.b16 %v67
  %v367 = vunpack.c.h.b16 %v67
  %v368 = vunpack.c.l.b16 %v68
  %v369 = vunpack.c.h.b16 %v68
  %v370 = vunpack.c.l.b16 %v69
  %v371 = vunpack.c.h.b16 %v69
  %v372 = vunpack.c.l.b16 %v70
  %v373 = vunpack.c.h.b16 %v70
  %v374 = vunpack.c.l.b16 %v71
  %v375 = vunpack.c.h.b16 %v71
  %v376 = vunpack.c.l.b16 %v72
  %v377 = vunpack.c.h.b16 %v72
  %v378 = vunpack.c.l.b16 %v73
  %v379 = vunpack.c.h.b16 %v73
  %v380 = vunpack.c.l.b16 %v74
  %v381 = vunpack.c.h.b16 %v74
  %v382 = vunpack.c.l.b16 %v75
  %v383 = vunpack.c.h.b16 %v75
  %v384 = vunpack.c.l.b16 %v76
  %v385 = vunpack.c.h.b16 %v76
  %v386 = vunpack.c.l.b16 %v77
  %v387 = vunpack.c.h.b16 %v77
  %v388 = vunpack.c.l.b16 %v78
  %v389 = vunpack.c.h.b16 %v78
  %v390 = vunpack.c.l.b16 %v79
  %v391 = vunpack.c.h.b16 %v79
  %v392 = vunpack.c.l.b16 %v80
  %v393 = vunpack.c.h.b16 %v80
  %v394 = vunpack.c.l.b16 %v81
  %v395 = vunpack.c.h.b16 %v81
  %v396 = vunpack.c.l.b16 %v82
  %v397 = vunpack.c.h.b16 %v82
  %v398 = vunpack.c.l.b16 %v83
  %v399 = vunpack.c.h.b16 %v83
  %v400 = vunpack.c.l.b16 %v84
  %v401 = vunpack.c.h.b16 %v84
  %v402 = vunpack.c.l.b16 %v85
  %v403 = vunpack.c.h.b16 %v85
  %v404 = vunpack.c.l.b16 %v86
  %v405 = vunpack.c.h.b16 %v86
  %v406 = vunpack.c.l.b16 %v87
  %v407 = vunpack.c.h.b16 %v87
  %v408 = vunpack.c.l.b16 %v88
  %v409 = vunpack.c.h.b16 %v88
  %v410 = vunpack.c.l.b16 %v89
  %v411 = vunpack.c.h.b16 %v89
  %v412 = vunpack.c.l.b16 %v90
  %v413 = vunpack.c.h.b16 %v90
  %v414 = vunpack.c.l.b16 %v91
  %v415 = vunpack.c.h.b16 %v91
  %v416 = vunpack.c.l.b16 %v92
  %v417 = vunpack.c.h.b16 %v92
  %v418 = vunpack.c.l.b16 %v93
  %v419 = vunpack.c.h.b16 %v93
  %v420 = vunpack.c.l.b16 %v94
  %v421 = vunpack.c.h.b16 %v94
  %v422 = vunpack.c.l.b16 %v95
  %v423 = vunpack.c.h.b16 %v95
  %v424 = vunpack.c.l.b16 %v96
  %v425 = vunpack.c.h.b16 %v96
  %v426 = vunpack.c.l.b16 %v97
  %v427 = vunpack.c.h.b16 %v97
  %v428 = vunpack.c.l.b16 %v98
  %v429 = vunpack.c.h.b16 %v98
  %v430 = vunpack.c.l.b16 %v99
  %v431 = vunpack.c.h.b16 %v99
  %v432 = vunpack.c.l.b16 %v100
  %v433 = vunpack.c.h.b16 %v100
  %v434 = vunpack.c.l.b16 %v101
  %v435 = vunpack.c.h.b16 %v101
  %v436 = vunpack.c.l.b16 %v102
  %v437 = vunpack.c.h.b16 %v102
  %v438 = vunpack.c.l.b16 %v103
  %v439 = vunpack.c.h.b16 %v103
  %v440 = vunpack.c.l.b16 %v104
  %v441 = vunpack.c.h.b16 %v104
  %v442 = vunpack.c.l.b16 %v105
  %v443 = vunpack.c.h.b16 %v105
  %v444 = vunpack.c.l.b16 %v106
  %v445 = vunpack.c.h.b16 %v106
  %v446 = vunpack.c.l.b16 %v107
  %v447 = vunpack.c.h.b16 %v107
  %v448 = vunpack.c.l.b16 %v108
  %v449 = vunpack.c.h.b16 %v108
  %v450 = vunpack.c.l.b16 %v109
  %v451 = vunpack.c.h.b16 %v109
  %v452 = vunpack.c.l.b16 %v110
  %v453 = vunpack.c.h.b16 %v110
  %v454 = vunpack.c.l.b16 %v111
  %v455 = vunpack.c.h.b16 %v111
  %v456 = vunpack.c.l.b16 %v112
  %v457 = vunpack.c.h.b16 %v112
  %v458 = vunpack.c.l.b16 %v113
  %v459 = vunpack.c.h.b16 %v113
  %v460 = vunpack.c.l.b16 %v114
  %v461 = vunpack.c.h.b16 %v114
  %v462 = vunpack.c.l.b16 %v115
  %v463 = vunpack.c.h.b16 %v115
  %v464 = vunpack.c.l.b16 %v116
  %v465 = vunpack.c.h.b16 %v116
  %v466 = vunpack.c.l.b16 %v117
  %v467 = vunpack.c.h.b16 %v117
  %v468 = vunpack.c.l.b16 %v118
  %v469 = vunpack.c.h.b16 %v118
  %v470 = vunpack.c.l.b16 %v119
  %v471 = vunpack.c.h.b16 %v119
  %v472 = vunpack.c.l.b16 %v120
  %v473 = vunpack.c.h.b16 %v120
  %v474 = vunpack.c.l.b16 %v121
  %v475 = vunpack.c.h.b16 %v121
  %v476 = vpack.c.b16 %v286, %v284
  %v477 = vpack.c.b16 %v287, %v285
  %v478 = vpack.c.b16 %v290, %v288
  %v479 = vpack.c.b16 %v291, %v289
  %v480 = vpack.c.b16 %v294, %v292
  %v481 = vpack.c.b16 %v295, %v293
  %v482 = vpack.c.b16 %v298, %v296
  %v483 = vpack.c.b16 %v299, %v297
  %v484 = vpack.c.b16 %v302, %v300
  %v485 = vpack.c.b16 %v303, %v301
  %v486 = vpack.c.b16 %v306, %v304
  %v487 = vpack.c.b16 %v307, %v305
  %v488 = vpack.c.b16 %v310, %v308
  %v489 = vpack.c.b16 %v311, %v309
  %v490 = vpack.c.b16 %v314, %v312
  %v491 = vpack.c.b16 %v315, %v313
  %v492 = vpack.c.b16 %v318, %v316
  %v493 = vpack.c.b16 %v319, %v317
  %v494 = vpack.c.b16 %v322, %v320
  %v495 = vpack.c.b16 %v323, %v321
  %v496 = vpack.c.b16 %v326, %v324
  %v497 = vpack.c.b16 %v327, %v325
  %v498 = vpack.c.b16 %v330, %v328
  %v499 = vpack.c.b16 %v331, %v329
  %v500 = vpack.c.b16 %v334, %v332
  %v501 = vpack.c.b16 %v335, %v333
  %v502 = vpack.c.b16 %v338, %v336
  %v503 = vpack.c.b16 %v339, %v337
  %v504 = vpack.c.b16 %v342, %v340
  %v505 = vpack.c.b16 %v343, %v341
  %v506 = vpack.c.b16 %v346, %v344
  %v507 = vpack.c.b16 %v347, %v345
  %v508 = vpack.c.b16 %v350, %v348
  %v509 = vpack.c.b16 %v351, %v349
  %v510 = vpack.c.b16 %v354, %v352
  %v511 = vpack.c.b16 %v355, %v353
  %v512 = vpack.c.b16 %v358, %v356
  %v513 = vpack.c.b16 %v359, %v357
  %v514 = vpack.c.b16 %v362, %v360
  %v515 = vpack.c.b16 %v363, %v361
  %v516 = vpack.c.b16 %v366, %v364
  %v517 = vpack.c.b16 %v367, %v365
  %v518 = vpack.c.b16 %v370, %v368
  %v519 = vpack.c.b16 %v371, %v369
  %v520 = vpack.c.b16 %v374, %v372
  %v521 = vpack.c.b16 %v375, %v373
  %v522 = vpack.c.b16 %v378, %v376
  %v523 = vpack.c.b16 %v379, %v377
  %v524 = vpack.c.b16 %v382, %v380
  %v525 = vpack.c.b16 %v383, %v381
  %v526 = vpack.c.b16 %v386, %v384
  %v527 = vpack.c.b16 %v387, %v385
  %v528 = vpack.c.b16 %v390, %v388
  %v529 = vpack.c.b16 %v391, %v389
  %v530 = vpack.c.b16 %v394, %v392
  %v531 = vpack.c.b16 %v395, %v393
  %v532 = vpack.c.b16 %v398, %v396
  %v533 = vpack.c.b16 %v399, %v397
  %v534 = vpack.c.b16 %v402, %v400
  %v535 = vpack.c.b16 %v403, %v401
  %v536 = vpack.c.b16 %v406, %v404
  %v537 = vpack.c.b16 %v407, %v405
  %v538 = vpack.c.b16 %v410, %v408
  %v539 = vpack.c.b16 %v411, %v409
  %v540 = vpack.c.b16 %v414, %v412
  %v541 = vpack.c.b16 %v415, %v413
  %v542 = vpack.c.b16 %v418, %v416
  %v543 = vpack.c.b16 %v419, %v417
  %v544 = vpack.c.b16 %v422, %v420
  %v545 = vpack.c.b16 %v423, %v421
  %v546 = vpack.c.b16 %v426, %v424
  %v547 = vpack.c.b16 %v427, %v425
  %v548 = vpack.c.b16 %v430, %v428
  %v549 = vpack.c.b16 %v431, %v429
  %v550 = vpack.c.b16 %v434, %v432
  %v551 = vpack.c.b16 %v435, %v433
  %v552 = vpack.c.b16 %v438, %v436
  %v553 = vpack.c.b16 %v439, %v437
  %v554 = vpack.c.b16 %v442, %v440
  %v555 = vpack.c.b16 %v443, %v441
  %v556 = vpack.c.b16 %v446, %v444
  %v557 = vpack.c.b16 %v447, %v445
  %v558 = vpack.c.b16 %v450, %v448
  %v559 = vpack.c.b16 %v451, %v449
  %v560 = vpack.c.b16 %v454, %v452
  %v561 = vpack.c.b16 %v455, %v453
  %v562 = vpack.c.b16 %v458, %v456
  %v563 = vpack.c.b16 %v459, %v457
  %v564 = vpack.c.b16 %v462, %v460
  %v565 = vpack.c.b16 %v463, %v461
  %v566 = vpack.c.b16 %v466, %v464
  %v567 = vpack.c.b16 %v467, %v465
  %v568 = vpack.c.b16 %v470, %v468
  %v569 = vpack.c.b16 %v471, %v469
  %v570 = vpack.c.b16 %v474, %v472
  %v571 = vpack.c.b16 %v475, %v473
  %668 = vmatpush.bf16.msra.mxu0 %v490
  %669 = vmatpush.bf16.msra.mxu0 %v488
  %670 = vmatpush.bf16.msra.mxu0 %v486
  %671 = vmatpush.bf16.msra.mxu0 %v484
  %672 = vmatpush.bf16.msra.mxu0 %v482
  %673 = vmatpush.bf16.msra.mxu0 %v480
  %674 = vmatpush.bf16.msra.mxu0 %v478
  %675 = vmatpush.bf16.msra.mxu0 %v476
  %676 = vmatmul.bf16.gmra.mxu0 %v164
  %v677 = vpop.f32.mrf.mxu0
  %v678 = vadd.f32 %v124, %v677
  %v679 = vpop.f32.mrf.mxu0
  %v680 = vadd.f32 %v124, %v679
  %681 = vmatmul.bf16.gmra.mxu0 %v170
  %v682 = vpop.f32.mrf.mxu0
  %v683 = vadd.f32 %v124, %v682
  %v684 = vpop.f32.mrf.mxu0
  %v685 = vadd.f32 %v124, %v684
  %686 = vdwg.mxu0
  %687 = vmatpush.bf16.msra.mxu0 %v506
  %688 = vmatpush.bf16.msra.mxu0 %v504
  %689 = vmatpush.bf16.msra.mxu0 %v502
  %690 = vmatpush.bf16.msra.mxu0 %v500
  %691 = vmatpush.bf16.msra.mxu0 %v498
  %692 = vmatpush.bf16.msra.mxu0 %v496
  %693 = vmatpush.bf16.msra.mxu0 %v494
  %694 = vmatpush.bf16.msra.mxu0 %v492
  %695 = vmatmul.bf16.gmra.mxu0 %v165
  %v696 = vpop.f32.mrf.mxu0
  %v697 = vadd.f32 %v678, %v696
  %v698 = vpop.f32.mrf.mxu0
  %v699 = vadd.f32 %v680, %v698
  %700 = vmatmul.bf16.gmra.mxu0 %v171
  %v701 = vpop.f32.mrf.mxu0
  %v702 = vadd.f32 %v683, %v701
  %v703 = vpop.f32.mrf.mxu0
  %v704 = vadd.f32 %v685, %v703
  %705 = vdwg.mxu0
  %706 = vmatpush.bf16.msra.mxu0 %v522
  %707 = vmatpush.bf16.msra.mxu0 %v520
  %708 = vmatpush.bf16.msra.mxu0 %v518
  %709 = vmatpush.bf16.msra.mxu0 %v516
  %710 = vmatpush.bf16.msra.mxu0 %v514
  %711 = vmatpush.bf16.msra.mxu0 %v512
  %712 = vmatpush.bf16.msra.mxu0 %v510
  %713 = vmatpush.bf16.msra.mxu0 %v508
  %714 = vmatmul.bf16.gmra.mxu0 %v166
  %v715 = vpop.f32.mrf.mxu0
  %v716 = vadd.f32 %v697, %v715
  %v717 = vpop.f32.mrf.mxu0
  %v718 = vadd.f32 %v699, %v717
  %719 = vmatmul.bf16.gmra.mxu0 %v172
  %v720 = vpop.f32.mrf.mxu0
  %v721 = vadd.f32 %v702, %v720
  %v722 = vpop.f32.mrf.mxu0
  %v723 = vadd.f32 %v704, %v722
  %724 = vdwg.mxu0
  %725 = vmatpush.bf16.msra.mxu0 %v538
  %726 = vmatpush.bf16.msra.mxu0 %v536
  %727 = vmatpush.bf16.msra.mxu0 %v534
  %728 = vmatpush.bf16.msra.mxu0 %v532
  %729 = vmatpush.bf16.msra.mxu0 %v530
  %730 = vmatpush.bf16.msra.mxu0 %v528
  %731 = vmatpush.bf16.msra.mxu0 %v526
  %732 = vmatpush.bf16.msra.mxu0 %v524
  %733 = vmatmul.bf16.gmra.mxu0 %v167
  %v734 = vpop.f32.mrf.mxu0
  %v735 = vadd.f32 %v716, %v734
  %v736 = vpop.f32.mrf.mxu0
  %v737 = vadd.f32 %v718, %v736
  %738 = vmatmul.bf16.gmra.mxu0 %v173
  %v739 = vpop.f32.mrf.mxu0
  %v740 = vadd.f32 %v721, %v739
  %v741 = vpop.f32.mrf.mxu0
  %v742 = vadd.f32 %v723, %v741
  %743 = vdwg.mxu0
  %744 = vmatpush.bf16.msra.mxu0 %v554
  %745 = vmatpush.bf16.msra.mxu0 %v552
  %746 = vmatpush.bf16.msra.mxu0 %v550
  %747 = vmatpush.bf16.msra.mxu0 %v548
  %748 = vmatpush.bf16.msra.mxu0 %v546
  %749 = vmatpush.bf16.msra.mxu0 %v544
  %750 = vmatpush.bf16.msra.mxu0 %v542
  %751 = vmatpush.bf16.msra.mxu0 %v540
  %752 = vmatmul.bf16.gmra.mxu0 %v168
  %v753 = vpop.f32.mrf.mxu0
  %v754 = vadd.f32 %v735, %v753
  %v755 = vpop.f32.mrf.mxu0
  %v756 = vadd.f32 %v737, %v755
  %757 = vmatmul.bf16.gmra.mxu0 %v174
  %v758 = vpop.f32.mrf.mxu0
  %v759 = vadd.f32 %v740, %v758
  %v760 = vpop.f32.mrf.mxu0
  %v761 = vadd.f32 %v742, %v760
  %762 = vdwg.mxu0
  %763 = vmatpush.bf16.msra.mxu0 %v570
  %764 = vmatpush.bf16.msra.mxu0 %v568
  %765 = vmatpush.bf16.msra.mxu0 %v566
  %766 = vmatpush.bf16.msra.mxu0 %v564
  %767 = vmatpush.bf16.msra.mxu0 %v562
  %768 = vmatpush.bf16.msra.mxu0 %v560
  %769 = vmatpush.bf16.msra.mxu0 %v558
  %770 = vmatpush.bf16.msra.mxu0 %v556
  %771 = vmatmul.bf16.gmra.mxu0 %v169
  %v772 = vpop.f32.mrf.mxu0
  %v773 = vadd.f32 %v754, %v772
  %v774 = vpop.f32.mrf.mxu0
  %v775 = vadd.f32 %v756, %v774
  %776 = vmatmul.bf16.gmra.mxu0 %v175
  %v777 = vpop.f32.mrf.mxu0
  %v778 = vadd.f32 %v759, %v777
  %v779 = vpop.f32.mrf.mxu0
  %v780 = vadd.f32 %v761, %v779
  %781 = vdwg.mxu0
  %782 = vmatpush.bf16.msra.mxu0 %v491
  %783 = vmatpush.bf16.msra.mxu0 %v489
  %784 = vmatpush.bf16.msra.mxu0 %v487
  %785 = vmatpush.bf16.msra.mxu0 %v485
  %786 = vmatpush.bf16.msra.mxu0 %v483
  %787 = vmatpush.bf16.msra.mxu0 %v481
  %788 = vmatpush.bf16.msra.mxu0 %v479
  %789 = vmatpush.bf16.msra.mxu0 %v477
  %790 = vmatmul.bf16.gmra.mxu0 %v164
  %v791 = vpop.f32.mrf.mxu0
  %v792 = vadd.f32 %v125, %v791
  %v793 = vpop.f32.mrf.mxu0
  %v794 = vadd.f32 %v125, %v793
  %795 = vmatmul.bf16.gmra.mxu0 %v170
  %v796 = vpop.f32.mrf.mxu0
  %v797 = vadd.f32 %v125, %v796
  %v798 = vpop.f32.mrf.mxu0
  %v799 = vadd.f32 %v125, %v798
  %800 = vdwg.mxu0
  %801 = vmatpush.bf16.msra.mxu0 %v507
  %802 = vmatpush.bf16.msra.mxu0 %v505
  %803 = vmatpush.bf16.msra.mxu0 %v503
  %804 = vmatpush.bf16.msra.mxu0 %v501
  %805 = vmatpush.bf16.msra.mxu0 %v499
  %806 = vmatpush.bf16.msra.mxu0 %v497
  %807 = vmatpush.bf16.msra.mxu0 %v495
  %808 = vmatpush.bf16.msra.mxu0 %v493
  %809 = vmatmul.bf16.gmra.mxu0 %v165
  %v810 = vpop.f32.mrf.mxu0
  %v811 = vadd.f32 %v792, %v810
  %v812 = vpop.f32.mrf.mxu0
  %v813 = vadd.f32 %v794, %v812
  %814 = vmatmul.bf16.gmra.mxu0 %v171
  %v815 = vpop.f32.mrf.mxu0
  %v816 = vadd.f32 %v797, %v815
  %v817 = vpop.f32.mrf.mxu0
  %v818 = vadd.f32 %v799, %v817
  %819 = vdwg.mxu0
  %820 = vmatpush.bf16.msra.mxu0 %v523
  %821 = vmatpush.bf16.msra.mxu0 %v521
  %822 = vmatpush.bf16.msra.mxu0 %v519
  %823 = vmatpush.bf16.msra.mxu0 %v517
  %824 = vmatpush.bf16.msra.mxu0 %v515
  %825 = vmatpush.bf16.msra.mxu0 %v513
  %826 = vmatpush.bf16.msra.mxu0 %v511
  %827 = vmatpush.bf16.msra.mxu0 %v509
  %828 = vmatmul.bf16.gmra.mxu0 %v166
  %v829 = vpop.f32.mrf.mxu0
  %v830 = vadd.f32 %v811, %v829
  %v831 = vpop.f32.mrf.mxu0
  %v832 = vadd.f32 %v813, %v831
  %833 = vmatmul.bf16.gmra.mxu0 %v172
  %v834 = vpop.f32.mrf.mxu0
  %v835 = vadd.f32 %v816, %v834
  %v836 = vpop.f32.mrf.mxu0
  %v837 = vadd.f32 %v818, %v836
  %838 = vdwg.mxu0
  %839 = vmatpush.bf16.msra.mxu0 %v539
  %840 = vmatpush.bf16.msra.mxu0 %v537
  %841 = vmatpush.bf16.msra.mxu0 %v535
  %842 = vmatpush.bf16.msra.mxu0 %v533
  %843 = vmatpush.bf16.msra.mxu0 %v531
  %844 = vmatpush.bf16.msra.mxu0 %v529
  %845 = vmatpush.bf16.msra.mxu0 %v527
  %846 = vmatpush.bf16.msra.mxu0 %v525
  %847 = vmatmul.bf16.gmra.mxu0 %v167
  %v848 = vpop.f32.mrf.mxu0
  %v849 = vadd.f32 %v830, %v848
  %v850 = vpop.f32.mrf.mxu0
  %v851 = vadd.f32 %v832, %v850
  %852 = vmatmul.bf16.gmra.mxu0 %v173
  %v853 = vpop.f32.mrf.mxu0
  %v854 = vadd.f32 %v835, %v853
  %v855 = vpop.f32.mrf.mxu0
  %v856 = vadd.f32 %v837, %v855
  %857 = vdwg.mxu0
  %858 = vmatpush.bf16.msra.mxu0 %v555
  %859 = vmatpush.bf16.msra.mxu0 %v553
  %860 = vmatpush.bf16.msra.mxu0 %v551
  %861 = vmatpush.bf16.msra.mxu0 %v549
  %862 = vmatpush.bf16.msra.mxu0 %v547
  %863 = vmatpush.bf16.msra.mxu0 %v545
  %864 = vmatpush.bf16.msra.mxu0 %v543
  %865 = vmatpush.bf16.msra.mxu0 %v541
  %866 = vmatmul.bf16.gmra.mxu0 %v168
  %v867 = vpop.f32.mrf.mxu0
  %v868 = vadd.f32 %v849, %v867
  %v869 = vpop.f32.mrf.mxu0
  %v870 = vadd.f32 %v851, %v869
  %871 = vmatmul.bf16.gmra.mxu0 %v174
  %v872 = vpop.f32.mrf.mxu0
  %v873 = vadd.f32 %v854, %v872
  %v874 = vpop.f32.mrf.mxu0
  %v875 = vadd.f32 %v856, %v874
  %876 = vdwg.mxu0
  %877 = vmatpush.bf16.msra.mxu0 %v571
  %878 = vmatpush.bf16.msra.mxu0 %v569
  %879 = vmatpush.bf16.msra.mxu0 %v567
  %880 = vmatpush.bf16.msra.mxu0 %v565
  %881 = vmatpush.bf16.msra.mxu0 %v563
  %882 = vmatpush.bf16.msra.mxu0 %v561
  %883 = vmatpush.bf16.msra.mxu0 %v559
  %884 = vmatpush.bf16.msra.mxu0 %v557
  %885 = vmatmul.bf16.gmra.mxu0 %v169
  %v886 = vpop.f32.mrf.mxu0
  %v887 = vadd.f32 %v868, %v886
  %v888 = vpop.f32.mrf.mxu0
  %v889 = vadd.f32 %v870, %v888
  %890 = vmatmul.bf16.gmra.mxu0 %v175
  %v891 = vpop.f32.mrf.mxu0
  %v892 = vadd.f32 %v873, %v891
  %v893 = vpop.f32.mrf.mxu0
  %v894 = vadd.f32 %v875, %v893
  %895 = vdwg.mxu0
  %v896 = vmax.f32 %v773, 0.0
  %v897 = vmax.f32 %v887, 0.0
  %v898 = vmax.f32 %v775, 0.0
  %v899 = vmax.f32 %v889, 0.0
  %v900 = vmax.f32 %v778, 0.0
  %v901 = vmax.f32 %v892, 0.0
  %v902 = vmax.f32 %v780, 0.0
  %v903 = vmax.f32 %v894, 0.0
  %v904 = vpack.c.bf16 %v897, %v896
  %v905 = vpack.c.bf16 %v899, %v898
  %v906 = vpack.c.bf16 %v901, %v900
  %v907 = vpack.c.bf16 %v903, %v902
  %908 = vst [vmem:[%s3] sm:$0xff] %v904
  %909 = vst [vmem:[%s3 + $0x8] sm:$0xff] %v905
  %910 = vst [vmem:[%s3 + $0x10] sm:$0xff] %v906
  %911 = vst [vmem:[%s3 + $0x18] sm:$0xff] %v907
  // Predicated region
  $region14: #{tablenet_forward.3} parent=0 // pred_check
    _
  $region15: #{tablenet_forward.3} parent=0 // pred_check_branch
    %913 = sbr.rel (0) target = $region17
  $region16: #{tablenet_forward.3} parent=0 // pred_region
    _
  $region17: #{tablenet_forward.3} parent=0 // pred_fallthru
    _
  // Predicated region
  $region18: #{tablenet_forward.3} parent=0 // pred_check
    _
  $region19: #{tablenet_forward.3} parent=0 // pred_check_branch
    %915 = sbr.rel (0) target = $region21
  $region20: #{tablenet_forward.3} parent=0 // pred_region
    _
  $region21: #{tablenet_forward.3} parent=0 // pred_fallthru
    _

// kernel: tablenet_forward.5
$region0: #{tablenet_forward.5}
  #allocation0 [shape = 'u32[]', space=smem, size = 0x4, offset = 0x4, fixed_abs, tag = 'smem constant byte address 0x4 - core index']
  #allocation1 [shape = 'u32[72,128]{1,0:T(1,128)}', space=vmem, size = 0x9000, scoped, tag = 'internal scratch']
  %s0 = inlined_call_operand.vmem [shape: bf16[32,256], index: 0, kind: input, shape index: {}]
  %s1 = inlined_call_operand.vmem [shape: bf16[32,256], index: 1, kind: input, shape index: {}]
  %s2 = inlined_call_operand.vmem [shape: bf16[256,256], index: 2, kind: input, shape index: {}]
  %s3 = inlined_call_operand.vmem [shape: bf16[256,256], index: 3, kind: input, shape index: {}]
  %s4 = inlined_call_operand.vmem [shape: f32[1,256], index: 4, kind: input, shape index: {}]
  %s5 = inlined_call_operand.vmem [shape: bf16[32,256], index: 5, kind: output, shape index: {}]
  %s6 = sld [smem:[#allocation0]]
  $region30: #{tablenet_forward.5} parent=0
    _
  %s8 = ssub.s32 1, %s6
  %s9 = scalar_select 0, %s8, %s6
  // Predicated region
  $region2: #{tablenet_forward.5} parent=0 // pred_check
    _
  $region3: #{tablenet_forward.5} parent=0 // pred_check_branch
    %11 = sbr.rel (0) target = $region5
  $region4: #{tablenet_forward.5} parent=0 // pred_region
    _
  $region5: #{tablenet_forward.5} parent=0 // pred_fallthru
    _
  // Predicated region
  $region6: #{tablenet_forward.5} parent=0 // pred_check
    _
  $region7: #{tablenet_forward.5} parent=0 // pred_check_branch
    %13 = sbr.rel (0) target = $region9
  $region8: #{tablenet_forward.5} parent=0 // pred_region
    _
  $region9: #{tablenet_forward.5} parent=0 // pred_fallthru
    _
  // Predicated region
  $region10: #{tablenet_forward.5} parent=0 // pred_check
    _
  $region11: #{tablenet_forward.5} parent=0 // pred_check_branch
    %15 = sbr.rel (0) target = $region13
  $region12: #{tablenet_forward.5} parent=0 // pred_region
    _
  $region13: #{tablenet_forward.5} parent=0 // pred_fallthru
    _
  // Predicated region
  $region14: #{tablenet_forward.5} parent=0 // pred_check
    _
  $region15: #{tablenet_forward.5} parent=0 // pred_check_branch
    %17 = sbr.rel (0) target = $region17
  $region16: #{tablenet_forward.5} parent=0 // pred_region
    _
  $region17: #{tablenet_forward.5} parent=0 // pred_fallthru
    _
  // Predicated region
  $region18: #{tablenet_forward.5} parent=0 // pred_check
    _
  $region19: #{tablenet_forward.5} parent=0 // pred_check_branch
    %19 = sbr.rel (0) target = $region21
  $region20: #{tablenet_forward.5} parent=0 // pred_region
    _
  $region21: #{tablenet_forward.5} parent=0 // pred_fallthru
    _
  %v20 = vld [vmem:[%s0] sm:$0xff]
  %v21 = vld [vmem:[%s0 + $0x8] sm:$0xff]
  %v22 = vld [vmem:[%s0 + $0x10] sm:$0xff]
  %v23 = vld [vmem:[%s0 + $0x18] sm:$0xff]
  %v24 = vld [vmem:[%s2] sm:$0xff]
  %v25 = vld [vmem:[%s2 + $0x8] sm:$0xff]
  %v26 = vld [vmem:[%s2 + $0x10] sm:$0xff]
  %v27 = vld [vmem:[%s2 + $0x18] sm:$0xff]
  %v28 = vld [vmem:[%s2 + $0x20] sm:$0xff]
  %v29 = vld [vmem:[%s2 + $0x28] sm:$0xff]
  %v30 = vld [vmem:[%s2 + $0x30] sm:$0xff]
  %v31 = vld [vmem:[%s2 + $0x38] sm:$0xff]
  %v32 = vld [vmem:[%s2 + $0x40] sm:$0xff]
  %v33 = vld [vmem:[%s2 + $0x48] sm:$0xff]
  %v34 = vld [vmem:[%s2 + $0x50] sm:$0xff]
  %v35 = vld [vmem:[%s2 + $0x58] sm:$0xff]
  %v36 = vld [vmem:[%s2 + $0x60] sm:$0xff]
  %v37 = vld [vmem:[%s2 + $0x68] sm:$0xff]
  %v38 = vld [vmem:[%s2 + $0x70] sm:$0xff]
  %v39 = vld [vmem:[%s2 + $0x78] sm:$0xff]
  %v40 = vld [vmem:[%s2 + $0x80] sm:$0xff]
  %v41 = vld [vmem:[%s2 + $0x88] sm:$0xff]
  %v42 = vld [vmem:[%s2 + $0x90] sm:$0xff]
  %v43 = vld [vmem:[%s2 + $0x98] sm:$0xff]
  %v44 = vld [vmem:[%s2 + $0xa0] sm:$0xff]
  %v45 = vld [vmem:[%s2 + $0xa8] sm:$0xff]
  %v46 = vld [vmem:[%s2 + $0xb0] sm:$0xff]
  %v47 = vld [vmem:[%s2 + $0xb8] sm:$0xff]
  %v48 = vld [vmem:[%s2 + $0xc0] sm:$0xff]
  %v49 = vld [vmem:[%s2 + $0xc8] sm:$0xff]
  %v50 = vld [vmem:[%s2 + $0xd0] sm:$0xff]
  %v51 = vld [vmem:[%s2 + $0xd8] sm:$0xff]
  %v52 = vld [vmem:[%s2 + $0xe0] sm:$0xff]
  %v53 = vld [vmem:[%s2 + $0xe8] sm:$0xff]
  %v54 = vld [vmem:[%s2 + $0xf0] sm:$0xff]
  %v55 = vld [vmem:[%s2 + $0xf8] sm:$0xff]
  %v56 = vld [vmem:[%s1] sm:$0xff]
  %v57 = vld [vmem:[%s1 + $0x8] sm:$0xff]
  %v58 = vld [vmem:[%s1 + $0x10] sm:$0xff]
  %v59 = vld [vmem:[%s1 + $0x18] sm:$0xff]
  %v60 = vld [vmem:[%s3] sm:$0xff]
  %v61 = vld [vmem:[%s3 + $0x8] sm:$0xff]
  %v62 = vld [vmem:[%s3 + $0x10] sm:$0xff]
  %v63 = vld [vmem:[%s3 + $0x18] sm:$0xff]
  %v64 = vld [vmem:[%s3 + $0x20] sm:$0xff]
  %v65 = vld [vmem:[%s3 + $0x28] sm:$0xff]
  %v66 = vld [vmem:[%s3 + $0x30] sm:$0xff]
  %v67 = vld [vmem:[%s3 + $0x38] sm:$0xff]
  %v68 = vld [vmem:[%s3 + $0x40] sm:$0xff]
  %v69 = vld [vmem:[%s3 + $0x48] sm:$0xff]
  %v70 = vld [vmem:[%s3 + $0x50] sm:$0xff]
  %v71 = vld [vmem:[%s3 + $0x58] sm:$0xff]
  %v72 = vld [vmem:[%s3 + $0x60] sm:$0xff]
  %v73 = vld [vmem:[%s3 + $0x68] sm:$0xff]
  %v74 = vld [vmem:[%s3 + $0x70] sm:$0xff]
  %v75 = vld [vmem:[%s3 + $0x78] sm:$0xff]
  %v76 = vld [vmem:[%s3 + $0x80] sm:$0xff]
  %v77 = vld [vmem:[%s3 + $0x88] sm:$0xff]
  %v78 = vld [vmem:[%s3 + $0x90] sm:$0xff]
  %v79 = vld [vmem:[%s3 + $0x98] sm:$0xff]
  %v80 = vld [vmem:[%s3 + $0xa0] sm:$0xff]
  %v81 = vld [vmem:[%s3 + $0xa8] sm:$0xff]
  %v82 = vld [vmem:[%s3 + $0xb0] sm:$0xff]
  %v83 = vld [vmem:[%s3 + $0xb8] sm:$0xff]
  %v84 = vld [vmem:[%s3 + $0xc0] sm:$0xff]
  %v85 = vld [vmem:[%s3 + $0xc8] sm:$0xff]
  %v86 = vld [vmem:[%s3 + $0xd0] sm:$0xff]
  %v87 = vld [vmem:[%s3 + $0xd8] sm:$0xff]
  %v88 = vld [vmem:[%s3 + $0xe0] sm:$0xff]
  %v89 = vld [vmem:[%s3 + $0xe8] sm:$0xff]
  %v90 = vld [vmem:[%s3 + $0xf0] sm:$0xff]
  %v91 = vld [vmem:[%s3 + $0xf8] sm:$0xff]
  %v96 = vunpack.c.l.b16 %v56
  %v97 = vunpack.c.h.b16 %v56
  %v98 = vunpack.c.l.b16 %v57
  %v99 = vunpack.c.h.b16 %v57
  %v100 = vunpack.c.l.b16 %v58
  %v101 = vunpack.c.h.b16 %v58
  %v102 = vunpack.c.l.b16 %v59
  %v103 = vunpack.c.h.b16 %v59
  %v104 = vpack.c.b16 %v98, %v96
  %v105 = vpack.c.b16 %v99, %v97
  %v106 = vpack.c.b16 %v102, %v100
  %v107 = vpack.c.b16 %v103, %v101
  %v144 = vunpack.c.l.b16 %v60
  %v145 = vunpack.c.h.b16 %v60
  %v146 = vunpack.c.l.b16 %v61
  %v147 = vunpack.c.h.b16 %v61
  %v148 = vunpack.c.l.b16 %v62
  %v149 = vunpack.c.h.b16 %v62
  %v150 = vunpack.c.l.b16 %v63
  %v151 = vunpack.c.h.b16 %v63
  %v152 = vunpack.c.l.b16 %v64
  %v153 = vunpack.c.h.b16 %v64
  %v154 = vunpack.c.l.b16 %v65
  %v155 = vunpack.c.h.b16 %v65
  %v156 = vunpack.c.l.b16 %v66
  %v157 = vunpack.c.h.b16 %v66
  %v158 = vunpack.c.l.b16 %v67
  %v159 = vunpack.c.h.b16 %v67
  %v160 = vunpack.c.l.b16 %v68
  %v161 = vunpack.c.h.b16 %v68
  %v162 = vunpack.c.l.b16 %v69
  %v163 = vunpack.c.h.b16 %v69
  %v164 = vunpack.c.l.b16 %v70
  %v165 = vunpack.c.h.b16 %v70
  %v166 = vunpack.c.l.b16 %v71
  %v167 = vunpack.c.h.b16 %v71
  %v168 = vunpack.c.l.b16 %v72
  %v169 = vunpack.c.h.b16 %v72
  %v170 = vunpack.c.l.b16 %v73
  %v171 = vunpack.c.h.b16 %v73
  %v172 = vunpack.c.l.b16 %v74
  %v173 = vunpack.c.h.b16 %v74
  %v174 = vunpack.c.l.b16 %v75
  %v175 = vunpack.c.h.b16 %v75
  %v176 = vunpack.c.l.b16 %v76
  %v177 = vunpack.c.h.b16 %v76
  %v178 = vunpack.c.l.b16 %v77
  %v179 = vunpack.c.h.b16 %v77
  %v180 = vunpack.c.l.b16 %v78
  %v181 = vunpack.c.h.b16 %v78
  %v182 = vunpack.c.l.b16 %v79
  %v183 = vunpack.c.h.b16 %v79
  %v184 = vunpack.c.l.b16 %v80
  %v185 = vunpack.c.h.b16 %v80
  %v186 = vunpack.c.l.b16 %v81
  %v187 = vunpack.c.h.b16 %v81
  %v188 = vunpack.c.l.b16 %v82
  %v189 = vunpack.c.h.b16 %v82
  %v190 = vunpack.c.l.b16 %v83
  %v191 = vunpack.c.h.b16 %v83
  %v192 = vunpack.c.l.b16 %v84
  %v193 = vunpack.c.h.b16 %v84
  %v194 = vunpack.c.l.b16 %v85
  %v195 = vunpack.c.h.b16 %v85
  %v196 = vunpack.c.l.b16 %v86
  %v197 = vunpack.c.h.b16 %v86
  %v198 = vunpack.c.l.b16 %v87
  %v199 = vunpack.c.h.b16 %v87
  %v200 = vunpack.c.l.b16 %v88
  %v201 = vunpack.c.h.b16 %v88
  %v202 = vunpack.c.l.b16 %v89
  %v203 = vunpack.c.h.b16 %v89
  %v204 = vunpack.c.l.b16 %v90
  %v205 = vunpack.c.h.b16 %v90
  %v206 = vunpack.c.l.b16 %v91
  %v207 = vunpack.c.h.b16 %v91
  %v208 = vpack.c.b16 %v146, %v144
  %v209 = vpack.c.b16 %v147, %v145
  %v210 = vpack.c.b16 %v150, %v148
  %v211 = vpack.c.b16 %v151, %v149
  %v212 = vpack.c.b16 %v154, %v152
  %v213 = vpack.c.b16 %v155, %v153
  %v214 = vpack.c.b16 %v158, %v156
  %v215 = vpack.c.b16 %v159, %v157
  %v216 = vpack.c.b16 %v162, %v160
  %v217 = vpack.c.b16 %v163, %v161
  %v218 = vpack.c.b16 %v166, %v164
  %v219 = vpack.c.b16 %v167, %v165
  %v220 = vpack.c.b16 %v170, %v168
  %v221 = vpack.c.b16 %v171, %v169
  %v222 = vpack.c.b16 %v174, %v172
  %v223 = vpack.c.b16 %v175, %v173
  %v224 = vpack.c.b16 %v178, %v176
  %v225 = vpack.c.b16 %v179, %v177
  %v226 = vpack.c.b16 %v182, %v180
  %v227 = vpack.c.b16 %v183, %v181
  %v228 = vpack.c.b16 %v186, %v184
  %v229 = vpack.c.b16 %v187, %v185
  %v230 = vpack.c.b16 %v190, %v188
  %v231 = vpack.c.b16 %v191, %v189
  %v232 = vpack.c.b16 %v194, %v192
  %v233 = vpack.c.b16 %v195, %v193
  %v234 = vpack.c.b16 %v198, %v196
  %v235 = vpack.c.b16 %v199, %v197
  %v236 = vpack.c.b16 %v202, %v200
  %v237 = vpack.c.b16 %v203, %v201
  %v238 = vpack.c.b16 %v206, %v204
  %v239 = vpack.c.b16 %v207, %v205
  %272 = vmatpush.bf16.msra.mxu0 %v222
  %273 = vmatpush.bf16.msra.mxu0 %v220
  %274 = vmatpush.bf16.msra.mxu0 %v218
  %275 = vmatpush.bf16.msra.mxu0 %v216
  %276 = vmatpush.bf16.msra.mxu0 %v214
  %277 = vmatpush.bf16.msra.mxu0 %v212
  %278 = vmatpush.bf16.msra.mxu0 %v210
  %279 = vmatpush.bf16.msra.mxu0 %v208
  %280 = vmatmul.bf16.gmra.mxu0 %v104
  %v281 = vpop.f32.mrf.mxu0
  %v282 = vadd.f32 0.0, %v281
  %v283 = vpop.f32.mrf.mxu0
  %v284 = vadd.f32 0.0, %v283
  %285 = vmatmul.bf16.gmra.mxu0 %v106
  %v286 = vpop.f32.mrf.mxu0
  %v287 = vadd.f32 0.0, %v286
  %v288 = vpop.f32.mrf.mxu0
  %v289 = vadd.f32 0.0, %v288
  %290 = vdwg.mxu0
  %291 = vmatpush.bf16.msra.mxu0 %v238
  %292 = vmatpush.bf16.msra.mxu0 %v236
  %293 = vmatpush.bf16.msra.mxu0 %v234
  %294 = vmatpush.bf16.msra.mxu0 %v232
  %295 = vmatpush.bf16.msra.mxu0 %v230
  %296 = vmatpush.bf16.msra.mxu0 %v228
  %297 = vmatpush.bf16.msra.mxu0 %v226
  %298 = vmatpush.bf16.msra.mxu0 %v224
  %299 = vmatmul.bf16.gmra.mxu0 %v105
  %v300 = vpop.f32.mrf.mxu0
  %v301 = vadd.f32 %v282, %v300
  %v302 = vpop.f32.mrf.mxu0
  %v303 = vadd.f32 %v284, %v302
  %304 = vmatmul.bf16.gmra.mxu0 %v107
  %v305 = vpop.f32.mrf.mxu0
  %v306 = vadd.f32 %v287, %v305
  %v307 = vpop.f32.mrf.mxu0
  %v308 = vadd.f32 %v289, %v307
  %309 = vdwg.mxu0
  %310 = vmatpush.bf16.msra.mxu0 %v223
  %311 = vmatpush.bf16.msra.mxu0 %v221
  %312 = vmatpush.bf16.msra.mxu0 %v219
  %313 = vmatpush.bf16.msra.mxu0 %v217
  %314 = vmatpush.bf16.msra.mxu0 %v215
  %315 = vmatpush.bf16.msra.mxu0 %v213
  %316 = vmatpush.bf16.msra.mxu0 %v211
  %317 = vmatpush.bf16.msra.mxu0 %v209
  %318 = vmatmul.bf16.gmra.mxu0 %v104
  %v319 = vpop.f32.mrf.mxu0
  %v320 = vadd.f32 0.0, %v319
  %v321 = vpop.f32.mrf.mxu0
  %v322 = vadd.f32 0.0, %v321
  %323 = vmatmul.bf16.gmra.mxu0 %v106
  %v324 = vpop.f32.mrf.mxu0
  %v325 = vadd.f32 0.0, %v324
  %v326 = vpop.f32.mrf.mxu0
  %v327 = vadd.f32 0.0, %v326
  %328 = vdwg.mxu0
  %329 = vmatpush.bf16.msra.mxu0 %v239
  %330 = vmatpush.bf16.msra.mxu0 %v237
  %331 = vmatpush.bf16.msra.mxu0 %v235
  %332 = vmatpush.bf16.msra.mxu0 %v233
  %333 = vmatpush.bf16.msra.mxu0 %v231
  %334 = vmatpush.bf16.msra.mxu0 %v229
  %335 = vmatpush.bf16.msra.mxu0 %v227
  %336 = vmatpush.bf16.msra.mxu0 %v225
  %337 = vmatmul.bf16.gmra.mxu0 %v105
  %v338 = vpop.f32.mrf.mxu0
  %v339 = vadd.f32 %v320, %v338
  %v340 = vpop.f32.mrf.mxu0
  %v341 = vadd.f32 %v322, %v340
  %342 = vmatmul.bf16.gmra.mxu0 %v107
  %v343 = vpop.f32.mrf.mxu0
  %v344 = vadd.f32 %v325, %v343
  %v345 = vpop.f32.mrf.mxu0
  %v346 = vadd.f32 %v327, %v345
  %347 = vdwg.mxu0
  %v352 = vunpack.c.l.b16 %v20
  %v353 = vunpack.c.h.b16 %v20
  %v354 = vunpack.c.l.b16 %v21
  %v355 = vunpack.c.h.b16 %v21
  %v356 = vunpack.c.l.b16 %v22
  %v357 = vunpack.c.h.b16 %v22
  %v358 = vunpack.c.l.b16 %v23
  %v359 = vunpack.c.h.b16 %v23
  %v360 = vpack.c.b16 %v354, %v352
  %v361 = vpack.c.b16 %v355, %v353
  %v362 = vpack.c.b16 %v358, %v356
  %v363 = vpack.c.b16 %v359, %v357
  %v400 = vunpack.c.l.b16 %v24
  %v401 = vunpack.c.h.b16 %v24
  %v402 = vunpack.c.l.b16 %v25
  %v403 = vunpack.c.h.b16 %v25
  %v404 = vunpack.c.l.b16 %v26
  %v405 = vunpack.c.h.b16 %v26
  %v406 = vunpack.c.l.b16 %v27
  %v407 = vunpack.c.h.b16 %v27
  %v408 = vunpack.c.l.b16 %v28
  %v409 = vunpack.c.h.b16 %v28
  %v410 = vunpack.c.l.b16 %v29
  %v411 = vunpack.c.h.b16 %v29
  %v412 = vunpack.c.l.b16 %v30
  %v413 = vunpack.c.h.b16 %v30
  %v414 = vunpack.c.l.b16 %v31
  %v415 = vunpack.c.h.b16 %v31
  %v416 = vunpack.c.l.b16 %v32
  %v417 = vunpack.c.h.b16 %v32
  %v418 = vunpack.c.l.b16 %v33
  %v419 = vunpack.c.h.b16 %v33
  %v420 = vunpack.c.l.b16 %v34
  %v421 = vunpack.c.h.b16 %v34
  %v422 = vunpack.c.l.b16 %v35
  %v423 = vunpack.c.h.b16 %v35
  %v424 = vunpack.c.l.b16 %v36
  %v425 = vunpack.c.h.b16 %v36
  %v426 = vunpack.c.l.b16 %v37
  %v427 = vunpack.c.h.b16 %v37
  %v428 = vunpack.c.l.b16 %v38
  %v429 = vunpack.c.h.b16 %v38
  %v430 = vunpack.c.l.b16 %v39
  %v431 = vunpack.c.h.b16 %v39
  %v432 = vunpack.c.l.b16 %v40
  %v433 = vunpack.c.h.b16 %v40
  %v434 = vunpack.c.l.b16 %v41
  %v435 = vunpack.c.h.b16 %v41
  %v436 = vunpack.c.l.b16 %v42
  %v437 = vunpack.c.h.b16 %v42
  %v438 = vunpack.c.l.b16 %v43
  %v439 = vunpack.c.h.b16 %v43
  %v440 = vunpack.c.l.b16 %v44
  %v441 = vunpack.c.h.b16 %v44
  %v442 = vunpack.c.l.b16 %v45
  %v443 = vunpack.c.h.b16 %v45
  %v444 = vunpack.c.l.b16 %v46
  %v445 = vunpack.c.h.b16 %v46
  %v446 = vunpack.c.l.b16 %v47
  %v447 = vunpack.c.h.b16 %v47
  %v448 = vunpack.c.l.b16 %v48
  %v449 = vunpack.c.h.b16 %v48
  %v450 = vunpack.c.l.b16 %v49
  %v451 = vunpack.c.h.b16 %v49
  %v452 = vunpack.c.l.b16 %v50
  %v453 = vunpack.c.h.b16 %v50
  %v454 = vunpack.c.l.b16 %v51
  %v455 = vunpack.c.h.b16 %v51
  %v456 = vunpack.c.l.b16 %v52
  %v457 = vunpack.c.h.b16 %v52
  %v458 = vunpack.c.l.b16 %v53
  %v459 = vunpack.c.h.b16 %v53
  %v460 = vunpack.c.l.b16 %v54
  %v461 = vunpack.c.h.b16 %v54
  %v462 = vunpack.c.l.b16 %v55
  %v463 = vunpack.c.h.b16 %v55
  %v464 = vpack.c.b16 %v402, %v400
  %v465 = vpack.c.b16 %v403, %v401
  %v466 = vpack.c.b16 %v406, %v404
  %v467 = vpack.c.b16 %v407, %v405
  %v468 = vpack.c.b16 %v410, %v408
  %v469 = vpack.c.b16 %v411, %v409
  %v470 = vpack.c.b16 %v414, %v412
  %v471 = vpack.c.b16 %v415, %v413
  %v472 = vpack.c.b16 %v418, %v416
  %v473 = vpack.c.b16 %v419, %v417
  %v474 = vpack.c.b16 %v422, %v420
  %v475 = vpack.c.b16 %v423, %v421
  %v476 = vpack.c.b16 %v426, %v424
  %v477 = vpack.c.b16 %v427, %v425
  %v478 = vpack.c.b16 %v430, %v428
  %v479 = vpack.c.b16 %v431, %v429
  %v480 = vpack.c.b16 %v434, %v432
  %v481 = vpack.c.b16 %v435, %v433
  %v482 = vpack.c.b16 %v438, %v436
  %v483 = vpack.c.b16 %v439, %v437
  %v484 = vpack.c.b16 %v442, %v440
  %v485 = vpack.c.b16 %v443, %v441
  %v486 = vpack.c.b16 %v446, %v444
  %v487 = vpack.c.b16 %v447, %v445
  %v488 = vpack.c.b16 %v450, %v448
  %v489 = vpack.c.b16 %v451, %v449
  %v490 = vpack.c.b16 %v454, %v452
  %v491 = vpack.c.b16 %v455, %v453
  %v492 = vpack.c.b16 %v458, %v456
  %v493 = vpack.c.b16 %v459, %v457
  %v494 = vpack.c.b16 %v462, %v460
  %v495 = vpack.c.b16 %v463, %v461
  %528 = vmatpush.bf16.msra.mxu0 %v478
  %529 = vmatpush.bf16.msra.mxu0 %v476
  %530 = vmatpush.bf16.msra.mxu0 %v474
  %531 = vmatpush.bf16.msra.mxu0 %v472
  %532 = vmatpush.bf16.msra.mxu0 %v470
  %533 = vmatpush.bf16.msra.mxu0 %v468
  %534 = vmatpush.bf16.msra.mxu0 %v466
  %535 = vmatpush.bf16.msra.mxu0 %v464
  %536 = vmatmul.bf16.gmra.mxu0 %v360
  %v537 = vpop.f32.mrf.mxu0
  %v538 = vadd.f32 %v301, %v537
  %v539 = vpop.f32.mrf.mxu0
  %v540 = vadd.f32 %v303, %v539
  %541 = vmatmul.bf16.gmra.mxu0 %v362
  %v542 = vpop.f32.mrf.mxu0
  %v543 = vadd.f32 %v306, %v542
  %v544 = vpop.f32.mrf.mxu0
  %v545 = vadd.f32 %v308, %v544
  %546 = vdwg.mxu0
  %547 = vmatpush.bf16.msra.mxu0 %v494
  %548 = vmatpush.bf16.msra.mxu0 %v492
  %549 = vmatpush.bf16.msra.mxu0 %v490
  %550 = vmatpush.bf16.msra.mxu0 %v488
  %551 = vmatpush.bf16.msra.mxu0 %v486
  %552 = vmatpush.bf16.msra.mxu0 %v484
  %553 = vmatpush.bf16.msra.mxu0 %v482
  %554 = vmatpush.bf16.msra.mxu0 %v480
  %555 = vmatmul.bf16.gmra.mxu0 %v361
  %v556 = vpop.f32.mrf.mxu0
  %v557 = vadd.f32 %v538, %v556
  %v558 = vpop.f32.mrf.mxu0
  %v559 = vadd.f32 %v540, %v558
  %560 = vmatmul.bf16.gmra.mxu0 %v363
  %v561 = vpop.f32.mrf.mxu0
  %v562 = vadd.f32 %v543, %v561
  %v563 = vpop.f32.mrf.mxu0
  %v564 = vadd.f32 %v545, %v563
  %565 = vdwg.mxu0
  %566 = vmatpush.bf16.msra.mxu0 %v479
  %567 = vmatpush.bf16.msra.mxu0 %v477
  %568 = vmatpush.bf16.msra.mxu0 %v475
  %569 = vmatpush.bf16.msra.mxu0 %v473
  %570 = vmatpush.bf16.msra.mxu0 %v471
  %571 = vmatpush.bf16.msra.mxu0 %v469
  %572 = vmatpush.bf16.msra.mxu0 %v467
  %573 = vmatpush.bf16.msra.mxu0 %v465
  %574 = vmatmul.bf16.gmra.mxu0 %v360
  %v575 = vpop.f32.mrf.mxu0
  %v576 = vadd.f32 %v339, %v575
  %v577 = vpop.f32.mrf.mxu0
  %v578 = vadd.f32 %v341, %v577
  %579 = vmatmul.bf16.gmra.mxu0 %v362
  %v580 = vpop.f32.mrf.mxu0
  %v581 = vadd.f32 %v344, %v580
  %v582 = vpop.f32.mrf.mxu0
  %v583 = vadd.f32 %v346, %v582
  %584 = vdwg.mxu0
  %585 = vmatpush.bf16.msra.mxu0 %v495
  %586 = vmatpush.bf16.msra.mxu0 %v493
  %587 = vmatpush.bf16.msra.mxu0 %v491
  %588 = vmatpush.bf16.msra.mxu0 %v489
  %589 = vmatpush.bf16.msra.mxu0 %v487
  %590 = vmatpush.bf16.msra.mxu0 %v485
  %591 = vmatpush.bf16.msra.mxu0 %v483
  %592 = vmatpush.bf16.msra.mxu0 %v481
  %593 = vmatmul.bf16.gmra.mxu0 %v361
  %v594 = vpop.f32.mrf.mxu0
  %v595 = vadd.f32 %v576, %v594
  %v596 = vpop.f32.mrf.mxu0
  %v597 = vadd.f32 %v578, %v596
  %598 = vmatmul.bf16.gmra.mxu0 %v363
  %v599 = vpop.f32.mrf.mxu0
  %v600 = vadd.f32 %v581, %v599
  %v601 = vpop.f32.mrf.mxu0
  %v602 = vadd.f32 %v583, %v601
  %603 = vdwg.mxu0
  %v604 = vld [vmem:[%s4] sm:$0x3]
  %v606 = vperm.slane %v604, 0
  %v607 = vperm.slane %v604, 1
  %v610 = vadd.f32 %v557, %v606
  %v611 = vadd.f32 %v595, %v607
  %v612 = vadd.f32 %v559, %v606
  %v613 = vadd.f32 %v597, %v607
  %v614 = vadd.f32 %v562, %v606
  %v615 = vadd.f32 %v600, %v607
  %v616 = vadd.f32 %v564, %v606
  %v617 = vadd.f32 %v602, %v607
  %v618 = vpack.c.bf16 %v611, %v610
  %v619 = vpack.c.bf16 %v613, %v612
  %v620 = vpack.c.bf16 %v615, %v614
  %v621 = vpack.c.bf16 %v617, %v616
  %622 = vst [vmem:[%s5] sm:$0xff] %v618
  %623 = vst [vmem:[%s5 + $0x8] sm:$0xff] %v619
  %624 = vst [vmem:[%s5 + $0x10] sm:$0xff] %v620
  %625 = vst [vmem:[%s5 + $0x18] sm:$0xff] %v621
  // Predicated region
  $region22: #{tablenet_forward.5} parent=0 // pred_check
    _
  $region23: #{tablenet_forward.5} parent=0 // pred_check_branch
    %627 = sbr.rel (0) target = $region25
  $region24: #{tablenet_forward.5} parent=0 // pred_region
    _
  $region25: #{tablenet_forward.5} parent=0 // pred_fallthru
    _
  // Predicated region
  $region26: #{tablenet_forward.5} parent=0 // pred_check
    _
  $region27: #{tablenet_forward.5} parent=0 // pred_check_branch
    %629 = sbr.rel (0) target = $region29
  $region28: #{tablenet_forward.5} parent=0 // pred_region
    _
  $region29: #{tablenet_forward.5} parent=0 // pred_fallthru
    _

// kernel: tablenet_forward.4
$region0: #{tablenet_forward.4}
  #allocation0 [shape = 'u32[]', space=smem, size = 0x4, offset = 0x4, fixed_abs, tag = 'smem constant byte address 0x4 - core index']
  #allocation1 [shape = 'u32[72,128]{1,0:T(1,128)}', space=vmem, size = 0x9000, scoped, tag = 'internal scratch']
  %s0 = inlined_call_operand.vmem [shape: bf16[16,1024], index: 0, kind: input, shape index: {}]
  %s1 = inlined_call_operand.vmem [shape: bf16[1024,512], index: 1, kind: input, shape index: {}]
  %s2 = inlined_call_operand.vmem [shape: f32[1,512], index: 2, kind: input, shape index: {}]
  %s3 = inlined_call_operand.vmem [shape: bf16[512,1024], index: 3, kind: input, shape index: {}]
  %s4 = inlined_call_operand.vmem [shape: f32[1,1024], index: 4, kind: input, shape index: {}]
  %s5 = inlined_call_operand.vmem [shape: bf16[1024,256], index: 5, kind: input, shape index: {}]
  %s6 = inlined_call_operand.vmem [shape: f32[1,256], index: 6, kind: input, shape index: {}]
  %s7 = inlined_call_operand.vmem [shape: bf16[256,256], index: 7, kind: input, shape index: {}]
  %s8 = inlined_call_operand.vmem [shape: f32[1,256], index: 8, kind: input, shape index: {}]
  %s9 = inlined_call_operand.vmem [shape: bf16[256,1024], index: 9, kind: input, shape index: {}]
  %s10 = inlined_call_operand.vmem [shape: bf16[512,1024], index: 10, kind: input, shape index: {}]
  %s11 = inlined_call_operand.vmem [shape: f32[1,1024], index: 11, kind: input, shape index: {}]
  %s12 = inlined_call_operand.vmem [shape: bf16[16,1024], index: 12, kind: output, shape index: {}]
  %s13 = sld [smem:[#allocation0]]
  $region58: #{tablenet_forward.4} parent=0
    _
  %s15 = ssub.s32 1, %s13
  %s16 = scalar_select 0, %s15, %s13
  // Predicated region
  $region2: #{tablenet_forward.4} parent=0 // pred_check
    _
  $region3: #{tablenet_forward.4} parent=0 // pred_check_branch
    %18 = sbr.rel (0) target = $region5
  $region4: #{tablenet_forward.4} parent=0 // pred_region
    _
  $region5: #{tablenet_forward.4} parent=0 // pred_fallthru
    _
  // Predicated region
  $region6: #{tablenet_forward.4} parent=0 // pred_check
    _
  $region7: #{tablenet_forward.4} parent=0 // pred_check_branch
    %20 = sbr.rel (0) target = $region9
  $region8: #{tablenet_forward.4} parent=0 // pred_region
    _
  $region9: #{tablenet_forward.4} parent=0 // pred_fallthru
    _
  // Predicated region
  $region10: #{tablenet_forward.4} parent=0 // pred_check
    _
  $region11: #{tablenet_forward.4} parent=0 // pred_check_branch
    %22 = sbr.rel (0) target = $region13
  $region12: #{tablenet_forward.4} parent=0 // pred_region
    _
  $region13: #{tablenet_forward.4} parent=0 // pred_fallthru
    _
  // Predicated region
  $region14: #{tablenet_forward.4} parent=0 // pred_check
    _
  $region15: #{tablenet_forward.4} parent=0 // pred_check_branch
    %24 = sbr.rel (0) target = $region17
  $region16: #{tablenet_forward.4} parent=0 // pred_region
    _
  $region17: #{tablenet_forward.4} parent=0 // pred_fallthru
    _
  // Predicated region
  $region18: #{tablenet_forward.4} parent=0 // pred_check
    _
  $region19: #{tablenet_forward.4} parent=0 // pred_check_branch
    %26 = sbr.rel (0) target = $region21
  $region20: #{tablenet_forward.4} parent=0 // pred_region
    _
  $region21: #{tablenet_forward.4} parent=0 // pred_fallthru
    _
  // Predicated region
  $region22: #{tablenet_forward.4} parent=0 // pred_check
    _
  $region23: #{tablenet_forward.4} parent=0 // pred_check_branch
    %28 = sbr.rel (0) target = $region25
  $region24: #{tablenet_forward.4} parent=0 // pred_region
    _
  $region25: #{tablenet_forward.4} parent=0 // pred_fallthru
    _
  // Predicated region
  $region26: #{tablenet_forward.4} parent=0 // pred_check
    _
  $region27: #{tablenet_forward.4} parent=0 // pred_check_branch
    %30 = sbr.rel (0) target = $region29
  $region28: #{tablenet_forward.4} parent=0 // pred_region
    _
  $region29: #{tablenet_forward.4} parent=0 // pred_fallthru
    _
  // Predicated region
  $region30: #{tablenet_forward.4} parent=0 // pred_check
    _
  $region31: #{tablenet_forward.4} parent=0 // pred_check_branch
    %32 = sbr.rel (0) target = $region33
  $region32: #{tablenet_forward.4} parent=0 // pred_region
    _
  $region33: #{tablenet_forward.4} parent=0 // pred_fallthru
    _
  // Predicated region
  $region34: #{tablenet_forward.4} parent=0 // pred_check
    _
  $region35: #{tablenet_forward.4} parent=0 // pred_check_branch
    %34 = sbr.rel (0) target = $region37
  $region36: #{tablenet_forward.4} parent=0 // pred_region
    _
  $region37: #{tablenet_forward.4} parent=0 // pred_fallthru
    _
  // Predicated region
  $region38: #{tablenet_forward.4} parent=0 // pred_check
    _
  $region39: #{tablenet_forward.4} parent=0 // pred_check_branch
    %36 = sbr.rel (0) target = $region41
  $region40: #{tablenet_forward.4} parent=0 // pred_region
    _
  $region41: #{tablenet_forward.4} parent=0 // pred_fallthru
    _
  // Predicated region
  $region42: #{tablenet_forward.4} parent=0 // pred_check
    _
  $region43: #{tablenet_forward.4} parent=0 // pred_check_branch
    %38 = sbr.rel (0) target = $region45
  $region44: #{tablenet_forward.4} parent=0 // pred_region
    _
  $region45: #{tablenet_forward.4} parent=0 // pred_fallthru
    _
  // Predicated region
  $region46: #{tablenet_forward.4} parent=0 // pred_check
    _
  $region47: #{tablenet_forward.4} parent=0 // pred_check_branch
    %40 = sbr.rel (0) target = $region49
  $region48: #{tablenet_forward.4} parent=0 // pred_region
    _
  $region49: #{tablenet_forward.4} parent=0 // pred_fallthru
    _
  %v41 = vld [vmem:[%s0] sm:$0xff]
  %v42 = vld [vmem:[%s0 + $0x8] sm:$0xff]
  %v43 = vld [vmem:[%s0 + $0x10] sm:$0xff]
  %v44 = vld [vmem:[%s0 + $0x18] sm:$0xff]
  %v45 = vld [vmem:[%s0 + $0x20] sm:$0xff]
  %v46 = vld [vmem:[%s0 + $0x28] sm:$0xff]
  %v47 = vld [vmem:[%s0 + $0x30] sm:$0xff]
  %v48 = vld [vmem:[%s0 + $0x38] sm:$0xff]
  %v49 = vld [vmem:[%s1] sm:$0xff]
  %v50 = vld [vmem:[%s1 + $0x8] sm:$0xff]
  %v51 = vld [vmem:[%s1 + $0x10] sm:$0xff]
  %v52 = vld [vmem:[%s1 + $0x18] sm:$0xff]
  %v53 = vld [vmem:[%s1 + $0x20] sm:$0xff]
  %v54 = vld [vmem:[%s1 + $0x28] sm:$0xff]
  %v55 = vld [vmem:[%s1 + $0x30] sm:$0xff]
  %v56 = vld [vmem:[%s1 + $0x38] sm:$0xff]
  %v57 = vld [vmem:[%s1 + $0x40] sm:$0xff]
  %v58 = vld [vmem:[%s1 + $0x48] sm:$0xff]
  %v59 = vld [vmem:[%s1 + $0x50] sm:$0xff]
  %v60 = vld [vmem:[%s1 + $0x58] sm:$0xff]
  %v61 = vld [vmem:[%s1 + $0x60] sm:$0xff]
  %v62 = vld [vmem:[%s1 + $0x68] sm:$0xff]
  %v63 = vld [vmem:[%s1 + $0x70] sm:$0xff]
  %v64 = vld [vmem:[%s1 + $0x78] sm:$0xff]
  %v65 = vld [vmem:[%s1 + $0x80] sm:$0xff]
  %v66 = vld [vmem:[%s1 + $0x88] sm:$0xff]
  %v67 = vld [vmem:[%s1 + $0x90] sm:$0xff]
  %v68 = vld [vmem:[%s1 + $0x98] sm:$0xff]
  %v69 = vld [vmem:[%s1 + $0xa0] sm:$0xff]
  %v70 = vld [vmem:[%s1 + $0xa8] sm:$0xff]
  %v71 = vld [vmem:[%s1 + $0xb0] sm:$0xff]
  %v72 = vld [vmem:[%s1 + $0xb8] sm:$0xff]
  %v73 = vld [vmem:[%s1 + $0xc0] sm:$0xff]
  %v74 = vld [vmem:[%s1 + $0xc8] sm:$0xff]
  %v75 = vld [vmem:[%s1 + $0xd0] sm:$0xff]
  %v76 = vld [vmem:[%s1 + $0xd8] sm:$0xff]
  %v77 = vld [vmem:[%s1 + $0xe0] sm:$0xff]
  %v78 = vld [vmem:[%s1 + $0xe8] sm:$0xff]
  %v79 = vld [vmem:[%s1 + $0xf0] sm:$0xff]
  %v80 = vld [vmem:[%s1 + $0xf8] sm:$0xff]
  %v81 = vld [vmem:[%s1 + $0x100] sm:$0xff]
  %v82 = vld [vmem:[%s1 + $0x108] sm:$0xff]
  %v83 = vld [vmem:[%s1 + $0x110] sm:$0xff]
  %v84 = vld [vmem:[%s1 + $0x118] sm:$0xff]
  %v85 = vld [vmem:[%s1 + $0x120] sm:$0xff]
  %v86 = vld [vmem:[%s1 + $0x128] sm:$0xff]
  %v87 = vld [vmem:[%s1 + $0x130] sm:$0xff]
  %v88 = vld [vmem:[%s1 + $0x138] sm:$0xff]
  %v89 = vld [vmem:[%s1 + $0x140] sm:$0xff]
  %v90 = vld [vmem:[%s1 + $0x148] sm:$0xff]
  %v91 = vld [vmem:[%s1 + $0x150] sm:$0xff]
  %v92 = vld [vmem:[%s1 + $0x158] sm:$0xff]
  %v93 = vld [vmem:[%s1 + $0x160] sm:$0xff]
  %v94 = vld [vmem:[%s1 + $0x168] sm:$0xff]
  %v95 = vld [vmem:[%s1 + $0x170] sm:$0xff]
  %v96 = vld [vmem:[%s1 + $0x178] sm:$0xff]
  %v97 = vld [vmem:[%s1 + $0x180] sm:$0xff]
  %v98 = vld [vmem:[%s1 + $0x188] sm:$0xff]
  %v99 = vld [vmem:[%s1 + $0x190] sm:$0xff]
  %v100 = vld [vmem:[%s1 + $0x198] sm:$0xff]
  %v101 = vld [vmem:[%s1 + $0x1a0] sm:$0xff]
  %v102 = vld [vmem:[%s1 + $0x1a8] sm:$0xff]
  %v103 = vld [vmem:[%s1 + $0x1b0] sm:$0xff]
  %v104 = vld [vmem:[%s1 + $0x1b8] sm:$0xff]
  %v105 = vld [vmem:[%s1 + $0x1c0] sm:$0xff]
  %v106 = vld [vmem:[%s1 + $0x1c8] sm:$0xff]
  %v107 = vld [vmem:[%s1 + $0x1d0] sm:$0xff]
  %v108 = vld [vmem:[%s1 + $0x1d8] sm:$0xff]
  %v109 = vld [vmem:[%s1 + $0x1e0] sm:$0xff]
  %v110 = vld [vmem:[%s1 + $0x1e8] sm:$0xff]
  %v111 = vld [vmem:[%s1 + $0x1f0] sm:$0xff]
  %v112 = vld [vmem:[%s1 + $0x1f8] sm:$0xff]
  %v113 = vld [vmem:[%s1 + $0x200] sm:$0xff]
  %v114 = vld [vmem:[%s1 + $0x208] sm:$0xff]
  %v115 = vld [vmem:[%s1 + $0x210] sm:$0xff]
  %v116 = vld [vmem:[%s1 + $0x218] sm:$0xff]
  %v117 = vld [vmem:[%s1 + $0x220] sm:$0xff]
  %v118 = vld [vmem:[%s1 + $0x228] sm:$0xff]
  %v119 = vld [vmem:[%s1 + $0x230] sm:$0xff]
  %v120 = vld [vmem:[%s1 + $0x238] sm:$0xff]
  %v121 = vld [vmem:[%s1 + $0x240] sm:$0xff]
  %v122 = vld [vmem:[%s1 + $0x248] sm:$0xff]
  %v123 = vld [vmem:[%s1 + $0x250] sm:$0xff]
  %v124 = vld [vmem:[%s1 + $0x258] sm:$0xff]
  %v125 = vld [vmem:[%s1 + $0x260] sm:$0xff]
  %v126 = vld [vmem:[%s1 + $0x268] sm:$0xff]
  %v127 = vld [vmem:[%s1 + $0x270] sm:$0xff]
  %v128 = vld [vmem:[%s1 + $0x278] sm:$0xff]
  %v129 = vld [vmem:[%s1 + $0x280] sm:$0xff]
  %v130 = vld [vmem:[%s1 + $0x288] sm:$0xff]
  %v131 = vld [vmem:[%s1 + $0x290] sm:$0xff]
  %v132 = vld [vmem:[%s1 + $0x298] sm:$0xff]
  %v133 = vld [vmem:[%s1 + $0x2a0] sm:$0xff]
  %v134 = vld [vmem:[%s1 + $0x2a8] sm:$0xff]
  %v135 = vld [vmem:[%s1 + $0x2b0] sm:$0xff]
  %v136 = vld [vmem:[%s1 + $0x2b8] sm:$0xff]
  %v137 = vld [vmem:[%s1 + $0x2c0] sm:$0xff]
  %v138 = vld [vmem:[%s1 + $0x2c8] sm:$0xff]
  %v139 = vld [vmem:[%s1 + $0x2d0] sm:$0xff]
  %v140 = vld [vmem:[%s1 + $0x2d8] sm:$0xff]
  %v141 = vld [vmem:[%s1 + $0x2e0] sm:$0xff]
  %v142 = vld [vmem:[%s1 + $0x2e8] sm:$0xff]
  %v143 = vld [vmem:[%s1 + $0x2f0] sm:$0xff]
  %v144 = vld [vmem:[%s1 + $0x2f8] sm:$0xff]
  %v145 = vld [vmem:[%s1 + $0x300] sm:$0xff]
  %v146 = vld [vmem:[%s1 + $0x308] sm:$0xff]
  %v147 = vld [vmem:[%s1 + $0x310] sm:$0xff]
  %v148 = vld [vmem:[%s1 + $0x318] sm:$0xff]
  %v149 = vld [vmem:[%s1 + $0x320] sm:$0xff]
  %v150 = vld [vmem:[%s1 + $0x328] sm:$0xff]
  %v151 = vld [vmem:[%s1 + $0x330] sm:$0xff]
  %v152 = vld [vmem:[%s1 + $0x338] sm:$0xff]
  %v153 = vld [vmem:[%s1 + $0x340] sm:$0xff]
  %v154 = vld [vmem:[%s1 + $0x348] sm:$0xff]
  %v155 = vld [vmem:[%s1 + $0x350] sm:$0xff]
  %v156 = vld [vmem:[%s1 + $0x358] sm:$0xff]
  %v157 = vld [vmem:[%s1 + $0x360] sm:$0xff]
  %v158 = vld [vmem:[%s1 + $0x368] sm:$0xff]
  %v159 = vld [vmem:[%s1 + $0x370] sm:$0xff]
  %v160 = vld [vmem:[%s1 + $0x378] sm:$0xff]
  %v161 = vld [vmem:[%s1 + $0x380] sm:$0xff]
  %v162 = vld [vmem:[%s1 + $0x388] sm:$0xff]
  %v163 = vld [vmem:[%s1 + $0x390] sm:$0xff]
  %v164 = vld [vmem:[%s1 + $0x398] sm:$0xff]
  %v165 = vld [vmem:[%s1 + $0x3a0] sm:$0xff]
  %v166 = vld [vmem:[%s1 + $0x3a8] sm:$0xff]
  %v167 = vld [vmem:[%s1 + $0x3b0] sm:$0xff]
  %v168 = vld [vmem:[%s1 + $0x3b8] sm:$0xff]
  %v169 = vld [vmem:[%s1 + $0x3c0] sm:$0xff]
  %v170 = vld [vmem:[%s1 + $0x3c8] sm:$0xff]
  %v171 = vld [vmem:[%s1 + $0x3d0] sm:$0xff]
  %v172 = vld [vmem:[%s1 + $0x3d8] sm:$0xff]
  %v173 = vld [vmem:[%s1 + $0x3e0] sm:$0xff]
  %v174 = vld [vmem:[%s1 + $0x3e8] sm:$0xff]
  %v175 = vld [vmem:[%s1 + $0x3f0] sm:$0xff]
  %v176 = vld [vmem:[%s1 + $0x3f8] sm:$0xff]
  %v177 = vld [vmem:[%s1 + $0x400] sm:$0xff]
  %v178 = vld [vmem:[%s1 + $0x408] sm:$0xff]
  %v179 = vld [vmem:[%s1 + $0x410] sm:$0xff]
  %v180 = vld [vmem:[%s1 + $0x418] sm:$0xff]
  %v181 = vld [vmem:[%s1 + $0x420] sm:$0xff]
  %v182 = vld [vmem:[%s1 + $0x428] sm:$0xff]
  %v183 = vld [vmem:[%s1 + $0x430] sm:$0xff]
  %v184 = vld [vmem:[%s1 + $0x438] sm:$0xff]
  %v185 = vld [vmem:[%s1 + $0x440] sm:$0xff]
  %v186 = vld [vmem:[%s1 + $0x448] sm:$0xff]
  %v187 = vld [vmem:[%s1 + $0x450] sm:$0xff]
  %v188 = vld [vmem:[%s1 + $0x458] sm:$0xff]
  %v189 = vld [vmem:[%s1 + $0x460] sm:$0xff]
  %v190 = vld [vmem:[%s1 + $0x468] sm:$0xff]
  %v191 = vld [vmem:[%s1 + $0x470] sm:$0xff]
  %v192 = vld [vmem:[%s1 + $0x478] sm:$0xff]
  %v193 = vld [vmem:[%s1 + $0x480] sm:$0xff]
  %v194 = vld [vmem:[%s1 + $0x488] sm:$0xff]
  %v195 = vld [vmem:[%s1 + $0x490] sm:$0xff]
  %v196 = vld [vmem:[%s1 + $0x498] sm:$0xff]
  %v197 = vld [vmem:[%s1 + $0x4a0] sm:$0xff]
  %v198 = vld [vmem:[%s1 + $0x4a8] sm:$0xff]
  %v199 = vld [vmem:[%s1 + $0x4b0] sm:$0xff]
  %v200 = vld [vmem:[%s1 + $0x4b8] sm:$0xff]
  %v201 = vld [vmem:[%s1 + $0x4c0] sm:$0xff]
  %v202 = vld [vmem:[%s1 + $0x4c8] sm:$0xff]
  %v203 = vld [vmem:[%s1 + $0x4d0] sm:$0xff]
  %v204 = vld [vmem:[%s1 + $0x4d8] sm:$0xff]
  %v205 = vld [vmem:[%s1 + $0x4e0] sm:$0xff]
  %v206 = vld [vmem:[%s1 + $0x4e8] sm:$0xff]
  %v207 = vld [vmem:[%s1 + $0x4f0] sm:$0xff]
  %v208 = vld [vmem:[%s1 + $0x4f8] sm:$0xff]
  %v209 = vld [vmem:[%s1 + $0x500] sm:$0xff]
  %v210 = vld [vmem:[%s1 + $0x508] sm:$0xff]
  %v211 = vld [vmem:[%s1 + $0x510] sm:$0xff]
  %v212 = vld [vmem:[%s1 + $0x518] sm:$0xff]
  %v213 = vld [vmem:[%s1 + $0x520] sm:$0xff]
  %v214 = vld [vmem:[%s1 + $0x528] sm:$0xff]
  %v215 = vld [vmem:[%s1 + $0x530] sm:$0xff]
  %v216 = vld [vmem:[%s1 + $0x538] sm:$0xff]
  %v217 = vld [vmem:[%s1 + $0x540] sm:$0xff]
  %v218 = vld [vmem:[%s1 + $0x548] sm:$0xff]
  %v219 = vld [vmem:[%s1 + $0x550] sm:$0xff]
  %v220 = vld [vmem:[%s1 + $0x558] sm:$0xff]
  %v221 = vld [vmem:[%s1 + $0x560] sm:$0xff]
  %v222 = vld [vmem:[%s1 + $0x568] sm:$0xff]
  %v223 = vld [vmem:[%s1 + $0x570] sm:$0xff]
  %v224 = vld [vmem:[%s1 + $0x578] sm:$0xff]
  %v225 = vld [vmem:[%s1 + $0x580] sm:$0xff]
  %v226 = vld [vmem:[%s1 + $0x588] sm:$0xff]
  %v227 = vld [vmem:[%s1 + $0x590] sm:$0xff]
  %v228 = vld [vmem:[%s1 + $0x598] sm:$0xff]
  %v229 = vld [vmem:[%s1 + $0x5a0] sm:$0xff]
  %v230 = vld [vmem:[%s1 + $0x5a8] sm:$0xff]
  %v231 = vld [vmem:[%s1 + $0x5b0] sm:$0xff]
  %v232 = vld [vmem:[%s1 + $0x5b8] sm:$0xff]
  %v233 = vld [vmem:[%s1 + $0x5c0] sm:$0xff]
  %v234 = vld [vmem:[%s1 + $0x5c8] sm:$0xff]
  %v235 = vld [vmem:[%s1 + $0x5d0] sm:$0xff]
  %v236 = vld [vmem:[%s1 + $0x5d8] sm:$0xff]
  %v237 = vld [vmem:[%s1 + $0x5e0] sm:$0xff]
  %v238 = vld [vmem:[%s1 + $0x5e8] sm:$0xff]
  %v239 = vld [vmem:[%s1 + $0x5f0] sm:$0xff]
  %v240 = vld [vmem:[%s1 + $0x5f8] sm:$0xff]
  %v241 = vld [vmem:[%s1 + $0x600] sm:$0xff]
  %v242 = vld [vmem:[%s1 + $0x608] sm:$0xff]
  %v243 = vld [vmem:[%s1 + $0x610] sm:$0xff]
  %v244 = vld [vmem:[%s1 + $0x618] sm:$0xff]
  %v245 = vld [vmem:[%s1 + $0x620] sm:$0xff]
  %v246 = vld [vmem:[%s1 + $0x628] sm:$0xff]
  %v247 = vld [vmem:[%s1 + $0x630] sm:$0xff]
  %v248 = vld [vmem:[%s1 + $0x638] sm:$0xff]
  %v249 = vld [vmem:[%s1 + $0x640] sm:$0xff]
  %v250 = vld [vmem:[%s1 + $0x648] sm:$0xff]
  %v251 = vld [vmem:[%s1 + $0x650] sm:$0xff]
  %v252 = vld [vmem:[%s1 + $0x658] sm:$0xff]
  %v253 = vld [vmem:[%s1 + $0x660] sm:$0xff]
  %v254 = vld [vmem:[%s1 + $0x668] sm:$0xff]
  %v255 = vld [vmem:[%s1 + $0x670] sm:$0xff]
  %v256 = vld [vmem:[%s1 + $0x678] sm:$0xff]
  %v257 = vld [vmem:[%s1 + $0x680] sm:$0xff]
  %v258 = vld [vmem:[%s1 + $0x688] sm:$0xff]
  %v259 = vld [vmem:[%s1 + $0x690] sm:$0xff]
  %v260 = vld [vmem:[%s1 + $0x698] sm:$0xff]
  %v261 = vld [vmem:[%s1 + $0x6a0] sm:$0xff]
  %v262 = vld [vmem:[%s1 + $0x6a8] sm:$0xff]
  %v263 = vld [vmem:[%s1 + $0x6b0] sm:$0xff]
  %v264 = vld [vmem:[%s1 + $0x6b8] sm:$0xff]
  %v265 = vld [vmem:[%s1 + $0x6c0] sm:$0xff]
  %v266 = vld [vmem:[%s1 + $0x6c8] sm:$0xff]
  %v267 = vld [vmem:[%s1 + $0x6d0] sm:$0xff]
  %v268 = vld [vmem:[%s1 + $0x6d8] sm:$0xff]
  %v269 = vld [vmem:[%s1 + $0x6e0] sm:$0xff]
  %v270 = vld [vmem:[%s1 + $0x6e8] sm:$0xff]
  %v271 = vld [vmem:[%s1 + $0x6f0] sm:$0xff]
  %v272 = vld [vmem:[%s1 + $0x6f8] sm:$0xff]
  %v273 = vld [vmem:[%s1 + $0x700] sm:$0xff]
  %v274 = vld [vmem:[%s1 + $0x708] sm:$0xff]
  %v275 = vld [vmem:[%s1 + $0x710] sm:$0xff]
  %v276 = vld [vmem:[%s1 + $0x718] sm:$0xff]
  %v277 = vld [vmem:[%s1 + $0x720] sm:$0xff]
  %v278 = vld [vmem:[%s1 + $0x728] sm:$0xff]
  %v279 = vld [vmem:[%s1 + $0x730] sm:$0xff]
  %v280 = vld [vmem:[%s1 + $0x738] sm:$0xff]
  %v281 = vld [vmem:[%s1 + $0x740] sm:$0xff]
  %v282 = vld [vmem:[%s1 + $0x748] sm:$0xff]
  %v283 = vld [vmem:[%s1 + $0x750] sm:$0xff]
  %v284 = vld [vmem:[%s1 + $0x758] sm:$0xff]
  %v285 = vld [vmem:[%s1 + $0x760] sm:$0xff]
  %v286 = vld [vmem:[%s1 + $0x768] sm:$0xff]
  %v287 = vld [vmem:[%s1 + $0x770] sm:$0xff]
  %v288 = vld [vmem:[%s1 + $0x778] sm:$0xff]
  %v289 = vld [vmem:[%s1 + $0x780] sm:$0xff]
  %v290 = vld [vmem:[%s1 + $0x788] sm:$0xff]
  %v291 = vld [vmem:[%s1 + $0x790] sm:$0xff]
  %v292 = vld [vmem:[%s1 + $0x798] sm:$0xff]
  %v293 = vld [vmem:[%s1 + $0x7a0] sm:$0xff]
  %v294 = vld [vmem:[%s1 + $0x7a8] sm:$0xff]
  %v295 = vld [vmem:[%s1 + $0x7b0] sm:$0xff]
  %v296 = vld [vmem:[%s1 + $0x7b8] sm:$0xff]
  %v297 = vld [vmem:[%s1 + $0x7c0] sm:$0xff]
  %v298 = vld [vmem:[%s1 + $0x7c8] sm:$0xff]
  %v299 = vld [vmem:[%s1 + $0x7d0] sm:$0xff]
  %v300 = vld [vmem:[%s1 + $0x7d8] sm:$0xff]
  %v301 = vld [vmem:[%s1 + $0x7e0] sm:$0xff]
  %v302 = vld [vmem:[%s1 + $0x7e8] sm:$0xff]
  %v303 = vld [vmem:[%s1 + $0x7f0] sm:$0xff]
  %v304 = vld [vmem:[%s1 + $0x7f8] sm:$0xff]
  %v305 = vld [vmem:[%s2] sm:$0xf]
  %v307 = vperm.slane %v305, 0
  %v308 = vperm.slane %v305, 1
  %v309 = vperm.slane %v305, 2
  %v310 = vperm.slane %v305, 3
  %v323 = vunpack.c.l.b16 %v41
  %v324 = vunpack.c.h.b16 %v41
  %v325 = vunpack.c.l.b16 %v42
  %v326 = vunpack.c.h.b16 %v42
  %v327 = vunpack.c.l.b16 %v43
  %v328 = vunpack.c.h.b16 %v43
  %v329 = vunpack.c.l.b16 %v44
  %v330 = vunpack.c.h.b16 %v44
  %v331 = vunpack.c.l.b16 %v45
  %v332 = vunpack.c.h.b16 %v45
  %v333 = vunpack.c.l.b16 %v46
  %v334 = vunpack.c.h.b16 %v46
  %v335 = vunpack.c.l.b16 %v47
  %v336 = vunpack.c.h.b16 %v47
  %v337 = vunpack.c.l.b16 %v48
  %v338 = vunpack.c.h.b16 %v48
  %v339 = vpack.c.b16 %v331, %v323
  %v340 = vpack.c.b16 %v332, %v324
  %v341 = vpack.c.b16 %v333, %v325
  %v342 = vpack.c.b16 %v334, %v326
  %v343 = vpack.c.b16 %v335, %v327
  %v344 = vpack.c.b16 %v336, %v328
  %v345 = vpack.c.b16 %v337, %v329
  %v346 = vpack.c.b16 %v338, %v330
  %v611 = vunpack.c.l.b16 %v49
  %v612 = vunpack.c.h.b16 %v49
  %v613 = vunpack.c.l.b16 %v50
  %v614 = vunpack.c.h.b16 %v50
  %v615 = vunpack.c.l.b16 %v51
  %v616 = vunpack.c.h.b16 %v51
  %v617 = vunpack.c.l.b16 %v52
  %v618 = vunpack.c.h.b16 %v52
  %v619 = vunpack.c.l.b16 %v53
  %v620 = vunpack.c.h.b16 %v53
  %v621 = vunpack.c.l.b16 %v54
  %v622 = vunpack.c.h.b16 %v54
  %v623 = vunpack.c.l.b16 %v55
  %v624 = vunpack.c.h.b16 %v55
  %v625 = vunpack.c.l.b16 %v56
  %v626 = vunpack.c.h.b16 %v56
  %v627 = vunpack.c.l.b16 %v57
  %v628 = vunpack.c.h.b16 %v57
  %v629 = vunpack.c.l.b16 %v58
  %v630 = vunpack.c.h.b16 %v58
  %v631 = vunpack.c.l.b16 %v59
  %v632 = vunpack.c.h.b16 %v59
  %v633 = vunpack.c.l.b16 %v60
  %v634 = vunpack.c.h.b16 %v60
  %v635 = vunpack.c.l.b16 %v61
  %v636 = vunpack.c.h.b16 %v61
  %v637 = vunpack.c.l.b16 %v62
  %v638 = vunpack.c.h.b16 %v62
  %v639 = vunpack.c.l.b16 %v63
  %v640 = vunpack.c.h.b16 %v63
  %v641 = vunpack.c.l.b16 %v64
  %v642 = vunpack.c.h.b16 %v64
  %v643 = vunpack.c.l.b16 %v65
  %v644 = vunpack.c.h.b16 %v65
  %v645 = vunpack.c.l.b16 %v66
  %v646 = vunpack.c.h.b16 %v66
  %v647 = vunpack.c.l.b16 %v67
  %v648 = vunpack.c.h.b16 %v67
  %v649 = vunpack.c.l.b16 %v68
  %v650 = vunpack.c.h.b16 %v68
  %v651 = vunpack.c.l.b16 %v69
  %v652 = vunpack.c.h.b16 %v69
  %v653 = vunpack.c.l.b16 %v70
  %v654 = vunpack.c.h.b16 %v70
  %v655 = vunpack.c.l.b16 %v71
  %v656 = vunpack.c.h.b16 %v71
  %v657 = vunpack.c.l.b16 %v72
  %v658 = vunpack.c.h.b16 %v72
  %v659 = vunpack.c.l.b16 %v73
  %v660 = vunpack.c.h.b16 %v73
  %v661 = vunpack.c.l.b16 %v74
  %v662 = vunpack.c.h.b16 %v74
  %v663 = vunpack.c.l.b16 %v75
  %v664 = vunpack.c.h.b16 %v75
  %v665 = vunpack.c.l.b16 %v76
  %v666 = vunpack.c.h.b16 %v76
  %v667 = vunpack.c.l.b16 %v77
  %v668 = vunpack.c.h.b16 %v77
  %v669 = vunpack.c.l.b16 %v78
  %v670 = vunpack.c.h.b16 %v78
  %v671 = vunpack.c.l.b16 %v79
  %v672 = vunpack.c.h.b16 %v79
  %v673 = vunpack.c.l.b16 %v80
  %v674 = vunpack.c.h.b16 %v80
  %v675 = vunpack.c.l.b16 %v81
  %v676 = vunpack.c.h.b16 %v81
  %v677 = vunpack.c.l.b16 %v82
  %v678 = vunpack.c.h.b16 %v82
  %v679 = vunpack.c.l.b16 %v83
  %v680 = vunpack.c.h.b16 %v83
  %v681 = vunpack.c.l.b16 %v84
  %v682 = vunpack.c.h.b16 %v84
  %v683 = vunpack.c.l.b16 %v85
  %v684 = vunpack.c.h.b16 %v85
  %v685 = vunpack.c.l.b16 %v86
  %v686 = vunpack.c.h.b16 %v86
  %v687 = vunpack.c.l.b16 %v87
  %v688 = vunpack.c.h.b16 %v87
  %v689 = vunpack.c.l.b16 %v88
  %v690 = vunpack.c.h.b16 %v88
  %v691 = vunpack.c.l.b16 %v89
  %v692 = vunpack.c.h.b16 %v89
  %v693 = vunpack.c.l.b16 %v90
  %v694 = vunpack.c.h.b16 %v90
  %v695 = vunpack.c.l.b16 %v91
  %v696 = vunpack.c.h.b16 %v91
  %v697 = vunpack.c.l.b16 %v92
  %v698 = vunpack.c.h.b16 %v92
  %v699 = vunpack.c.l.b16 %v93
  %v700 = vunpack.c.h.b16 %v93
  %v701 = vunpack.c.l.b16 %v94
  %v702 = vunpack.c.h.b16 %v94
  %v703 = vunpack.c.l.b16 %v95
  %v704 = vunpack.c.h.b16 %v95
  %v705 = vunpack.c.l.b16 %v96
  %v706 = vunpack.c.h.b16 %v96
  %v707 = vunpack.c.l.b16 %v97
  %v708 = vunpack.c.h.b16 %v97
  %v709 = vunpack.c.l.b16 %v98
  %v710 = vunpack.c.h.b16 %v98
  %v711 = vunpack.c.l.b16 %v99
  %v712 = vunpack.c.h.b16 %v99
  %v713 = vunpack.c.l.b16 %v100
  %v714 = vunpack.c.h.b16 %v100
  %v715 = vunpack.c.l.b16 %v101
  %v716 = vunpack.c.h.b16 %v101
  %v717 = vunpack.c.l.b16 %v102
  %v718 = vunpack.c.h.b16 %v102
  %v719 = vunpack.c.l.b16 %v103
  %v720 = vunpack.c.h.b16 %v103
  %v721 = vunpack.c.l.b16 %v104
  %v722 = vunpack.c.h.b16 %v104
  %v723 = vunpack.c.l.b16 %v105
  %v724 = vunpack.c.h.b16 %v105
  %v725 = vunpack.c.l.b16 %v106
  %v726 = vunpack.c.h.b16 %v106
  %v727 = vunpack.c.l.b16 %v107
  %v728 = vunpack.c.h.b16 %v107
  %v729 = vunpack.c.l.b16 %v108
  %v730 = vunpack.c.h.b16 %v108
  %v731 = vunpack.c.l.b16 %v109
  %v732 = vunpack.c.h.b16 %v109
  %v733 = vunpack.c.l.b16 %v110
  %v734 = vunpack.c.h.b16 %v110
  %v735 = vunpack.c.l.b16 %v111
  %v736 = vunpack.c.h.b16 %v111
  %v737 = vunpack.c.l.b16 %v112
  %v738 = vunpack.c.h.b16 %v112
  %v739 = vunpack.c.l.b16 %v113
  %v740 = vunpack.c.h.b16 %v113
  %v741 = vunpack.c.l.b16 %v114
  %v742 = vunpack.c.h.b16 %v114
  %v743 = vunpack.c.l.b16 %v115
  %v744 = vunpack.c.h.b16 %v115
  %v745 = vunpack.c.l.b16 %v116
  %v746 = vunpack.c.h.b16 %v116
  %v747 = vunpack.c.l.b16 %v117
  %v748 = vunpack.c.h.b16 %v117
  %v749 = vunpack.c.l.b16 %v118
  %v750 = vunpack.c.h.b16 %v118
  %v751 = vunpack.c.l.b16 %v119
  %v752 = vunpack.c.h.b16 %v119
  %v753 = vunpack.c.l.b16 %v120
  %v754 = vunpack.c.h.b16 %v120
  %v755 = vunpack.c.l.b16 %v121
  %v756 = vunpack.c.h.b16 %v121
  %v757 = vunpack.c.l.b16 %v122
  %v758 = vunpack.c.h.b16 %v122
  %v759 = vunpack.c.l.b16 %v123
  %v760 = vunpack.c.h.b16 %v123
  %v761 = vunpack.c.l.b16 %v124
  %v762 = vunpack.c.h.b16 %v124
  %v763 = vunpack.c.l.b16 %v125
  %v764 = vunpack.c.h.b16 %v125
  %v765 = vunpack.c.l.b16 %v126
  %v766 = vunpack.c.h.b16 %v126
  %v767 = vunpack.c.l.b16 %v127
  %v768 = vunpack.c.h.b16 %v127
  %v769 = vunpack.c.l.b16 %v128
  %v770 = vunpack.c.h.b16 %v128
  %v771 = vunpack.c.l.b16 %v129
  %v772 = vunpack.c.h.b16 %v129
  %v773 = vunpack.c.l.b16 %v130
  %v774 = vunpack.c.h.b16 %v130
  %v775 = vunpack.c.l.b16 %v131
  %v776 = vunpack.c.h.b16 %v131
  %v777 = vunpack.c.l.b16 %v132
  %v778 = vunpack.c.h.b16 %v132
  %v779 = vunpack.c.l.b16 %v133
  %v780 = vunpack.c.h.b16 %v133
  %v781 = vunpack.c.l.b16 %v134
  %v782 = vunpack.c.h.b16 %v134
  %v783 = vunpack.c.l.b16 %v135
  %v784 = vunpack.c.h.b16 %v135
  %v785 = vunpack.c.l.b16 %v136
  %v786 = vunpack.c.h.b16 %v136
  %v787 = vunpack.c.l.b16 %v137
  %v788 = vunpack.c.h.b16 %v137
  %v789 = vunpack.c.l.b16 %v138
  %v790 = vunpack.c.h.b16 %v138
  %v791 = vunpack.c.l.b16 %v139
  %v792 = vunpack.c.h.b16 %v139
  %v793 = vunpack.c.l.b16 %v140
  %v794 = vunpack.c.h.b16 %v140
  %v795 = vunpack.c.l.b16 %v141
  %v796 = vunpack.c.h.b16 %v141
  %v797 = vunpack.c.l.b16 %v142
  %v798 = vunpack.c.h.b16 %v142
  %v799 = vunpack.c.l.b16 %v143
  %v800 = vunpack.c.h.b16 %v143
  %v801 = vunpack.c.l.b16 %v144
  %v802 = vunpack.c.h.b16 %v144
  %v803 = vunpack.c.l.b16 %v145
  %v804 = vunpack.c.h.b16 %v145
  %v805 = vunpack.c.l.b16 %v146
  %v806 = vunpack.c.h.b16 %v146
  %v807 = vunpack.c.l.b16 %v147
  %v808 = vunpack.c.h.b16 %v147
  %v809 = vunpack.c.l.b16 %v148
  %v810 = vunpack.c.h.b16 %v148
  %v811 = vunpack.c.l.b16 %v149
  %v812 = vunpack.c.h.b16 %v149
  %v813 = vunpack.c.l.b16 %v150
  %v814 = vunpack.c.h.b16 %v150
  %v815 = vunpack.c.l.b16 %v151
  %v816 = vunpack.c.h.b16 %v151
  %v817 = vunpack.c.l.b16 %v152
  %v818 = vunpack.c.h.b16 %v152
  %v819 = vunpack.c.l.b16 %v153
  %v820 = vunpack.c.h.b16 %v153
  %v821 = vunpack.c.l.b16 %v154
  %v822 = vunpack.c.h.b16 %v154
  %v823 = vunpack.c.l.b16 %v155
  %v824 = vunpack.c.h.b16 %v155
  %v825 = vunpack.c.l.b16 %v156
  %v826 = vunpack.c.h.b16 %v156
  %v827 = vunpack.c.l.b16 %v157
  %v828 = vunpack.c.h.b16 %v157
  %v829 = vunpack.c.l.b16 %v158
  %v830 = vunpack.c.h.b16 %v158
  %v831 = vunpack.c.l.b16 %v159
  %v832 = vunpack.c.h.b16 %v159
  %v833 = vunpack.c.l.b16 %v160
  %v834 = vunpack.c.h.b16 %v160
  %v835 = vunpack.c.l.b16 %v161
  %v836 = vunpack.c.h.b16 %v161
  %v837 = vunpack.c.l.b16 %v162
  %v838 = vunpack.c.h.b16 %v162
  %v839 = vunpack.c.l.b16 %v163
  %v840 = vunpack.c.h.b16 %v163
  %v841 = vunpack.c.l.b16 %v164
  %v842 = vunpack.c.h.b16 %v164
  %v843 = vunpack.c.l.b16 %v165
  %v844 = vunpack.c.h.b16 %v165
  %v845 = vunpack.c.l.b16 %v166
  %v846 = vunpack.c.h.b16 %v166
  %v847 = vunpack.c.l.b16 %v167
  %v848 = vunpack.c.h.b16 %v167
  %v849 = vunpack.c.l.b16 %v168
  %v850 = vunpack.c.h.b16 %v168
  %v851 = vunpack.c.l.b16 %v169
  %v852 = vunpack.c.h.b16 %v169
  %v853 = vunpack.c.l.b16 %v170
  %v854 = vunpack.c.h.b16 %v170
  %v855 = vunpack.c.l.b16 %v171
  %v856 = vunpack.c.h.b16 %v171
  %v857 = vunpack.c.l.b16 %v172
  %v858 = vunpack.c.h.b16 %v172
  %v859 = vunpack.c.l.b16 %v173
  %v860 = vunpack.c.h.b16 %v173
  %v861 = vunpack.c.l.b16 %v174
  %v862 = vunpack.c.h.b16 %v174
  %v863 = vunpack.c.l.b16 %v175
  %v864 = vunpack.c.h.b16 %v175
  %v865 = vunpack.c.l.b16 %v176
  %v866 = vunpack.c.h.b16 %v176
  %v867 = vunpack.c.l.b16 %v177
  %v868 = vunpack.c.h.b16 %v177
  %v869 = vunpack.c.l.b16 %v178
  %v870 = vunpack.c.h.b16 %v178
  %v871 = vunpack.c.l.b16 %v179
  %v872 = vunpack.c.h.b16 %v179
  %v873 = vunpack.c.l.b16 %v180
  %v874 = vunpack.c.h.b16 %v180
  %v875 = vunpack.c.l.b16 %v181
  %v876 = vunpack.c.h.b16 %v181
  %v877 = vunpack.c.l.b16 %v182
  %v878 = vunpack.c.h.b16 %v182
  %v879 = vunpack.c.l.b16 %v183
  %v880 = vunpack.c.h.b16 %v183
  %v881 = vunpack.c.l.b16 %v184
  %v882 = vunpack.c.h.b16 %v184
  %v883 = vunpack.c.l.b16 %v185
  %v884 = vunpack.c.h.b16 %v185
  %v885 = vunpack.c.l.b16 %v186
  %v886 = vunpack.c.h.b16 %v186
  %v887 = vunpack.c.l.b16 %v187
  %v888 = vunpack.c.h.b16 %v187
  %v889 = vunpack.c.l.b16 %v188
  %v890 = vunpack.c.h.b16 %v188
  %v891 = vunpack.c.l.b16 %v189
  %v892 = vunpack.c.h.b16 %v189
  %v893 = vunpack.c.l.b16 %v190
  %v894 = vunpack.c.h.b16 %v190
  %v895 = vunpack.c.l.b16 %v191
  %v896 = vunpack.c.h.b16 %v191
  %v897 = vunpack.c.l.b16 %v192
  %v898 = vunpack.c.h.b16 %v192
  %v899 = vunpack.c.l.b16 %v193
  %v900 = vunpack.c.h.b16 %v193
  %v901 = vunpack.c.l.b16 %v194
  %v902 = vunpack.c.h.b16 %v194
  %v903 = vunpack.c.l.b16 %v195
  %v904 = vunpack.c.h.b16 %v195
  %v905 = vunpack.c.l.b16 %v196
  %v906 = vunpack.c.h.b16 %v196
  %v907 = vunpack.c.l.b16 %v197
  %v908 = vunpack.c.h.b16 %v197
  %v909 = vunpack.c.l.b16 %v198
  %v910 = vunpack.c.h.b16 %v198
  %v911 = vunpack.c.l.b16 %v199
  %v912 = vunpack.c.h.b16 %v199
  %v913 = vunpack.c.l.b16 %v200
  %v914 = vunpack.c.h.b16 %v200
  %v915 = vunpack.c.l.b16 %v201
  %v916 = vunpack.c.h.b16 %v201
  %v917 = vunpack.c.l.b16 %v202
  %v918 = vunpack.c.h.b16 %v202
  %v919 = vunpack.c.l.b16 %v203
  %v920 = vunpack.c.h.b16 %v203
  %v921 = vunpack.c.l.b16 %v204
  %v922 = vunpack.c.h.b16 %v204
  %v923 = vunpack.c.l.b16 %v205
  %v924 = vunpack.c.h.b16 %v205
  %v925 = vunpack.c.l.b16 %v206
  %v926 = vunpack.c.h.b16 %v206
  %v927 = vunpack.c.l.b16 %v207
  %v928 = vunpack.c.h.b16 %v207
  %v929 = vunpack.c.l.b16 %v208
  %v930 = vunpack.c.h.b16 %v208
  %v931 = vunpack.c.l.b16 %v209
  %v932 = vunpack.c.h.b16 %v209
  %v933 = vunpack.c.l.b16 %v210
  %v934 = vunpack.c.h.b16 %v210
  %v935 = vunpack.c.l.b16 %v211
  %v936 = vunpack.c.h.b16 %v211
  %v937 = vunpack.c.l.b16 %v212
  %v938 = vunpack.c.h.b16 %v212
  %v939 = vunpack.c.l.b16 %v213
  %v940 = vunpack.c.h.b16 %v213
  %v941 = vunpack.c.l.b16 %v214
  %v942 = vunpack.c.h.b16 %v214
  %v943 = vunpack.c.l.b16 %v215
  %v944 = vunpack.c.h.b16 %v215
  %v945 = vunpack.c.l.b16 %v216
  %v946 = vunpack.c.h.b16 %v216
  %v947 = vunpack.c.l.b16 %v217
  %v948 = vunpack.c.h.b16 %v217
  %v949 = vunpack.c.l.b16 %v218
  %v950 = vunpack.c.h.b16 %v218
  %v951 = vunpack.c.l.b16 %v219
  %v952 = vunpack.c.h.b16 %v219
  %v953 = vunpack.c.l.b16 %v220
  %v954 = vunpack.c.h.b16 %v220
  %v955 = vunpack.c.l.b16 %v221
  %v956 = vunpack.c.h.b16 %v221
  %v957 = vunpack.c.l.b16 %v222
  %v958 = vunpack.c.h.b16 %v222
  %v959 = vunpack.c.l.b16 %v223
  %v960 = vunpack.c.h.b16 %v223
  %v961 = vunpack.c.l.b16 %v224
  %v962 = vunpack.c.h.b16 %v224
  %v963 = vunpack.c.l.b16 %v225
  %v964 = vunpack.c.h.b16 %v225
  %v965 = vunpack.c.l.b16 %v226
  %v966 = vunpack.c.h.b16 %v226
  %v967 = vunpack.c.l.b16 %v227
  %v968 = vunpack.c.h.b16 %v227
  %v969 = vunpack.c.l.b16 %v228
  %v970 = vunpack.c.h.b16 %v228
  %v971 = vunpack.c.l.b16 %v229
  %v972 = vunpack.c.h.b16 %v229
  %v973 = vunpack.c.l.b16 %v230
  %v974 = vunpack.c.h.b16 %v230
  %v975 = vunpack.c.l.b16 %v231
  %v976 = vunpack.c.h.b16 %v231
  %v977 = vunpack.c.l.b16 %v232
  %v978 = vunpack.c.h.b16 %v232
  %v979 = vunpack.c.l.b16 %v233
  %v980 = vunpack.c.h.b16 %v233
  %v981 = vunpack.c.l.b16 %v234
  %v982 = vunpack.c.h.b16 %v234
  %v983 = vunpack.c.l.b16 %v235
  %v984 = vunpack.c.h.b16 %v235
  %v985 = vunpack.c.l.b16 %v236
  %v986 = vunpack.c.h.b16 %v236
  %v987 = vunpack.c.l.b16 %v237
  %v988 = vunpack.c.h.b16 %v237
  %v989 = vunpack.c.l.b16 %v238
  %v990 = vunpack.c.h.b16 %v238
  %v991 = vunpack.c.l.b16 %v239
  %v992 = vunpack.c.h.b16 %v239
  %v993 = vunpack.c.l.b16 %v240
  %v994 = vunpack.c.h.b16 %v240
  %v995 = vunpack.c.l.b16 %v241
  %v996 = vunpack.c.h.b16 %v241
  %v997 = vunpack.c.l.b16 %v242
  %v998 = vunpack.c.h.b16 %v242
  %v999 = vunpack.c.l.b16 %v243
  %v1000 = vunpack.c.h.b16 %v243
  %v1001 = vunpack.c.l.b16 %v244
  %v1002 = vunpack.c.h.b16 %v244
  %v1003 = vunpack.c.l.b16 %v245
  %v1004 = vunpack.c.h.b16 %v245
  %v1005 = vunpack.c.l.b16 %v246
  %v1006 = vunpack.c.h.b16 %v246
  %v1007 = vunpack.c.l.b16 %v247
  %v1008 = vunpack.c.h.b16 %v247
  %v1009 = vunpack.c.l.b16 %v248
  %v1010 = vunpack.c.h.b16 %v248
  %v1011 = vunpack.c.l.b16 %v249
  %v1012 = vunpack.c.h.b16 %v249
  %v1013 = vunpack.c.l.b16 %v250
  %v1014 = vunpack.c.h.b16 %v250
  %v1015 = vunpack.c.l.b16 %v251
  %v1016 = vunpack.c.h.b16 %v251
  %v1017 = vunpack.c.l.b16 %v252
  %v1018 = vunpack.c.h.b16 %v252
  %v1019 = vunpack.c.l.b16 %v253
  %v1020 = vunpack.c.h.b16 %v253
  %v1021 = vunpack.c.l.b16 %v254
  %v1022 = vunpack.c.h.b16 %v254
  %v1023 = vunpack.c.l.b16 %v255
  %v1024 = vunpack.c.h.b16 %v255
  %v1025 = vunpack.c.l.b16 %v256
  %v1026 = vunpack.c.h.b16 %v256
  %v1027 = vunpack.c.l.b16 %v257
  %v1028 = vunpack.c.h.b16 %v257
  %v1029 = vunpack.c.l.b16 %v258
  %v1030 = vunpack.c.h.b16 %v258
  %v1031 = vunpack.c.l.b16 %v259
  %v1032 = vunpack.c.h.b16 %v259
  %v1033 = vunpack.c.l.b16 %v260
  %v1034 = vunpack.c.h.b16 %v260
  %v1035 = vunpack.c.l.b16 %v261
  %v1036 = vunpack.c.h.b16 %v261
  %v1037 = vunpack.c.l.b16 %v262
  %v1038 = vunpack.c.h.b16 %v262
  %v1039 = vunpack.c.l.b16 %v263
  %v1040 = vunpack.c.h.b16 %v263
  %v1041 = vunpack.c.l.b16 %v264
  %v1042 = vunpack.c.h.b16 %v264
  %v1043 = vunpack.c.l.b16 %v265
  %v1044 = vunpack.c.h.b16 %v265
  %v1045 = vunpack.c.l.b16 %v266
  %v1046 = vunpack.c.h.b16 %v266
  %v1047 = vunpack.c.l.b16 %v267
  %v1048 = vunpack.c.h.b16 %v267
  %v1049 = vunpack.c.l.b16 %v268
  %v1050 = vunpack.c.h.b16 %v268
  %v1051 = vunpack.c.l.b16 %v269
  %v1052 = vunpack.c.h.b16 %v269
  %v1053 = vunpack.c.l.b16 %v270
  %v1054 = vunpack.c.h.b16 %v270
  %v1055 = vunpack.c.l.b16 %v271
  %v1056 = vunpack.c.h.b16 %v271
  %v1057 = vunpack.c.l.b16 %v272
  %v1058 = vunpack.c.h.b16 %v272
  %v1059 = vunpack.c.l.b16 %v273
  %v1060 = vunpack.c.h.b16 %v273
  %v1061 = vunpack.c.l.b16 %v274
  %v1062 = vunpack.c.h.b16 %v274
  %v1063 = vunpack.c.l.b16 %v275
  %v1064 = vunpack.c.h.b16 %v275
  %v1065 = vunpack.c.l.b16 %v276
  %v1066 = vunpack.c.h.b16 %v276
  %v1067 = vunpack.c.l.b16 %v277
  %v1068 = vunpack.c.h.b16 %v277
  %v1069 = vunpack.c.l.b16 %v278
  %v1070 = vunpack.c.h.b16 %v278
  %v1071 = vunpack.c.l.b16 %v279
  %v1072 = vunpack.c.h.b16 %v279
  %v1073 = vunpack.c.l.b16 %v280
  %v1074 = vunpack.c.h.b16 %v280
  %v1075 = vunpack.c.l.b16 %v281
  %v1076 = vunpack.c.h.b16 %v281
  %v1077 = vunpack.c.l.b16 %v282
  %v1078 = vunpack.c.h.b16 %v282
  %v1079 = vunpack.c.l.b16 %v283
  %v1080 = vunpack.c.h.b16 %v283
  %v1081 = vunpack.c.l.b16 %v284
  %v1082 = vunpack.c.h.b16 %v284
  %v1083 = vunpack.c.l.b16 %v285
  %v1084 = vunpack.c.h.b16 %v285
  %v1085 = vunpack.c.l.b16 %v286
  %v1086 = vunpack.c.h.b16 %v286
  %v1087 = vunpack.c.l.b16 %v287
  %v1088 = vunpack.c.h.b16 %v287
  %v1089 = vunpack.c.l.b16 %v288
  %v1090 = vunpack.c.h.b16 %v288
  %v1091 = vunpack.c.l.b16 %v289
  %v1092 = vunpack.c.h.b16 %v289
  %v1093 = vunpack.c.l.b16 %v290
  %v1094 = vunpack.c.h.b16 %v290
  %v1095 = vunpack.c.l.b16 %v291
  %v1096 = vunpack.c.h.b16 %v291
  %v1097 = vunpack.c.l.b16 %v292
  %v1098 = vunpack.c.h.b16 %v292
  %v1099 = vunpack.c.l.b16 %v293
  %v1100 = vunpack.c.h.b16 %v293
  %v1101 = vunpack.c.l.b16 %v294
  %v1102 = vunpack.c.h.b16 %v294
  %v1103 = vunpack.c.l.b16 %v295
  %v1104 = vunpack.c.h.b16 %v295
  %v1105 = vunpack.c.l.b16 %v296
  %v1106 = vunpack.c.h.b16 %v296
  %v1107 = vunpack.c.l.b16 %v297
  %v1108 = vunpack.c.h.b16 %v297
  %v1109 = vunpack.c.l.b16 %v298
  %v1110 = vunpack.c.h.b16 %v298
  %v1111 = vunpack.c.l.b16 %v299
  %v1112 = vunpack.c.h.b16 %v299
  %v1113 = vunpack.c.l.b16 %v300
  %v1114 = vunpack.c.h.b16 %v300
  %v1115 = vunpack.c.l.b16 %v301
  %v1116 = vunpack.c.h.b16 %v301
  %v1117 = vunpack.c.l.b16 %v302
  %v1118 = vunpack.c.h.b16 %v302
  %v1119 = vunpack.c.l.b16 %v303
  %v1120 = vunpack.c.h.b16 %v303
  %v1121 = vunpack.c.l.b16 %v304
  %v1122 = vunpack.c.h.b16 %v304
  %v1123 = vpack.c.b16 %v615, %v611
  %v1124 = vpack.c.b16 %v616, %v612
  %v1125 = vpack.c.b16 %v617, %v613
  %v1126 = vpack.c.b16 %v618, %v614
  %v1127 = vpack.c.b16 %v623, %v619
  %v1128 = vpack.c.b16 %v624, %v620
  %v1129 = vpack.c.b16 %v625, %v621
  %v1130 = vpack.c.b16 %v626, %v622
  %v1131 = vpack.c.b16 %v631, %v627
  %v1132 = vpack.c.b16 %v632, %v628
  %v1133 = vpack.c.b16 %v633, %v629
  %v1134 = vpack.c.b16 %v634, %v630
  %v1135 = vpack.c.b16 %v639, %v635
  %v1136 = vpack.c.b16 %v640, %v636
  %v1137 = vpack.c.b16 %v641, %v637
  %v1138 = vpack.c.b16 %v642, %v638
  %v1139 = vpack.c.b16 %v647, %v643
  %v1140 = vpack.c.b16 %v648, %v644
  %v1141 = vpack.c.b16 %v649, %v645
  %v1142 = vpack.c.b16 %v650, %v646
  %v1143 = vpack.c.b16 %v655, %v651
  %v1144 = vpack.c.b16 %v656, %v652
  %v1145 = vpack.c.b16 %v657, %v653
  %v1146 = vpack.c.b16 %v658, %v654
  %v1147 = vpack.c.b16 %v663, %v659
  %v1148 = vpack.c.b16 %v664, %v660
  %v1149 = vpack.c.b16 %v665, %v661
  %v1150 = vpack.c.b16 %v666, %v662
  %v1151 = vpack.c.b16 %v671, %v667
  %v1152 = vpack.c.b16 %v672, %v668
  %v1153 = vpack.c.b16 %v673, %v669
  %v1154 = vpack.c.b16 %v674, %v670
  %v1155 = vpack.c.b16 %v679, %v675
  %v1156 = vpack.c.b16 %v680, %v676
  %v1157 = vpack.c.b16 %v681, %v677
  %v1158 = vpack.c.b16 %v682, %v678
  %v1159 = vpack.c.b16 %v687, %v683
  %v1160 = vpack.c.b16 %v688, %v684
  %v1161 = vpack.c.b16 %v689, %v685
  %v1162 = vpack.c.b16 %v690, %v686
  %v1163 = vpack.c.b16 %v695, %v691
  %v1164 = vpack.c.b16 %v696, %v692
  %v1165 = vpack.c.b16 %v697, %v693
  %v1166 = vpack.c.b16 %v698, %v694
  %v1167 = vpack.c.b16 %v703, %v699
  %v1168 = vpack.c.b16 %v704, %v700
  %v1169 = vpack.c.b16 %v705, %v701
  %v1170 = vpack.c.b16 %v706, %v702
  %v1171 = vpack.c.b16 %v711, %v707
  %v1172 = vpack.c.b16 %v712, %v708
  %v1173 = vpack.c.b16 %v713, %v709
  %v1174 = vpack.c.b16 %v714, %v710
  %v1175 = vpack.c.b16 %v719, %v715
  %v1176 = vpack.c.b16 %v720, %v716
  %v1177 = vpack.c.b16 %v721, %v717
  %v1178 = vpack.c.b16 %v722, %v718
  %v1179 = vpack.c.b16 %v727, %v723
  %v1180 = vpack.c.b16 %v728, %v724
  %v1181 = vpack.c.b16 %v729, %v725
  %v1182 = vpack.c.b16 %v730, %v726
  %v1183 = vpack.c.b16 %v735, %v731
  %v1184 = vpack.c.b16 %v736, %v732
  %v1185 = vpack.c.b16 %v737, %v733
  %v1186 = vpack.c.b16 %v738, %v734
  %v1187 = vpack.c.b16 %v743, %v739
  %v1188 = vpack.c.b16 %v744, %v740
  %v1189 = vpack.c.b16 %v745, %v741
  %v1190 = vpack.c.b16 %v746, %v742
  %v1191 = vpack.c.b16 %v751, %v747
  %v1192 = vpack.c.b16 %v752, %v748
  %v1193 = vpack.c.b16 %v753, %v749
  %v1194 = vpack.c.b16 %v754, %v750
  %v1195 = vpack.c.b16 %v759, %v755
  %v1196 = vpack.c.b16 %v760, %v756
  %v1197 = vpack.c.b16 %v761, %v757
  %v1198 = vpack.c.b16 %v762, %v758
  %v1199 = vpack.c.b16 %v767, %v763
  %v1200 = vpack.c.b16 %v768, %v764
  %v1201 = vpack.c.b16 %v769, %v765
  %v1202 = vpack.c.b16 %v770, %v766
  %v1203 = vpack.c.b16 %v775, %v771
  %v1204 = vpack.c.b16 %v776, %v772
  %v1205 = vpack.c.b16 %v777, %v773
  %v1206 = vpack.c.b16 %v778, %v774
  %v1207 = vpack.c.b16 %v783, %v779
  %v1208 = vpack.c.b16 %v784, %v780
  %v1209 = vpack.c.b16 %v785, %v781
  %v1210 = vpack.c.b16 %v786, %v782
  %v1211 = vpack.c.b16 %v791, %v787
  %v1212 = vpack.c.b16 %v792, %v788
  %v1213 = vpack.c.b16 %v793, %v789
  %v1214 = vpack.c.b16 %v794, %v790
  %v1215 = vpack.c.b16 %v799, %v795
  %v1216 = vpack.c.b16 %v800, %v796
  %v1217 = vpack.c.b16 %v801, %v797
  %v1218 = vpack.c.b16 %v802, %v798
  %v1219 = vpack.c.b16 %v807, %v803
  %v1220 = vpack.c.b16 %v808, %v804
  %v1221 = vpack.c.b16 %v809, %v805
  %v1222 = vpack.c.b16 %v810, %v806
  %v1223 = vpack.c.b16 %v815, %v811
  %v1224 = vpack.c.b16 %v816, %v812
  %v1225 = vpack.c.b16 %v817, %v813
  %v1226 = vpack.c.b16 %v818, %v814
  %v1227 = vpack.c.b16 %v823, %v819
  %v1228 = vpack.c.b16 %v824, %v820
  %v1229 = vpack.c.b16 %v825, %v821
  %v1230 = vpack.c.b16 %v826, %v822
  %v1231 = vpack.c.b16 %v831, %v827
  %v1232 = vpack.c.b16 %v832, %v828
  %v1233 = vpack.c.b16 %v833, %v829
  %v1234 = vpack.c.b16 %v834, %v830
  %v1235 = vpack.c.b16 %v839, %v835
  %v1236 = vpack.c.b16 %v840, %v836
  %v1237 = vpack.c.b16 %v841, %v837
  %v1238 = vpack.c.b16 %v842, %v838
  %v1239 = vpack.c.b16 %v847, %v843
  %v1240 = vpack.c.b16 %v848, %v844
  %v1241 = vpack.c.b16 %v849, %v845
  %v1242 = vpack.c.b16 %v850, %v846
  %v1243 = vpack.c.b16 %v855, %v851
  %v1244 = vpack.c.b16 %v856, %v852
  %v1245 = vpack.c.b16 %v857, %v853
  %v1246 = vpack.c.b16 %v858, %v854
  %v1247 = vpack.c.b16 %v863, %v859
  %v1248 = vpack.c.b16 %v864, %v860
  %v1249 = vpack.c.b16 %v865, %v861
  %v1250 = vpack.c.b16 %v866, %v862
  %v1251 = vpack.c.b16 %v871, %v867
  %v1252 = vpack.c.b16 %v872, %v868
  %v1253 = vpack.c.b16 %v873, %v869
  %v1254 = vpack.c.b16 %v874, %v870
  %v1255 = vpack.c.b16 %v879, %v875
  %v1256 = vpack.c.b16 %v880, %v876
  %v1257 = vpack.c.b16 %v881, %v877
  %v1258 = vpack.c.b16 %v882, %v878
  %v1259 = vpack.c.b16 %v887, %v883
  %v1260 = vpack.c.b16 %v888, %v884
  %v1261 = vpack.c.b16 %v889, %v885
  %v1262 = vpack.c.b16 %v890, %v886
  %v1263 = vpack.c.b16 %v895, %v891
  %v1264 = vpack.c.b16 %v896, %v892
  %v1265 = vpack.c.b16 %v897, %v893
  %v1266 = vpack.c.b16 %v898, %v894
  %v1267 = vpack.c.b16 %v903, %v899
  %v1268 = vpack.c.b16 %v904, %v900
  %v1269 = vpack.c.b16 %v905, %v901
  %v1270 = vpack.c.b16 %v906, %v902
  %v1271 = vpack.c.b16 %v911, %v907
  %v1272 = vpack.c.b16 %v912, %v908
  %v1273 = vpack.c.b16 %v913, %v909
  %v1274 = vpack.c.b16 %v914, %v910
  %v1275 = vpack.c.b16 %v919, %v915
  %v1276 = vpack.c.b16 %v920, %v916
  %v1277 = vpack.c.b16 %v921, %v917
  %v1278 = vpack.c.b16 %v922, %v918
  %v1279 = vpack.c.b16 %v927, %v923
  %v1280 = vpack.c.b16 %v928, %v924
  %v1281 = vpack.c.b16 %v929, %v925
  %v1282 = vpack.c.b16 %v930, %v926
  %v1283 = vpack.c.b16 %v935, %v931
  %v1284 = vpack.c.b16 %v936, %v932
  %v1285 = vpack.c.b16 %v937, %v933
  %v1286 = vpack.c.b16 %v938, %v934
  %v1287 = vpack.c.b16 %v943, %v939
  %v1288 = vpack.c.b16 %v944, %v940
  %v1289 = vpack.c.b16 %v945, %v941
  %v1290 = vpack.c.b16 %v946, %v942
  %v1291 = vpack.c.b16 %v951, %v947
  %v1292 = vpack.c.b16 %v952, %v948
  %v1293 = vpack.c.b16 %v953, %v949
  %v1294 = vpack.c.b16 %v954, %v950
  %v1295 = vpack.c.b16 %v959, %v955
  %v1296 = vpack.c.b16 %v960, %v956
  %v1297 = vpack.c.b16 %v961, %v957
  %v1298 = vpack.c.b16 %v962, %v958
  %v1299 = vpack.c.b16 %v967, %v963
  %v1300 = vpack.c.b16 %v968, %v964
  %v1301 = vpack.c.b16 %v969, %v965
  %v1302 = vpack.c.b16 %v970, %v966
  %v1303 = vpack.c.b16 %v975, %v971
  %v1304 = vpack.c.b16 %v976, %v972
  %v1305 = vpack.c.b16 %v977, %v973
  %v1306 = vpack.c.b16 %v978, %v974
  %v1307 = vpack.c.b16 %v983, %v979
  %v1308 = vpack.c.b16 %v984, %v980
  %v1309 = vpack.c.b16 %v985, %v981
  %v1310 = vpack.c.b16 %v986, %v982
  %v1311 = vpack.c.b16 %v991, %v987
  %v1312 = vpack.c.b16 %v992, %v988
  %v1313 = vpack.c.b16 %v993, %v989
  %v1314 = vpack.c.b16 %v994, %v990
  %v1315 = vpack.c.b16 %v999, %v995
  %v1316 = vpack.c.b16 %v1000, %v996
  %v1317 = vpack.c.b16 %v1001, %v997
  %v1318 = vpack.c.b16 %v1002, %v998
  %v1319 = vpack.c.b16 %v1007, %v1003
  %v1320 = vpack.c.b16 %v1008, %v1004
  %v1321 = vpack.c.b16 %v1009, %v1005
  %v1322 = vpack.c.b16 %v1010, %v1006
  %v1323 = vpack.c.b16 %v1015, %v1011
  %v1324 = vpack.c.b16 %v1016, %v1012
  %v1325 = vpack.c.b16 %v1017, %v1013
  %v1326 = vpack.c.b16 %v1018, %v1014
  %v1327 = vpack.c.b16 %v1023, %v1019
  %v1328 = vpack.c.b16 %v1024, %v1020
  %v1329 = vpack.c.b16 %v1025, %v1021
  %v1330 = vpack.c.b16 %v1026, %v1022
  %v1331 = vpack.c.b16 %v1031, %v1027
  %v1332 = vpack.c.b16 %v1032, %v1028
  %v1333 = vpack.c.b16 %v1033, %v1029
  %v1334 = vpack.c.b16 %v1034, %v1030
  %v1335 = vpack.c.b16 %v1039, %v1035
  %v1336 = vpack.c.b16 %v1040, %v1036
  %v1337 = vpack.c.b16 %v1041, %v1037
  %v1338 = vpack.c.b16 %v1042, %v1038
  %v1339 = vpack.c.b16 %v1047, %v1043
  %v1340 = vpack.c.b16 %v1048, %v1044
  %v1341 = vpack.c.b16 %v1049, %v1045
  %v1342 = vpack.c.b16 %v1050, %v1046
  %v1343 = vpack.c.b16 %v1055, %v1051
  %v1344 = vpack.c.b16 %v1056, %v1052
  %v1345 = vpack.c.b16 %v1057, %v1053
  %v1346 = vpack.c.b16 %v1058, %v1054
  %v1347 = vpack.c.b16 %v1063, %v1059
  %v1348 = vpack.c.b16 %v1064, %v1060
  %v1349 = vpack.c.b16 %v1065, %v1061
  %v1350 = vpack.c.b16 %v1066, %v1062
  %v1351 = vpack.c.b16 %v1071, %v1067
  %v1352 = vpack.c.b16 %v1072, %v1068
  %v1353 = vpack.c.b16 %v1073, %v1069
  %v1354 = vpack.c.b16 %v1074, %v1070
  %v1355 = vpack.c.b16 %v1079, %v1075
  %v1356 = vpack.c.b16 %v1080, %v1076
  %v1357 = vpack.c.b16 %v1081, %v1077
  %v1358 = vpack.c.b16 %v1082, %v1078
  %v1359 = vpack.c.b16 %v1087, %v1083
  %v1360 = vpack.c.b16 %v1088, %v1084
  %v1361 = vpack.c.b16 %v1089, %v1085
  %v1362 = vpack.c.b16 %v1090, %v1086
  %v1363 = vpack.c.b16 %v1095, %v1091
  %v1364 = vpack.c.b16 %v1096, %v1092
  %v1365 = vpack.c.b16 %v1097, %v1093
  %v1366 = vpack.c.b16 %v1098, %v1094
  %v1367 = vpack.c.b16 %v1103, %v1099
  %v1368 = vpack.c.b16 %v1104, %v1100
  %v1369 = vpack.c.b16 %v1105, %v1101
  %v1370 = vpack.c.b16 %v1106, %v1102
  %v1371 = vpack.c.b16 %v1111, %v1107
  %v1372 = vpack.c.b16 %v1112, %v1108
  %v1373 = vpack.c.b16 %v1113, %v1109
  %v1374 = vpack.c.b16 %v1114, %v1110
  %v1375 = vpack.c.b16 %v1119, %v1115
  %v1376 = vpack.c.b16 %v1120, %v1116
  %v1377 = vpack.c.b16 %v1121, %v1117
  %v1378 = vpack.c.b16 %v1122, %v1118
  %1635 = vmatpush.bf16.msra.mxu0 %v1151
  %1636 = vmatpush.bf16.msra.mxu0 %v1147
  %1637 = vmatpush.bf16.msra.mxu0 %v1143
  %1638 = vmatpush.bf16.msra.mxu0 %v1139
  %1639 = vmatpush.bf16.msra.mxu0 %v1135
  %1640 = vmatpush.bf16.msra.mxu0 %v1131
  %1641 = vmatpush.bf16.msra.mxu0 %v1127
  %1642 = vmatpush.bf16.msra.mxu0 %v1123
  %1643 = vmatmul.bf16.gmra.mxu0 %v339
  %v1644 = vpop.f32.mrf.mxu0
  %v1645 = vadd.f32 %v307, %v1644
  %v1646 = vpop.f32.mrf.mxu0
  %v1647 = vadd.f32 %v307, %v1646
  %1648 = vdwg.mxu0
  %1649 = vmatpush.bf16.msra.mxu0 %v1183
  %1650 = vmatpush.bf16.msra.mxu0 %v1179
  %1651 = vmatpush.bf16.msra.mxu0 %v1175
  %1652 = vmatpush.bf16.msra.mxu0 %v1171
  %1653 = vmatpush.bf16.msra.mxu0 %v1167
  %1654 = vmatpush.bf16.msra.mxu0 %v1163
  %1655 = vmatpush.bf16.msra.mxu0 %v1159
  %1656 = vmatpush.bf16.msra.mxu0 %v1155
  %1657 = vmatmul.bf16.gmra.mxu0 %v340
  %v1658 = vpop.f32.mrf.mxu0
  %v1659 = vadd.f32 %v1645, %v1658
  %v1660 = vpop.f32.mrf.mxu0
  %v1661 = vadd.f32 %v1647, %v1660
  %1662 = vdwg.mxu0
  %1663 = vmatpush.bf16.msra.mxu0 %v1215
  %1664 = vmatpush.bf16.msra.mxu0 %v1211
  %1665 = vmatpush.bf16.msra.mxu0 %v1207
  %1666 = vmatpush.bf16.msra.mxu0 %v1203
  %1667 = vmatpush.bf16.msra.mxu0 %v1199
  %1668 = vmatpush.bf16.msra.mxu0 %v1195
  %1669 = vmatpush.bf16.msra.mxu0 %v1191
  %1670 = vmatpush.bf16.msra.mxu0 %v1187
  %1671 = vmatmul.bf16.gmra.mxu0 %v341
  %v1672 = vpop.f32.mrf.mxu0
  %v1673 = vadd.f32 %v1659, %v1672
  %v1674 = vpop.f32.mrf.mxu0
  %v1675 = vadd.f32 %v1661, %v1674
  %1676 = vdwg.mxu0
  %1677 = vmatpush.bf16.msra.mxu0 %v1247
  %1678 = vmatpush.bf16.msra.mxu0 %v1243
  %1679 = vmatpush.bf16.msra.mxu0 %v1239
  %1680 = vmatpush.bf16.msra.mxu0 %v1235
  %1681 = vmatpush.bf16.msra.mxu0 %v1231
  %1682 = vmatpush.bf16.msra.mxu0 %v1227
  %1683 = vmatpush.bf16.msra.mxu0 %v1223
  %1684 = vmatpush.bf16.msra.mxu0 %v1219
  %1685 = vmatmul.bf16.gmra.mxu0 %v342
  %v1686 = vpop.f32.mrf.mxu0
  %v1687 = vadd.f32 %v1673, %v1686
  %v1688 = vpop.f32.mrf.mxu0
  %v1689 = vadd.f32 %v1675, %v1688
  %1690 = vdwg.mxu0
  %1691 = vmatpush.bf16.msra.mxu0 %v1279
  %1692 = vmatpush.bf16.msra.mxu0 %v1275
  %1693 = vmatpush.bf16.msra.mxu0 %v1271
  %1694 = vmatpush.bf16.msra.mxu0 %v1267
  %1695 = vmatpush.bf16.msra.mxu0 %v1263
  %1696 = vmatpush.bf16.msra.mxu0 %v1259
  %1697 = vmatpush.bf16.msra.mxu0 %v1255
  %1698 = vmatpush.bf16.msra.mxu0 %v1251
  %1699 = vmatmul.bf16.gmra.mxu0 %v343
  %v1700 = vpop.f32.mrf.mxu0
  %v1701 = vadd.f32 %v1687, %v1700
  %v1702 = vpop.f32.mrf.mxu0
  %v1703 = vadd.f32 %v1689, %v1702
  %1704 = vdwg.mxu0
  %1705 = vmatpush.bf16.msra.mxu0 %v1311
  %1706 = vmatpush.bf16.msra.mxu0 %v1307
  %1707 = vmatpush.bf16.msra.mxu0 %v1303
  %1708 = vmatpush.bf16.msra.mxu0 %v1299
  %1709 = vmatpush.bf16.msra.mxu0 %v1295
  %1710 = vmatpush.bf16.msra.mxu0 %v1291
  %1711 = vmatpush.bf16.msra.mxu0 %v1287
  %1712 = vmatpush.bf16.msra.mxu0 %v1283
  %1713 = vmatmul.bf16.gmra.mxu0 %v344
  %v1714 = vpop.f32.mrf.mxu0
  %v1715 = vadd.f32 %v1701, %v1714
  %v1716 = vpop.f32.mrf.mxu0
  %v1717 = vadd.f32 %v1703, %v1716
  %1718 = vdwg.mxu0
  %1719 = vmatpush.bf16.msra.mxu0 %v1343
  %1720 = vmatpush.bf16.msra.mxu0 %v1339
  %1721 = vmatpush.bf16.msra.mxu0 %v1335
  %1722 = vmatpush.bf16.msra.mxu0 %v1331
  %1723 = vmatpush.bf16.msra.mxu0 %v1327
  %1724 = vmatpush.bf16.msra.mxu0 %v1323
  %1725 = vmatpush.bf16.msra.mxu0 %v1319
  %1726 = vmatpush.bf16.msra.mxu0 %v1315
  %1727 = vmatmul.bf16.gmra.mxu0 %v345
  %v1728 = vpop.f32.mrf.mxu0
  %v1729 = vadd.f32 %v1715, %v1728
  %v1730 = vpop.f32.mrf.mxu0
  %v1731 = vadd.f32 %v1717, %v1730
  %1732 = vdwg.mxu0
  %1733 = vmatpush.bf16.msra.mxu0 %v1375
  %1734 = vmatpush.bf16.msra.mxu0 %v1371
  %1735 = vmatpush.bf16.msra.mxu0 %v1367
  %1736 = vmatpush.bf16.msra.mxu0 %v1363
  %1737 = vmatpush.bf16.msra.mxu0 %v1359
  %1738 = vmatpush.bf16.msra.mxu0 %v1355
  %1739 = vmatpush.bf16.msra.mxu0 %v1351
  %1740 = vmatpush.bf16.msra.mxu0 %v1347
  %1741 = vmatmul.bf16.gmra.mxu0 %v346
  %v1742 = vpop.f32.mrf.mxu0
  %v1743 = vadd.f32 %v1729, %v1742
  %v1744 = vpop.f32.mrf.mxu0
  %v1745 = vadd.f32 %v1731, %v1744
  %1746 = vdwg.mxu0
  %1747 = vmatpush.bf16.msra.mxu0 %v1152
  %1748 = vmatpush.bf16.msra.mxu0 %v1148
  %1749 = vmatpush.bf16.msra.mxu0 %v1144
  %1750 = vmatpush.bf16.msra.mxu0 %v1140
  %1751 = vmatpush.bf16.msra.mxu0 %v1136
  %1752 = vmatpush.bf16.msra.mxu0 %v1132
  %1753 = vmatpush.bf16.msra.mxu0 %v1128
  %1754 = vmatpush.bf16.msra.mxu0 %v1124
  %1755 = vmatmul.bf16.gmra.mxu0 %v339
  %v1756 = vpop.f32.mrf.mxu0
  %v1757 = vadd.f32 %v308, %v1756
  %v1758 = vpop.f32.mrf.mxu0
  %v1759 = vadd.f32 %v308, %v1758
  %1760 = vdwg.mxu0
  %1761 = vmatpush.bf16.msra.mxu0 %v1184
  %1762 = vmatpush.bf16.msra.mxu0 %v1180
  %1763 = vmatpush.bf16.msra.mxu0 %v1176
  %1764 = vmatpush.bf16.msra.mxu0 %v1172
  %1765 = vmatpush.bf16.msra.mxu0 %v1168
  %1766 = vmatpush.bf16.msra.mxu0 %v1164
  %1767 = vmatpush.bf16.msra.mxu0 %v1160
  %1768 = vmatpush.bf16.msra.mxu0 %v1156
  %1769 = vmatmul.bf16.gmra.mxu0 %v340
  %v1770 = vpop.f32.mrf.mxu0
  %v1771 = vadd.f32 %v1757, %v1770
  %v1772 = vpop.f32.mrf.mxu0
  %v1773 = vadd.f32 %v1759, %v1772
  %1774 = vdwg.mxu0
  %1775 = vmatpush.bf16.msra.mxu0 %v1216
  %1776 = vmatpush.bf16.msra.mxu0 %v1212
  %1777 = vmatpush.bf16.msra.mxu0 %v1208
  %1778 = vmatpush.bf16.msra.mxu0 %v1204
  %1779 = vmatpush.bf16.msra.mxu0 %v1200
  %1780 = vmatpush.bf16.msra.mxu0 %v1196
  %1781 = vmatpush.bf16.msra.mxu0 %v1192
  %1782 = vmatpush.bf16.msra.mxu0 %v1188
  %1783 = vmatmul.bf16.gmra.mxu0 %v341
  %v1784 = vpop.f32.mrf.mxu0
  %v1785 = vadd.f32 %v1771, %v1784
  %v1786 = vpop.f32.mrf.mxu0
  %v1787 = vadd.f32 %v1773, %v1786
  %1788 = vdwg.mxu0
  %1789 = vmatpush.bf16.msra.mxu0 %v1248
  %1790 = vmatpush.bf16.msra.mxu0 %v1244
  %1791 = vmatpush.bf16.msra.mxu0 %v1240
  %1792 = vmatpush.bf16.msra.mxu0 %v1236
  %1793 = vmatpush.bf16.msra.mxu0 %v1232
  %1794 = vmatpush.bf16.msra.mxu0 %v1228
  %1795 = vmatpush.bf16.msra.mxu0 %v1224
  %1796 = vmatpush.bf16.msra.mxu0 %v1220
  %1797 = vmatmul.bf16.gmra.mxu0 %v342
  %v1798 = vpop.f32.mrf.mxu0
  %v1799 = vadd.f32 %v1785, %v1798
  %v1800 = vpop.f32.mrf.mxu0
  %v1801 = vadd.f32 %v1787, %v1800
  %1802 = vdwg.mxu0
  %1803 = vmatpush.bf16.msra.mxu0 %v1280
  %1804 = vmatpush.bf16.msra.mxu0 %v1276
  %1805 = vmatpush.bf16.msra.mxu0 %v1272
  %1806 = vmatpush.bf16.msra.mxu0 %v1268
  %1807 = vmatpush.bf16.msra.mxu0 %v1264
  %1808 = vmatpush.bf16.msra.mxu0 %v1260
  %1809 = vmatpush.bf16.msra.mxu0 %v1256
  %1810 = vmatpush.bf16.msra.mxu0 %v1252
  %1811 = vmatmul.bf16.gmra.mxu0 %v343
  %v1812 = vpop.f32.mrf.mxu0
  %v1813 = vadd.f32 %v1799, %v1812
  %v1814 = vpop.f32.mrf.mxu0
  %v1815 = vadd.f32 %v1801, %v1814
  %1816 = vdwg.mxu0
  %1817 = vmatpush.bf16.msra.mxu0 %v1312
  %1818 = vmatpush.bf16.msra.mxu0 %v1308
  %1819 = vmatpush.bf16.msra.mxu0 %v1304
  %1820 = vmatpush.bf16.msra.mxu0 %v1300
  %1821 = vmatpush.bf16.msra.mxu0 %v1296
  %1822 = vmatpush.bf16.msra.mxu0 %v1292
  %1823 = vmatpush.bf16.msra.mxu0 %v1288
  %1824 = vmatpush.bf16.msra.mxu0 %v1284
  %1825 = vmatmul.bf16.gmra.mxu0 %v344
  %v1826 = vpop.f32.mrf.mxu0
  %v1827 = vadd.f32 %v1813, %v1826
  %v1828 = vpop.f32.mrf.mxu0
  %v1829 = vadd.f32 %v1815, %v1828
  %1830 = vdwg.mxu0
  %1831 = vmatpush.bf16.msra.mxu0 %v1344
  %1832 = vmatpush.bf16.msra.mxu0 %v1340
  %1833 = vmatpush.bf16.msra.mxu0 %v1336
  %1834 = vmatpush.bf16.msra.mxu0 %v1332
  %1835 = vmatpush.bf16.msra.mxu0 %v1328
  %1836 = vmatpush.bf16.msra.mxu0 %v1324
  %1837 = vmatpush.bf16.msra.mxu0 %v1320
  %1838 = vmatpush.bf16.msra.mxu0 %v1316
  %1839 = vmatmul.bf16.gmra.mxu0 %v345
  %v1840 = vpop.f32.mrf.mxu0
  %v1841 = vadd.f32 %v1827, %v1840
  %v1842 = vpop.f32.mrf.mxu0
  %v1843 = vadd.f32 %v1829, %v1842
  %1844 = vdwg.mxu0
  %1845 = vmatpush.bf16.msra.mxu0 %v1376
  %1846 = vmatpush.bf16.msra.mxu0 %v1372
  %1847 = vmatpush.bf16.msra.mxu0 %v1368
  %1848 = vmatpush.bf16.msra.mxu0 %v1364
  %1849 = vmatpush.bf16.msra.mxu0 %v1360
  %1850 = vmatpush.bf16.msra.mxu0 %v1356
  %1851 = vmatpush.bf16.msra.mxu0 %v1352
  %1852 = vmatpush.bf16.msra.mxu0 %v1348
  %1853 = vmatmul.bf16.gmra.mxu0 %v346
  %v1854 = vpop.f32.mrf.mxu0
  %v1855 = vadd.f32 %v1841, %v1854
  %v1856 = vpop.f32.mrf.mxu0
  %v1857 = vadd.f32 %v1843, %v1856
  %1858 = vdwg.mxu0
  %1859 = vmatpush.bf16.msra.mxu0 %v1153
  %1860 = vmatpush.bf16.msra.mxu0 %v1149
  %1861 = vmatpush.bf16.msra.mxu0 %v1145
  %1862 = vmatpush.bf16.msra.mxu0 %v1141
  %1863 = vmatpush.bf16.msra.mxu0 %v1137
  %1864 = vmatpush.bf16.msra.mxu0 %v1133
  %1865 = vmatpush.bf16.msra.mxu0 %v1129
  %1866 = vmatpush.bf16.msra.mxu0 %v1125
  %1867 = vmatmul.bf16.gmra.mxu0 %v339
  %v1868 = vpop.f32.mrf.mxu0
  %v1869 = vadd.f32 %v309, %v1868
  %v1870 = vpop.f32.mrf.mxu0
  %v1871 = vadd.f32 %v309, %v1870
  %1872 = vdwg.mxu0
  %1873 = vmatpush.bf16.msra.mxu0 %v1185
  %1874 = vmatpush.bf16.msra.mxu0 %v1181
  %1875 = vmatpush.bf16.msra.mxu0 %v1177
  %1876 = vmatpush.bf16.msra.mxu0 %v1173
  %1877 = vmatpush.bf16.msra.mxu0 %v1169
  %1878 = vmatpush.bf16.msra.mxu0 %v1165
  %1879 = vmatpush.bf16.msra.mxu0 %v1161
  %1880 = vmatpush.bf16.msra.mxu0 %v1157
  %1881 = vmatmul.bf16.gmra.mxu0 %v340
  %v1882 = vpop.f32.mrf.mxu0
  %v1883 = vadd.f32 %v1869, %v1882
  %v1884 = vpop.f32.mrf.mxu0
  %v1885 = vadd.f32 %v1871, %v1884
  %1886 = vdwg.mxu0
  %1887 = vmatpush.bf16.msra.mxu0 %v1217
  %1888 = vmatpush.bf16.msra.mxu0 %v1213
  %1889 = vmatpush.bf16.msra.mxu0 %v1209
  %1890 = vmatpush.bf16.msra.mxu0 %v1205
  %1891 = vmatpush.bf16.msra.mxu0 %v1201
  %1892 = vmatpush.bf16.msra.mxu0 %v1197
  %1893 = vmatpush.bf16.msra.mxu0 %v1193
  %1894 = vmatpush.bf16.msra.mxu0 %v1189
  %1895 = vmatmul.bf16.gmra.mxu0 %v341
  %v1896 = vpop.f32.mrf.mxu0
  %v1897 = vadd.f32 %v1883, %v1896
  %v1898 = vpop.f32.mrf.mxu0
  %v1899 = vadd.f32 %v1885, %v1898
  %1900 = vdwg.mxu0
  %1901 = vmatpush.bf16.msra.mxu0 %v1249
  %1902 = vmatpush.bf16.msra.mxu0 %v1245
  %1903 = vmatpush.bf16.msra.mxu0 %v1241
  %1904 = vmatpush.bf16.msra.mxu0 %v1237
  %1905 = vmatpush.bf16.msra.mxu0 %v1233
  %1906 = vmatpush.bf16.msra.mxu0 %v1229
  %1907 = vmatpush.bf16.msra.mxu0 %v1225
  %1908 = vmatpush.bf16.msra.mxu0 %v1221
  %1909 = vmatmul.bf16.gmra.mxu0 %v342
  %v1910 = vpop.f32.mrf.mxu0
  %v1911 = vadd.f32 %v1897, %v1910
  %v1912 = vpop.f32.mrf.mxu0
  %v1913 = vadd.f32 %v1899, %v1912
  %1914 = vdwg.mxu0
  %1915 = vmatpush.bf16.msra.mxu0 %v1281
  %1916 = vmatpush.bf16.msra.mxu0 %v1277
  %1917 = vmatpush.bf16.msra.mxu0 %v1273
  %1918 = vmatpush.bf16.msra.mxu0 %v1269
  %1919 = vmatpush.bf16.msra.mxu0 %v1265
  %1920 = vmatpush.bf16.msra.mxu0 %v1261
  %1921 = vmatpush.bf16.msra.mxu0 %v1257
  %1922 = vmatpush.bf16.msra.mxu0 %v1253
  %1923 = vmatmul.bf16.gmra.mxu0 %v343
  %v1924 = vpop.f32.mrf.mxu0
  %v1925 = vadd.f32 %v1911, %v1924
  %v1926 = vpop.f32.mrf.mxu0
  %v1927 = vadd.f32 %v1913, %v1926
  %1928 = vdwg.mxu0
  %1929 = vmatpush.bf16.msra.mxu0 %v1313
  %1930 = vmatpush.bf16.msra.mxu0 %v1309
  %1931 = vmatpush.bf16.msra.mxu0 %v1305
  %1932 = vmatpush.bf16.msra.mxu0 %v1301
  %1933 = vmatpush.bf16.msra.mxu0 %v1297
  %1934 = vmatpush.bf16.msra.mxu0 %v1293
  %1935 = vmatpush.bf16.msra.mxu0 %v1289
  %1936 = vmatpush.bf16.msra.mxu0 %v1285
  %1937 = vmatmul.bf16.gmra.mxu0 %v344
  %v1938 = vpop.f32.mrf.mxu0
  %v1939 = vadd.f32 %v1925, %v1938
  %v1940 = vpop.f32.mrf.mxu0
  %v1941 = vadd.f32 %v1927, %v1940
  %1942 = vdwg.mxu0
  %1943 = vmatpush.bf16.msra.mxu0 %v1345
  %1944 = vmatpush.bf16.msra.mxu0 %v1341
  %1945 = vmatpush.bf16.msra.mxu0 %v1337
  %1946 = vmatpush.bf16.msra.mxu0 %v1333
  %1947 = vmatpush.bf16.msra.mxu0 %v1329
  %1948 = vmatpush.bf16.msra.mxu0 %v1325
  %1949 = vmatpush.bf16.msra.mxu0 %v1321
  %1950 = vmatpush.bf16.msra.mxu0 %v1317
  %1951 = vmatmul.bf16.gmra.mxu0 %v345
  %v1952 = vpop.f32.mrf.mxu0
  %v1953 = vadd.f32 %v1939, %v1952
  %v1954 = vpop.f32.mrf.mxu0
  %v1955 = vadd.f32 %v1941, %v1954
  %1956 = vdwg.mxu0
  %1957 = vmatpush.bf16.msra.mxu0 %v1377
  %1958 = vmatpush.bf16.msra.mxu0 %v1373
  %1959 = vmatpush.bf16.msra.mxu0 %v1369
  %1960 = vmatpush.bf16.msra.mxu0 %v1365
  %1961 = vmatpush.bf16.msra.mxu0 %v1361
  %1962 = vmatpush.bf16.msra.mxu0 %v1357
  %1963 = vmatpush.bf16.msra.mxu0 %v1353
  %1964 = vmatpush.bf16.msra.mxu0 %v1349
  %1965 = vmatmul.bf16.gmra.mxu0 %v346
  %v1966 = vpop.f32.mrf.mxu0
  %v1967 = vadd.f32 %v1953, %v1966
  %v1968 = vpop.f32.mrf.mxu0
  %v1969 = vadd.f32 %v1955, %v1968
  %1970 = vdwg.mxu0
  %1971 = vmatpush.bf16.msra.mxu0 %v1154
  %1972 = vmatpush.bf16.msra.mxu0 %v1150
  %1973 = vmatpush.bf16.msra.mxu0 %v1146
  %1974 = vmatpush.bf16.msra.mxu0 %v1142
  %1975 = vmatpush.bf16.msra.mxu0 %v1138
  %1976 = vmatpush.bf16.msra.mxu0 %v1134
  %1977 = vmatpush.bf16.msra.mxu0 %v1130
  %1978 = vmatpush.bf16.msra.mxu0 %v1126
  %1979 = vmatmul.bf16.gmra.mxu0 %v339
  %v1980 = vpop.f32.mrf.mxu0
  %v1981 = vadd.f32 %v310, %v1980
  %v1982 = vpop.f32.mrf.mxu0
  %v1983 = vadd.f32 %v310, %v1982
  %1984 = vdwg.mxu0
  %1985 = vmatpush.bf16.msra.mxu0 %v1186
  %1986 = vmatpush.bf16.msra.mxu0 %v1182
  %1987 = vmatpush.bf16.msra.mxu0 %v1178
  %1988 = vmatpush.bf16.msra.mxu0 %v1174
  %1989 = vmatpush.bf16.msra.mxu0 %v1170
  %1990 = vmatpush.bf16.msra.mxu0 %v1166
  %1991 = vmatpush.bf16.msra.mxu0 %v1162
  %1992 = vmatpush.bf16.msra.mxu0 %v1158
  %1993 = vmatmul.bf16.gmra.mxu0 %v340
  %v1994 = vpop.f32.mrf.mxu0
  %v1995 = vadd.f32 %v1981, %v1994
  %v1996 = vpop.f32.mrf.mxu0
  %v1997 = vadd.f32 %v1983, %v1996
  %1998 = vdwg.mxu0
  %1999 = vmatpush.bf16.msra.mxu0 %v1218
  %2000 = vmatpush.bf16.msra.mxu0 %v1214
  %2001 = vmatpush.bf16.msra.mxu0 %v1210
  %2002 = vmatpush.bf16.msra.mxu0 %v1206
  %2003 = vmatpush.bf16.msra.mxu0 %v1202
  %2004 = vmatpush.bf16.msra.mxu0 %v1198
  %2005 = vmatpush.bf16.msra.mxu0 %v1194
  %2006 = vmatpush.bf16.msra.mxu0 %v1190
  %2007 = vmatmul.bf16.gmra.mxu0 %v341
  %v2008 = vpop.f32.mrf.mxu0
  %v2009 = vadd.f32 %v1995, %v2008
  %v2010 = vpop.f32.mrf.mxu0
  %v2011 = vadd.f32 %v1997, %v2010
  %2012 = vdwg.mxu0
  %2013 = vmatpush.bf16.msra.mxu0 %v1250
  %2014 = vmatpush.bf16.msra.mxu0 %v1246
  %2015 = vmatpush.bf16.msra.mxu0 %v1242
  %2016 = vmatpush.bf16.msra.mxu0 %v1238
  %2017 = vmatpush.bf16.msra.mxu0 %v1234
  %2018 = vmatpush.bf16.msra.mxu0 %v1230
  %2019 = vmatpush.bf16.msra.mxu0 %v1226
  %2020 = vmatpush.bf16.msra.mxu0 %v1222
  %2021 = vmatmul.bf16.gmra.mxu0 %v342
  %v2022 = vpop.f32.mrf.mxu0
  %v2023 = vadd.f32 %v2009, %v2022
  %v2024 = vpop.f32.mrf.mxu0
  %v2025 = vadd.f32 %v2011, %v2024
  %2026 = vdwg.mxu0
  %2027 = vmatpush.bf16.msra.mxu0 %v1282
  %2028 = vmatpush.bf16.msra.mxu0 %v1278
  %2029 = vmatpush.bf16.msra.mxu0 %v1274
  %2030 = vmatpush.bf16.msra.mxu0 %v1270
  %2031 = vmatpush.bf16.msra.mxu0 %v1266
  %2032 = vmatpush.bf16.msra.mxu0 %v1262
  %2033 = vmatpush.bf16.msra.mxu0 %v1258
  %2034 = vmatpush.bf16.msra.mxu0 %v1254
  %2035 = vmatmul.bf16.gmra.mxu0 %v343
  %v2036 = vpop.f32.mrf.mxu0
  %v2037 = vadd.f32 %v2023, %v2036
  %v2038 = vpop.f32.mrf.mxu0
  %v2039 = vadd.f32 %v2025, %v2038
  %2040 = vdwg.mxu0
  %2041 = vmatpush.bf16.msra.mxu0 %v1314
  %2042 = vmatpush.bf16.msra.mxu0 %v1310
  %2043 = vmatpush.bf16.msra.mxu0 %v1306
  %2044 = vmatpush.bf16.msra.mxu0 %v1302
  %2045 = vmatpush.bf16.msra.mxu0 %v1298
  %2046 = vmatpush.bf16.msra.mxu0 %v1294
  %2047 = vmatpush.bf16.msra.mxu0 %v1290
  %2048 = vmatpush.bf16.msra.mxu0 %v1286
  %2049 = vmatmul.bf16.gmra.mxu0 %v344
  %v2050 = vpop.f32.mrf.mxu0
  %v2051 = vadd.f32 %v2037, %v2050
  %v2052 = vpop.f32.mrf.mxu0
  %v2053 = vadd.f32 %v2039, %v2052
  %2054 = vdwg.mxu0
  %2055 = vmatpush.bf16.msra.mxu0 %v1346
  %2056 = vmatpush.bf16.msra.mxu0 %v1342
  %2057 = vmatpush.bf16.msra.mxu0 %v1338
  %2058 = vmatpush.bf16.msra.mxu0 %v1334
  %2059 = vmatpush.bf16.msra.mxu0 %v1330
  %2060 = vmatpush.bf16.msra.mxu0 %v1326
  %2061 = vmatpush.bf16.msra.mxu0 %v1322
  %2062 = vmatpush.bf16.msra.mxu0 %v1318
  %2063 = vmatmul.bf16.gmra.mxu0 %v345
  %v2064 = vpop.f32.mrf.mxu0
  %v2065 = vadd.f32 %v2051, %v2064
  %v2066 = vpop.f32.mrf.mxu0
  %v2067 = vadd.f32 %v2053, %v2066
  %2068 = vdwg.mxu0
  %2069 = vmatpush.bf16.msra.mxu0 %v1378
  %2070 = vmatpush.bf16.msra.mxu0 %v1374
  %2071 = vmatpush.bf16.msra.mxu0 %v1370
  %2072 = vmatpush.bf16.msra.mxu0 %v1366
  %2073 = vmatpush.bf16.msra.mxu0 %v1362
  %2074 = vmatpush.bf16.msra.mxu0 %v1358
  %2075 = vmatpush.bf16.msra.mxu0 %v1354
  %2076 = vmatpush.bf16.msra.mxu0 %v1350
  %2077 = vmatmul.bf16.gmra.mxu0 %v346
  %v2078 = vpop.f32.mrf.mxu0
  %v2079 = vadd.f32 %v2065, %v2078
  %v2080 = vpop.f32.mrf.mxu0
  %v2081 = vadd.f32 %v2067, %v2080
  %2082 = vdwg.mxu0
  %v2083 = vmax.f32 %v1743, 0.0
  %v2084 = vmax.f32 %v1855, 0.0
  %v2085 = vmax.f32 %v1967, 0.0
  %v2086 = vmax.f32 %v2079, 0.0
  %v2087 = vmax.f32 %v1745, 0.0
  %v2088 = vmax.f32 %v1857, 0.0
  %v2089 = vmax.f32 %v1969, 0.0
  %v2090 = vmax.f32 %v2081, 0.0
  %v2091 = vpack.c.bf16 %v2087, %v2083
  %v2092 = vpack.c.bf16 %v2088, %v2084
  %v2093 = vpack.c.bf16 %v2089, %v2085
  %v2094 = vpack.c.bf16 %v2090, %v2086
  %v2095 = vld [vmem:[%s3] sm:$0xff]
  %v2096 = vld [vmem:[%s3 + $0x8] sm:$0xff]
  %v2097 = vld [vmem:[%s3 + $0x10] sm:$0xff]
  %v2098 = vld [vmem:[%s3 + $0x18] sm:$0xff]
  %v2099 = vld [vmem:[%s3 + $0x20] sm:$0xff]
  %v2100 = vld [vmem:[%s3 + $0x28] sm:$0xff]
  %v2101 = vld [vmem:[%s3 + $0x30] sm:$0xff]
  %v2102 = vld [vmem:[%s3 + $0x38] sm:$0xff]
  %v2103 = vld [vmem:[%s3 + $0x40] sm:$0xff]
  %v2104 = vld [vmem:[%s3 + $0x48] sm:$0xff]
  %v2105 = vld [vmem:[%s3 + $0x50] sm:$0xff]
  %v2106 = vld [vmem:[%s3 + $0x58] sm:$0xff]
  %v2107 = vld [vmem:[%s3 + $0x60] sm:$0xff]
  %v2108 = vld [vmem:[%s3 + $0x68] sm:$0xff]
  %v2109 = vld [vmem:[%s3 + $0x70] sm:$0xff]
  %v2110 = vld [vmem:[%s3 + $0x78] sm:$0xff]
  %v2111 = vld [vmem:[%s3 + $0x80] sm:$0xff]
  %v2112 = vld [vmem:[%s3 + $0x88] sm:$0xff]
  %v2113 = vld [vmem:[%s3 + $0x90] sm:$0xff]
  %v2114 = vld [vmem:[%s3 + $0x98] sm:$0xff]
  %v2115 = vld [vmem:[%s3 + $0xa0] sm:$0xff]
  %v2116 = vld [vmem:[%s3 + $0xa8] sm:$0xff]
  %v2117 = vld [vmem:[%s3 + $0xb0] sm:$0xff]
  %v2118 = vld [vmem:[%s3 + $0xb8] sm:$0xff]
  %v2119 = vld [vmem:[%s3 + $0xc0] sm:$0xff]
  %v2120 = vld [vmem:[%s3 + $0xc8] sm:$0xff]
  %v2121 = vld [vmem:[%s3 + $0xd0] sm:$0xff]
  %v2122 = vld [vmem:[%s3 + $0xd8] sm:$0xff]
  %v2123 = vld [vmem:[%s3 + $0xe0] sm:$0xff]
  %v2124 = vld [vmem:[%s3 + $0xe8] sm:$0xff]
  %v2125 = vld [vmem:[%s3 + $0xf0] sm:$0xff]
  %v2126 = vld [vmem:[%s3 + $0xf8] sm:$0xff]
  %v2127 = vld [vmem:[%s3 + $0x100] sm:$0xff]
  %v2128 = vld [vmem:[%s3 + $0x108] sm:$0xff]
  %v2129 = vld [vmem:[%s3 + $0x110] sm:$0xff]
  %v2130 = vld [vmem:[%s3 + $0x118] sm:$0xff]
  %v2131 = vld [vmem:[%s3 + $0x120] sm:$0xff]
  %v2132 = vld [vmem:[%s3 + $0x128] sm:$0xff]
  %v2133 = vld [vmem:[%s3 + $0x130] sm:$0xff]
  %v2134 = vld [vmem:[%s3 + $0x138] sm:$0xff]
  %v2135 = vld [vmem:[%s3 + $0x140] sm:$0xff]
  %v2136 = vld [vmem:[%s3 + $0x148] sm:$0xff]
  %v2137 = vld [vmem:[%s3 + $0x150] sm:$0xff]
  %v2138 = vld [vmem:[%s3 + $0x158] sm:$0xff]
  %v2139 = vld [vmem:[%s3 + $0x160] sm:$0xff]
  %v2140 = vld [vmem:[%s3 + $0x168] sm:$0xff]
  %v2141 = vld [vmem:[%s3 + $0x170] sm:$0xff]
  %v2142 = vld [vmem:[%s3 + $0x178] sm:$0xff]
  %v2143 = vld [vmem:[%s3 + $0x180] sm:$0xff]
  %v2144 = vld [vmem:[%s3 + $0x188] sm:$0xff]
  %v2145 = vld [vmem:[%s3 + $0x190] sm:$0xff]
  %v2146 = vld [vmem:[%s3 + $0x198] sm:$0xff]
  %v2147 = vld [vmem:[%s3 + $0x1a0] sm:$0xff]
  %v2148 = vld [vmem:[%s3 + $0x1a8] sm:$0xff]
  %v2149 = vld [vmem:[%s3 + $0x1b0] sm:$0xff]
  %v2150 = vld [vmem:[%s3 + $0x1b8] sm:$0xff]
  %v2151 = vld [vmem:[%s3 + $0x1c0] sm:$0xff]
  %v2152 = vld [vmem:[%s3 + $0x1c8] sm:$0xff]
  %v2153 = vld [vmem:[%s3 + $0x1d0] sm:$0xff]
  %v2154 = vld [vmem:[%s3 + $0x1d8] sm:$0xff]
  %v2155 = vld [vmem:[%s3 + $0x1e0] sm:$0xff]
  %v2156 = vld [vmem:[%s3 + $0x1e8] sm:$0xff]
  %v2157 = vld [vmem:[%s3 + $0x1f0] sm:$0xff]
  %v2158 = vld [vmem:[%s3 + $0x1f8] sm:$0xff]
  %v2159 = vld [vmem:[%s3 + $0x200] sm:$0xff]
  %v2160 = vld [vmem:[%s3 + $0x208] sm:$0xff]
  %v2161 = vld [vmem:[%s3 + $0x210] sm:$0xff]
  %v2162 = vld [vmem:[%s3 + $0x218] sm:$0xff]
  %v2163 = vld [vmem:[%s3 + $0x220] sm:$0xff]
  %v2164 = vld [vmem:[%s3 + $0x228] sm:$0xff]
  %v2165 = vld [vmem:[%s3 + $0x230] sm:$0xff]
  %v2166 = vld [vmem:[%s3 + $0x238] sm:$0xff]
  %v2167 = vld [vmem:[%s3 + $0x240] sm:$0xff]
  %v2168 = vld [vmem:[%s3 + $0x248] sm:$0xff]
  %v2169 = vld [vmem:[%s3 + $0x250] sm:$0xff]
  %v2170 = vld [vmem:[%s3 + $0x258] sm:$0xff]
  %v2171 = vld [vmem:[%s3 + $0x260] sm:$0xff]
  %v2172 = vld [vmem:[%s3 + $0x268] sm:$0xff]
  %v2173 = vld [vmem:[%s3 + $0x270] sm:$0xff]
  %v2174 = vld [vmem:[%s3 + $0x278] sm:$0xff]
  %v2175 = vld [vmem:[%s3 + $0x280] sm:$0xff]
  %v2176 = vld [vmem:[%s3 + $0x288] sm:$0xff]
  %v2177 = vld [vmem:[%s3 + $0x290] sm:$0xff]
  %v2178 = vld [vmem:[%s3 + $0x298] sm:$0xff]
  %v2179 = vld [vmem:[%s3 + $0x2a0] sm:$0xff]
  %v2180 = vld [vmem:[%s3 + $0x2a8] sm:$0xff]
  %v2181 = vld [vmem:[%s3 + $0x2b0] sm:$0xff]
  %v2182 = vld [vmem:[%s3 + $0x2b8] sm:$0xff]
  %v2183 = vld [vmem:[%s3 + $0x2c0] sm:$0xff]
  %v2184 = vld [vmem:[%s3 + $0x2c8] sm:$0xff]
  %v2185 = vld [vmem:[%s3 + $0x2d0] sm:$0xff]
  %v2186 = vld [vmem:[%s3 + $0x2d8] sm:$0xff]
  %v2187 = vld [vmem:[%s3 + $0x2e0] sm:$0xff]
  %v2188 = vld [vmem:[%s3 + $0x2e8] sm:$0xff]
  %v2189 = vld [vmem:[%s3 + $0x2f0] sm:$0xff]
  %v2190 = vld [vmem:[%s3 + $0x2f8] sm:$0xff]
  %v2191 = vld [vmem:[%s3 + $0x300] sm:$0xff]
  %v2192 = vld [vmem:[%s3 + $0x308] sm:$0xff]
  %v2193 = vld [vmem:[%s3 + $0x310] sm:$0xff]
  %v2194 = vld [vmem:[%s3 + $0x318] sm:$0xff]
  %v2195 = vld [vmem:[%s3 + $0x320] sm:$0xff]
  %v2196 = vld [vmem:[%s3 + $0x328] sm:$0xff]
  %v2197 = vld [vmem:[%s3 + $0x330] sm:$0xff]
  %v2198 = vld [vmem:[%s3 + $0x338] sm:$0xff]
  %v2199 = vld [vmem:[%s3 + $0x340] sm:$0xff]
  %v2200 = vld [vmem:[%s3 + $0x348] sm:$0xff]
  %v2201 = vld [vmem:[%s3 + $0x350] sm:$0xff]
  %v2202 = vld [vmem:[%s3 + $0x358] sm:$0xff]
  %v2203 = vld [vmem:[%s3 + $0x360] sm:$0xff]
  %v2204 = vld [vmem:[%s3 + $0x368] sm:$0xff]
  %v2205 = vld [vmem:[%s3 + $0x370] sm:$0xff]
  %v2206 = vld [vmem:[%s3 + $0x378] sm:$0xff]
  %v2207 = vld [vmem:[%s3 + $0x380] sm:$0xff]
  %v2208 = vld [vmem:[%s3 + $0x388] sm:$0xff]
  %v2209 = vld [vmem:[%s3 + $0x390] sm:$0xff]
  %v2210 = vld [vmem:[%s3 + $0x398] sm:$0xff]
  %v2211 = vld [vmem:[%s3 + $0x3a0] sm:$0xff]
  %v2212 = vld [vmem:[%s3 + $0x3a8] sm:$0xff]
  %v2213 = vld [vmem:[%s3 + $0x3b0] sm:$0xff]
  %v2214 = vld [vmem:[%s3 + $0x3b8] sm:$0xff]
  %v2215 = vld [vmem:[%s3 + $0x3c0] sm:$0xff]
  %v2216 = vld [vmem:[%s3 + $0x3c8] sm:$0xff]
  %v2217 = vld [vmem:[%s3 + $0x3d0] sm:$0xff]
  %v2218 = vld [vmem:[%s3 + $0x3d8] sm:$0xff]
  %v2219 = vld [vmem:[%s3 + $0x3e0] sm:$0xff]
  %v2220 = vld [vmem:[%s3 + $0x3e8] sm:$0xff]
  %v2221 = vld [vmem:[%s3 + $0x3f0] sm:$0xff]
  %v2222 = vld [vmem:[%s3 + $0x3f8] sm:$0xff]
  %v2223 = vld [vmem:[%s3 + $0x400] sm:$0xff]
  %v2224 = vld [vmem:[%s3 + $0x408] sm:$0xff]
  %v2225 = vld [vmem:[%s3 + $0x410] sm:$0xff]
  %v2226 = vld [vmem:[%s3 + $0x418] sm:$0xff]
  %v2227 = vld [vmem:[%s3 + $0x420] sm:$0xff]
  %v2228 = vld [vmem:[%s3 + $0x428] sm:$0xff]
  %v2229 = vld [vmem:[%s3 + $0x430] sm:$0xff]
  %v2230 = vld [vmem:[%s3 + $0x438] sm:$0xff]
  %v2231 = vld [vmem:[%s3 + $0x440] sm:$0xff]
  %v2232 = vld [vmem:[%s3 + $0x448] sm:$0xff]
  %v2233 = vld [vmem:[%s3 + $0x450] sm:$0xff]
  %v2234 = vld [vmem:[%s3 + $0x458] sm:$0xff]
  %v2235 = vld [vmem:[%s3 + $0x460] sm:$0xff]
  %v2236 = vld [vmem:[%s3 + $0x468] sm:$0xff]
  %v2237 = vld [vmem:[%s3 + $0x470] sm:$0xff]
  %v2238 = vld [vmem:[%s3 + $0x478] sm:$0xff]
  %v2239 = vld [vmem:[%s3 + $0x480] sm:$0xff]
  %v2240 = vld [vmem:[%s3 + $0x488] sm:$0xff]
  %v2241 = vld [vmem:[%s3 + $0x490] sm:$0xff]
  %v2242 = vld [vmem:[%s3 + $0x498] sm:$0xff]
  %v2243 = vld [vmem:[%s3 + $0x4a0] sm:$0xff]
  %v2244 = vld [vmem:[%s3 + $0x4a8] sm:$0xff]
  %v2245 = vld [vmem:[%s3 + $0x4b0] sm:$0xff]
  %v2246 = vld [vmem:[%s3 + $0x4b8] sm:$0xff]
  %v2247 = vld [vmem:[%s3 + $0x4c0] sm:$0xff]
  %v2248 = vld [vmem:[%s3 + $0x4c8] sm:$0xff]
  %v2249 = vld [vmem:[%s3 + $0x4d0] sm:$0xff]
  %v2250 = vld [vmem:[%s3 + $0x4d8] sm:$0xff]
  %v2251 = vld [vmem:[%s3 + $0x4e0] sm:$0xff]
  %v2252 = vld [vmem:[%s3 + $0x4e8] sm:$0xff]
  %v2253 = vld [vmem:[%s3 + $0x4f0] sm:$0xff]
  %v2254 = vld [vmem:[%s3 + $0x4f8] sm:$0xff]
  %v2255 = vld [vmem:[%s3 + $0x500] sm:$0xff]
  %v2256 = vld [vmem:[%s3 + $0x508] sm:$0xff]
  %v2257 = vld [vmem:[%s3 + $0x510] sm:$0xff]
  %v2258 = vld [vmem:[%s3 + $0x518] sm:$0xff]
  %v2259 = vld [vmem:[%s3 + $0x520] sm:$0xff]
  %v2260 = vld [vmem:[%s3 + $0x528] sm:$0xff]
  %v2261 = vld [vmem:[%s3 + $0x530] sm:$0xff]
  %v2262 = vld [vmem:[%s3 + $0x538] sm:$0xff]
  %v2263 = vld [vmem:[%s3 + $0x540] sm:$0xff]
  %v2264 = vld [vmem:[%s3 + $0x548] sm:$0xff]
  %v2265 = vld [vmem:[%s3 + $0x550] sm:$0xff]
  %v2266 = vld [vmem:[%s3 + $0x558] sm:$0xff]
  %v2267 = vld [vmem:[%s3 + $0x560] sm:$0xff]
  %v2268 = vld [vmem:[%s3 + $0x568] sm:$0xff]
  %v2269 = vld [vmem:[%s3 + $0x570] sm:$0xff]
  %v2270 = vld [vmem:[%s3 + $0x578] sm:$0xff]
  %v2271 = vld [vmem:[%s3 + $0x580] sm:$0xff]
  %v2272 = vld [vmem:[%s3 + $0x588] sm:$0xff]
  %v2273 = vld [vmem:[%s3 + $0x590] sm:$0xff]
  %v2274 = vld [vmem:[%s3 + $0x598] sm:$0xff]
  %v2275 = vld [vmem:[%s3 + $0x5a0] sm:$0xff]
  %v2276 = vld [vmem:[%s3 + $0x5a8] sm:$0xff]
  %v2277 = vld [vmem:[%s3 + $0x5b0] sm:$0xff]
  %v2278 = vld [vmem:[%s3 + $0x5b8] sm:$0xff]
  %v2279 = vld [vmem:[%s3 + $0x5c0] sm:$0xff]
  %v2280 = vld [vmem:[%s3 + $0x5c8] sm:$0xff]
  %v2281 = vld [vmem:[%s3 + $0x5d0] sm:$0xff]
  %v2282 = vld [vmem:[%s3 + $0x5d8] sm:$0xff]
  %v2283 = vld [vmem:[%s3 + $0x5e0] sm:$0xff]
  %v2284 = vld [vmem:[%s3 + $0x5e8] sm:$0xff]
  %v2285 = vld [vmem:[%s3 + $0x5f0] sm:$0xff]
  %v2286 = vld [vmem:[%s3 + $0x5f8] sm:$0xff]
  %v2287 = vld [vmem:[%s3 + $0x600] sm:$0xff]
  %v2288 = vld [vmem:[%s3 + $0x608] sm:$0xff]
  %v2289 = vld [vmem:[%s3 + $0x610] sm:$0xff]
  %v2290 = vld [vmem:[%s3 + $0x618] sm:$0xff]
  %v2291 = vld [vmem:[%s3 + $0x620] sm:$0xff]
  %v2292 = vld [vmem:[%s3 + $0x628] sm:$0xff]
  %v2293 = vld [vmem:[%s3 + $0x630] sm:$0xff]
  %v2294 = vld [vmem:[%s3 + $0x638] sm:$0xff]
  %v2295 = vld [vmem:[%s3 + $0x640] sm:$0xff]
  %v2296 = vld [vmem:[%s3 + $0x648] sm:$0xff]
  %v2297 = vld [vmem:[%s3 + $0x650] sm:$0xff]
  %v2298 = vld [vmem:[%s3 + $0x658] sm:$0xff]
  %v2299 = vld [vmem:[%s3 + $0x660] sm:$0xff]
  %v2300 = vld [vmem:[%s3 + $0x668] sm:$0xff]
  %v2301 = vld [vmem:[%s3 + $0x670] sm:$0xff]
  %v2302 = vld [vmem:[%s3 + $0x678] sm:$0xff]
  %v2303 = vld [vmem:[%s3 + $0x680] sm:$0xff]
  %v2304 = vld [vmem:[%s3 + $0x688] sm:$0xff]
  %v2305 = vld [vmem:[%s3 + $0x690] sm:$0xff]
  %v2306 = vld [vmem:[%s3 + $0x698] sm:$0xff]
  %v2307 = vld [vmem:[%s3 + $0x6a0] sm:$0xff]
  %v2308 = vld [vmem:[%s3 + $0x6a8] sm:$0xff]
  %v2309 = vld [vmem:[%s3 + $0x6b0] sm:$0xff]
  %v2310 = vld [vmem:[%s3 + $0x6b8] sm:$0xff]
  %v2311 = vld [vmem:[%s3 + $0x6c0] sm:$0xff]
  %v2312 = vld [vmem:[%s3 + $0x6c8] sm:$0xff]
  %v2313 = vld [vmem:[%s3 + $0x6d0] sm:$0xff]
  %v2314 = vld [vmem:[%s3 + $0x6d8] sm:$0xff]
  %v2315 = vld [vmem:[%s3 + $0x6e0] sm:$0xff]
  %v2316 = vld [vmem:[%s3 + $0x6e8] sm:$0xff]
  %v2317 = vld [vmem:[%s3 + $0x6f0] sm:$0xff]
  %v2318 = vld [vmem:[%s3 + $0x6f8] sm:$0xff]
  %v2319 = vld [vmem:[%s3 + $0x700] sm:$0xff]
  %v2320 = vld [vmem:[%s3 + $0x708] sm:$0xff]
  %v2321 = vld [vmem:[%s3 + $0x710] sm:$0xff]
  %v2322 = vld [vmem:[%s3 + $0x718] sm:$0xff]
  %v2323 = vld [vmem:[%s3 + $0x720] sm:$0xff]
  %v2324 = vld [vmem:[%s3 + $0x728] sm:$0xff]
  %v2325 = vld [vmem:[%s3 + $0x730] sm:$0xff]
  %v2326 = vld [vmem:[%s3 + $0x738] sm:$0xff]
  %v2327 = vld [vmem:[%s3 + $0x740] sm:$0xff]
  %v2328 = vld [vmem:[%s3 + $0x748] sm:$0xff]
  %v2329 = vld [vmem:[%s3 + $0x750] sm:$0xff]
  %v2330 = vld [vmem:[%s3 + $0x758] sm:$0xff]
  %v2331 = vld [vmem:[%s3 + $0x760] sm:$0xff]
  %v2332 = vld [vmem:[%s3 + $0x768] sm:$0xff]
  %v2333 = vld [vmem:[%s3 + $0x770] sm:$0xff]
  %v2334 = vld [vmem:[%s3 + $0x778] sm:$0xff]
  %v2335 = vld [vmem:[%s3 + $0x780] sm:$0xff]
  %v2336 = vld [vmem:[%s3 + $0x788] sm:$0xff]
  %v2337 = vld [vmem:[%s3 + $0x790] sm:$0xff]
  %v2338 = vld [vmem:[%s3 + $0x798] sm:$0xff]
  %v2339 = vld [vmem:[%s3 + $0x7a0] sm:$0xff]
  %v2340 = vld [vmem:[%s3 + $0x7a8] sm:$0xff]
  %v2341 = vld [vmem:[%s3 + $0x7b0] sm:$0xff]
  %v2342 = vld [vmem:[%s3 + $0x7b8] sm:$0xff]
  %v2343 = vld [vmem:[%s3 + $0x7c0] sm:$0xff]
  %v2344 = vld [vmem:[%s3 + $0x7c8] sm:$0xff]
  %v2345 = vld [vmem:[%s3 + $0x7d0] sm:$0xff]
  %v2346 = vld [vmem:[%s3 + $0x7d8] sm:$0xff]
  %v2347 = vld [vmem:[%s3 + $0x7e0] sm:$0xff]
  %v2348 = vld [vmem:[%s3 + $0x7e8] sm:$0xff]
  %v2349 = vld [vmem:[%s3 + $0x7f0] sm:$0xff]
  %v2350 = vld [vmem:[%s3 + $0x7f8] sm:$0xff]
  %v2351 = vld [vmem:[%s4] sm:$0xff]
  %v2353 = vperm.slane %v2351, 0
  %v2354 = vperm.slane %v2351, 1
  %v2355 = vperm.slane %v2351, 2
  %v2356 = vperm.slane %v2351, 3
  %v2357 = vperm.slane %v2351, 4
  %v2358 = vperm.slane %v2351, 5
  %v2359 = vperm.slane %v2351, 6
  %v2360 = vperm.slane %v2351, 7
  %v2625 = vunpack.c.l.b16 %v2095
  %v2626 = vunpack.c.h.b16 %v2095
  %v2627 = vunpack.c.l.b16 %v2096
  %v2628 = vunpack.c.h.b16 %v2096
  %v2629 = vunpack.c.l.b16 %v2097
  %v2630 = vunpack.c.h.b16 %v2097
  %v2631 = vunpack.c.l.b16 %v2098
  %v2632 = vunpack.c.h.b16 %v2098
  %v2633 = vunpack.c.l.b16 %v2099
  %v2634 = vunpack.c.h.b16 %v2099
  %v2635 = vunpack.c.l.b16 %v2100
  %v2636 = vunpack.c.h.b16 %v2100
  %v2637 = vunpack.c.l.b16 %v2101
  %v2638 = vunpack.c.h.b16 %v2101
  %v2639 = vunpack.c.l.b16 %v2102
  %v2640 = vunpack.c.h.b16 %v2102
  %v2641 = vunpack.c.l.b16 %v2103
  %v2642 = vunpack.c.h.b16 %v2103
  %v2643 = vunpack.c.l.b16 %v2104
  %v2644 = vunpack.c.h.b16 %v2104
  %v2645 = vunpack.c.l.b16 %v2105
  %v2646 = vunpack.c.h.b16 %v2105
  %v2647 = vunpack.c.l.b16 %v2106
  %v2648 = vunpack.c.h.b16 %v2106
  %v2649 = vunpack.c.l.b16 %v2107
  %v2650 = vunpack.c.h.b16 %v2107
  %v2651 = vunpack.c.l.b16 %v2108
  %v2652 = vunpack.c.h.b16 %v2108
  %v2653 = vunpack.c.l.b16 %v2109
  %v2654 = vunpack.c.h.b16 %v2109
  %v2655 = vunpack.c.l.b16 %v2110
  %v2656 = vunpack.c.h.b16 %v2110
  %v2657 = vunpack.c.l.b16 %v2111
  %v2658 = vunpack.c.h.b16 %v2111
  %v2659 = vunpack.c.l.b16 %v2112
  %v2660 = vunpack.c.h.b16 %v2112
  %v2661 = vunpack.c.l.b16 %v2113
  %v2662 = vunpack.c.h.b16 %v2113
  %v2663 = vunpack.c.l.b16 %v2114
  %v2664 = vunpack.c.h.b16 %v2114
  %v2665 = vunpack.c.l.b16 %v2115
  %v2666 = vunpack.c.h.b16 %v2115
  %v2667 = vunpack.c.l.b16 %v2116
  %v2668 = vunpack.c.h.b16 %v2116
  %v2669 = vunpack.c.l.b16 %v2117
  %v2670 = vunpack.c.h.b16 %v2117
  %v2671 = vunpack.c.l.b16 %v2118
  %v2672 = vunpack.c.h.b16 %v2118
  %v2673 = vunpack.c.l.b16 %v2119
  %v2674 = vunpack.c.h.b16 %v2119
  %v2675 = vunpack.c.l.b16 %v2120
  %v2676 = vunpack.c.h.b16 %v2120
  %v2677 = vunpack.c.l.b16 %v2121
  %v2678 = vunpack.c.h.b16 %v2121
  %v2679 = vunpack.c.l.b16 %v2122
  %v2680 = vunpack.c.h.b16 %v2122
  %v2681 = vunpack.c.l.b16 %v2123
  %v2682 = vunpack.c.h.b16 %v2123
  %v2683 = vunpack.c.l.b16 %v2124
  %v2684 = vunpack.c.h.b16 %v2124
  %v2685 = vunpack.c.l.b16 %v2125
  %v2686 = vunpack.c.h.b16 %v2125
  %v2687 = vunpack.c.l.b16 %v2126
  %v2688 = vunpack.c.h.b16 %v2126
  %v2689 = vunpack.c.l.b16 %v2127
  %v2690 = vunpack.c.h.b16 %v2127
  %v2691 = vunpack.c.l.b16 %v2128
  %v2692 = vunpack.c.h.b16 %v2128
  %v2693 = vunpack.c.l.b16 %v2129
  %v2694 = vunpack.c.h.b16 %v2129
  %v2695 = vunpack.c.l.b16 %v2130
  %v2696 = vunpack.c.h.b16 %v2130
  %v2697 = vunpack.c.l.b16 %v2131
  %v2698 = vunpack.c.h.b16 %v2131
  %v2699 = vunpack.c.l.b16 %v2132
  %v2700 = vunpack.c.h.b16 %v2132
  %v2701 = vunpack.c.l.b16 %v2133
  %v2702 = vunpack.c.h.b16 %v2133
  %v2703 = vunpack.c.l.b16 %v2134
  %v2704 = vunpack.c.h.b16 %v2134
  %v2705 = vunpack.c.l.b16 %v2135
  %v2706 = vunpack.c.h.b16 %v2135
  %v2707 = vunpack.c.l.b16 %v2136
  %v2708 = vunpack.c.h.b16 %v2136
  %v2709 = vunpack.c.l.b16 %v2137
  %v2710 = vunpack.c.h.b16 %v2137
  %v2711 = vunpack.c.l.b16 %v2138
  %v2712 = vunpack.c.h.b16 %v2138
  %v2713 = vunpack.c.l.b16 %v2139
  %v2714 = vunpack.c.h.b16 %v2139
  %v2715 = vunpack.c.l.b16 %v2140
  %v2716 = vunpack.c.h.b16 %v2140
  %v2717 = vunpack.c.l.b16 %v2141
  %v2718 = vunpack.c.h.b16 %v2141
  %v2719 = vunpack.c.l.b16 %v2142
  %v2720 = vunpack.c.h.b16 %v2142
  %v2721 = vunpack.c.l.b16 %v2143
  %v2722 = vunpack.c.h.b16 %v2143
  %v2723 = vunpack.c.l.b16 %v2144
  %v2724 = vunpack.c.h.b16 %v2144
  %v2725 = vunpack.c.l.b16 %v2145
  %v2726 = vunpack.c.h.b16 %v2145
  %v2727 = vunpack.c.l.b16 %v2146
  %v2728 = vunpack.c.h.b16 %v2146
  %v2729 = vunpack.c.l.b16 %v2147
  %v2730 = vunpack.c.h.b16 %v2147
  %v2731 = vunpack.c.l.b16 %v2148
  %v2732 = vunpack.c.h.b16 %v2148
  %v2733 = vunpack.c.l.b16 %v2149
  %v2734 = vunpack.c.h.b16 %v2149
  %v2735 = vunpack.c.l.b16 %v2150
  %v2736 = vunpack.c.h.b16 %v2150
  %v2737 = vunpack.c.l.b16 %v2151
  %v2738 = vunpack.c.h.b16 %v2151
  %v2739 = vunpack.c.l.b16 %v2152
  %v2740 = vunpack.c.h.b16 %v2152
  %v2741 = vunpack.c.l.b16 %v2153
  %v2742 = vunpack.c.h.b16 %v2153
  %v2743 = vunpack.c.l.b16 %v2154
  %v2744 = vunpack.c.h.b16 %v2154
  %v2745 = vunpack.c.l.b16 %v2155
  %v2746 = vunpack.c.h.b16 %v2155
  %v2747 = vunpack.c.l.b16 %v2156
  %v2748 = vunpack.c.h.b16 %v2156
  %v2749 = vunpack.c.l.b16 %v2157
  %v2750 = vunpack.c.h.b16 %v2157
  %v2751 = vunpack.c.l.b16 %v2158
  %v2752 = vunpack.c.h.b16 %v2158
  %v2753 = vunpack.c.l.b16 %v2159
  %v2754 = vunpack.c.h.b16 %v2159
  %v2755 = vunpack.c.l.b16 %v2160
  %v2756 = vunpack.c.h.b16 %v2160
  %v2757 = vunpack.c.l.b16 %v2161
  %v2758 = vunpack.c.h.b16 %v2161
  %v2759 = vunpack.c.l.b16 %v2162
  %v2760 = vunpack.c.h.b16 %v2162
  %v2761 = vunpack.c.l.b16 %v2163
  %v2762 = vunpack.c.h.b16 %v2163
  %v2763 = vunpack.c.l.b16 %v2164
  %v2764 = vunpack.c.h.b16 %v2164
  %v2765 = vunpack.c.l.b16 %v2165
  %v2766 = vunpack.c.h.b16 %v2165
  %v2767 = vunpack.c.l.b16 %v2166
  %v2768 = vunpack.c.h.b16 %v2166
  %v2769 = vunpack.c.l.b16 %v2167
  %v2770 = vunpack.c.h.b16 %v2167
  %v2771 = vunpack.c.l.b16 %v2168
  %v2772 = vunpack.c.h.b16 %v2168
  %v2773 = vunpack.c.l.b16 %v2169
  %v2774 = vunpack.c.h.b16 %v2169
  %v2775 = vunpack.c.l.b16 %v2170
  %v2776 = vunpack.c.h.b16 %v2170
  %v2777 = vunpack.c.l.b16 %v2171
  %v2778 = vunpack.c.h.b16 %v2171
  %v2779 = vunpack.c.l.b16 %v2172
  %v2780 = vunpack.c.h.b16 %v2172
  %v2781 = vunpack.c.l.b16 %v2173
  %v2782 = vunpack.c.h.b16 %v2173
  %v2783 = vunpack.c.l.b16 %v2174
  %v2784 = vunpack.c.h.b16 %v2174
  %v2785 = vunpack.c.l.b16 %v2175
  %v2786 = vunpack.c.h.b16 %v2175
  %v2787 = vunpack.c.l.b16 %v2176
  %v2788 = vunpack.c.h.b16 %v2176
  %v2789 = vunpack.c.l.b16 %v2177
  %v2790 = vunpack.c.h.b16 %v2177
  %v2791 = vunpack.c.l.b16 %v2178
  %v2792 = vunpack.c.h.b16 %v2178
  %v2793 = vunpack.c.l.b16 %v2179
  %v2794 = vunpack.c.h.b16 %v2179
  %v2795 = vunpack.c.l.b16 %v2180
  %v2796 = vunpack.c.h.b16 %v2180
  %v2797 = vunpack.c.l.b16 %v2181
  %v2798 = vunpack.c.h.b16 %v2181
  %v2799 = vunpack.c.l.b16 %v2182
  %v2800 = vunpack.c.h.b16 %v2182
  %v2801 = vunpack.c.l.b16 %v2183
  %v2802 = vunpack.c.h.b16 %v2183
  %v2803 = vunpack.c.l.b16 %v2184
  %v2804 = vunpack.c.h.b16 %v2184
  %v2805 = vunpack.c.l.b16 %v2185
  %v2806 = vunpack.c.h.b16 %v2185
  %v2807 = vunpack.c.l.b16 %v2186
  %v2808 = vunpack.c.h.b16 %v2186
  %v2809 = vunpack.c.l.b16 %v2187
  %v2810 = vunpack.c.h.b16 %v2187
  %v2811 = vunpack.c.l.b16 %v2188
  %v2812 = vunpack.c.h.b16 %v2188
  %v2813 = vunpack.c.l.b16 %v2189
  %v2814 = vunpack.c.h.b16 %v2189
  %v2815 = vunpack.c.l.b16 %v2190
  %v2816 = vunpack.c.h.b16 %v2190
  %v2817 = vunpack.c.l.b16 %v2191
  %v2818 = vunpack.c.h.b16 %v2191
  %v2819 = vunpack.c.l.b16 %v2192
  %v2820 = vunpack.c.h.b16 %v2192
  %v2821 = vunpack.c.l.b16 %v2193
  %v2822 = vunpack.c.h.b16 %v2193
  %v2823 = vunpack.c.l.b16 %v2194
  %v2824 = vunpack.c.h.b16 %v2194
  %v2825 = vunpack.c.l.b16 %v2195
  %v2826 = vunpack.c.h.b16 %v2195
  %v2827 = vunpack.c.l.b16 %v2196
  %v2828 = vunpack.c.h.b16 %v2196
  %v2829 = vunpack.c.l.b16 %v2197
  %v2830 = vunpack.c.h.b16 %v2197
  %v2831 = vunpack.c.l.b16 %v2198
  %v2832 = vunpack.c.h.b16 %v2198
  %v2833 = vunpack.c.l.b16 %v2199
  %v2834 = vunpack.c.h.b16 %v2199
  %v2835 = vunpack.c.l.b16 %v2200
  %v2836 = vunpack.c.h.b16 %v2200
  %v2837 = vunpack.c.l.b16 %v2201
  %v2838 = vunpack.c.h.b16 %v2201
  %v2839 = vunpack.c.l.b16 %v2202
  %v2840 = vunpack.c.h.b16 %v2202
  %v2841 = vunpack.c.l.b16 %v2203
  %v2842 = vunpack.c.h.b16 %v2203
  %v2843 = vunpack.c.l.b16 %v2204
  %v2844 = vunpack.c.h.b16 %v2204
  %v2845 = vunpack.c.l.b16 %v2205
  %v2846 = vunpack.c.h.b16 %v2205
  %v2847 = vunpack.c.l.b16 %v2206
  %v2848 = vunpack.c.h.b16 %v2206
  %v2849 = vunpack.c.l.b16 %v2207
  %v2850 = vunpack.c.h.b16 %v2207
  %v2851 = vunpack.c.l.b16 %v2208
  %v2852 = vunpack.c.h.b16 %v2208
  %v2853 = vunpack.c.l.b16 %v2209
  %v2854 = vunpack.c.h.b16 %v2209
  %v2855 = vunpack.c.l.b16 %v2210
  %v2856 = vunpack.c.h.b16 %v2210
  %v2857 = vunpack.c.l.b16 %v2211
  %v2858 = vunpack.c.h.b16 %v2211
  %v2859 = vunpack.c.l.b16 %v2212
  %v2860 = vunpack.c.h.b16 %v2212
  %v2861 = vunpack.c.l.b16 %v2213
  %v2862 = vunpack.c.h.b16 %v2213
  %v2863 = vunpack.c.l.b16 %v2214
  %v2864 = vunpack.c.h.b16 %v2214
  %v2865 = vunpack.c.l.b16 %v2215
  %v2866 = vunpack.c.h.b16 %v2215
  %v2867 = vunpack.c.l.b16 %v2216
  %v2868 = vunpack.c.h.b16 %v2216
  %v2869 = vunpack.c.l.b16 %v2217
  %v2870 = vunpack.c.h.b16 %v2217
  %v2871 = vunpack.c.l.b16 %v2218
  %v2872 = vunpack.c.h.b16 %v2218
  %v2873 = vunpack.c.l.b16 %v2219
  %v2874 = vunpack.c.h.b16 %v2219
  %v2875 = vunpack.c.l.b16 %v2220
  %v2876 = vunpack.c.h.b16 %v2220
  %v2877 = vunpack.c.l.b16 %v2221
  %v2878 = vunpack.c.h.b16 %v2221
  %v2879 = vunpack.c.l.b16 %v2222
  %v2880 = vunpack.c.h.b16 %v2222
  %v2881 = vunpack.c.l.b16 %v2223
  %v2882 = vunpack.c.h.b16 %v2223
  %v2883 = vunpack.c.l.b16 %v2224
  %v2884 = vunpack.c.h.b16 %v2224
  %v2885 = vunpack.c.l.b16 %v2225
  %v2886 = vunpack.c.h.b16 %v2225
  %v2887 = vunpack.c.l.b16 %v2226
  %v2888 = vunpack.c.h.b16 %v2226
  %v2889 = vunpack.c.l.b16 %v2227
  %v2890 = vunpack.c.h.b16 %v2227
  %v2891 = vunpack.c.l.b16 %v2228
  %v2892 = vunpack.c.h.b16 %v2228
  %v2893 = vunpack.c.l.b16 %v2229
  %v2894 = vunpack.c.h.b16 %v2229
  %v2895 = vunpack.c.l.b16 %v2230
  %v2896 = vunpack.c.h.b16 %v2230
  %v2897 = vunpack.c.l.b16 %v2231
  %v2898 = vunpack.c.h.b16 %v2231
  %v2899 = vunpack.c.l.b16 %v2232
  %v2900 = vunpack.c.h.b16 %v2232
  %v2901 = vunpack.c.l.b16 %v2233
  %v2902 = vunpack.c.h.b16 %v2233
  %v2903 = vunpack.c.l.b16 %v2234
  %v2904 = vunpack.c.h.b16 %v2234
  %v2905 = vunpack.c.l.b16 %v2235
  %v2906 = vunpack.c.h.b16 %v2235
  %v2907 = vunpack.c.l.b16 %v2236
  %v2908 = vunpack.c.h.b16 %v2236
  %v2909 = vunpack.c.l.b16 %v2237
  %v2910 = vunpack.c.h.b16 %v2237
  %v2911 = vunpack.c.l.b16 %v2238
  %v2912 = vunpack.c.h.b16 %v2238
  %v2913 = vunpack.c.l.b16 %v2239
  %v2914 = vunpack.c.h.b16 %v2239
  %v2915 = vunpack.c.l.b16 %v2240
  %v2916 = vunpack.c.h.b16 %v2240
  %v2917 = vunpack.c.l.b16 %v2241
  %v2918 = vunpack.c.h.b16 %v2241
  %v2919 = vunpack.c.l.b16 %v2242
  %v2920 = vunpack.c.h.b16 %v2242
  %v2921 = vunpack.c.l.b16 %v2243
  %v2922 = vunpack.c.h.b16 %v2243
  %v2923 = vunpack.c.l.b16 %v2244
  %v2924 = vunpack.c.h.b16 %v2244
  %v2925 = vunpack.c.l.b16 %v2245
  %v2926 = vunpack.c.h.b16 %v2245
  %v2927 = vunpack.c.l.b16 %v2246
  %v2928 = vunpack.c.h.b16 %v2246
  %v2929 = vunpack.c.l.b16 %v2247
  %v2930 = vunpack.c.h.b16 %v2247
  %v2931 = vunpack.c.l.b16 %v2248
  %v2932 = vunpack.c.h.b16 %v2248
  %v2933 = vunpack.c.l.b16 %v2249
  %v2934 = vunpack.c.h.b16 %v2249
  %v2935 = vunpack.c.l.b16 %v2250
  %v2936 = vunpack.c.h.b16 %v2250
  %v2937 = vunpack.c.l.b16 %v2251
  %v2938 = vunpack.c.h.b16 %v2251
  %v2939 = vunpack.c.l.b16 %v2252
  %v2940 = vunpack.c.h.b16 %v2252
  %v2941 = vunpack.c.l.b16 %v2253
  %v2942 = vunpack.c.h.b16 %v2253
  %v2943 = vunpack.c.l.b16 %v2254
  %v2944 = vunpack.c.h.b16 %v2254
  %v2945 = vunpack.c.l.b16 %v2255
  %v2946 = vunpack.c.h.b16 %v2255
  %v2947 = vunpack.c.l.b16 %v2256
  %v2948 = vunpack.c.h.b16 %v2256
  %v2949 = vunpack.c.l.b16 %v2257
  %v2950 = vunpack.c.h.b16 %v2257
  %v2951 = vunpack.c.l.b16 %v2258
  %v2952 = vunpack.c.h.b16 %v2258
  %v2953 = vunpack.c.l.b16 %v2259
  %v2954 = vunpack.c.h.b16 %v2259
  %v2955 = vunpack.c.l.b16 %v2260
  %v2956 = vunpack.c.h.b16 %v2260
  %v2957 = vunpack.c.l.b16 %v2261
  %v2958 = vunpack.c.h.b16 %v2261
  %v2959 = vunpack.c.l.b16 %v2262
  %v2960 = vunpack.c.h.b16 %v2262
  %v2961 = vunpack.c.l.b16 %v2263
  %v2962 = vunpack.c.h.b16 %v2263
  %v2963 = vunpack.c.l.b16 %v2264
  %v2964 = vunpack.c.h.b16 %v2264
  %v2965 = vunpack.c.l.b16 %v2265
  %v2966 = vunpack.c.h.b16 %v2265
  %v2967 = vunpack.c.l.b16 %v2266
  %v2968 = vunpack.c.h.b16 %v2266
  %v2969 = vunpack.c.l.b16 %v2267
  %v2970 = vunpack.c.h.b16 %v2267
  %v2971 = vunpack.c.l.b16 %v2268
  %v2972 = vunpack.c.h.b16 %v2268
  %v2973 = vunpack.c.l.b16 %v2269
  %v2974 = vunpack.c.h.b16 %v2269
  %v2975 = vunpack.c.l.b16 %v2270
  %v2976 = vunpack.c.h.b16 %v2270
  %v2977 = vunpack.c.l.b16 %v2271
  %v2978 = vunpack.c.h.b16 %v2271
  %v2979 = vunpack.c.l.b16 %v2272
  %v2980 = vunpack.c.h.b16 %v2272
  %v2981 = vunpack.c.l.b16 %v2273
  %v2982 = vunpack.c.h.b16 %v2273
  %v2983 = vunpack.c.l.b16 %v2274
  %v2984 = vunpack.c.h.b16 %v2274
  %v2985 = vunpack.c.l.b16 %v2275
  %v2986 = vunpack.c.h.b16 %v2275
  %v2987 = vunpack.c.l.b16 %v2276
  %v2988 = vunpack.c.h.b16 %v2276
  %v2989 = vunpack.c.l.b16 %v2277
  %v2990 = vunpack.c.h.b16 %v2277
  %v2991 = vunpack.c.l.b16 %v2278
  %v2992 = vunpack.c.h.b16 %v2278
  %v2993 = vunpack.c.l.b16 %v2279
  %v2994 = vunpack.c.h.b16 %v2279
  %v2995 = vunpack.c.l.b16 %v2280
  %v2996 = vunpack.c.h.b16 %v2280
  %v2997 = vunpack.c.l.b16 %v2281
  %v2998 = vunpack.c.h.b16 %v2281
  %v2999 = vunpack.c.l.b16 %v2282
  %v3000 = vunpack.c.h.b16 %v2282
  %v3001 = vunpack.c.l.b16 %v2283
  %v3002 = vunpack.c.h.b16 %v2283
  %v3003 = vunpack.c.l.b16 %v2284
  %v3004 = vunpack.c.h.b16 %v2284
  %v3005 = vunpack.c.l.b16 %v2285
  %v3006 = vunpack.c.h.b16 %v2285
  %v3007 = vunpack.c.l.b16 %v2286
  %v3008 = vunpack.c.h.b16 %v2286
  %v3009 = vunpack.c.l.b16 %v2287
  %v3010 = vunpack.c.h.b16 %v2287
  %v3011 = vunpack.c.l.b16 %v2288
  %v3012 = vunpack.c.h.b16 %v2288
  %v3013 = vunpack.c.l.b16 %v2289
  %v3014 = vunpack.c.h.b16 %v2289
  %v3015 = vunpack.c.l.b16 %v2290
  %v3016 = vunpack.c.h.b16 %v2290
  %v3017 = vunpack.c.l.b16 %v2291
  %v3018 = vunpack.c.h.b16 %v2291
  %v3019 = vunpack.c.l.b16 %v2292
  %v3020 = vunpack.c.h.b16 %v2292
  %v3021 = vunpack.c.l.b16 %v2293
  %v3022 = vunpack.c.h.b16 %v2293
  %v3023 = vunpack.c.l.b16 %v2294
  %v3024 = vunpack.c.h.b16 %v2294
  %v3025 = vunpack.c.l.b16 %v2295
  %v3026 = vunpack.c.h.b16 %v2295
  %v3027 = vunpack.c.l.b16 %v2296
  %v3028 = vunpack.c.h.b16 %v2296
  %v3029 = vunpack.c.l.b16 %v2297
  %v3030 = vunpack.c.h.b16 %v2297
  %v3031 = vunpack.c.l.b16 %v2298
  %v3032 = vunpack.c.h.b16 %v2298
  %v3033 = vunpack.c.l.b16 %v2299
  %v3034 = vunpack.c.h.b16 %v2299
  %v3035 = vunpack.c.l.b16 %v2300
  %v3036 = vunpack.c.h.b16 %v2300
  %v3037 = vunpack.c.l.b16 %v2301
  %v3038 = vunpack.c.h.b16 %v2301
  %v3039 = vunpack.c.l.b16 %v2302
  %v3040 = vunpack.c.h.b16 %v2302
  %v3041 = vunpack.c.l.b16 %v2303
  %v3042 = vunpack.c.h.b16 %v2303
  %v3043 = vunpack.c.l.b16 %v2304
  %v3044 = vunpack.c.h.b16 %v2304
  %v3045 = vunpack.c.l.b16 %v2305
  %v3046 = vunpack.c.h.b16 %v2305
  %v3047 = vunpack.c.l.b16 %v2306
  %v3048 = vunpack.c.h.b16 %v2306
  %v3049 = vunpack.c.l.b16 %v2307
  %v3050 = vunpack.c.h.b16 %v2307
  %v3051 = vunpack.c.l.b16 %v2308
  %v3052 = vunpack.c.h.b16 %v2308
  %v3053 = vunpack.c.l.b16 %v2309
  %v3054 = vunpack.c.h.b16 %v2309
  %v3055 = vunpack.c.l.b16 %v2310
  %v3056 = vunpack.c.h.b16 %v2310
  %v3057 = vunpack.c.l.b16 %v2311
  %v3058 = vunpack.c.h.b16 %v2311
  %v3059 = vunpack.c.l.b16 %v2312
  %v3060 = vunpack.c.h.b16 %v2312
  %v3061 = vunpack.c.l.b16 %v2313
  %v3062 = vunpack.c.h.b16 %v2313
  %v3063 = vunpack.c.l.b16 %v2314
  %v3064 = vunpack.c.h.b16 %v2314
  %v3065 = vunpack.c.l.b16 %v2315
  %v3066 = vunpack.c.h.b16 %v2315
  %v3067 = vunpack.c.l.b16 %v2316
  %v3068 = vunpack.c.h.b16 %v2316
  %v3069 = vunpack.c.l.b16 %v2317
  %v3070 = vunpack.c.h.b16 %v2317
  %v3071 = vunpack.c.l.b16 %v2318
  %v3072 = vunpack.c.h.b16 %v2318
  %v3073 = vunpack.c.l.b16 %v2319
  %v3074 = vunpack.c.h.b16 %v2319
  %v3075 = vunpack.c.l.b16 %v2320
  %v3076 = vunpack.c.h.b16 %v2320
  %v3077 = vunpack.c.l.b16 %v2321
  %v3078 = vunpack.c.h.b16 %v2321
  %v3079 = vunpack.c.l.b16 %v2322
  %v3080 = vunpack.c.h.b16 %v2322
  %v3081 = vunpack.c.l.b16 %v2323
  %v3082 = vunpack.c.h.b16 %v2323
  %v3083 = vunpack.c.l.b16 %v2324
  %v3084 = vunpack.c.h.b16 %v2324
  %v3085 = vunpack.c.l.b16 %v2325
  %v3086 = vunpack.c.h.b16 %v2325
  %v3087 = vunpack.c.l.b16 %v2326
  %v3088 = vunpack.c.h.b16 %v2326
  %v3089 = vunpack.c.l.b16 %v2327
  %v3090 = vunpack.c.h.b16 %v2327
  %v3091 = vunpack.c.l.b16 %v2328
  %v3092 = vunpack.c.h.b16 %v2328
  %v3093 = vunpack.c.l.b16 %v2329
  %v3094 = vunpack.c.h.b16 %v2329
  %v3095 = vunpack.c.l.b16 %v2330
  %v3096 = vunpack.c.h.b16 %v2330
  %v3097 = vunpack.c.l.b16 %v2331
  %v3098 = vunpack.c.h.b16 %v2331
  %v3099 = vunpack.c.l.b16 %v2332
  %v3100 = vunpack.c.h.b16 %v2332
  %v3101 = vunpack.c.l.b16 %v2333
  %v3102 = vunpack.c.h.b16 %v2333
  %v3103 = vunpack.c.l.b16 %v2334
  %v3104 = vunpack.c.h.b16 %v2334
  %v3105 = vunpack.c.l.b16 %v2335
  %v3106 = vunpack.c.h.b16 %v2335
  %v3107 = vunpack.c.l.b16 %v2336
  %v3108 = vunpack.c.h.b16 %v2336
  %v3109 = vunpack.c.l.b16 %v2337
  %v3110 = vunpack.c.h.b16 %v2337
  %v3111 = vunpack.c.l.b16 %v2338
  %v3112 = vunpack.c.h.b16 %v2338
  %v3113 = vunpack.c.l.b16 %v2339
  %v3114 = vunpack.c.h.b16 %v2339
  %v3115 = vunpack.c.l.b16 %v2340
  %v3116 = vunpack.c.h.b16 %v2340
  %v3117 = vunpack.c.l.b16 %v2341
  %v3118 = vunpack.c.h.b16 %v2341
  %v3119 = vunpack.c.l.b16 %v2342
  %v3120 = vunpack.c.h.b16 %v2342
  %v3121 = vunpack.c.l.b16 %v2343
  %v3122 = vunpack.c.h.b16 %v2343
  %v3123 = vunpack.c.l.b16 %v2344
  %v3124 = vunpack.c.h.b16 %v2344
  %v3125 = vunpack.c.l.b16 %v2345
  %v3126 = vunpack.c.h.b16 %v2345
  %v3127 = vunpack.c.l.b16 %v2346
  %v3128 = vunpack.c.h.b16 %v2346
  %v3129 = vunpack.c.l.b16 %v2347
  %v3130 = vunpack.c.h.b16 %v2347
  %v3131 = vunpack.c.l.b16 %v2348
  %v3132 = vunpack.c.h.b16 %v2348
  %v3133 = vunpack.c.l.b16 %v2349
  %v3134 = vunpack.c.h.b16 %v2349
  %v3135 = vunpack.c.l.b16 %v2350
  %v3136 = vunpack.c.h.b16 %v2350
  %v3137 = vpack.c.b16 %v2633, %v2625
  %v3138 = vpack.c.b16 %v2634, %v2626
  %v3139 = vpack.c.b16 %v2635, %v2627
  %v3140 = vpack.c.b16 %v2636, %v2628
  %v3141 = vpack.c.b16 %v2637, %v2629
  %v3142 = vpack.c.b16 %v2638, %v2630
  %v3143 = vpack.c.b16 %v2639, %v2631
  %v3144 = vpack.c.b16 %v2640, %v2632
  %v3145 = vpack.c.b16 %v2649, %v2641
  %v3146 = vpack.c.b16 %v2650, %v2642
  %v3147 = vpack.c.b16 %v2651, %v2643
  %v3148 = vpack.c.b16 %v2652, %v2644
  %v3149 = vpack.c.b16 %v2653, %v2645
  %v3150 = vpack.c.b16 %v2654, %v2646
  %v3151 = vpack.c.b16 %v2655, %v2647
  %v3152 = vpack.c.b16 %v2656, %v2648
  %v3153 = vpack.c.b16 %v2665, %v2657
  %v3154 = vpack.c.b16 %v2666, %v2658
  %v3155 = vpack.c.b16 %v2667, %v2659
  %v3156 = vpack.c.b16 %v2668, %v2660
  %v3157 = vpack.c.b16 %v2669, %v2661
  %v3158 = vpack.c.b16 %v2670, %v2662
  %v3159 = vpack.c.b16 %v2671, %v2663
  %v3160 = vpack.c.b16 %v2672, %v2664
  %v3161 = vpack.c.b16 %v2681, %v2673
  %v3162 = vpack.c.b16 %v2682, %v2674
  %v3163 = vpack.c.b16 %v2683, %v2675
  %v3164 = vpack.c.b16 %v2684, %v2676
  %v3165 = vpack.c.b16 %v2685, %v2677
  %v3166 = vpack.c.b16 %v2686, %v2678
  %v3167 = vpack.c.b16 %v2687, %v2679
  %v3168 = vpack.c.b16 %v2688, %v2680
  %v3169 = vpack.c.b16 %v2697, %v2689
  %v3170 = vpack.c.b16 %v2698, %v2690
  %v3171 = vpack.c.b16 %v2699, %v2691
  %v3172 = vpack.c.b16 %v2700, %v2692
  %v3173 = vpack.c.b16 %v2701, %v2693
  %v3174 = vpack.c.b16 %v2702, %v2694
  %v3175 = vpack.c.b16 %v2703, %v2695
  %v3176 = vpack.c.b16 %v2704, %v2696
  %v3177 = vpack.c.b16 %v2713, %v2705
  %v3178 = vpack.c.b16 %v2714, %v2706
  %v3179 = vpack.c.b16 %v2715, %v2707
  %v3180 = vpack.c.b16 %v2716, %v2708
  %v3181 = vpack.c.b16 %v2717, %v2709
  %v3182 = vpack.c.b16 %v2718, %v2710
  %v3183 = vpack.c.b16 %v2719, %v2711
  %v3184 = vpack.c.b16 %v2720, %v2712
  %v3185 = vpack.c.b16 %v2729, %v2721
  %v3186 = vpack.c.b16 %v2730, %v2722
  %v3187 = vpack.c.b16 %v2731, %v2723
  %v3188 = vpack.c.b16 %v2732, %v2724
  %v3189 = vpack.c.b16 %v2733, %v2725
  %v3190 = vpack.c.b16 %v2734, %v2726
  %v3191 = vpack.c.b16 %v2735, %v2727
  %v3192 = vpack.c.b16 %v2736, %v2728
  %v3193 = vpack.c.b16 %v2745, %v2737
  %v3194 = vpack.c.b16 %v2746, %v2738
  %v3195 = vpack.c.b16 %v2747, %v2739
  %v3196 = vpack.c.b16 %v2748, %v2740
  %v3197 = vpack.c.b16 %v2749, %v2741
  %v3198 = vpack.c.b16 %v2750, %v2742
  %v3199 = vpack.c.b16 %v2751, %v2743
  %v3200 = vpack.c.b16 %v2752, %v2744
  %v3201 = vpack.c.b16 %v2761, %v2753
  %v3202 = vpack.c.b16 %v2762, %v2754
  %v3203 = vpack.c.b16 %v2763, %v2755
  %v3204 = vpack.c.b16 %v2764, %v2756
  %v3205 = vpack.c.b16 %v2765, %v2757
  %v3206 = vpack.c.b16 %v2766, %v2758
  %v3207 = vpack.c.b16 %v2767, %v2759
  %v3208 = vpack.c.b16 %v2768, %v2760
  %v3209 = vpack.c.b16 %v2777, %v2769
  %v3210 = vpack.c.b16 %v2778, %v2770
  %v3211 = vpack.c.b16 %v2779, %v2771
  %v3212 = vpack.c.b16 %v2780, %v2772
  %v3213 = vpack.c.b16 %v2781, %v2773
  %v3214 = vpack.c.b16 %v2782, %v2774
  %v3215 = vpack.c.b16 %v2783, %v2775
  %v3216 = vpack.c.b16 %v2784, %v2776
  %v3217 = vpack.c.b16 %v2793, %v2785
  %v3218 = vpack.c.b16 %v2794, %v2786
  %v3219 = vpack.c.b16 %v2795, %v2787
  %v3220 = vpack.c.b16 %v2796, %v2788
  %v3221 = vpack.c.b16 %v2797, %v2789
  %v3222 = vpack.c.b16 %v2798, %v2790
  %v3223 = vpack.c.b16 %v2799, %v2791
  %v3224 = vpack.c.b16 %v2800, %v2792
  %v3225 = vpack.c.b16 %v2809, %v2801
  %v3226 = vpack.c.b16 %v2810, %v2802
  %v3227 = vpack.c.b16 %v2811, %v2803
  %v3228 = vpack.c.b16 %v2812, %v2804
  %v3229 = vpack.c.b16 %v2813, %v2805
  %v3230 = vpack.c.b16 %v2814, %v2806
  %v3231 = vpack.c.b16 %v2815, %v2807
  %v3232 = vpack.c.b16 %v2816, %v2808
  %v3233 = vpack.c.b16 %v2825, %v2817
  %v3234 = vpack.c.b16 %v2826, %v2818
  %v3235 = vpack.c.b16 %v2827, %v2819
  %v3236 = vpack.c.b16 %v2828, %v2820
  %v3237 = vpack.c.b16 %v2829, %v2821
  %v3238 = vpack.c.b16 %v2830, %v2822
  %v3239 = vpack.c.b16 %v2831, %v2823
  %v3240 = vpack.c.b16 %v2832, %v2824
  %v3241 = vpack.c.b16 %v2841, %v2833
  %v3242 = vpack.c.b16 %v2842, %v2834
  %v3243 = vpack.c.b16 %v2843, %v2835
  %v3244 = vpack.c.b16 %v2844, %v2836
  %v3245 = vpack.c.b16 %v2845, %v2837
  %v3246 = vpack.c.b16 %v2846, %v2838
  %v3247 = vpack.c.b16 %v2847, %v2839
  %v3248 = vpack.c.b16 %v2848, %v2840
  %v3249 = vpack.c.b16 %v2857, %v2849
  %v3250 = vpack.c.b16 %v2858, %v2850
  %v3251 = vpack.c.b16 %v2859, %v2851
  %v3252 = vpack.c.b16 %v2860, %v2852
  %v3253 = vpack.c.b16 %v2861, %v2853
  %v3254 = vpack.c.b16 %v2862, %v2854
  %v3255 = vpack.c.b16 %v2863, %v2855
  %v3256 = vpack.c.b16 %v2864, %v2856
  %v3257 = vpack.c.b16 %v2873, %v2865
  %v3258 = vpack.c.b16 %v2874, %v2866
  %v3259 = vpack.c.b16 %v2875, %v2867
  %v3260 = vpack.c.b16 %v2876, %v2868
  %v3261 = vpack.c.b16 %v2877, %v2869
  %v3262 = vpack.c.b16 %v2878, %v2870
  %v3263 = vpack.c.b16 %v2879, %v2871
  %v3264 = vpack.c.b16 %v2880, %v2872
  %v3265 = vpack.c.b16 %v2889, %v2881
  %v3266 = vpack.c.b16 %v2890, %v2882
  %v3267 = vpack.c.b16 %v2891, %v2883
  %v3268 = vpack.c.b16 %v2892, %v2884
  %v3269 = vpack.c.b16 %v2893, %v2885
  %v3270 = vpack.c.b16 %v2894, %v2886
  %v3271 = vpack.c.b16 %v2895, %v2887
  %v3272 = vpack.c.b16 %v2896, %v2888
  %v3273 = vpack.c.b16 %v2905, %v2897
  %v3274 = vpack.c.b16 %v2906, %v2898
  %v3275 = vpack.c.b16 %v2907, %v2899
  %v3276 = vpack.c.b16 %v2908, %v2900
  %v3277 = vpack.c.b16 %v2909, %v2901
  %v3278 = vpack.c.b16 %v2910, %v2902
  %v3279 = vpack.c.b16 %v2911, %v2903
  %v3280 = vpack.c.b16 %v2912, %v2904
  %v3281 = vpack.c.b16 %v2921, %v2913
  %v3282 = vpack.c.b16 %v2922, %v2914
  %v3283 = vpack.c.b16 %v2923, %v2915
  %v3284 = vpack.c.b16 %v2924, %v2916
  %v3285 = vpack.c.b16 %v2925, %v2917
  %v3286 = vpack.c.b16 %v2926, %v2918
  %v3287 = vpack.c.b16 %v2927, %v2919
  %v3288 = vpack.c.b16 %v2928, %v2920
  %v3289 = vpack.c.b16 %v2937, %v2929
  %v3290 = vpack.c.b16 %v2938, %v2930
  %v3291 = vpack.c.b16 %v2939, %v2931
  %v3292 = vpack.c.b16 %v2940, %v2932
  %v3293 = vpack.c.b16 %v2941, %v2933
  %v3294 = vpack.c.b16 %v2942, %v2934
  %v3295 = vpack.c.b16 %v2943, %v2935
  %v3296 = vpack.c.b16 %v2944, %v2936
  %v3297 = vpack.c.b16 %v2953, %v2945
  %v3298 = vpack.c.b16 %v2954, %v2946
  %v3299 = vpack.c.b16 %v2955, %v2947
  %v3300 = vpack.c.b16 %v2956, %v2948
  %v3301 = vpack.c.b16 %v2957, %v2949
  %v3302 = vpack.c.b16 %v2958, %v2950
  %v3303 = vpack.c.b16 %v2959, %v2951
  %v3304 = vpack.c.b16 %v2960, %v2952
  %v3305 = vpack.c.b16 %v2969, %v2961
  %v3306 = vpack.c.b16 %v2970, %v2962
  %v3307 = vpack.c.b16 %v2971, %v2963
  %v3308 = vpack.c.b16 %v2972, %v2964
  %v3309 = vpack.c.b16 %v2973, %v2965
  %v3310 = vpack.c.b16 %v2974, %v2966
  %v3311 = vpack.c.b16 %v2975, %v2967
  %v3312 = vpack.c.b16 %v2976, %v2968
  %v3313 = vpack.c.b16 %v2985, %v2977
  %v3314 = vpack.c.b16 %v2986, %v2978
  %v3315 = vpack.c.b16 %v2987, %v2979
  %v3316 = vpack.c.b16 %v2988, %v2980
  %v3317 = vpack.c.b16 %v2989, %v2981
  %v3318 = vpack.c.b16 %v2990, %v2982
  %v3319 = vpack.c.b16 %v2991, %v2983
  %v3320 = vpack.c.b16 %v2992, %v2984
  %v3321 = vpack.c.b16 %v3001, %v2993
  %v3322 = vpack.c.b16 %v3002, %v2994
  %v3323 = vpack.c.b16 %v3003, %v2995
  %v3324 = vpack.c.b16 %v3004, %v2996
  %v3325 = vpack.c.b16 %v3005, %v2997
  %v3326 = vpack.c.b16 %v3006, %v2998
  %v3327 = vpack.c.b16 %v3007, %v2999
  %v3328 = vpack.c.b16 %v3008, %v3000
  %v3329 = vpack.c.b16 %v3017, %v3009
  %v3330 = vpack.c.b16 %v3018, %v3010
  %v3331 = vpack.c.b16 %v3019, %v3011
  %v3332 = vpack.c.b16 %v3020, %v3012
  %v3333 = vpack.c.b16 %v3021, %v3013
  %v3334 = vpack.c.b16 %v3022, %v3014
  %v3335 = vpack.c.b16 %v3023, %v3015
  %v3336 = vpack.c.b16 %v3024, %v3016
  %v3337 = vpack.c.b16 %v3033, %v3025
  %v3338 = vpack.c.b16 %v3034, %v3026
  %v3339 = vpack.c.b16 %v3035, %v3027
  %v3340 = vpack.c.b16 %v3036, %v3028
  %v3341 = vpack.c.b16 %v3037, %v3029
  %v3342 = vpack.c.b16 %v3038, %v3030
  %v3343 = vpack.c.b16 %v3039, %v3031
  %v3344 = vpack.c.b16 %v3040, %v3032
  %v3345 = vpack.c.b16 %v3049, %v3041
  %v3346 = vpack.c.b16 %v3050, %v3042
  %v3347 = vpack.c.b16 %v3051, %v3043
  %v3348 = vpack.c.b16 %v3052, %v3044
  %v3349 = vpack.c.b16 %v3053, %v3045
  %v3350 = vpack.c.b16 %v3054, %v3046
  %v3351 = vpack.c.b16 %v3055, %v3047
  %v3352 = vpack.c.b16 %v3056, %v3048
  %v3353 = vpack.c.b16 %v3065, %v3057
  %v3354 = vpack.c.b16 %v3066, %v3058
  %v3355 = vpack.c.b16 %v3067, %v3059
  %v3356 = vpack.c.b16 %v3068, %v3060
  %v3357 = vpack.c.b16 %v3069, %v3061
  %v3358 = vpack.c.b16 %v3070, %v3062
  %v3359 = vpack.c.b16 %v3071, %v3063
  %v3360 = vpack.c.b16 %v3072, %v3064
  %v3361 = vpack.c.b16 %v3081, %v3073
  %v3362 = vpack.c.b16 %v3082, %v3074
  %v3363 = vpack.c.b16 %v3083, %v3075
  %v3364 = vpack.c.b16 %v3084, %v3076
  %v3365 = vpack.c.b16 %v3085, %v3077
  %v3366 = vpack.c.b16 %v3086, %v3078
  %v3367 = vpack.c.b16 %v3087, %v3079
  %v3368 = vpack.c.b16 %v3088, %v3080
  %v3369 = vpack.c.b16 %v3097, %v3089
  %v3370 = vpack.c.b16 %v3098, %v3090
  %v3371 = vpack.c.b16 %v3099, %v3091
  %v3372 = vpack.c.b16 %v3100, %v3092
  %v3373 = vpack.c.b16 %v3101, %v3093
  %v3374 = vpack.c.b16 %v3102, %v3094
  %v3375 = vpack.c.b16 %v3103, %v3095
  %v3376 = vpack.c.b16 %v3104, %v3096
  %v3377 = vpack.c.b16 %v3113, %v3105
  %v3378 = vpack.c.b16 %v3114, %v3106
  %v3379 = vpack.c.b16 %v3115, %v3107
  %v3380 = vpack.c.b16 %v3116, %v3108
  %v3381 = vpack.c.b16 %v3117, %v3109
  %v3382 = vpack.c.b16 %v3118, %v3110
  %v3383 = vpack.c.b16 %v3119, %v3111
  %v3384 = vpack.c.b16 %v3120, %v3112
  %v3385 = vpack.c.b16 %v3129, %v3121
  %v3386 = vpack.c.b16 %v3130, %v3122
  %v3387 = vpack.c.b16 %v3131, %v3123
  %v3388 = vpack.c.b16 %v3132, %v3124
  %v3389 = vpack.c.b16 %v3133, %v3125
  %v3390 = vpack.c.b16 %v3134, %v3126
  %v3391 = vpack.c.b16 %v3135, %v3127
  %v3392 = vpack.c.b16 %v3136, %v3128
  %3649 = vmatpush.bf16.msra.mxu0 %v3193
  %3650 = vmatpush.bf16.msra.mxu0 %v3185
  %3651 = vmatpush.bf16.msra.mxu0 %v3177
  %3652 = vmatpush.bf16.msra.mxu0 %v3169
  %3653 = vmatpush.bf16.msra.mxu0 %v3161
  %3654 = vmatpush.bf16.msra.mxu0 %v3153
  %3655 = vmatpush.bf16.msra.mxu0 %v3145
  %3656 = vmatpush.bf16.msra.mxu0 %v3137
  %3657 = vmatmul.bf16.gmra.mxu0 %v2091
  %v3658 = vpop.f32.mrf.mxu0
  %v3659 = vadd.f32 %v2353, %v3658
  %v3660 = vpop.f32.mrf.mxu0
  %v3661 = vadd.f32 %v2353, %v3660
  %3662 = vdwg.mxu0
  %3663 = vmatpush.bf16.msra.mxu0 %v3257
  %3664 = vmatpush.bf16.msra.mxu0 %v3249
  %3665 = vmatpush.bf16.msra.mxu0 %v3241
  %3666 = vmatpush.bf16.msra.mxu0 %v3233
  %3667 = vmatpush.bf16.msra.mxu0 %v3225
  %3668 = vmatpush.bf16.msra.mxu0 %v3217
  %3669 = vmatpush.bf16.msra.mxu0 %v3209
  %3670 = vmatpush.bf16.msra.mxu0 %v3201
  %3671 = vmatmul.bf16.gmra.mxu0 %v2092
  %v3672 = vpop.f32.mrf.mxu0
  %v3673 = vadd.f32 %v3659, %v3672
  %v3674 = vpop.f32.mrf.mxu0
  %v3675 = vadd.f32 %v3661, %v3674
  %3676 = vdwg.mxu0
  %3677 = vmatpush.bf16.msra.mxu0 %v3321
  %3678 = vmatpush.bf16.msra.mxu0 %v3313
  %3679 = vmatpush.bf16.msra.mxu0 %v3305
  %3680 = vmatpush.bf16.msra.mxu0 %v3297
  %3681 = vmatpush.bf16.msra.mxu0 %v3289
  %3682 = vmatpush.bf16.msra.mxu0 %v3281
  %3683 = vmatpush.bf16.msra.mxu0 %v3273
  %3684 = vmatpush.bf16.msra.mxu0 %v3265
  %3685 = vmatmul.bf16.gmra.mxu0 %v2093
  %v3686 = vpop.f32.mrf.mxu0
  %v3687 = vadd.f32 %v3673, %v3686
  %v3688 = vpop.f32.mrf.mxu0
  %v3689 = vadd.f32 %v3675, %v3688
  %3690 = vdwg.mxu0
  %3691 = vmatpush.bf16.msra.mxu0 %v3385
  %3692 = vmatpush.bf16.msra.mxu0 %v3377
  %3693 = vmatpush.bf16.msra.mxu0 %v3369
  %3694 = vmatpush.bf16.msra.mxu0 %v3361
  %3695 = vmatpush.bf16.msra.mxu0 %v3353
  %3696 = vmatpush.bf16.msra.mxu0 %v3345
  %3697 = vmatpush.bf16.msra.mxu0 %v3337
  %3698 = vmatpush.bf16.msra.mxu0 %v3329
  %3699 = vmatmul.bf16.gmra.mxu0 %v2094
  %v3700 = vpop.f32.mrf.mxu0
  %v3701 = vadd.f32 %v3687, %v3700
  %v3702 = vpop.f32.mrf.mxu0
  %v3703 = vadd.f32 %v3689, %v3702
  %3704 = vdwg.mxu0
  %3705 = vmatpush.bf16.msra.mxu0 %v3194
  %3706 = vmatpush.bf16.msra.mxu0 %v3186
  %3707 = vmatpush.bf16.msra.mxu0 %v3178
  %3708 = vmatpush.bf16.msra.mxu0 %v3170
  %3709 = vmatpush.bf16.msra.mxu0 %v3162
  %3710 = vmatpush.bf16.msra.mxu0 %v3154
  %3711 = vmatpush.bf16.msra.mxu0 %v3146
  %3712 = vmatpush.bf16.msra.mxu0 %v3138
  %3713 = vmatmul.bf16.gmra.mxu0 %v2091
  %v3714 = vpop.f32.mrf.mxu0
  %v3715 = vadd.f32 %v2354, %v3714
  %v3716 = vpop.f32.mrf.mxu0
  %v3717 = vadd.f32 %v2354, %v3716
  %3718 = vdwg.mxu0
  %3719 = vmatpush.bf16.msra.mxu0 %v3258
  %3720 = vmatpush.bf16.msra.mxu0 %v3250
  %3721 = vmatpush.bf16.msra.mxu0 %v3242
  %3722 = vmatpush.bf16.msra.mxu0 %v3234
  %3723 = vmatpush.bf16.msra.mxu0 %v3226
  %3724 = vmatpush.bf16.msra.mxu0 %v3218
  %3725 = vmatpush.bf16.msra.mxu0 %v3210
  %3726 = vmatpush.bf16.msra.mxu0 %v3202
  %3727 = vmatmul.bf16.gmra.mxu0 %v2092
  %v3728 = vpop.f32.mrf.mxu0
  %v3729 = vadd.f32 %v3715, %v3728
  %v3730 = vpop.f32.mrf.mxu0
  %v3731 = vadd.f32 %v3717, %v3730
  %3732 = vdwg.mxu0
  %3733 = vmatpush.bf16.msra.mxu0 %v3322
  %3734 = vmatpush.bf16.msra.mxu0 %v3314
  %3735 = vmatpush.bf16.msra.mxu0 %v3306
  %3736 = vmatpush.bf16.msra.mxu0 %v3298
  %3737 = vmatpush.bf16.msra.mxu0 %v3290
  %3738 = vmatpush.bf16.msra.mxu0 %v3282
  %3739 = vmatpush.bf16.msra.mxu0 %v3274
  %3740 = vmatpush.bf16.msra.mxu0 %v3266
  %3741 = vmatmul.bf16.gmra.mxu0 %v2093
  %v3742 = vpop.f32.mrf.mxu0
  %v3743 = vadd.f32 %v3729, %v3742
  %v3744 = vpop.f32.mrf.mxu0
  %v3745 = vadd.f32 %v3731, %v3744
  %3746 = vdwg.mxu0
  %3747 = vmatpush.bf16.msra.mxu0 %v3386
  %3748 = vmatpush.bf16.msra.mxu0 %v3378
  %3749 = vmatpush.bf16.msra.mxu0 %v3370
  %3750 = vmatpush.bf16.msra.mxu0 %v3362
  %3751 = vmatpush.bf16.msra.mxu0 %v3354
  %3752 = vmatpush.bf16.msra.mxu0 %v3346
  %3753 = vmatpush.bf16.msra.mxu0 %v3338
  %3754 = vmatpush.bf16.msra.mxu0 %v3330
  %3755 = vmatmul.bf16.gmra.mxu0 %v2094
  %v3756 = vpop.f32.mrf.mxu0
  %v3757 = vadd.f32 %v3743, %v3756
  %v3758 = vpop.f32.mrf.mxu0
  %v3759 = vadd.f32 %v3745, %v3758
  %3760 = vdwg.mxu0
  %3761 = vmatpush.bf16.msra.mxu0 %v3195
  %3762 = vmatpush.bf16.msra.mxu0 %v3187
  %3763 = vmatpush.bf16.msra.mxu0 %v3179
  %3764 = vmatpush.bf16.msra.mxu0 %v3171
  %3765 = vmatpush.bf16.msra.mxu0 %v3163
  %3766 = vmatpush.bf16.msra.mxu0 %v3155
  %3767 = vmatpush.bf16.msra.mxu0 %v3147
  %3768 = vmatpush.bf16.msra.mxu0 %v3139
  %3769 = vmatmul.bf16.gmra.mxu0 %v2091
  %v3770 = vpop.f32.mrf.mxu0
  %v3771 = vadd.f32 %v2355, %v3770
  %v3772 = vpop.f32.mrf.mxu0
  %v3773 = vadd.f32 %v2355, %v3772
  %3774 = vdwg.mxu0
  %3775 = vmatpush.bf16.msra.mxu0 %v3259
  %3776 = vmatpush.bf16.msra.mxu0 %v3251
  %3777 = vmatpush.bf16.msra.mxu0 %v3243
  %3778 = vmatpush.bf16.msra.mxu0 %v3235
  %3779 = vmatpush.bf16.msra.mxu0 %v3227
  %3780 = vmatpush.bf16.msra.mxu0 %v3219
  %3781 = vmatpush.bf16.msra.mxu0 %v3211
  %3782 = vmatpush.bf16.msra.mxu0 %v3203
  %3783 = vmatmul.bf16.gmra.mxu0 %v2092
  %v3784 = vpop.f32.mrf.mxu0
  %v3785 = vadd.f32 %v3771, %v3784
  %v3786 = vpop.f32.mrf.mxu0
  %v3787 = vadd.f32 %v3773, %v3786
  %3788 = vdwg.mxu0
  %3789 = vmatpush.bf16.msra.mxu0 %v3323
  %3790 = vmatpush.bf16.msra.mxu0 %v3315
  %3791 = vmatpush.bf16.msra.mxu0 %v3307
  %3792 = vmatpush.bf16.msra.mxu0 %v3299
  %3793 = vmatpush.bf16.msra.mxu0 %v3291
  %3794 = vmatpush.bf16.msra.mxu0 %v3283
  %3795 = vmatpush.bf16.msra.mxu0 %v3275
  %3796 = vmatpush.bf16.msra.mxu0 %v3267
  %3797 = vmatmul.bf16.gmra.mxu0 %v2093
  %v3798 = vpop.f32.mrf.mxu0
  %v3799 = vadd.f32 %v3785, %v3798
  %v3800 = vpop.f32.mrf.mxu0
  %v3801 = vadd.f32 %v3787, %v3800
  %3802 = vdwg.mxu0
  %3803 = vmatpush.bf16.msra.mxu0 %v3387
  %3804 = vmatpush.bf16.msra.mxu0 %v3379
  %3805 = vmatpush.bf16.msra.mxu0 %v3371
  %3806 = vmatpush.bf16.msra.mxu0 %v3363
  %3807 = vmatpush.bf16.msra.mxu0 %v3355
  %3808 = vmatpush.bf16.msra.mxu0 %v3347
  %3809 = vmatpush.bf16.msra.mxu0 %v3339
  %3810 = vmatpush.bf16.msra.mxu0 %v3331
  %3811 = vmatmul.bf16.gmra.mxu0 %v2094
  %v3812 = vpop.f32.mrf.mxu0
  %v3813 = vadd.f32 %v3799, %v3812
  %v3814 = vpop.f32.mrf.mxu0
  %v3815 = vadd.f32 %v3801, %v3814
  %3816 = vdwg.mxu0
  %3817 = vmatpush.bf16.msra.mxu0 %v3196
  %3818 = vmatpush.bf16.msra.mxu0 %v3188
  %3819 = vmatpush.bf16.msra.mxu0 %v3180
  %3820 = vmatpush.bf16.msra.mxu0 %v3172
  %3821 = vmatpush.bf16.msra.mxu0 %v3164
  %3822 = vmatpush.bf16.msra.mxu0 %v3156
  %3823 = vmatpush.bf16.msra.mxu0 %v3148
  %3824 = vmatpush.bf16.msra.mxu0 %v3140
  %3825 = vmatmul.bf16.gmra.mxu0 %v2091
  %v3826 = vpop.f32.mrf.mxu0
  %v3827 = vadd.f32 %v2356, %v3826
  %v3828 = vpop.f32.mrf.mxu0
  %v3829 = vadd.f32 %v2356, %v3828
  %3830 = vdwg.mxu0
  %3831 = vmatpush.bf16.msra.mxu0 %v3260
  %3832 = vmatpush.bf16.msra.mxu0 %v3252
  %3833 = vmatpush.bf16.msra.mxu0 %v3244
  %3834 = vmatpush.bf16.msra.mxu0 %v3236
  %3835 = vmatpush.bf16.msra.mxu0 %v3228
  %3836 = vmatpush.bf16.msra.mxu0 %v3220
  %3837 = vmatpush.bf16.msra.mxu0 %v3212
  %3838 = vmatpush.bf16.msra.mxu0 %v3204
  %3839 = vmatmul.bf16.gmra.mxu0 %v2092
  %v3840 = vpop.f32.mrf.mxu0
  %v3841 = vadd.f32 %v3827, %v3840
  %v3842 = vpop.f32.mrf.mxu0
  %v3843 = vadd.f32 %v3829, %v3842
  %3844 = vdwg.mxu0
  %3845 = vmatpush.bf16.msra.mxu0 %v3324
  %3846 = vmatpush.bf16.msra.mxu0 %v3316
  %3847 = vmatpush.bf16.msra.mxu0 %v3308
  %3848 = vmatpush.bf16.msra.mxu0 %v3300
  %3849 = vmatpush.bf16.msra.mxu0 %v3292
  %3850 = vmatpush.bf16.msra.mxu0 %v3284
  %3851 = vmatpush.bf16.msra.mxu0 %v3276
  %3852 = vmatpush.bf16.msra.mxu0 %v3268
  %3853 = vmatmul.bf16.gmra.mxu0 %v2093
  %v3854 = vpop.f32.mrf.mxu0
  %v3855 = vadd.f32 %v3841, %v3854
  %v3856 = vpop.f32.mrf.mxu0
  %v3857 = vadd.f32 %v3843, %v3856
  %3858 = vdwg.mxu0
  %3859 = vmatpush.bf16.msra.mxu0 %v3388
  %3860 = vmatpush.bf16.msra.mxu0 %v3380
  %3861 = vmatpush.bf16.msra.mxu0 %v3372
  %3862 = vmatpush.bf16.msra.mxu0 %v3364
  %3863 = vmatpush.bf16.msra.mxu0 %v3356
  %3864 = vmatpush.bf16.msra.mxu0 %v3348
  %3865 = vmatpush.bf16.msra.mxu0 %v3340
  %3866 = vmatpush.bf16.msra.mxu0 %v3332
  %3867 = vmatmul.bf16.gmra.mxu0 %v2094
  %v3868 = vpop.f32.mrf.mxu0
  %v3869 = vadd.f32 %v3855, %v3868
  %v3870 = vpop.f32.mrf.mxu0
  %v3871 = vadd.f32 %v3857, %v3870
  %3872 = vdwg.mxu0
  %3873 = vmatpush.bf16.msra.mxu0 %v3197
  %3874 = vmatpush.bf16.msra.mxu0 %v3189
  %3875 = vmatpush.bf16.msra.mxu0 %v3181
  %3876 = vmatpush.bf16.msra.mxu0 %v3173
  %3877 = vmatpush.bf16.msra.mxu0 %v3165
  %3878 = vmatpush.bf16.msra.mxu0 %v3157
  %3879 = vmatpush.bf16.msra.mxu0 %v3149
  %3880 = vmatpush.bf16.msra.mxu0 %v3141
  %3881 = vmatmul.bf16.gmra.mxu0 %v2091
  %v3882 = vpop.f32.mrf.mxu0
  %v3883 = vadd.f32 %v2357, %v3882
  %v3884 = vpop.f32.mrf.mxu0
  %v3885 = vadd.f32 %v2357, %v3884
  %3886 = vdwg.mxu0
  %3887 = vmatpush.bf16.msra.mxu0 %v3261
  %3888 = vmatpush.bf16.msra.mxu0 %v3253
  %3889 = vmatpush.bf16.msra.mxu0 %v3245
  %3890 = vmatpush.bf16.msra.mxu0 %v3237
  %3891 = vmatpush.bf16.msra.mxu0 %v3229
  %3892 = vmatpush.bf16.msra.mxu0 %v3221
  %3893 = vmatpush.bf16.msra.mxu0 %v3213
  %3894 = vmatpush.bf16.msra.mxu0 %v3205
  %3895 = vmatmul.bf16.gmra.mxu0 %v2092
  %v3896 = vpop.f32.mrf.mxu0
  %v3897 = vadd.f32 %v3883, %v3896
  %v3898 = vpop.f32.mrf.mxu0
  %v3899 = vadd.f32 %v3885, %v3898
  %3900 = vdwg.mxu0
  %3901 = vmatpush.bf16.msra.mxu0 %v3325
  %3902 = vmatpush.bf16.msra.mxu0 %v3317
  %3903 = vmatpush.bf16.msra.mxu0 %v3309
  %3904 = vmatpush.bf16.msra.mxu0 %v3301
  %3905 = vmatpush.bf16.msra.mxu0 %v3293
  %3906 = vmatpush.bf16.msra.mxu0 %v3285
  %3907 = vmatpush.bf16.msra.mxu0 %v3277
  %3908 = vmatpush.bf16.msra.mxu0 %v3269
  %3909 = vmatmul.bf16.gmra.mxu0 %v2093
  %v3910 = vpop.f32.mrf.mxu0
  %v3911 = vadd.f32 %v3897, %v3910
  %v3912 = vpop.f32.mrf.mxu0
  %v3913 = vadd.f32 %v3899, %v3912
  %3914 = vdwg.mxu0
  %3915 = vmatpush.bf16.msra.mxu0 %v3389
  %3916 = vmatpush.bf16.msra.mxu0 %v3381
  %3917 = vmatpush.bf16.msra.mxu0 %v3373
  %3918 = vmatpush.bf16.msra.mxu0 %v3365
  %3919 = vmatpush.bf16.msra.mxu0 %v3357
  %3920 = vmatpush.bf16.msra.mxu0 %v3349
  %3921 = vmatpush.bf16.msra.mxu0 %v3341
  %3922 = vmatpush.bf16.msra.mxu0 %v3333
  %3923 = vmatmul.bf16.gmra.mxu0 %v2094
  %v3924 = vpop.f32.mrf.mxu0
  %v3925 = vadd.f32 %v3911, %v3924
  %v3926 = vpop.f32.mrf.mxu0
  %v3927 = vadd.f32 %v3913, %v3926
  %3928 = vdwg.mxu0
  %3929 = vmatpush.bf16.msra.mxu0 %v3198
  %3930 = vmatpush.bf16.msra.mxu0 %v3190
  %3931 = vmatpush.bf16.msra.mxu0 %v3182
  %3932 = vmatpush.bf16.msra.mxu0 %v3174
  %3933 = vmatpush.bf16.msra.mxu0 %v3166
  %3934 = vmatpush.bf16.msra.mxu0 %v3158
  %3935 = vmatpush.bf16.msra.mxu0 %v3150
  %3936 = vmatpush.bf16.msra.mxu0 %v3142
  %3937 = vmatmul.bf16.gmra.mxu0 %v2091
  %v3938 = vpop.f32.mrf.mxu0
  %v3939 = vadd.f32 %v2358, %v3938
  %v3940 = vpop.f32.mrf.mxu0
  %v3941 = vadd.f32 %v2358, %v3940
  %3942 = vdwg.mxu0
  %3943 = vmatpush.bf16.msra.mxu0 %v3262
  %3944 = vmatpush.bf16.msra.mxu0 %v3254
  %3945 = vmatpush.bf16.msra.mxu0 %v3246
  %3946 = vmatpush.bf16.msra.mxu0 %v3238
  %3947 = vmatpush.bf16.msra.mxu0 %v3230
  %3948 = vmatpush.bf16.msra.mxu0 %v3222
  %3949 = vmatpush.bf16.msra.mxu0 %v3214
  %3950 = vmatpush.bf16.msra.mxu0 %v3206
  %3951 = vmatmul.bf16.gmra.mxu0 %v2092
  %v3952 = vpop.f32.mrf.mxu0
  %v3953 = vadd.f32 %v3939, %v3952
  %v3954 = vpop.f32.mrf.mxu0
  %v3955 = vadd.f32 %v3941, %v3954
  %3956 = vdwg.mxu0
  %3957 = vmatpush.bf16.msra.mxu0 %v3326
  %3958 = vmatpush.bf16.msra.mxu0 %v3318
  %3959 = vmatpush.bf16.msra.mxu0 %v3310
  %3960 = vmatpush.bf16.msra.mxu0 %v3302
  %3961 = vmatpush.bf16.msra.mxu0 %v3294
  %3962 = vmatpush.bf16.msra.mxu0 %v3286
  %3963 = vmatpush.bf16.msra.mxu0 %v3278
  %3964 = vmatpush.bf16.msra.mxu0 %v3270
  %3965 = vmatmul.bf16.gmra.mxu0 %v2093
  %v3966 = vpop.f32.mrf.mxu0
  %v3967 = vadd.f32 %v3953, %v3966
  %v3968 = vpop.f32.mrf.mxu0
  %v3969 = vadd.f32 %v3955, %v3968
  %3970 = vdwg.mxu0
  %3971 = vmatpush.bf16.msra.mxu0 %v3390
  %3972 = vmatpush.bf16.msra.mxu0 %v3382
  %3973 = vmatpush.bf16.msra.mxu0 %v3374
  %3974 = vmatpush.bf16.msra.mxu0 %v3366
  %3975 = vmatpush.bf16.msra.mxu0 %v3358
  %3976 = vmatpush.bf16.msra.mxu0 %v3350
  %3977 = vmatpush.bf16.msra.mxu0 %v3342
  %3978 = vmatpush.bf16.msra.mxu0 %v3334
  %3979 = vmatmul.bf16.gmra.mxu0 %v2094
  %v3980 = vpop.f32.mrf.mxu0
  %v3981 = vadd.f32 %v3967, %v3980
  %v3982 = vpop.f32.mrf.mxu0
  %v3983 = vadd.f32 %v3969, %v3982
  %3984 = vdwg.mxu0
  %3985 = vmatpush.bf16.msra.mxu0 %v3199
  %3986 = vmatpush.bf16.msra.mxu0 %v3191
  %3987 = vmatpush.bf16.msra.mxu0 %v3183
  %3988 = vmatpush.bf16.msra.mxu0 %v3175
  %3989 = vmatpush.bf16.msra.mxu0 %v3167
  %3990 = vmatpush.bf16.msra.mxu0 %v3159
  %3991 = vmatpush.bf16.msra.mxu0 %v3151
  %3992 = vmatpush.bf16.msra.mxu0 %v3143
  %3993 = vmatmul.bf16.gmra.mxu0 %v2091
  %v3994 = vpop.f32.mrf.mxu0
  %v3995 = vadd.f32 %v2359, %v3994
  %v3996 = vpop.f32.mrf.mxu0
  %v3997 = vadd.f32 %v2359, %v3996
  %3998 = vdwg.mxu0
  %3999 = vmatpush.bf16.msra.mxu0 %v3263
  %4000 = vmatpush.bf16.msra.mxu0 %v3255
  %4001 = vmatpush.bf16.msra.mxu0 %v3247
  %4002 = vmatpush.bf16.msra.mxu0 %v3239
  %4003 = vmatpush.bf16.msra.mxu0 %v3231
  %4004 = vmatpush.bf16.msra.mxu0 %v3223
  %4005 = vmatpush.bf16.msra.mxu0 %v3215
  %4006 = vmatpush.bf16.msra.mxu0 %v3207
  %4007 = vmatmul.bf16.gmra.mxu0 %v2092
  %v4008 = vpop.f32.mrf.mxu0
  %v4009 = vadd.f32 %v3995, %v4008
  %v4010 = vpop.f32.mrf.mxu0
  %v4011 = vadd.f32 %v3997, %v4010
  %4012 = vdwg.mxu0
  %4013 = vmatpush.bf16.msra.mxu0 %v3327
  %4014 = vmatpush.bf16.msra.mxu0 %v3319
  %4015 = vmatpush.bf16.msra.mxu0 %v3311
  %4016 = vmatpush.bf16.msra.mxu0 %v3303
  %4017 = vmatpush.bf16.msra.mxu0 %v3295
  %4018 = vmatpush.bf16.msra.mxu0 %v3287
  %4019 = vmatpush.bf16.msra.mxu0 %v3279
  %4020 = vmatpush.bf16.msra.mxu0 %v3271
  %4021 = vmatmul.bf16.gmra.mxu0 %v2093
  %v4022 = vpop.f32.mrf.mxu0
  %v4023 = vadd.f32 %v4009, %v4022
  %v4024 = vpop.f32.mrf.mxu0
  %v4025 = vadd.f32 %v4011, %v4024
  %4026 = vdwg.mxu0
  %4027 = vmatpush.bf16.msra.mxu0 %v3391
  %4028 = vmatpush.bf16.msra.mxu0 %v3383
  %4029 = vmatpush.bf16.msra.mxu0 %v3375
  %4030 = vmatpush.bf16.msra.mxu0 %v3367
  %4031 = vmatpush.bf16.msra.mxu0 %v3359
  %4032 = vmatpush.bf16.msra.mxu0 %v3351
  %4033 = vmatpush.bf16.msra.mxu0 %v3343
  %4034 = vmatpush.bf16.msra.mxu0 %v3335
  %4035 = vmatmul.bf16.gmra.mxu0 %v2094
  %v4036 = vpop.f32.mrf.mxu0
  %v4037 = vadd.f32 %v4023, %v4036
  %v4038 = vpop.f32.mrf.mxu0
  %v4039 = vadd.f32 %v4025, %v4038
  %4040 = vdwg.mxu0
  %4041 = vmatpush.bf16.msra.mxu0 %v3200
  %4042 = vmatpush.bf16.msra.mxu0 %v3192
  %4043 = vmatpush.bf16.msra.mxu0 %v3184
  %4044 = vmatpush.bf16.msra.mxu0 %v3176
  %4045 = vmatpush.bf16.msra.mxu0 %v3168
  %4046 = vmatpush.bf16.msra.mxu0 %v3160
  %4047 = vmatpush.bf16.msra.mxu0 %v3152
  %4048 = vmatpush.bf16.msra.mxu0 %v3144
  %4049 = vmatmul.bf16.gmra.mxu0 %v2091
  %v4050 = vpop.f32.mrf.mxu0
  %v4051 = vadd.f32 %v2360, %v4050
  %v4052 = vpop.f32.mrf.mxu0
  %v4053 = vadd.f32 %v2360, %v4052
  %4054 = vdwg.mxu0
  %4055 = vmatpush.bf16.msra.mxu0 %v3264
  %4056 = vmatpush.bf16.msra.mxu0 %v3256
  %4057 = vmatpush.bf16.msra.mxu0 %v3248
  %4058 = vmatpush.bf16.msra.mxu0 %v3240
  %4059 = vmatpush.bf16.msra.mxu0 %v3232
  %4060 = vmatpush.bf16.msra.mxu0 %v3224
  %4061 = vmatpush.bf16.msra.mxu0 %v3216
  %4062 = vmatpush.bf16.msra.mxu0 %v3208
  %4063 = vmatmul.bf16.gmra.mxu0 %v2092
  %v4064 = vpop.f32.mrf.mxu0
  %v4065 = vadd.f32 %v4051, %v4064
  %v4066 = vpop.f32.mrf.mxu0
  %v4067 = vadd.f32 %v4053, %v4066
  %4068 = vdwg.mxu0
  %4069 = vmatpush.bf16.msra.mxu0 %v3328
  %4070 = vmatpush.bf16.msra.mxu0 %v3320
  %4071 = vmatpush.bf16.msra.mxu0 %v3312
  %4072 = vmatpush.bf16.msra.mxu0 %v3304
  %4073 = vmatpush.bf16.msra.mxu0 %v3296
  %4074 = vmatpush.bf16.msra.mxu0 %v3288
  %4075 = vmatpush.bf16.msra.mxu0 %v3280
  %4076 = vmatpush.bf16.msra.mxu0 %v3272
  %4077 = vmatmul.bf16.gmra.mxu0 %v2093
  %v4078 = vpop.f32.mrf.mxu0
  %v4079 = vadd.f32 %v4065, %v4078
  %v4080 = vpop.f32.mrf.mxu0
  %v4081 = vadd.f32 %v4067, %v4080
  %4082 = vdwg.mxu0
  %4083 = vmatpush.bf16.msra.mxu0 %v3392
  %4084 = vmatpush.bf16.msra.mxu0 %v3384
  %4085 = vmatpush.bf16.msra.mxu0 %v3376
  %4086 = vmatpush.bf16.msra.mxu0 %v3368
  %4087 = vmatpush.bf16.msra.mxu0 %v3360
  %4088 = vmatpush.bf16.msra.mxu0 %v3352
  %4089 = vmatpush.bf16.msra.mxu0 %v3344
  %4090 = vmatpush.bf16.msra.mxu0 %v3336
  %4091 = vmatmul.bf16.gmra.mxu0 %v2094
  %v4092 = vpop.f32.mrf.mxu0
  %v4093 = vadd.f32 %v4079, %v4092
  %v4094 = vpop.f32.mrf.mxu0
  %v4095 = vadd.f32 %v4081, %v4094
  %4096 = vdwg.mxu0
  %v4097 = vmax.f32 %v3701, 0.0
  %v4098 = vmax.f32 %v3757, 0.0
  %v4099 = vmax.f32 %v3813, 0.0
  %v4100 = vmax.f32 %v3869, 0.0
  %v4101 = vmax.f32 %v3925, 0.0
  %v4102 = vmax.f32 %v3981, 0.0
  %v4103 = vmax.f32 %v4037, 0.0
  %v4104 = vmax.f32 %v4093, 0.0
  %v4105 = vmax.f32 %v3703, 0.0
  %v4106 = vmax.f32 %v3759, 0.0
  %v4107 = vmax.f32 %v3815, 0.0
  %v4108 = vmax.f32 %v3871, 0.0
  %v4109 = vmax.f32 %v3927, 0.0
  %v4110 = vmax.f32 %v3983, 0.0
  %v4111 = vmax.f32 %v4039, 0.0
  %v4112 = vmax.f32 %v4095, 0.0
  %v4113 = vpack.c.bf16 %v4105, %v4097
  %v4114 = vpack.c.bf16 %v4106, %v4098
  %v4115 = vpack.c.bf16 %v4107, %v4099
  %v4116 = vpack.c.bf16 %v4108, %v4100
  %v4117 = vpack.c.bf16 %v4109, %v4101
  %v4118 = vpack.c.bf16 %v4110, %v4102
  %v4119 = vpack.c.bf16 %v4111, %v4103
  %v4120 = vpack.c.bf16 %v4112, %v4104
  %v4121 = vld [vmem:[%s5] sm:$0xff]
  %v4122 = vld [vmem:[%s5 + $0x8] sm:$0xff]
  %v4123 = vld [vmem:[%s5 + $0x10] sm:$0xff]
  %v4124 = vld [vmem:[%s5 + $0x18] sm:$0xff]
  %v4125 = vld [vmem:[%s5 + $0x20] sm:$0xff]
  %v4126 = vld [vmem:[%s5 + $0x28] sm:$0xff]
  %v4127 = vld [vmem:[%s5 + $0x30] sm:$0xff]
  %v4128 = vld [vmem:[%s5 + $0x38] sm:$0xff]
  %v4129 = vld [vmem:[%s5 + $0x40] sm:$0xff]
  %v4130 = vld [vmem:[%s5 + $0x48] sm:$0xff]
  %v4131 = vld [vmem:[%s5 + $0x50] sm:$0xff]
  %v4132 = vld [vmem:[%s5 + $0x58] sm:$0xff]
  %v4133 = vld [vmem:[%s5 + $0x60] sm:$0xff]
  %v4134 = vld [vmem:[%s5 + $0x68] sm:$0xff]
  %v4135 = vld [vmem:[%s5 + $0x70] sm:$0xff]
  %v4136 = vld [vmem:[%s5 + $0x78] sm:$0xff]
  %v4137 = vld [vmem:[%s5 + $0x80] sm:$0xff]
  %v4138 = vld [vmem:[%s5 + $0x88] sm:$0xff]
  %v4139 = vld [vmem:[%s5 + $0x90] sm:$0xff]
  %v4140 = vld [vmem:[%s5 + $0x98] sm:$0xff]
  %v4141 = vld [vmem:[%s5 + $0xa0] sm:$0xff]
  %v4142 = vld [vmem:[%s5 + $0xa8] sm:$0xff]
  %v4143 = vld [vmem:[%s5 + $0xb0] sm:$0xff]
  %v4144 = vld [vmem:[%s5 + $0xb8] sm:$0xff]
  %v4145 = vld [vmem:[%s5 + $0xc0] sm:$0xff]
  %v4146 = vld [vmem:[%s5 + $0xc8] sm:$0xff]
  %v4147 = vld [vmem:[%s5 + $0xd0] sm:$0xff]
  %v4148 = vld [vmem:[%s5 + $0xd8] sm:$0xff]
  %v4149 = vld [vmem:[%s5 + $0xe0] sm:$0xff]
  %v4150 = vld [vmem:[%s5 + $0xe8] sm:$0xff]
  %v4151 = vld [vmem:[%s5 + $0xf0] sm:$0xff]
  %v4152 = vld [vmem:[%s5 + $0xf8] sm:$0xff]
  %v4153 = vld [vmem:[%s5 + $0x100] sm:$0xff]
  %v4154 = vld [vmem:[%s5 + $0x108] sm:$0xff]
  %v4155 = vld [vmem:[%s5 + $0x110] sm:$0xff]
  %v4156 = vld [vmem:[%s5 + $0x118] sm:$0xff]
  %v4157 = vld [vmem:[%s5 + $0x120] sm:$0xff]
  %v4158 = vld [vmem:[%s5 + $0x128] sm:$0xff]
  %v4159 = vld [vmem:[%s5 + $0x130] sm:$0xff]
  %v4160 = vld [vmem:[%s5 + $0x138] sm:$0xff]
  %v4161 = vld [vmem:[%s5 + $0x140] sm:$0xff]
  %v4162 = vld [vmem:[%s5 + $0x148] sm:$0xff]
  %v4163 = vld [vmem:[%s5 + $0x150] sm:$0xff]
  %v4164 = vld [vmem:[%s5 + $0x158] sm:$0xff]
  %v4165 = vld [vmem:[%s5 + $0x160] sm:$0xff]
  %v4166 = vld [vmem:[%s5 + $0x168] sm:$0xff]
  %v4167 = vld [vmem:[%s5 + $0x170] sm:$0xff]
  %v4168 = vld [vmem:[%s5 + $0x178] sm:$0xff]
  %v4169 = vld [vmem:[%s5 + $0x180] sm:$0xff]
  %v4170 = vld [vmem:[%s5 + $0x188] sm:$0xff]
  %v4171 = vld [vmem:[%s5 + $0x190] sm:$0xff]
  %v4172 = vld [vmem:[%s5 + $0x198] sm:$0xff]
  %v4173 = vld [vmem:[%s5 + $0x1a0] sm:$0xff]
  %v4174 = vld [vmem:[%s5 + $0x1a8] sm:$0xff]
  %v4175 = vld [vmem:[%s5 + $0x1b0] sm:$0xff]
  %v4176 = vld [vmem:[%s5 + $0x1b8] sm:$0xff]
  %v4177 = vld [vmem:[%s5 + $0x1c0] sm:$0xff]
  %v4178 = vld [vmem:[%s5 + $0x1c8] sm:$0xff]
  %v4179 = vld [vmem:[%s5 + $0x1d0] sm:$0xff]
  %v4180 = vld [vmem:[%s5 + $0x1d8] sm:$0xff]
  %v4181 = vld [vmem:[%s5 + $0x1e0] sm:$0xff]
  %v4182 = vld [vmem:[%s5 + $0x1e8] sm:$0xff]
  %v4183 = vld [vmem:[%s5 + $0x1f0] sm:$0xff]
  %v4184 = vld [vmem:[%s5 + $0x1f8] sm:$0xff]
  %v4185 = vld [vmem:[%s5 + $0x200] sm:$0xff]
  %v4186 = vld [vmem:[%s5 + $0x208] sm:$0xff]
  %v4187 = vld [vmem:[%s5 + $0x210] sm:$0xff]
  %v4188 = vld [vmem:[%s5 + $0x218] sm:$0xff]
  %v4189 = vld [vmem:[%s5 + $0x220] sm:$0xff]
  %v4190 = vld [vmem:[%s5 + $0x228] sm:$0xff]
  %v4191 = vld [vmem:[%s5 + $0x230] sm:$0xff]
  %v4192 = vld [vmem:[%s5 + $0x238] sm:$0xff]
  %v4193 = vld [vmem:[%s5 + $0x240] sm:$0xff]
  %v4194 = vld [vmem:[%s5 + $0x248] sm:$0xff]
  %v4195 = vld [vmem:[%s5 + $0x250] sm:$0xff]
  %v4196 = vld [vmem:[%s5 + $0x258] sm:$0xff]
  %v4197 = vld [vmem:[%s5 + $0x260] sm:$0xff]
  %v4198 = vld [vmem:[%s5 + $0x268] sm:$0xff]
  %v4199 = vld [vmem:[%s5 + $0x270] sm:$0xff]
  %v4200 = vld [vmem:[%s5 + $0x278] sm:$0xff]
  %v4201 = vld [vmem:[%s5 + $0x280] sm:$0xff]
  %v4202 = vld [vmem:[%s5 + $0x288] sm:$0xff]
  %v4203 = vld [vmem:[%s5 + $0x290] sm:$0xff]
  %v4204 = vld [vmem:[%s5 + $0x298] sm:$0xff]
  %v4205 = vld [vmem:[%s5 + $0x2a0] sm:$0xff]
  %v4206 = vld [vmem:[%s5 + $0x2a8] sm:$0xff]
  %v4207 = vld [vmem:[%s5 + $0x2b0] sm:$0xff]
  %v4208 = vld [vmem:[%s5 + $0x2b8] sm:$0xff]
  %v4209 = vld [vmem:[%s5 + $0x2c0] sm:$0xff]
  %v4210 = vld [vmem:[%s5 + $0x2c8] sm:$0xff]
  %v4211 = vld [vmem:[%s5 + $0x2d0] sm:$0xff]
  %v4212 = vld [vmem:[%s5 + $0x2d8] sm:$0xff]
  %v4213 = vld [vmem:[%s5 + $0x2e0] sm:$0xff]
  %v4214 = vld [vmem:[%s5 + $0x2e8] sm:$0xff]
  %v4215 = vld [vmem:[%s5 + $0x2f0] sm:$0xff]
  %v4216 = vld [vmem:[%s5 + $0x2f8] sm:$0xff]
  %v4217 = vld [vmem:[%s5 + $0x300] sm:$0xff]
  %v4218 = vld [vmem:[%s5 + $0x308] sm:$0xff]
  %v4219 = vld [vmem:[%s5 + $0x310] sm:$0xff]
  %v4220 = vld [vmem:[%s5 + $0x318] sm:$0xff]
  %v4221 = vld [vmem:[%s5 + $0x320] sm:$0xff]
  %v4222 = vld [vmem:[%s5 + $0x328] sm:$0xff]
  %v4223 = vld [vmem:[%s5 + $0x330] sm:$0xff]
  %v4224 = vld [vmem:[%s5 + $0x338] sm:$0xff]
  %v4225 = vld [vmem:[%s5 + $0x340] sm:$0xff]
  %v4226 = vld [vmem:[%s5 + $0x348] sm:$0xff]
  %v4227 = vld [vmem:[%s5 + $0x350] sm:$0xff]
  %v4228 = vld [vmem:[%s5 + $0x358] sm:$0xff]
  %v4229 = vld [vmem:[%s5 + $0x360] sm:$0xff]
  %v4230 = vld [vmem:[%s5 + $0x368] sm:$0xff]
  %v4231 = vld [vmem:[%s5 + $0x370] sm:$0xff]
  %v4232 = vld [vmem:[%s5 + $0x378] sm:$0xff]
  %v4233 = vld [vmem:[%s5 + $0x380] sm:$0xff]
  %v4234 = vld [vmem:[%s5 + $0x388] sm:$0xff]
  %v4235 = vld [vmem:[%s5 + $0x390] sm:$0xff]
  %v4236 = vld [vmem:[%s5 + $0x398] sm:$0xff]
  %v4237 = vld [vmem:[%s5 + $0x3a0] sm:$0xff]
  %v4238 = vld [vmem:[%s5 + $0x3a8] sm:$0xff]
  %v4239 = vld [vmem:[%s5 + $0x3b0] sm:$0xff]
  %v4240 = vld [vmem:[%s5 + $0x3b8] sm:$0xff]
  %v4241 = vld [vmem:[%s5 + $0x3c0] sm:$0xff]
  %v4242 = vld [vmem:[%s5 + $0x3c8] sm:$0xff]
  %v4243 = vld [vmem:[%s5 + $0x3d0] sm:$0xff]
  %v4244 = vld [vmem:[%s5 + $0x3d8] sm:$0xff]
  %v4245 = vld [vmem:[%s5 + $0x3e0] sm:$0xff]
  %v4246 = vld [vmem:[%s5 + $0x3e8] sm:$0xff]
  %v4247 = vld [vmem:[%s5 + $0x3f0] sm:$0xff]
  %v4248 = vld [vmem:[%s5 + $0x3f8] sm:$0xff]
  %v4249 = vld [vmem:[%s6] sm:$0x3]
  %v4251 = vperm.slane %v4249, 0
  %v4252 = vperm.slane %v4249, 1
  %v4383 = vunpack.c.l.b16 %v4121
  %v4384 = vunpack.c.h.b16 %v4121
  %v4385 = vunpack.c.l.b16 %v4122
  %v4386 = vunpack.c.h.b16 %v4122
  %v4387 = vunpack.c.l.b16 %v4123
  %v4388 = vunpack.c.h.b16 %v4123
  %v4389 = vunpack.c.l.b16 %v4124
  %v4390 = vunpack.c.h.b16 %v4124
  %v4391 = vunpack.c.l.b16 %v4125
  %v4392 = vunpack.c.h.b16 %v4125
  %v4393 = vunpack.c.l.b16 %v4126
  %v4394 = vunpack.c.h.b16 %v4126
  %v4395 = vunpack.c.l.b16 %v4127
  %v4396 = vunpack.c.h.b16 %v4127
  %v4397 = vunpack.c.l.b16 %v4128
  %v4398 = vunpack.c.h.b16 %v4128
  %v4399 = vunpack.c.l.b16 %v4129
  %v4400 = vunpack.c.h.b16 %v4129
  %v4401 = vunpack.c.l.b16 %v4130
  %v4402 = vunpack.c.h.b16 %v4130
  %v4403 = vunpack.c.l.b16 %v4131
  %v4404 = vunpack.c.h.b16 %v4131
  %v4405 = vunpack.c.l.b16 %v4132
  %v4406 = vunpack.c.h.b16 %v4132
  %v4407 = vunpack.c.l.b16 %v4133
  %v4408 = vunpack.c.h.b16 %v4133
  %v4409 = vunpack.c.l.b16 %v4134
  %v4410 = vunpack.c.h.b16 %v4134
  %v4411 = vunpack.c.l.b16 %v4135
  %v4412 = vunpack.c.h.b16 %v4135
  %v4413 = vunpack.c.l.b16 %v4136
  %v4414 = vunpack.c.h.b16 %v4136
  %v4415 = vunpack.c.l.b16 %v4137
  %v4416 = vunpack.c.h.b16 %v4137
  %v4417 = vunpack.c.l.b16 %v4138
  %v4418 = vunpack.c.h.b16 %v4138
  %v4419 = vunpack.c.l.b16 %v4139
  %v4420 = vunpack.c.h.b16 %v4139
  %v4421 = vunpack.c.l.b16 %v4140
  %v4422 = vunpack.c.h.b16 %v4140
  %v4423 = vunpack.c.l.b16 %v4141
  %v4424 = vunpack.c.h.b16 %v4141
  %v4425 = vunpack.c.l.b16 %v4142
  %v4426 = vunpack.c.h.b16 %v4142
  %v4427 = vunpack.c.l.b16 %v4143
  %v4428 = vunpack.c.h.b16 %v4143
  %v4429 = vunpack.c.l.b16 %v4144
  %v4430 = vunpack.c.h.b16 %v4144
  %v4431 = vunpack.c.l.b16 %v4145
  %v4432 = vunpack.c.h.b16 %v4145
  %v4433 = vunpack.c.l.b16 %v4146
  %v4434 = vunpack.c.h.b16 %v4146
  %v4435 = vunpack.c.l.b16 %v4147
  %v4436 = vunpack.c.h.b16 %v4147
  %v4437 = vunpack.c.l.b16 %v4148
  %v4438 = vunpack.c.h.b16 %v4148
  %v4439 = vunpack.c.l.b16 %v4149
  %v4440 = vunpack.c.h.b16 %v4149
  %v4441 = vunpack.c.l.b16 %v4150
  %v4442 = vunpack.c.h.b16 %v4150
  %v4443 = vunpack.c.l.b16 %v4151
  %v4444 = vunpack.c.h.b16 %v4151
  %v4445 = vunpack.c.l.b16 %v4152
  %v4446 = vunpack.c.h.b16 %v4152
  %v4447 = vunpack.c.l.b16 %v4153
  %v4448 = vunpack.c.h.b16 %v4153
  %v4449 = vunpack.c.l.b16 %v4154
  %v4450 = vunpack.c.h.b16 %v4154
  %v4451 = vunpack.c.l.b16 %v4155
  %v4452 = vunpack.c.h.b16 %v4155
  %v4453 = vunpack.c.l.b16 %v4156
  %v4454 = vunpack.c.h.b16 %v4156
  %v4455 = vunpack.c.l.b16 %v4157
  %v4456 = vunpack.c.h.b16 %v4157
  %v4457 = vunpack.c.l.b16 %v4158
  %v4458 = vunpack.c.h.b16 %v4158
  %v4459 = vunpack.c.l.b16 %v4159
  %v4460 = vunpack.c.h.b16 %v4159
  %v4461 = vunpack.c.l.b16 %v4160
  %v4462 = vunpack.c.h.b16 %v4160
  %v4463 = vunpack.c.l.b16 %v4161
  %v4464 = vunpack.c.h.b16 %v4161
  %v4465 = vunpack.c.l.b16 %v4162
  %v4466 = vunpack.c.h.b16 %v4162
  %v4467 = vunpack.c.l.b16 %v4163
  %v4468 = vunpack.c.h.b16 %v4163
  %v4469 = vunpack.c.l.b16 %v4164
  %v4470 = vunpack.c.h.b16 %v4164
  %v4471 = vunpack.c.l.b16 %v4165
  %v4472 = vunpack.c.h.b16 %v4165
  %v4473 = vunpack.c.l.b16 %v4166
  %v4474 = vunpack.c.h.b16 %v4166
  %v4475 = vunpack.c.l.b16 %v4167
  %v4476 = vunpack.c.h.b16 %v4167
  %v4477 = vunpack.c.l.b16 %v4168
  %v4478 = vunpack.c.h.b16 %v4168
  %v4479 = vunpack.c.l.b16 %v4169
  %v4480 = vunpack.c.h.b16 %v4169
  %v4481 = vunpack.c.l.b16 %v4170
  %v4482 = vunpack.c.h.b16 %v4170
  %v4483 = vunpack.c.l.b16 %v4171
  %v4484 = vunpack.c.h.b16 %v4171
  %v4485 = vunpack.c.l.b16 %v4172
  %v4486 = vunpack.c.h.b16 %v4172
  %v4487 = vunpack.c.l.b16 %v4173
  %v4488 = vunpack.c.h.b16 %v4173
  %v4489 = vunpack.c.l.b16 %v4174
  %v4490 = vunpack.c.h.b16 %v4174
  %v4491 = vunpack.c.l.b16 %v4175
  %v4492 = vunpack.c.h.b16 %v4175
  %v4493 = vunpack.c.l.b16 %v4176
  %v4494 = vunpack.c.h.b16 %v4176
  %v4495 = vunpack.c.l.b16 %v4177
  %v4496 = vunpack.c.h.b16 %v4177
  %v4497 = vunpack.c.l.b16 %v4178
  %v4498 = vunpack.c.h.b16 %v4178
  %v4499 = vunpack.c.l.b16 %v4179
  %v4500 = vunpack.c.h.b16 %v4179
  %v4501 = vunpack.c.l.b16 %v4180
  %v4502 = vunpack.c.h.b16 %v4180
  %v4503 = vunpack.c.l.b16 %v4181
  %v4504 = vunpack.c.h.b16 %v4181
  %v4505 = vunpack.c.l.b16 %v4182
  %v4506 = vunpack.c.h.b16 %v4182
  %v4507 = vunpack.c.l.b16 %v4183
  %v4508 = vunpack.c.h.b16 %v4183
  %v4509 = vunpack.c.l.b16 %v4184
  %v4510 = vunpack.c.h.b16 %v4184
  %v4511 = vunpack.c.l.b16 %v4185
  %v4512 = vunpack.c.h.b16 %v4185
  %v4513 = vunpack.c.l.b16 %v4186
  %v4514 = vunpack.c.h.b16 %v4186
  %v4515 = vunpack.c.l.b16 %v4187
  %v4516 = vunpack.c.h.b16 %v4187
  %v4517 = vunpack.c.l.b16 %v4188
  %v4518 = vunpack.c.h.b16 %v4188
  %v4519 = vunpack.c.l.b16 %v4189
  %v4520 = vunpack.c.h.b16 %v4189
  %v4521 = vunpack.c.l.b16 %v4190
  %v4522 = vunpack.c.h.b16 %v4190
  %v4523 = vunpack.c.l.b16 %v4191
  %v4524 = vunpack.c.h.b16 %v4191
  %v4525 = vunpack.c.l.b16 %v4192
  %v4526 = vunpack.c.h.b16 %v4192
  %v4527 = vunpack.c.l.b16 %v4193
  %v4528 = vunpack.c.h.b16 %v4193
  %v4529 = vunpack.c.l.b16 %v4194
  %v4530 = vunpack.c.h.b16 %v4194
  %v4531 = vunpack.c.l.b16 %v4195
  %v4532 = vunpack.c.h.b16 %v4195
  %v4533 = vunpack.c.l.b16 %v4196
  %v4534 = vunpack.c.h.b16 %v4196
  %v4535 = vunpack.c.l.b16 %v4197
  %v4536 = vunpack.c.h.b16 %v4197
  %v4537 = vunpack.c.l.b16 %v4198
  %v4538 = vunpack.c.h.b16 %v4198
  %v4539 = vunpack.c.l.b16 %v4199
  %v4540 = vunpack.c.h.b16 %v4199
  %v4541 = vunpack.c.l.b16 %v4200
  %v4542 = vunpack.c.h.b16 %v4200
  %v4543 = vunpack.c.l.b16 %v4201
  %v4544 = vunpack.c.h.b16 %v4201
  %v4545 = vunpack.c.l.b16 %v4202
  %v4546 = vunpack.c.h.b16 %v4202
  %v4547 = vunpack.c.l.b16 %v4203
  %v4548 = vunpack.c.h.b16 %v4203
  %v4549 = vunpack.c.l.b16 %v4204
  %v4550 = vunpack.c.h.b16 %v4204
  %v4551 = vunpack.c.l.b16 %v4205
  %v4552 = vunpack.c.h.b16 %v4205
  %v4553 = vunpack.c.l.b16 %v4206
  %v4554 = vunpack.c.h.b16 %v4206
  %v4555 = vunpack.c.l.b16 %v4207
  %v4556 = vunpack.c.h.b16 %v4207
  %v4557 = vunpack.c.l.b16 %v4208
  %v4558 = vunpack.c.h.b16 %v4208
  %v4559 = vunpack.c.l.b16 %v4209
  %v4560 = vunpack.c.h.b16 %v4209
  %v4561 = vunpack.c.l.b16 %v4210
  %v4562 = vunpack.c.h.b16 %v4210
  %v4563 = vunpack.c.l.b16 %v4211
  %v4564 = vunpack.c.h.b16 %v4211
  %v4565 = vunpack.c.l.b16 %v4212
  %v4566 = vunpack.c.h.b16 %v4212
  %v4567 = vunpack.c.l.b16 %v4213
  %v4568 = vunpack.c.h.b16 %v4213
  %v4569 = vunpack.c.l.b16 %v4214
  %v4570 = vunpack.c.h.b16 %v4214
  %v4571 = vunpack.c.l.b16 %v4215
  %v4572 = vunpack.c.h.b16 %v4215
  %v4573 = vunpack.c.l.b16 %v4216
  %v4574 = vunpack.c.h.b16 %v4216
  %v4575 = vunpack.c.l.b16 %v4217
  %v4576 = vunpack.c.h.b16 %v4217
  %v4577 = vunpack.c.l.b16 %v4218
  %v4578 = vunpack.c.h.b16 %v4218
  %v4579 = vunpack.c.l.b16 %v4219
  %v4580 = vunpack.c.h.b16 %v4219
  %v4581 = vunpack.c.l.b16 %v4220
  %v4582 = vunpack.c.h.b16 %v4220
  %v4583 = vunpack.c.l.b16 %v4221
  %v4584 = vunpack.c.h.b16 %v4221
  %v4585 = vunpack.c.l.b16 %v4222
  %v4586 = vunpack.c.h.b16 %v4222
  %v4587 = vunpack.c.l.b16 %v4223
  %v4588 = vunpack.c.h.b16 %v4223
  %v4589 = vunpack.c.l.b16 %v4224
  %v4590 = vunpack.c.h.b16 %v4224
  %v4591 = vunpack.c.l.b16 %v4225
  %v4592 = vunpack.c.h.b16 %v4225
  %v4593 = vunpack.c.l.b16 %v4226
  %v4594 = vunpack.c.h.b16 %v4226
  %v4595 = vunpack.c.l.b16 %v4227
  %v4596 = vunpack.c.h.b16 %v4227
  %v4597 = vunpack.c.l.b16 %v4228
  %v4598 = vunpack.c.h.b16 %v4228
  %v4599 = vunpack.c.l.b16 %v4229
  %v4600 = vunpack.c.h.b16 %v4229
  %v4601 = vunpack.c.l.b16 %v4230
  %v4602 = vunpack.c.h.b16 %v4230
  %v4603 = vunpack.c.l.b16 %v4231
  %v4604 = vunpack.c.h.b16 %v4231
  %v4605 = vunpack.c.l.b16 %v4232
  %v4606 = vunpack.c.h.b16 %v4232
  %v4607 = vunpack.c.l.b16 %v4233
  %v4608 = vunpack.c.h.b16 %v4233
  %v4609 = vunpack.c.l.b16 %v4234
  %v4610 = vunpack.c.h.b16 %v4234
  %v4611 = vunpack.c.l.b16 %v4235
  %v4612 = vunpack.c.h.b16 %v4235
  %v4613 = vunpack.c.l.b16 %v4236
  %v4614 = vunpack.c.h.b16 %v4236
  %v4615 = vunpack.c.l.b16 %v4237
  %v4616 = vunpack.c.h.b16 %v4237
  %v4617 = vunpack.c.l.b16 %v4238
  %v4618 = vunpack.c.h.b16 %v4238
  %v4619 = vunpack.c.l.b16 %v4239
  %v4620 = vunpack.c.h.b16 %v4239
  %v4621 = vunpack.c.l.b16 %v4240
  %v4622 = vunpack.c.h.b16 %v4240
  %v4623 = vunpack.c.l.b16 %v4241
  %v4624 = vunpack.c.h.b16 %v4241
  %v4625 = vunpack.c.l.b16 %v4242
  %v4626 = vunpack.c.h.b16 %v4242
  %v4627 = vunpack.c.l.b16 %v4243
  %v4628 = vunpack.c.h.b16 %v4243
  %v4629 = vunpack.c.l.b16 %v4244
  %v4630 = vunpack.c.h.b16 %v4244
  %v4631 = vunpack.c.l.b16 %v4245
  %v4632 = vunpack.c.h.b16 %v4245
  %v4633 = vunpack.c.l.b16 %v4246
  %v4634 = vunpack.c.h.b16 %v4246
  %v4635 = vunpack.c.l.b16 %v4247
  %v4636 = vunpack.c.h.b16 %v4247
  %v4637 = vunpack.c.l.b16 %v4248
  %v4638 = vunpack.c.h.b16 %v4248
  %v4639 = vpack.c.b16 %v4385, %v4383
  %v4640 = vpack.c.b16 %v4386, %v4384
  %v4641 = vpack.c.b16 %v4389, %v4387
  %v4642 = vpack.c.b16 %v4390, %v4388
  %v4643 = vpack.c.b16 %v4393, %v4391
  %v4644 = vpack.c.b16 %v4394, %v4392
  %v4645 = vpack.c.b16 %v4397, %v4395
  %v4646 = vpack.c.b16 %v4398, %v4396
  %v4647 = vpack.c.b16 %v4401, %v4399
  %v4648 = vpack.c.b16 %v4402, %v4400
  %v4649 = vpack.c.b16 %v4405, %v4403
  %v4650 = vpack.c.b16 %v4406, %v4404
  %v4651 = vpack.c.b16 %v4409, %v4407
  %v4652 = vpack.c.b16 %v4410, %v4408
  %v4653 = vpack.c.b16 %v4413, %v4411
  %v4654 = vpack.c.b16 %v4414, %v4412
  %v4655 = vpack.c.b16 %v4417, %v4415
  %v4656 = vpack.c.b16 %v4418, %v4416
  %v4657 = vpack.c.b16 %v4421, %v4419
  %v4658 = vpack.c.b16 %v4422, %v4420
  %v4659 = vpack.c.b16 %v4425, %v4423
  %v4660 = vpack.c.b16 %v4426, %v4424
  %v4661 = vpack.c.b16 %v4429, %v4427
  %v4662 = vpack.c.b16 %v4430, %v4428
  %v4663 = vpack.c.b16 %v4433, %v4431
  %v4664 = vpack.c.b16 %v4434, %v4432
  %v4665 = vpack.c.b16 %v4437, %v4435
  %v4666 = vpack.c.b16 %v4438, %v4436
  %v4667 = vpack.c.b16 %v4441, %v4439
  %v4668 = vpack.c.b16 %v4442, %v4440
  %v4669 = vpack.c.b16 %v4445, %v4443
  %v4670 = vpack.c.b16 %v4446, %v4444
  %v4671 = vpack.c.b16 %v4449, %v4447
  %v4672 = vpack.c.b16 %v4450, %v4448
  %v4673 = vpack.c.b16 %v4453, %v4451
  %v4674 = vpack.c.b16 %v4454, %v4452
  %v4675 = vpack.c.b16 %v4457, %v4455
  %v4676 = vpack.c.b16 %v4458, %v4456
  %v4677 = vpack.c.b16 %v4461, %v4459
  %v4678 = vpack.c.b16 %v4462, %v4460
  %v4679 = vpack.c.b16 %v4465, %v4463
  %v4680 = vpack.c.b16 %v4466, %v4464
  %v4681 = vpack.c.b16 %v4469, %v4467
  %v4682 = vpack.c.b16 %v4470, %v4468
  %v4683 = vpack.c.b16 %v4473, %v4471
  %v4684 = vpack.c.b16 %v4474, %v4472
  %v4685 = vpack.c.b16 %v4477, %v4475
  %v4686 = vpack.c.b16 %v4478, %v4476
  %v4687 = vpack.c.b16 %v4481, %v4479
  %v4688 = vpack.c.b16 %v4482, %v4480
  %v4689 = vpack.c.b16 %v4485, %v4483
  %v4690 = vpack.c.b16 %v4486, %v4484
  %v4691 = vpack.c.b16 %v4489, %v4487
  %v4692 = vpack.c.b16 %v4490, %v4488
  %v4693 = vpack.c.b16 %v4493, %v4491
  %v4694 = vpack.c.b16 %v4494, %v4492
  %v4695 = vpack.c.b16 %v4497, %v4495
  %v4696 = vpack.c.b16 %v4498, %v4496
  %v4697 = vpack.c.b16 %v4501, %v4499
  %v4698 = vpack.c.b16 %v4502, %v4500
  %v4699 = vpack.c.b16 %v4505, %v4503
  %v4700 = vpack.c.b16 %v4506, %v4504
  %v4701 = vpack.c.b16 %v4509, %v4507
  %v4702 = vpack.c.b16 %v4510, %v4508
  %v4703 = vpack.c.b16 %v4513, %v4511
  %v4704 = vpack.c.b16 %v4514, %v4512
  %v4705 = vpack.c.b16 %v4517, %v4515
  %v4706 = vpack.c.b16 %v4518, %v4516
  %v4707 = vpack.c.b16 %v4521, %v4519
  %v4708 = vpack.c.b16 %v4522, %v4520
  %v4709 = vpack.c.b16 %v4525, %v4523
  %v4710 = vpack.c.b16 %v4526, %v4524
  %v4711 = vpack.c.b16 %v4529, %v4527
  %v4712 = vpack.c.b16 %v4530, %v4528
  %v4713 = vpack.c.b16 %v4533, %v4531
  %v4714 = vpack.c.b16 %v4534, %v4532
  %v4715 = vpack.c.b16 %v4537, %v4535
  %v4716 = vpack.c.b16 %v4538, %v4536
  %v4717 = vpack.c.b16 %v4541, %v4539
  %v4718 = vpack.c.b16 %v4542, %v4540
  %v4719 = vpack.c.b16 %v4545, %v4543
  %v4720 = vpack.c.b16 %v4546, %v4544
  %v4721 = vpack.c.b16 %v4549, %v4547
  %v4722 = vpack.c.b16 %v4550, %v4548
  %v4723 = vpack.c.b16 %v4553, %v4551
  %v4724 = vpack.c.b16 %v4554, %v4552
  %v4725 = vpack.c.b16 %v4557, %v4555
  %v4726 = vpack.c.b16 %v4558, %v4556
  %v4727 = vpack.c.b16 %v4561, %v4559
  %v4728 = vpack.c.b16 %v4562, %v4560
  %v4729 = vpack.c.b16 %v4565, %v4563
  %v4730 = vpack.c.b16 %v4566, %v4564
  %v4731 = vpack.c.b16 %v4569, %v4567
  %v4732 = vpack.c.b16 %v4570, %v4568
  %v4733 = vpack.c.b16 %v4573, %v4571
  %v4734 = vpack.c.b16 %v4574, %v4572
  %v4735 = vpack.c.b16 %v4577, %v4575
  %v4736 = vpack.c.b16 %v4578, %v4576
  %v4737 = vpack.c.b16 %v4581, %v4579
  %v4738 = vpack.c.b16 %v4582, %v4580
  %v4739 = vpack.c.b16 %v4585, %v4583
  %v4740 = vpack.c.b16 %v4586, %v4584
  %v4741 = vpack.c.b16 %v4589, %v4587
  %v4742 = vpack.c.b16 %v4590, %v4588
  %v4743 = vpack.c.b16 %v4593, %v4591
  %v4744 = vpack.c.b16 %v4594, %v4592
  %v4745 = vpack.c.b16 %v4597, %v4595
  %v4746 = vpack.c.b16 %v4598, %v4596
  %v4747 = vpack.c.b16 %v4601, %v4599
  %v4748 = vpack.c.b16 %v4602, %v4600
  %v4749 = vpack.c.b16 %v4605, %v4603
  %v4750 = vpack.c.b16 %v4606, %v4604
  %v4751 = vpack.c.b16 %v4609, %v4607
  %v4752 = vpack.c.b16 %v4610, %v4608
  %v4753 = vpack.c.b16 %v4613, %v4611
  %v4754 = vpack.c.b16 %v4614, %v4612
  %v4755 = vpack.c.b16 %v4617, %v4615
  %v4756 = vpack.c.b16 %v4618, %v4616
  %v4757 = vpack.c.b16 %v4621, %v4619
  %v4758 = vpack.c.b16 %v4622, %v4620
  %v4759 = vpack.c.b16 %v4625, %v4623
  %v4760 = vpack.c.b16 %v4626, %v4624
  %v4761 = vpack.c.b16 %v4629, %v4627
  %v4762 = vpack.c.b16 %v4630, %v4628
  %v4763 = vpack.c.b16 %v4633, %v4631
  %v4764 = vpack.c.b16 %v4634, %v4632
  %v4765 = vpack.c.b16 %v4637, %v4635
  %v4766 = vpack.c.b16 %v4638, %v4636
  %4895 = vmatpush.bf16.msra.mxu0 %v4653
  %4896 = vmatpush.bf16.msra.mxu0 %v4651
  %4897 = vmatpush.bf16.msra.mxu0 %v4649
  %4898 = vmatpush.bf16.msra.mxu0 %v4647
  %4899 = vmatpush.bf16.msra.mxu0 %v4645
  %4900 = vmatpush.bf16.msra.mxu0 %v4643
  %4901 = vmatpush.bf16.msra.mxu0 %v4641
  %4902 = vmatpush.bf16.msra.mxu0 %v4639
  %4903 = vmatmul.bf16.gmra.mxu0 %v4113
  %v4904 = vpop.f32.mrf.mxu0
  %v4905 = vadd.f32 %v4251, %v4904
  %v4906 = vpop.f32.mrf.mxu0
  %v4907 = vadd.f32 %v4251, %v4906
  %4908 = vdwg.mxu0
  %4909 = vmatpush.bf16.msra.mxu0 %v4669
  %4910 = vmatpush.bf16.msra.mxu0 %v4667
  %4911 = vmatpush.bf16.msra.mxu0 %v4665
  %4912 = vmatpush.bf16.msra.mxu0 %v4663
  %4913 = vmatpush.bf16.msra.mxu0 %v4661
  %4914 = vmatpush.bf16.msra.mxu0 %v4659
  %4915 = vmatpush.bf16.msra.mxu0 %v4657
  %4916 = vmatpush.bf16.msra.mxu0 %v4655
  %4917 = vmatmul.bf16.gmra.mxu0 %v4114
  %v4918 = vpop.f32.mrf.mxu0
  %v4919 = vadd.f32 %v4905, %v4918
  %v4920 = vpop.f32.mrf.mxu0
  %v4921 = vadd.f32 %v4907, %v4920
  %4922 = vdwg.mxu0
  %4923 = vmatpush.bf16.msra.mxu0 %v4685
  %4924 = vmatpush.bf16.msra.mxu0 %v4683
  %4925 = vmatpush.bf16.msra.mxu0 %v4681
  %4926 = vmatpush.bf16.msra.mxu0 %v4679
  %4927 = vmatpush.bf16.msra.mxu0 %v4677
  %4928 = vmatpush.bf16.msra.mxu0 %v4675
  %4929 = vmatpush.bf16.msra.mxu0 %v4673
  %4930 = vmatpush.bf16.msra.mxu0 %v4671
  %4931 = vmatmul.bf16.gmra.mxu0 %v4115
  %v4932 = vpop.f32.mrf.mxu0
  %v4933 = vadd.f32 %v4919, %v4932
  %v4934 = vpop.f32.mrf.mxu0
  %v4935 = vadd.f32 %v4921, %v4934
  %4936 = vdwg.mxu0
  %4937 = vmatpush.bf16.msra.mxu0 %v4701
  %4938 = vmatpush.bf16.msra.mxu0 %v4699
  %4939 = vmatpush.bf16.msra.mxu0 %v4697
  %4940 = vmatpush.bf16.msra.mxu0 %v4695
  %4941 = vmatpush.bf16.msra.mxu0 %v4693
  %4942 = vmatpush.bf16.msra.mxu0 %v4691
  %4943 = vmatpush.bf16.msra.mxu0 %v4689
  %4944 = vmatpush.bf16.msra.mxu0 %v4687
  %4945 = vmatmul.bf16.gmra.mxu0 %v4116
  %v4946 = vpop.f32.mrf.mxu0
  %v4947 = vadd.f32 %v4933, %v4946
  %v4948 = vpop.f32.mrf.mxu0
  %v4949 = vadd.f32 %v4935, %v4948
  %4950 = vdwg.mxu0
  %4951 = vmatpush.bf16.msra.mxu0 %v4717
  %4952 = vmatpush.bf16.msra.mxu0 %v4715
  %4953 = vmatpush.bf16.msra.mxu0 %v4713
  %4954 = vmatpush.bf16.msra.mxu0 %v4711
  %4955 = vmatpush.bf16.msra.mxu0 %v4709
  %4956 = vmatpush.bf16.msra.mxu0 %v4707
  %4957 = vmatpush.bf16.msra.mxu0 %v4705
  %4958 = vmatpush.bf16.msra.mxu0 %v4703
  %4959 = vmatmul.bf16.gmra.mxu0 %v4117
  %v4960 = vpop.f32.mrf.mxu0
  %v4961 = vadd.f32 %v4947, %v4960
  %v4962 = vpop.f32.mrf.mxu0
  %v4963 = vadd.f32 %v4949, %v4962
  %4964 = vdwg.mxu0
  %4965 = vmatpush.bf16.msra.mxu0 %v4733
  %4966 = vmatpush.bf16.msra.mxu0 %v4731
  %4967 = vmatpush.bf16.msra.mxu0 %v4729
  %4968 = vmatpush.bf16.msra.mxu0 %v4727
  %4969 = vmatpush.bf16.msra.mxu0 %v4725
  %4970 = vmatpush.bf16.msra.mxu0 %v4723
  %4971 = vmatpush.bf16.msra.mxu0 %v4721
  %4972 = vmatpush.bf16.msra.mxu0 %v4719
  %4973 = vmatmul.bf16.gmra.mxu0 %v4118
  %v4974 = vpop.f32.mrf.mxu0
  %v4975 = vadd.f32 %v4961, %v4974
  %v4976 = vpop.f32.mrf.mxu0
  %v4977 = vadd.f32 %v4963, %v4976
  %4978 = vdwg.mxu0
  %4979 = vmatpush.bf16.msra.mxu0 %v4749
  %4980 = vmatpush.bf16.msra.mxu0 %v4747
  %4981 = vmatpush.bf16.msra.mxu0 %v4745
  %4982 = vmatpush.bf16.msra.mxu0 %v4743
  %4983 = vmatpush.bf16.msra.mxu0 %v4741
  %4984 = vmatpush.bf16.msra.mxu0 %v4739
  %4985 = vmatpush.bf16.msra.mxu0 %v4737
  %4986 = vmatpush.bf16.msra.mxu0 %v4735
  %4987 = vmatmul.bf16.gmra.mxu0 %v4119
  %v4988 = vpop.f32.mrf.mxu0
  %v4989 = vadd.f32 %v4975, %v4988
  %v4990 = vpop.f32.mrf.mxu0
  %v4991 = vadd.f32 %v4977, %v4990
  %4992 = vdwg.mxu0
  %4993 = vmatpush.bf16.msra.mxu0 %v4765
  %4994 = vmatpush.bf16.msra.mxu0 %v4763
  %4995 = vmatpush.bf16.msra.mxu0 %v4761
  %4996 = vmatpush.bf16.msra.mxu0 %v4759
  %4997 = vmatpush.bf16.msra.mxu0 %v4757
  %4998 = vmatpush.bf16.msra.mxu0 %v4755
  %4999 = vmatpush.bf16.msra.mxu0 %v4753
  %5000 = vmatpush.bf16.msra.mxu0 %v4751
  %5001 = vmatmul.bf16.gmra.mxu0 %v4120
  %v5002 = vpop.f32.mrf.mxu0
  %v5003 = vadd.f32 %v4989, %v5002
  %v5004 = vpop.f32.mrf.mxu0
  %v5005 = vadd.f32 %v4991, %v5004
  %5006 = vdwg.mxu0
  %5007 = vmatpush.bf16.msra.mxu0 %v4654
  %5008 = vmatpush.bf16.msra.mxu0 %v4652
  %5009 = vmatpush.bf16.msra.mxu0 %v4650
  %5010 = vmatpush.bf16.msra.mxu0 %v4648
  %5011 = vmatpush.bf16.msra.mxu0 %v4646
  %5012 = vmatpush.bf16.msra.mxu0 %v4644
  %5013 = vmatpush.bf16.msra.mxu0 %v4642
  %5014 = vmatpush.bf16.msra.mxu0 %v4640
  %5015 = vmatmul.bf16.gmra.mxu0 %v4113
  %v5016 = vpop.f32.mrf.mxu0
  %v5017 = vadd.f32 %v4252, %v5016
  %v5018 = vpop.f32.mrf.mxu0
  %v5019 = vadd.f32 %v4252, %v5018
  %5020 = vdwg.mxu0
  %5021 = vmatpush.bf16.msra.mxu0 %v4670
  %5022 = vmatpush.bf16.msra.mxu0 %v4668
  %5023 = vmatpush.bf16.msra.mxu0 %v4666
  %5024 = vmatpush.bf16.msra.mxu0 %v4664
  %5025 = vmatpush.bf16.msra.mxu0 %v4662
  %5026 = vmatpush.bf16.msra.mxu0 %v4660
  %5027 = vmatpush.bf16.msra.mxu0 %v4658
  %5028 = vmatpush.bf16.msra.mxu0 %v4656
  %5029 = vmatmul.bf16.gmra.mxu0 %v4114
  %v5030 = vpop.f32.mrf.mxu0
  %v5031 = vadd.f32 %v5017, %v5030
  %v5032 = vpop.f32.mrf.mxu0
  %v5033 = vadd.f32 %v5019, %v5032
  %5034 = vdwg.mxu0
  %5035 = vmatpush.bf16.msra.mxu0 %v4686
  %5036 = vmatpush.bf16.msra.mxu0 %v4684
  %5037 = vmatpush.bf16.msra.mxu0 %v4682
  %5038 = vmatpush.bf16.msra.mxu0 %v4680
  %5039 = vmatpush.bf16.msra.mxu0 %v4678
  %5040 = vmatpush.bf16.msra.mxu0 %v4676
  %5041 = vmatpush.bf16.msra.mxu0 %v4674
  %5042 = vmatpush.bf16.msra.mxu0 %v4672
  %5043 = vmatmul.bf16.gmra.mxu0 %v4115
  %v5044 = vpop.f32.mrf.mxu0
  %v5045 = vadd.f32 %v5031, %v5044
  %v5046 = vpop.f32.mrf.mxu0
  %v5047 = vadd.f32 %v5033, %v5046
  %5048 = vdwg.mxu0
  %5049 = vmatpush.bf16.msra.mxu0 %v4702
  %5050 = vmatpush.bf16.msra.mxu0 %v4700
  %5051 = vmatpush.bf16.msra.mxu0 %v4698
  %5052 = vmatpush.bf16.msra.mxu0 %v4696
  %5053 = vmatpush.bf16.msra.mxu0 %v4694
  %5054 = vmatpush.bf16.msra.mxu0 %v4692
  %5055 = vmatpush.bf16.msra.mxu0 %v4690
  %5056 = vmatpush.bf16.msra.mxu0 %v4688
  %5057 = vmatmul.bf16.gmra.mxu0 %v4116
  %v5058 = vpop.f32.mrf.mxu0
  %v5059 = vadd.f32 %v5045, %v5058
  %v5060 = vpop.f32.mrf.mxu0
  %v5061 = vadd.f32 %v5047, %v5060
  %5062 = vdwg.mxu0
  %5063 = vmatpush.bf16.msra.mxu0 %v4718
  %5064 = vmatpush.bf16.msra.mxu0 %v4716
  %5065 = vmatpush.bf16.msra.mxu0 %v4714
  %5066 = vmatpush.bf16.msra.mxu0 %v4712
  %5067 = vmatpush.bf16.msra.mxu0 %v4710
  %5068 = vmatpush.bf16.msra.mxu0 %v4708
  %5069 = vmatpush.bf16.msra.mxu0 %v4706
  %5070 = vmatpush.bf16.msra.mxu0 %v4704
  %5071 = vmatmul.bf16.gmra.mxu0 %v4117
  %v5072 = vpop.f32.mrf.mxu0
  %v5073 = vadd.f32 %v5059, %v5072
  %v5074 = vpop.f32.mrf.mxu0
  %v5075 = vadd.f32 %v5061, %v5074
  %5076 = vdwg.mxu0
  %5077 = vmatpush.bf16.msra.mxu0 %v4734
  %5078 = vmatpush.bf16.msra.mxu0 %v4732
  %5079 = vmatpush.bf16.msra.mxu0 %v4730
  %5080 = vmatpush.bf16.msra.mxu0 %v4728
  %5081 = vmatpush.bf16.msra.mxu0 %v4726
  %5082 = vmatpush.bf16.msra.mxu0 %v4724
  %5083 = vmatpush.bf16.msra.mxu0 %v4722
  %5084 = vmatpush.bf16.msra.mxu0 %v4720
  %5085 = vmatmul.bf16.gmra.mxu0 %v4118
  %v5086 = vpop.f32.mrf.mxu0
  %v5087 = vadd.f32 %v5073, %v5086
  %v5088 = vpop.f32.mrf.mxu0
  %v5089 = vadd.f32 %v5075, %v5088
  %5090 = vdwg.mxu0
  %5091 = vmatpush.bf16.msra.mxu0 %v4750
  %5092 = vmatpush.bf16.msra.mxu0 %v4748
  %5093 = vmatpush.bf16.msra.mxu0 %v4746
  %5094 = vmatpush.bf16.msra.mxu0 %v4744
  %5095 = vmatpush.bf16.msra.mxu0 %v4742
  %5096 = vmatpush.bf16.msra.mxu0 %v4740
  %5097 = vmatpush.bf16.msra.mxu0 %v4738
  %5098 = vmatpush.bf16.msra.mxu0 %v4736
  %5099 = vmatmul.bf16.gmra.mxu0 %v4119
  %v5100 = vpop.f32.mrf.mxu0
  %v5101 = vadd.f32 %v5087, %v5100
  %v5102 = vpop.f32.mrf.mxu0
  %v5103 = vadd.f32 %v5089, %v5102
  %5104 = vdwg.mxu0
  %5105 = vmatpush.bf16.msra.mxu0 %v4766
  %5106 = vmatpush.bf16.msra.mxu0 %v4764
  %5107 = vmatpush.bf16.msra.mxu0 %v4762
  %5108 = vmatpush.bf16.msra.mxu0 %v4760
  %5109 = vmatpush.bf16.msra.mxu0 %v4758
  %5110 = vmatpush.bf16.msra.mxu0 %v4756
  %5111 = vmatpush.bf16.msra.mxu0 %v4754
  %5112 = vmatpush.bf16.msra.mxu0 %v4752
  %5113 = vmatmul.bf16.gmra.mxu0 %v4120
  %v5114 = vpop.f32.mrf.mxu0
  %v5115 = vadd.f32 %v5101, %v5114
  %v5116 = vpop.f32.mrf.mxu0
  %v5117 = vadd.f32 %v5103, %v5116
  %5118 = vdwg.mxu0
  %v5119 = vmax.f32 %v5003, 0.0
  %v5120 = vmax.f32 %v5115, 0.0
  %v5121 = vmax.f32 %v5005, 0.0
  %v5122 = vmax.f32 %v5117, 0.0
  %v5123 = vpack.c.bf16 %v5121, %v5119
  %v5124 = vpack.c.bf16 %v5122, %v5120
  %v5125 = vld [vmem:[%s7] sm:$0xff]
  %v5126 = vld [vmem:[%s7 + $0x8] sm:$0xff]
  %v5127 = vld [vmem:[%s7 + $0x10] sm:$0xff]
  %v5128 = vld [vmem:[%s7 + $0x18] sm:$0xff]
  %v5129 = vld [vmem:[%s7 + $0x20] sm:$0xff]
  %v5130 = vld [vmem:[%s7 + $0x28] sm:$0xff]
  %v5131 = vld [vmem:[%s7 + $0x30] sm:$0xff]
  %v5132 = vld [vmem:[%s7 + $0x38] sm:$0xff]
  %v5133 = vld [vmem:[%s7 + $0x40] sm:$0xff]
  %v5134 = vld [vmem:[%s7 + $0x48] sm:$0xff]
  %v5135 = vld [vmem:[%s7 + $0x50] sm:$0xff]
  %v5136 = vld [vmem:[%s7 + $0x58] sm:$0xff]
  %v5137 = vld [vmem:[%s7 + $0x60] sm:$0xff]
  %v5138 = vld [vmem:[%s7 + $0x68] sm:$0xff]
  %v5139 = vld [vmem:[%s7 + $0x70] sm:$0xff]
  %v5140 = vld [vmem:[%s7 + $0x78] sm:$0xff]
  %v5141 = vld [vmem:[%s7 + $0x80] sm:$0xff]
  %v5142 = vld [vmem:[%s7 + $0x88] sm:$0xff]
  %v5143 = vld [vmem:[%s7 + $0x90] sm:$0xff]
  %v5144 = vld [vmem:[%s7 + $0x98] sm:$0xff]
  %v5145 = vld [vmem:[%s7 + $0xa0] sm:$0xff]
  %v5146 = vld [vmem:[%s7 + $0xa8] sm:$0xff]
  %v5147 = vld [vmem:[%s7 + $0xb0] sm:$0xff]
  %v5148 = vld [vmem:[%s7 + $0xb8] sm:$0xff]
  %v5149 = vld [vmem:[%s7 + $0xc0] sm:$0xff]
  %v5150 = vld [vmem:[%s7 + $0xc8] sm:$0xff]
  %v5151 = vld [vmem:[%s7 + $0xd0] sm:$0xff]
  %v5152 = vld [vmem:[%s7 + $0xd8] sm:$0xff]
  %v5153 = vld [vmem:[%s7 + $0xe0] sm:$0xff]
  %v5154 = vld [vmem:[%s7 + $0xe8] sm:$0xff]
  %v5155 = vld [vmem:[%s7 + $0xf0] sm:$0xff]
  %v5156 = vld [vmem:[%s7 + $0xf8] sm:$0xff]
  %v5157 = vld [vmem:[%s8] sm:$0x3]
  %v5159 = vperm.slane %v5157, 0
  %v5160 = vperm.slane %v5157, 1
  %v5195 = vunpack.c.l.b16 %v5125
  %v5196 = vunpack.c.h.b16 %v5125
  %v5197 = vunpack.c.l.b16 %v5126
  %v5198 = vunpack.c.h.b16 %v5126
  %v5199 = vunpack.c.l.b16 %v5127
  %v5200 = vunpack.c.h.b16 %v5127
  %v5201 = vunpack.c.l.b16 %v5128
  %v5202 = vunpack.c.h.b16 %v5128
  %v5203 = vunpack.c.l.b16 %v5129
  %v5204 = vunpack.c.h.b16 %v5129
  %v5205 = vunpack.c.l.b16 %v5130
  %v5206 = vunpack.c.h.b16 %v5130
  %v5207 = vunpack.c.l.b16 %v5131
  %v5208 = vunpack.c.h.b16 %v5131
  %v5209 = vunpack.c.l.b16 %v5132
  %v5210 = vunpack.c.h.b16 %v5132
  %v5211 = vunpack.c.l.b16 %v5133
  %v5212 = vunpack.c.h.b16 %v5133
  %v5213 = vunpack.c.l.b16 %v5134
  %v5214 = vunpack.c.h.b16 %v5134
  %v5215 = vunpack.c.l.b16 %v5135
  %v5216 = vunpack.c.h.b16 %v5135
  %v5217 = vunpack.c.l.b16 %v5136
  %v5218 = vunpack.c.h.b16 %v5136
  %v5219 = vunpack.c.l.b16 %v5137
  %v5220 = vunpack.c.h.b16 %v5137
  %v5221 = vunpack.c.l.b16 %v5138
  %v5222 = vunpack.c.h.b16 %v5138
  %v5223 = vunpack.c.l.b16 %v5139
  %v5224 = vunpack.c.h.b16 %v5139
  %v5225 = vunpack.c.l.b16 %v5140
  %v5226 = vunpack.c.h.b16 %v5140
  %v5227 = vunpack.c.l.b16 %v5141
  %v5228 = vunpack.c.h.b16 %v5141
  %v5229 = vunpack.c.l.b16 %v5142
  %v5230 = vunpack.c.h.b16 %v5142
  %v5231 = vunpack.c.l.b16 %v5143
  %v5232 = vunpack.c.h.b16 %v5143
  %v5233 = vunpack.c.l.b16 %v5144
  %v5234 = vunpack.c.h.b16 %v5144
  %v5235 = vunpack.c.l.b16 %v5145
  %v5236 = vunpack.c.h.b16 %v5145
  %v5237 = vunpack.c.l.b16 %v5146
  %v5238 = vunpack.c.h.b16 %v5146
  %v5239 = vunpack.c.l.b16 %v5147
  %v5240 = vunpack.c.h.b16 %v5147
  %v5241 = vunpack.c.l.b16 %v5148
  %v5242 = vunpack.c.h.b16 %v5148
  %v5243 = vunpack.c.l.b16 %v5149
  %v5244 = vunpack.c.h.b16 %v5149
  %v5245 = vunpack.c.l.b16 %v5150
  %v5246 = vunpack.c.h.b16 %v5150
  %v5247 = vunpack.c.l.b16 %v5151
  %v5248 = vunpack.c.h.b16 %v5151
  %v5249 = vunpack.c.l.b16 %v5152
  %v5250 = vunpack.c.h.b16 %v5152
  %v5251 = vunpack.c.l.b16 %v5153
  %v5252 = vunpack.c.h.b16 %v5153
  %v5253 = vunpack.c.l.b16 %v5154
  %v5254 = vunpack.c.h.b16 %v5154
  %v5255 = vunpack.c.l.b16 %v5155
  %v5256 = vunpack.c.h.b16 %v5155
  %v5257 = vunpack.c.l.b16 %v5156
  %v5258 = vunpack.c.h.b16 %v5156
  %v5259 = vpack.c.b16 %v5197, %v5195
  %v5260 = vpack.c.b16 %v5198, %v5196
  %v5261 = vpack.c.b16 %v5201, %v5199
  %v5262 = vpack.c.b16 %v5202, %v5200
  %v5263 = vpack.c.b16 %v5205, %v5203
  %v5264 = vpack.c.b16 %v5206, %v5204
  %v5265 = vpack.c.b16 %v5209, %v5207
  %v5266 = vpack.c.b16 %v5210, %v5208
  %v5267 = vpack.c.b16 %v5213, %v5211
  %v5268 = vpack.c.b16 %v5214, %v5212
  %v5269 = vpack.c.b16 %v5217, %v5215
  %v5270 = vpack.c.b16 %v5218, %v5216
  %v5271 = vpack.c.b16 %v5221, %v5219
  %v5272 = vpack.c.b16 %v5222, %v5220
  %v5273 = vpack.c.b16 %v5225, %v5223
  %v5274 = vpack.c.b16 %v5226, %v5224
  %v5275 = vpack.c.b16 %v5229, %v5227
  %v5276 = vpack.c.b16 %v5230, %v5228
  %v5277 = vpack.c.b16 %v5233, %v5231
  %v5278 = vpack.c.b16 %v5234, %v5232
  %v5279 = vpack.c.b16 %v5237, %v5235
  %v5280 = vpack.c.b16 %v5238, %v5236
  %v5281 = vpack.c.b16 %v5241, %v5239
  %v5282 = vpack.c.b16 %v5242, %v5240
  %v5283 = vpack.c.b16 %v5245, %v5243
  %v5284 = vpack.c.b16 %v5246, %v5244
  %v5285 = vpack.c.b16 %v5249, %v5247
  %v5286 = vpack.c.b16 %v5250, %v5248
  %v5287 = vpack.c.b16 %v5253, %v5251
  %v5288 = vpack.c.b16 %v5254, %v5252
  %v5289 = vpack.c.b16 %v5257, %v5255
  %v5290 = vpack.c.b16 %v5258, %v5256
  %5323 = vmatpush.bf16.msra.mxu0 %v5273
  %5324 = vmatpush.bf16.msra.mxu0 %v5271
  %5325 = vmatpush.bf16.msra.mxu0 %v5269
  %5326 = vmatpush.bf16.msra.mxu0 %v5267
  %5327 = vmatpush.bf16.msra.mxu0 %v5265
  %5328 = vmatpush.bf16.msra.mxu0 %v5263
  %5329 = vmatpush.bf16.msra.mxu0 %v5261
  %5330 = vmatpush.bf16.msra.mxu0 %v5259
  %5331 = vmatmul.bf16.gmra.mxu0 %v5123
  %v5332 = vpop.f32.mrf.mxu0
  %v5333 = vadd.f32 %v5159, %v5332
  %v5334 = vpop.f32.mrf.mxu0
  %v5335 = vadd.f32 %v5159, %v5334
  %5336 = vdwg.mxu0
  %5337 = vmatpush.bf16.msra.mxu0 %v5289
  %5338 = vmatpush.bf16.msra.mxu0 %v5287
  %5339 = vmatpush.bf16.msra.mxu0 %v5285
  %5340 = vmatpush.bf16.msra.mxu0 %v5283
  %5341 = vmatpush.bf16.msra.mxu0 %v5281
  %5342 = vmatpush.bf16.msra.mxu0 %v5279
  %5343 = vmatpush.bf16.msra.mxu0 %v5277
  %5344 = vmatpush.bf16.msra.mxu0 %v5275
  %5345 = vmatmul.bf16.gmra.mxu0 %v5124
  %v5346 = vpop.f32.mrf.mxu0
  %v5347 = vadd.f32 %v5333, %v5346
  %v5348 = vpop.f32.mrf.mxu0
  %v5349 = vadd.f32 %v5335, %v5348
  %5350 = vdwg.mxu0
  %5351 = vmatpush.bf16.msra.mxu0 %v5274
  %5352 = vmatpush.bf16.msra.mxu0 %v5272
  %5353 = vmatpush.bf16.msra.mxu0 %v5270
  %5354 = vmatpush.bf16.msra.mxu0 %v5268
  %5355 = vmatpush.bf16.msra.mxu0 %v5266
  %5356 = vmatpush.bf16.msra.mxu0 %v5264
  %5357 = vmatpush.bf16.msra.mxu0 %v5262
  %5358 = vmatpush.bf16.msra.mxu0 %v5260
  %5359 = vmatmul.bf16.gmra.mxu0 %v5123
  %v5360 = vpop.f32.mrf.mxu0
  %v5361 = vadd.f32 %v5160, %v5360
  %v5362 = vpop.f32.mrf.mxu0
  %v5363 = vadd.f32 %v5160, %v5362
  %5364 = vdwg.mxu0
  %5365 = vmatpush.bf16.msra.mxu0 %v5290
  %5366 = vmatpush.bf16.msra.mxu0 %v5288
  %5367 = vmatpush.bf16.msra.mxu0 %v5286
  %5368 = vmatpush.bf16.msra.mxu0 %v5284
  %5369 = vmatpush.bf16.msra.mxu0 %v5282
  %5370 = vmatpush.bf16.msra.mxu0 %v5280
  %5371 = vmatpush.bf16.msra.mxu0 %v5278
  %5372 = vmatpush.bf16.msra.mxu0 %v5276
  %5373 = vmatmul.bf16.gmra.mxu0 %v5124
  %v5374 = vpop.f32.mrf.mxu0
  %v5375 = vadd.f32 %v5361, %v5374
  %v5376 = vpop.f32.mrf.mxu0
  %v5377 = vadd.f32 %v5363, %v5376
  %5378 = vdwg.mxu0
  %v5379 = vmax.f32 %v5347, 0.0
  %v5380 = vmax.f32 %v5375, 0.0
  %v5381 = vmax.f32 %v5349, 0.0
  %v5382 = vmax.f32 %v5377, 0.0
  %v5383 = vpack.c.bf16 %v5381, %v5379
  %v5384 = vpack.c.bf16 %v5382, %v5380
  %v5385 = vld [vmem:[%s9] sm:$0xff]
  %v5386 = vld [vmem:[%s9 + $0x8] sm:$0xff]
  %v5387 = vld [vmem:[%s9 + $0x10] sm:$0xff]
  %v5388 = vld [vmem:[%s9 + $0x18] sm:$0xff]
  %v5389 = vld [vmem:[%s9 + $0x20] sm:$0xff]
  %v5390 = vld [vmem:[%s9 + $0x28] sm:$0xff]
  %v5391 = vld [vmem:[%s9 + $0x30] sm:$0xff]
  %v5392 = vld [vmem:[%s9 + $0x38] sm:$0xff]
  %v5393 = vld [vmem:[%s9 + $0x40] sm:$0xff]
  %v5394 = vld [vmem:[%s9 + $0x48] sm:$0xff]
  %v5395 = vld [vmem:[%s9 + $0x50] sm:$0xff]
  %v5396 = vld [vmem:[%s9 + $0x58] sm:$0xff]
  %v5397 = vld [vmem:[%s9 + $0x60] sm:$0xff]
  %v5398 = vld [vmem:[%s9 + $0x68] sm:$0xff]
  %v5399 = vld [vmem:[%s9 + $0x70] sm:$0xff]
  %v5400 = vld [vmem:[%s9 + $0x78] sm:$0xff]
  %v5401 = vld [vmem:[%s9 + $0x80] sm:$0xff]
  %v5402 = vld [vmem:[%s9 + $0x88] sm:$0xff]
  %v5403 = vld [vmem:[%s9 + $0x90] sm:$0xff]
  %v5404 = vld [vmem:[%s9 + $0x98] sm:$0xff]
  %v5405 = vld [vmem:[%s9 + $0xa0] sm:$0xff]
  %v5406 = vld [vmem:[%s9 + $0xa8] sm:$0xff]
  %v5407 = vld [vmem:[%s9 + $0xb0] sm:$0xff]
  %v5408 = vld [vmem:[%s9 + $0xb8] sm:$0xff]
  %v5409 = vld [vmem:[%s9 + $0xc0] sm:$0xff]
  %v5410 = vld [vmem:[%s9 + $0xc8] sm:$0xff]
  %v5411 = vld [vmem:[%s9 + $0xd0] sm:$0xff]
  %v5412 = vld [vmem:[%s9 + $0xd8] sm:$0xff]
  %v5413 = vld [vmem:[%s9 + $0xe0] sm:$0xff]
  %v5414 = vld [vmem:[%s9 + $0xe8] sm:$0xff]
  %v5415 = vld [vmem:[%s9 + $0xf0] sm:$0xff]
  %v5416 = vld [vmem:[%s9 + $0xf8] sm:$0xff]
  %v5417 = vld [vmem:[%s9 + $0x100] sm:$0xff]
  %v5418 = vld [vmem:[%s9 + $0x108] sm:$0xff]
  %v5419 = vld [vmem:[%s9 + $0x110] sm:$0xff]
  %v5420 = vld [vmem:[%s9 + $0x118] sm:$0xff]
  %v5421 = vld [vmem:[%s9 + $0x120] sm:$0xff]
  %v5422 = vld [vmem:[%s9 + $0x128] sm:$0xff]
  %v5423 = vld [vmem:[%s9 + $0x130] sm:$0xff]
  %v5424 = vld [vmem:[%s9 + $0x138] sm:$0xff]
  %v5425 = vld [vmem:[%s9 + $0x140] sm:$0xff]
  %v5426 = vld [vmem:[%s9 + $0x148] sm:$0xff]
  %v5427 = vld [vmem:[%s9 + $0x150] sm:$0xff]
  %v5428 = vld [vmem:[%s9 + $0x158] sm:$0xff]
  %v5429 = vld [vmem:[%s9 + $0x160] sm:$0xff]
  %v5430 = vld [vmem:[%s9 + $0x168] sm:$0xff]
  %v5431 = vld [vmem:[%s9 + $0x170] sm:$0xff]
  %v5432 = vld [vmem:[%s9 + $0x178] sm:$0xff]
  %v5433 = vld [vmem:[%s9 + $0x180] sm:$0xff]
  %v5434 = vld [vmem:[%s9 + $0x188] sm:$0xff]
  %v5435 = vld [vmem:[%s9 + $0x190] sm:$0xff]
  %v5436 = vld [vmem:[%s9 + $0x198] sm:$0xff]
  %v5437 = vld [vmem:[%s9 + $0x1a0] sm:$0xff]
  %v5438 = vld [vmem:[%s9 + $0x1a8] sm:$0xff]
  %v5439 = vld [vmem:[%s9 + $0x1b0] sm:$0xff]
  %v5440 = vld [vmem:[%s9 + $0x1b8] sm:$0xff]
  %v5441 = vld [vmem:[%s9 + $0x1c0] sm:$0xff]
  %v5442 = vld [vmem:[%s9 + $0x1c8] sm:$0xff]
  %v5443 = vld [vmem:[%s9 + $0x1d0] sm:$0xff]
  %v5444 = vld [vmem:[%s9 + $0x1d8] sm:$0xff]
  %v5445 = vld [vmem:[%s9 + $0x1e0] sm:$0xff]
  %v5446 = vld [vmem:[%s9 + $0x1e8] sm:$0xff]
  %v5447 = vld [vmem:[%s9 + $0x1f0] sm:$0xff]
  %v5448 = vld [vmem:[%s9 + $0x1f8] sm:$0xff]
  %v5449 = vld [vmem:[%s9 + $0x200] sm:$0xff]
  %v5450 = vld [vmem:[%s9 + $0x208] sm:$0xff]
  %v5451 = vld [vmem:[%s9 + $0x210] sm:$0xff]
  %v5452 = vld [vmem:[%s9 + $0x218] sm:$0xff]
  %v5453 = vld [vmem:[%s9 + $0x220] sm:$0xff]
  %v5454 = vld [vmem:[%s9 + $0x228] sm:$0xff]
  %v5455 = vld [vmem:[%s9 + $0x230] sm:$0xff]
  %v5456 = vld [vmem:[%s9 + $0x238] sm:$0xff]
  %v5457 = vld [vmem:[%s9 + $0x240] sm:$0xff]
  %v5458 = vld [vmem:[%s9 + $0x248] sm:$0xff]
  %v5459 = vld [vmem:[%s9 + $0x250] sm:$0xff]
  %v5460 = vld [vmem:[%s9 + $0x258] sm:$0xff]
  %v5461 = vld [vmem:[%s9 + $0x260] sm:$0xff]
  %v5462 = vld [vmem:[%s9 + $0x268] sm:$0xff]
  %v5463 = vld [vmem:[%s9 + $0x270] sm:$0xff]
  %v5464 = vld [vmem:[%s9 + $0x278] sm:$0xff]
  %v5465 = vld [vmem:[%s9 + $0x280] sm:$0xff]
  %v5466 = vld [vmem:[%s9 + $0x288] sm:$0xff]
  %v5467 = vld [vmem:[%s9 + $0x290] sm:$0xff]
  %v5468 = vld [vmem:[%s9 + $0x298] sm:$0xff]
  %v5469 = vld [vmem:[%s9 + $0x2a0] sm:$0xff]
  %v5470 = vld [vmem:[%s9 + $0x2a8] sm:$0xff]
  %v5471 = vld [vmem:[%s9 + $0x2b0] sm:$0xff]
  %v5472 = vld [vmem:[%s9 + $0x2b8] sm:$0xff]
  %v5473 = vld [vmem:[%s9 + $0x2c0] sm:$0xff]
  %v5474 = vld [vmem:[%s9 + $0x2c8] sm:$0xff]
  %v5475 = vld [vmem:[%s9 + $0x2d0] sm:$0xff]
  %v5476 = vld [vmem:[%s9 + $0x2d8] sm:$0xff]
  %v5477 = vld [vmem:[%s9 + $0x2e0] sm:$0xff]
  %v5478 = vld [vmem:[%s9 + $0x2e8] sm:$0xff]
  %v5479 = vld [vmem:[%s9 + $0x2f0] sm:$0xff]
  %v5480 = vld [vmem:[%s9 + $0x2f8] sm:$0xff]
  %v5481 = vld [vmem:[%s9 + $0x300] sm:$0xff]
  %v5482 = vld [vmem:[%s9 + $0x308] sm:$0xff]
  %v5483 = vld [vmem:[%s9 + $0x310] sm:$0xff]
  %v5484 = vld [vmem:[%s9 + $0x318] sm:$0xff]
  %v5485 = vld [vmem:[%s9 + $0x320] sm:$0xff]
  %v5486 = vld [vmem:[%s9 + $0x328] sm:$0xff]
  %v5487 = vld [vmem:[%s9 + $0x330] sm:$0xff]
  %v5488 = vld [vmem:[%s9 + $0x338] sm:$0xff]
  %v5489 = vld [vmem:[%s9 + $0x340] sm:$0xff]
  %v5490 = vld [vmem:[%s9 + $0x348] sm:$0xff]
  %v5491 = vld [vmem:[%s9 + $0x350] sm:$0xff]
  %v5492 = vld [vmem:[%s9 + $0x358] sm:$0xff]
  %v5493 = vld [vmem:[%s9 + $0x360] sm:$0xff]
  %v5494 = vld [vmem:[%s9 + $0x368] sm:$0xff]
  %v5495 = vld [vmem:[%s9 + $0x370] sm:$0xff]
  %v5496 = vld [vmem:[%s9 + $0x378] sm:$0xff]
  %v5497 = vld [vmem:[%s9 + $0x380] sm:$0xff]
  %v5498 = vld [vmem:[%s9 + $0x388] sm:$0xff]
  %v5499 = vld [vmem:[%s9 + $0x390] sm:$0xff]
  %v5500 = vld [vmem:[%s9 + $0x398] sm:$0xff]
  %v5501 = vld [vmem:[%s9 + $0x3a0] sm:$0xff]
  %v5502 = vld [vmem:[%s9 + $0x3a8] sm:$0xff]
  %v5503 = vld [vmem:[%s9 + $0x3b0] sm:$0xff]
  %v5504 = vld [vmem:[%s9 + $0x3b8] sm:$0xff]
  %v5505 = vld [vmem:[%s9 + $0x3c0] sm:$0xff]
  %v5506 = vld [vmem:[%s9 + $0x3c8] sm:$0xff]
  %v5507 = vld [vmem:[%s9 + $0x3d0] sm:$0xff]
  %v5508 = vld [vmem:[%s9 + $0x3d8] sm:$0xff]
  %v5509 = vld [vmem:[%s9 + $0x3e0] sm:$0xff]
  %v5510 = vld [vmem:[%s9 + $0x3e8] sm:$0xff]
  %v5511 = vld [vmem:[%s9 + $0x3f0] sm:$0xff]
  %v5512 = vld [vmem:[%s9 + $0x3f8] sm:$0xff]
  %v5513 = vld [vmem:[%s10] sm:$0xff]
  %v5514 = vld [vmem:[%s10 + $0x8] sm:$0xff]
  %v5515 = vld [vmem:[%s10 + $0x10] sm:$0xff]
  %v5516 = vld [vmem:[%s10 + $0x18] sm:$0xff]
  %v5517 = vld [vmem:[%s10 + $0x20] sm:$0xff]
  %v5518 = vld [vmem:[%s10 + $0x28] sm:$0xff]
  %v5519 = vld [vmem:[%s10 + $0x30] sm:$0xff]
  %v5520 = vld [vmem:[%s10 + $0x38] sm:$0xff]
  %v5521 = vld [vmem:[%s10 + $0x40] sm:$0xff]
  %v5522 = vld [vmem:[%s10 + $0x48] sm:$0xff]
  %v5523 = vld [vmem:[%s10 + $0x50] sm:$0xff]
  %v5524 = vld [vmem:[%s10 + $0x58] sm:$0xff]
  %v5525 = vld [vmem:[%s10 + $0x60] sm:$0xff]
  %v5526 = vld [vmem:[%s10 + $0x68] sm:$0xff]
  %v5527 = vld [vmem:[%s10 + $0x70] sm:$0xff]
  %v5528 = vld [vmem:[%s10 + $0x78] sm:$0xff]
  %v5529 = vld [vmem:[%s10 + $0x80] sm:$0xff]
  %v5530 = vld [vmem:[%s10 + $0x88] sm:$0xff]
  %v5531 = vld [vmem:[%s10 + $0x90] sm:$0xff]
  %v5532 = vld [vmem:[%s10 + $0x98] sm:$0xff]
  %v5533 = vld [vmem:[%s10 + $0xa0] sm:$0xff]
  %v5534 = vld [vmem:[%s10 + $0xa8] sm:$0xff]
  %v5535 = vld [vmem:[%s10 + $0xb0] sm:$0xff]
  %v5536 = vld [vmem:[%s10 + $0xb8] sm:$0xff]
  %v5537 = vld [vmem:[%s10 + $0xc0] sm:$0xff]
  %v5538 = vld [vmem:[%s10 + $0xc8] sm:$0xff]
  %v5539 = vld [vmem:[%s10 + $0xd0] sm:$0xff]
  %v5540 = vld [vmem:[%s10 + $0xd8] sm:$0xff]
  %v5541 = vld [vmem:[%s10 + $0xe0] sm:$0xff]
  %v5542 = vld [vmem:[%s10 + $0xe8] sm:$0xff]
  %v5543 = vld [vmem:[%s10 + $0xf0] sm:$0xff]
  %v5544 = vld [vmem:[%s10 + $0xf8] sm:$0xff]
  %v5545 = vld [vmem:[%s10 + $0x100] sm:$0xff]
  %v5546 = vld [vmem:[%s10 + $0x108] sm:$0xff]
  %v5547 = vld [vmem:[%s10 + $0x110] sm:$0xff]
  %v5548 = vld [vmem:[%s10 + $0x118] sm:$0xff]
  %v5549 = vld [vmem:[%s10 + $0x120] sm:$0xff]
  %v5550 = vld [vmem:[%s10 + $0x128] sm:$0xff]
  %v5551 = vld [vmem:[%s10 + $0x130] sm:$0xff]
  %v5552 = vld [vmem:[%s10 + $0x138] sm:$0xff]
  %v5553 = vld [vmem:[%s10 + $0x140] sm:$0xff]
  %v5554 = vld [vmem:[%s10 + $0x148] sm:$0xff]
  %v5555 = vld [vmem:[%s10 + $0x150] sm:$0xff]
  %v5556 = vld [vmem:[%s10 + $0x158] sm:$0xff]
  %v5557 = vld [vmem:[%s10 + $0x160] sm:$0xff]
  %v5558 = vld [vmem:[%s10 + $0x168] sm:$0xff]
  %v5559 = vld [vmem:[%s10 + $0x170] sm:$0xff]
  %v5560 = vld [vmem:[%s10 + $0x178] sm:$0xff]
  %v5561 = vld [vmem:[%s10 + $0x180] sm:$0xff]
  %v5562 = vld [vmem:[%s10 + $0x188] sm:$0xff]
  %v5563 = vld [vmem:[%s10 + $0x190] sm:$0xff]
  %v5564 = vld [vmem:[%s10 + $0x198] sm:$0xff]
  %v5565 = vld [vmem:[%s10 + $0x1a0] sm:$0xff]
  %v5566 = vld [vmem:[%s10 + $0x1a8] sm:$0xff]
  %v5567 = vld [vmem:[%s10 + $0x1b0] sm:$0xff]
  %v5568 = vld [vmem:[%s10 + $0x1b8] sm:$0xff]
  %v5569 = vld [vmem:[%s10 + $0x1c0] sm:$0xff]
  %v5570 = vld [vmem:[%s10 + $0x1c8] sm:$0xff]
  %v5571 = vld [vmem:[%s10 + $0x1d0] sm:$0xff]
  %v5572 = vld [vmem:[%s10 + $0x1d8] sm:$0xff]
  %v5573 = vld [vmem:[%s10 + $0x1e0] sm:$0xff]
  %v5574 = vld [vmem:[%s10 + $0x1e8] sm:$0xff]
  %v5575 = vld [vmem:[%s10 + $0x1f0] sm:$0xff]
  %v5576 = vld [vmem:[%s10 + $0x1f8] sm:$0xff]
  %v5577 = vld [vmem:[%s10 + $0x200] sm:$0xff]
  %v5578 = vld [vmem:[%s10 + $0x208] sm:$0xff]
  %v5579 = vld [vmem:[%s10 + $0x210] sm:$0xff]
  %v5580 = vld [vmem:[%s10 + $0x218] sm:$0xff]
  %v5581 = vld [vmem:[%s10 + $0x220] sm:$0xff]
  %v5582 = vld [vmem:[%s10 + $0x228] sm:$0xff]
  %v5583 = vld [vmem:[%s10 + $0x230] sm:$0xff]
  %v5584 = vld [vmem:[%s10 + $0x238] sm:$0xff]
  %v5585 = vld [vmem:[%s10 + $0x240] sm:$0xff]
  %v5586 = vld [vmem:[%s10 + $0x248] sm:$0xff]
  %v5587 = vld [vmem:[%s10 + $0x250] sm:$0xff]
  %v5588 = vld [vmem:[%s10 + $0x258] sm:$0xff]
  %v5589 = vld [vmem:[%s10 + $0x260] sm:$0xff]
  %v5590 = vld [vmem:[%s10 + $0x268] sm:$0xff]
  %v5591 = vld [vmem:[%s10 + $0x270] sm:$0xff]
  %v5592 = vld [vmem:[%s10 + $0x278] sm:$0xff]
  %v5593 = vld [vmem:[%s10 + $0x280] sm:$0xff]
  %v5594 = vld [vmem:[%s10 + $0x288] sm:$0xff]
  %v5595 = vld [vmem:[%s10 + $0x290] sm:$0xff]
  %v5596 = vld [vmem:[%s10 + $0x298] sm:$0xff]
  %v5597 = vld [vmem:[%s10 + $0x2a0] sm:$0xff]
  %v5598 = vld [vmem:[%s10 + $0x2a8] sm:$0xff]
  %v5599 = vld [vmem:[%s10 + $0x2b0] sm:$0xff]
  %v5600 = vld [vmem:[%s10 + $0x2b8] sm:$0xff]
  %v5601 = vld [vmem:[%s10 + $0x2c0] sm:$0xff]
  %v5602 = vld [vmem:[%s10 + $0x2c8] sm:$0xff]
  %v5603 = vld [vmem:[%s10 + $0x2d0] sm:$0xff]
  %v5604 = vld [vmem:[%s10 + $0x2d8] sm:$0xff]
  %v5605 = vld [vmem:[%s10 + $0x2e0] sm:$0xff]
  %v5606 = vld [vmem:[%s10 + $0x2e8] sm:$0xff]
  %v5607 = vld [vmem:[%s10 + $0x2f0] sm:$0xff]
  %v5608 = vld [vmem:[%s10 + $0x2f8] sm:$0xff]
  %v5609 = vld [vmem:[%s10 + $0x300] sm:$0xff]
  %v5610 = vld [vmem:[%s10 + $0x308] sm:$0xff]
  %v5611 = vld [vmem:[%s10 + $0x310] sm:$0xff]
  %v5612 = vld [vmem:[%s10 + $0x318] sm:$0xff]
  %v5613 = vld [vmem:[%s10 + $0x320] sm:$0xff]
  %v5614 = vld [vmem:[%s10 + $0x328] sm:$0xff]
  %v5615 = vld [vmem:[%s10 + $0x330] sm:$0xff]
  %v5616 = vld [vmem:[%s10 + $0x338] sm:$0xff]
  %v5617 = vld [vmem:[%s10 + $0x340] sm:$0xff]
  %v5618 = vld [vmem:[%s10 + $0x348] sm:$0xff]
  %v5619 = vld [vmem:[%s10 + $0x350] sm:$0xff]
  %v5620 = vld [vmem:[%s10 + $0x358] sm:$0xff]
  %v5621 = vld [vmem:[%s10 + $0x360] sm:$0xff]
  %v5622 = vld [vmem:[%s10 + $0x368] sm:$0xff]
  %v5623 = vld [vmem:[%s10 + $0x370] sm:$0xff]
  %v5624 = vld [vmem:[%s10 + $0x378] sm:$0xff]
  %v5625 = vld [vmem:[%s10 + $0x380] sm:$0xff]
  %v5626 = vld [vmem:[%s10 + $0x388] sm:$0xff]
  %v5627 = vld [vmem:[%s10 + $0x390] sm:$0xff]
  %v5628 = vld [vmem:[%s10 + $0x398] sm:$0xff]
  %v5629 = vld [vmem:[%s10 + $0x3a0] sm:$0xff]
  %v5630 = vld [vmem:[%s10 + $0x3a8] sm:$0xff]
  %v5631 = vld [vmem:[%s10 + $0x3b0] sm:$0xff]
  %v5632 = vld [vmem:[%s10 + $0x3b8] sm:$0xff]
  %v5633 = vld [vmem:[%s10 + $0x3c0] sm:$0xff]
  %v5634 = vld [vmem:[%s10 + $0x3c8] sm:$0xff]
  %v5635 = vld [vmem:[%s10 + $0x3d0] sm:$0xff]
  %v5636 = vld [vmem:[%s10 + $0x3d8] sm:$0xff]
  %v5637 = vld [vmem:[%s10 + $0x3e0] sm:$0xff]
  %v5638 = vld [vmem:[%s10 + $0x3e8] sm:$0xff]
  %v5639 = vld [vmem:[%s10 + $0x3f0] sm:$0xff]
  %v5640 = vld [vmem:[%s10 + $0x3f8] sm:$0xff]
  %v5641 = vld [vmem:[%s10 + $0x400] sm:$0xff]
  %v5642 = vld [vmem:[%s10 + $0x408] sm:$0xff]
  %v5643 = vld [vmem:[%s10 + $0x410] sm:$0xff]
  %v5644 = vld [vmem:[%s10 + $0x418] sm:$0xff]
  %v5645 = vld [vmem:[%s10 + $0x420] sm:$0xff]
  %v5646 = vld [vmem:[%s10 + $0x428] sm:$0xff]
  %v5647 = vld [vmem:[%s10 + $0x430] sm:$0xff]
  %v5648 = vld [vmem:[%s10 + $0x438] sm:$0xff]
  %v5649 = vld [vmem:[%s10 + $0x440] sm:$0xff]
  %v5650 = vld [vmem:[%s10 + $0x448] sm:$0xff]
  %v5651 = vld [vmem:[%s10 + $0x450] sm:$0xff]
  %v5652 = vld [vmem:[%s10 + $0x458] sm:$0xff]
  %v5653 = vld [vmem:[%s10 + $0x460] sm:$0xff]
  %v5654 = vld [vmem:[%s10 + $0x468] sm:$0xff]
  %v5655 = vld [vmem:[%s10 + $0x470] sm:$0xff]
  %v5656 = vld [vmem:[%s10 + $0x478] sm:$0xff]
  %v5657 = vld [vmem:[%s10 + $0x480] sm:$0xff]
  %v5658 = vld [vmem:[%s10 + $0x488] sm:$0xff]
  %v5659 = vld [vmem:[%s10 + $0x490] sm:$0xff]
  %v5660 = vld [vmem:[%s10 + $0x498] sm:$0xff]
  %v5661 = vld [vmem:[%s10 + $0x4a0] sm:$0xff]
  %v5662 = vld [vmem:[%s10 + $0x4a8] sm:$0xff]
  %v5663 = vld [vmem:[%s10 + $0x4b0] sm:$0xff]
  %v5664 = vld [vmem:[%s10 + $0x4b8] sm:$0xff]
  %v5665 = vld [vmem:[%s10 + $0x4c0] sm:$0xff]
  %v5666 = vld [vmem:[%s10 + $0x4c8] sm:$0xff]
  %v5667 = vld [vmem:[%s10 + $0x4d0] sm:$0xff]
  %v5668 = vld [vmem:[%s10 + $0x4d8] sm:$0xff]
  %v5669 = vld [vmem:[%s10 + $0x4e0] sm:$0xff]
  %v5670 = vld [vmem:[%s10 + $0x4e8] sm:$0xff]
  %v5671 = vld [vmem:[%s10 + $0x4f0] sm:$0xff]
  %v5672 = vld [vmem:[%s10 + $0x4f8] sm:$0xff]
  %v5673 = vld [vmem:[%s10 + $0x500] sm:$0xff]
  %v5674 = vld [vmem:[%s10 + $0x508] sm:$0xff]
  %v5675 = vld [vmem:[%s10 + $0x510] sm:$0xff]
  %v5676 = vld [vmem:[%s10 + $0x518] sm:$0xff]
  %v5677 = vld [vmem:[%s10 + $0x520] sm:$0xff]
  %v5678 = vld [vmem:[%s10 + $0x528] sm:$0xff]
  %v5679 = vld [vmem:[%s10 + $0x530] sm:$0xff]
  %v5680 = vld [vmem:[%s10 + $0x538] sm:$0xff]
  %v5681 = vld [vmem:[%s10 + $0x540] sm:$0xff]
  %v5682 = vld [vmem:[%s10 + $0x548] sm:$0xff]
  %v5683 = vld [vmem:[%s10 + $0x550] sm:$0xff]
  %v5684 = vld [vmem:[%s10 + $0x558] sm:$0xff]
  %v5685 = vld [vmem:[%s10 + $0x560] sm:$0xff]
  %v5686 = vld [vmem:[%s10 + $0x568] sm:$0xff]
  %v5687 = vld [vmem:[%s10 + $0x570] sm:$0xff]
  %v5688 = vld [vmem:[%s10 + $0x578] sm:$0xff]
  %v5689 = vld [vmem:[%s10 + $0x580] sm:$0xff]
  %v5690 = vld [vmem:[%s10 + $0x588] sm:$0xff]
  %v5691 = vld [vmem:[%s10 + $0x590] sm:$0xff]
  %v5692 = vld [vmem:[%s10 + $0x598] sm:$0xff]
  %v5693 = vld [vmem:[%s10 + $0x5a0] sm:$0xff]
  %v5694 = vld [vmem:[%s10 + $0x5a8] sm:$0xff]
  %v5695 = vld [vmem:[%s10 + $0x5b0] sm:$0xff]
  %v5696 = vld [vmem:[%s10 + $0x5b8] sm:$0xff]
  %v5697 = vld [vmem:[%s10 + $0x5c0] sm:$0xff]
  %v5698 = vld [vmem:[%s10 + $0x5c8] sm:$0xff]
  %v5699 = vld [vmem:[%s10 + $0x5d0] sm:$0xff]
  %v5700 = vld [vmem:[%s10 + $0x5d8] sm:$0xff]
  %v5701 = vld [vmem:[%s10 + $0x5e0] sm:$0xff]
  %v5702 = vld [vmem:[%s10 + $0x5e8] sm:$0xff]
  %v5703 = vld [vmem:[%s10 + $0x5f0] sm:$0xff]
  %v5704 = vld [vmem:[%s10 + $0x5f8] sm:$0xff]
  %v5705 = vld [vmem:[%s10 + $0x600] sm:$0xff]
  %v5706 = vld [vmem:[%s10 + $0x608] sm:$0xff]
  %v5707 = vld [vmem:[%s10 + $0x610] sm:$0xff]
  %v5708 = vld [vmem:[%s10 + $0x618] sm:$0xff]
  %v5709 = vld [vmem:[%s10 + $0x620] sm:$0xff]
  %v5710 = vld [vmem:[%s10 + $0x628] sm:$0xff]
  %v5711 = vld [vmem:[%s10 + $0x630] sm:$0xff]
  %v5712 = vld [vmem:[%s10 + $0x638] sm:$0xff]
  %v5713 = vld [vmem:[%s10 + $0x640] sm:$0xff]
  %v5714 = vld [vmem:[%s10 + $0x648] sm:$0xff]
  %v5715 = vld [vmem:[%s10 + $0x650] sm:$0xff]
  %v5716 = vld [vmem:[%s10 + $0x658] sm:$0xff]
  %v5717 = vld [vmem:[%s10 + $0x660] sm:$0xff]
  %v5718 = vld [vmem:[%s10 + $0x668] sm:$0xff]
  %v5719 = vld [vmem:[%s10 + $0x670] sm:$0xff]
  %v5720 = vld [vmem:[%s10 + $0x678] sm:$0xff]
  %v5721 = vld [vmem:[%s10 + $0x680] sm:$0xff]
  %v5722 = vld [vmem:[%s10 + $0x688] sm:$0xff]
  %v5723 = vld [vmem:[%s10 + $0x690] sm:$0xff]
  %v5724 = vld [vmem:[%s10 + $0x698] sm:$0xff]
  %v5725 = vld [vmem:[%s10 + $0x6a0] sm:$0xff]
  %v5726 = vld [vmem:[%s10 + $0x6a8] sm:$0xff]
  %v5727 = vld [vmem:[%s10 + $0x6b0] sm:$0xff]
  %v5728 = vld [vmem:[%s10 + $0x6b8] sm:$0xff]
  %v5729 = vld [vmem:[%s10 + $0x6c0] sm:$0xff]
  %v5730 = vld [vmem:[%s10 + $0x6c8] sm:$0xff]
  %v5731 = vld [vmem:[%s10 + $0x6d0] sm:$0xff]
  %v5732 = vld [vmem:[%s10 + $0x6d8] sm:$0xff]
  %v5733 = vld [vmem:[%s10 + $0x6e0] sm:$0xff]
  %v5734 = vld [vmem:[%s10 + $0x6e8] sm:$0xff]
  %v5735 = vld [vmem:[%s10 + $0x6f0] sm:$0xff]
  %v5736 = vld [vmem:[%s10 + $0x6f8] sm:$0xff]
  %v5737 = vld [vmem:[%s10 + $0x700] sm:$0xff]
  %v5738 = vld [vmem:[%s10 + $0x708] sm:$0xff]
  %v5739 = vld [vmem:[%s10 + $0x710] sm:$0xff]
  %v5740 = vld [vmem:[%s10 + $0x718] sm:$0xff]
  %v5741 = vld [vmem:[%s10 + $0x720] sm:$0xff]
  %v5742 = vld [vmem:[%s10 + $0x728] sm:$0xff]
  %v5743 = vld [vmem:[%s10 + $0x730] sm:$0xff]
  %v5744 = vld [vmem:[%s10 + $0x738] sm:$0xff]
  %v5745 = vld [vmem:[%s10 + $0x740] sm:$0xff]
  %v5746 = vld [vmem:[%s10 + $0x748] sm:$0xff]
  %v5747 = vld [vmem:[%s10 + $0x750] sm:$0xff]
  %v5748 = vld [vmem:[%s10 + $0x758] sm:$0xff]
  %v5749 = vld [vmem:[%s10 + $0x760] sm:$0xff]
  %v5750 = vld [vmem:[%s10 + $0x768] sm:$0xff]
  %v5751 = vld [vmem:[%s10 + $0x770] sm:$0xff]
  %v5752 = vld [vmem:[%s10 + $0x778] sm:$0xff]
  %v5753 = vld [vmem:[%s10 + $0x780] sm:$0xff]
  %v5754 = vld [vmem:[%s10 + $0x788] sm:$0xff]
  %v5755 = vld [vmem:[%s10 + $0x790] sm:$0xff]
  %v5756 = vld [vmem:[%s10 + $0x798] sm:$0xff]
  %v5757 = vld [vmem:[%s10 + $0x7a0] sm:$0xff]
  %v5758 = vld [vmem:[%s10 + $0x7a8] sm:$0xff]
  %v5759 = vld [vmem:[%s10 + $0x7b0] sm:$0xff]
  %v5760 = vld [vmem:[%s10 + $0x7b8] sm:$0xff]
  %v5761 = vld [vmem:[%s10 + $0x7c0] sm:$0xff]
  %v5762 = vld [vmem:[%s10 + $0x7c8] sm:$0xff]
  %v5763 = vld [vmem:[%s10 + $0x7d0] sm:$0xff]
  %v5764 = vld [vmem:[%s10 + $0x7d8] sm:$0xff]
  %v5765 = vld [vmem:[%s10 + $0x7e0] sm:$0xff]
  %v5766 = vld [vmem:[%s10 + $0x7e8] sm:$0xff]
  %v5767 = vld [vmem:[%s10 + $0x7f0] sm:$0xff]
  %v5768 = vld [vmem:[%s10 + $0x7f8] sm:$0xff]
  %v6025 = vunpack.c.l.b16 %v5513
  %v6026 = vunpack.c.h.b16 %v5513
  %v6027 = vunpack.c.l.b16 %v5514
  %v6028 = vunpack.c.h.b16 %v5514
  %v6029 = vunpack.c.l.b16 %v5515
  %v6030 = vunpack.c.h.b16 %v5515
  %v6031 = vunpack.c.l.b16 %v5516
  %v6032 = vunpack.c.h.b16 %v5516
  %v6033 = vunpack.c.l.b16 %v5517
  %v6034 = vunpack.c.h.b16 %v5517
  %v6035 = vunpack.c.l.b16 %v5518
  %v6036 = vunpack.c.h.b16 %v5518
  %v6037 = vunpack.c.l.b16 %v5519
  %v6038 = vunpack.c.h.b16 %v5519
  %v6039 = vunpack.c.l.b16 %v5520
  %v6040 = vunpack.c.h.b16 %v5520
  %v6041 = vunpack.c.l.b16 %v5521
  %v6042 = vunpack.c.h.b16 %v5521
  %v6043 = vunpack.c.l.b16 %v5522
  %v6044 = vunpack.c.h.b16 %v5522
  %v6045 = vunpack.c.l.b16 %v5523
  %v6046 = vunpack.c.h.b16 %v5523
  %v6047 = vunpack.c.l.b16 %v5524
  %v6048 = vunpack.c.h.b16 %v5524
  %v6049 = vunpack.c.l.b16 %v5525
  %v6050 = vunpack.c.h.b16 %v5525
  %v6051 = vunpack.c.l.b16 %v5526
  %v6052 = vunpack.c.h.b16 %v5526
  %v6053 = vunpack.c.l.b16 %v5527
  %v6054 = vunpack.c.h.b16 %v5527
  %v6055 = vunpack.c.l.b16 %v5528
  %v6056 = vunpack.c.h.b16 %v5528
  %v6057 = vunpack.c.l.b16 %v5529
  %v6058 = vunpack.c.h.b16 %v5529
  %v6059 = vunpack.c.l.b16 %v5530
  %v6060 = vunpack.c.h.b16 %v5530
  %v6061 = vunpack.c.l.b16 %v5531
  %v6062 = vunpack.c.h.b16 %v5531
  %v6063 = vunpack.c.l.b16 %v5532
  %v6064 = vunpack.c.h.b16 %v5532
  %v6065 = vunpack.c.l.b16 %v5533
  %v6066 = vunpack.c.h.b16 %v5533
  %v6067 = vunpack.c.l.b16 %v5534
  %v6068 = vunpack.c.h.b16 %v5534
  %v6069 = vunpack.c.l.b16 %v5535
  %v6070 = vunpack.c.h.b16 %v5535
  %v6071 = vunpack.c.l.b16 %v5536
  %v6072 = vunpack.c.h.b16 %v5536
  %v6073 = vunpack.c.l.b16 %v5537
  %v6074 = vunpack.c.h.b16 %v5537
  %v6075 = vunpack.c.l.b16 %v5538
  %v6076 = vunpack.c.h.b16 %v5538
  %v6077 = vunpack.c.l.b16 %v5539
  %v6078 = vunpack.c.h.b16 %v5539
  %v6079 = vunpack.c.l.b16 %v5540
  %v6080 = vunpack.c.h.b16 %v5540
  %v6081 = vunpack.c.l.b16 %v5541
  %v6082 = vunpack.c.h.b16 %v5541
  %v6083 = vunpack.c.l.b16 %v5542
  %v6084 = vunpack.c.h.b16 %v5542
  %v6085 = vunpack.c.l.b16 %v5543
  %v6086 = vunpack.c.h.b16 %v5543
  %v6087 = vunpack.c.l.b16 %v5544
  %v6088 = vunpack.c.h.b16 %v5544
  %v6089 = vunpack.c.l.b16 %v5545
  %v6090 = vunpack.c.h.b16 %v5545
  %v6091 = vunpack.c.l.b16 %v5546
  %v6092 = vunpack.c.h.b16 %v5546
  %v6093 = vunpack.c.l.b16 %v5547
  %v6094 = vunpack.c.h.b16 %v5547
  %v6095 = vunpack.c.l.b16 %v5548
  %v6096 = vunpack.c.h.b16 %v5548
  %v6097 = vunpack.c.l.b16 %v5549
  %v6098 = vunpack.c.h.b16 %v5549
  %v6099 = vunpack.c.l.b16 %v5550
  %v6100 = vunpack.c.h.b16 %v5550
  %v6101 = vunpack.c.l.b16 %v5551
  %v6102 = vunpack.c.h.b16 %v5551
  %v6103 = vunpack.c.l.b16 %v5552
  %v6104 = vunpack.c.h.b16 %v5552
  %v6105 = vunpack.c.l.b16 %v5553
  %v6106 = vunpack.c.h.b16 %v5553
  %v6107 = vunpack.c.l.b16 %v5554
  %v6108 = vunpack.c.h.b16 %v5554
  %v6109 = vunpack.c.l.b16 %v5555
  %v6110 = vunpack.c.h.b16 %v5555
  %v6111 = vunpack.c.l.b16 %v5556
  %v6112 = vunpack.c.h.b16 %v5556
  %v6113 = vunpack.c.l.b16 %v5557
  %v6114 = vunpack.c.h.b16 %v5557
  %v6115 = vunpack.c.l.b16 %v5558
  %v6116 = vunpack.c.h.b16 %v5558
  %v6117 = vunpack.c.l.b16 %v5559
  %v6118 = vunpack.c.h.b16 %v5559
  %v6119 = vunpack.c.l.b16 %v5560
  %v6120 = vunpack.c.h.b16 %v5560
  %v6121 = vunpack.c.l.b16 %v5561
  %v6122 = vunpack.c.h.b16 %v5561
  %v6123 = vunpack.c.l.b16 %v5562
  %v6124 = vunpack.c.h.b16 %v5562
  %v6125 = vunpack.c.l.b16 %v5563
  %v6126 = vunpack.c.h.b16 %v5563
  %v6127 = vunpack.c.l.b16 %v5564
  %v6128 = vunpack.c.h.b16 %v5564
  %v6129 = vunpack.c.l.b16 %v5565
  %v6130 = vunpack.c.h.b16 %v5565
  %v6131 = vunpack.c.l.b16 %v5566
  %v6132 = vunpack.c.h.b16 %v5566
  %v6133 = vunpack.c.l.b16 %v5567
  %v6134 = vunpack.c.h.b16 %v5567
  %v6135 = vunpack.c.l.b16 %v5568
  %v6136 = vunpack.c.h.b16 %v5568
  %v6137 = vunpack.c.l.b16 %v5569
  %v6138 = vunpack.c.h.b16 %v5569
  %v6139 = vunpack.c.l.b16 %v5570
  %v6140 = vunpack.c.h.b16 %v5570
  %v6141 = vunpack.c.l.b16 %v5571
  %v6142 = vunpack.c.h.b16 %v5571
  %v6143 = vunpack.c.l.b16 %v5572
  %v6144 = vunpack.c.h.b16 %v5572
  %v6145 = vunpack.c.l.b16 %v5573
  %v6146 = vunpack.c.h.b16 %v5573
  %v6147 = vunpack.c.l.b16 %v5574
  %v6148 = vunpack.c.h.b16 %v5574
  %v6149 = vunpack.c.l.b16 %v5575
  %v6150 = vunpack.c.h.b16 %v5575
  %v6151 = vunpack.c.l.b16 %v5576
  %v6152 = vunpack.c.h.b16 %v5576
  %v6153 = vunpack.c.l.b16 %v5577
  %v6154 = vunpack.c.h.b16 %v5577
  %v6155 = vunpack.c.l.b16 %v5578
  %v6156 = vunpack.c.h.b16 %v5578
  %v6157 = vunpack.c.l.b16 %v5579
  %v6158 = vunpack.c.h.b16 %v5579
  %v6159 = vunpack.c.l.b16 %v5580
  %v6160 = vunpack.c.h.b16 %v5580
  %v6161 = vunpack.c.l.b16 %v5581
  %v6162 = vunpack.c.h.b16 %v5581
  %v6163 = vunpack.c.l.b16 %v5582
  %v6164 = vunpack.c.h.b16 %v5582
  %v6165 = vunpack.c.l.b16 %v5583
  %v6166 = vunpack.c.h.b16 %v5583
  %v6167 = vunpack.c.l.b16 %v5584
  %v6168 = vunpack.c.h.b16 %v5584
  %v6169 = vunpack.c.l.b16 %v5585
  %v6170 = vunpack.c.h.b16 %v5585
  %v6171 = vunpack.c.l.b16 %v5586
  %v6172 = vunpack.c.h.b16 %v5586
  %v6173 = vunpack.c.l.b16 %v5587
  %v6174 = vunpack.c.h.b16 %v5587
  %v6175 = vunpack.c.l.b16 %v5588
  %v6176 = vunpack.c.h.b16 %v5588
  %v6177 = vunpack.c.l.b16 %v5589
  %v6178 = vunpack.c.h.b16 %v5589
  %v6179 = vunpack.c.l.b16 %v5590
  %v6180 = vunpack.c.h.b16 %v5590
  %v6181 = vunpack.c.l.b16 %v5591
  %v6182 = vunpack.c.h.b16 %v5591
  %v6183 = vunpack.c.l.b16 %v5592
  %v6184 = vunpack.c.h.b16 %v5592
  %v6185 = vunpack.c.l.b16 %v5593
  %v6186 = vunpack.c.h.b16 %v5593
  %v6187 = vunpack.c.l.b16 %v5594
  %v6188 = vunpack.c.h.b16 %v5594
  %v6189 = vunpack.c.l.b16 %v5595
  %v6190 = vunpack.c.h.b16 %v5595
  %v6191 = vunpack.c.l.b16 %v5596
  %v6192 = vunpack.c.h.b16 %v5596
  %v6193 = vunpack.c.l.b16 %v5597
  %v6194 = vunpack.c.h.b16 %v5597
  %v6195 = vunpack.c.l.b16 %v5598
  %v6196 = vunpack.c.h.b16 %v5598
  %v6197 = vunpack.c.l.b16 %v5599
  %v6198 = vunpack.c.h.b16 %v5599
  %v6199 = vunpack.c.l.b16 %v5600
  %v6200 = vunpack.c.h.b16 %v5600
  %v6201 = vunpack.c.l.b16 %v5601
  %v6202 = vunpack.c.h.b16 %v5601
  %v6203 = vunpack.c.l.b16 %v5602
  %v6204 = vunpack.c.h.b16 %v5602
  %v6205 = vunpack.c.l.b16 %v5603
  %v6206 = vunpack.c.h.b16 %v5603
  %v6207 = vunpack.c.l.b16 %v5604
  %v6208 = vunpack.c.h.b16 %v5604
  %v6209 = vunpack.c.l.b16 %v5605
  %v6210 = vunpack.c.h.b16 %v5605
  %v6211 = vunpack.c.l.b16 %v5606
  %v6212 = vunpack.c.h.b16 %v5606
  %v6213 = vunpack.c.l.b16 %v5607
  %v6214 = vunpack.c.h.b16 %v5607
  %v6215 = vunpack.c.l.b16 %v5608
  %v6216 = vunpack.c.h.b16 %v5608
  %v6217 = vunpack.c.l.b16 %v5609
  %v6218 = vunpack.c.h.b16 %v5609
  %v6219 = vunpack.c.l.b16 %v5610
  %v6220 = vunpack.c.h.b16 %v5610
  %v6221 = vunpack.c.l.b16 %v5611
  %v6222 = vunpack.c.h.b16 %v5611
  %v6223 = vunpack.c.l.b16 %v5612
  %v6224 = vunpack.c.h.b16 %v5612
  %v6225 = vunpack.c.l.b16 %v5613
  %v6226 = vunpack.c.h.b16 %v5613
  %v6227 = vunpack.c.l.b16 %v5614
  %v6228 = vunpack.c.h.b16 %v5614
  %v6229 = vunpack.c.l.b16 %v5615
  %v6230 = vunpack.c.h.b16 %v5615
  %v6231 = vunpack.c.l.b16 %v5616
  %v6232 = vunpack.c.h.b16 %v5616
  %v6233 = vunpack.c.l.b16 %v5617
  %v6234 = vunpack.c.h.b16 %v5617
  %v6235 = vunpack.c.l.b16 %v5618
  %v6236 = vunpack.c.h.b16 %v5618
  %v6237 = vunpack.c.l.b16 %v5619
  %v6238 = vunpack.c.h.b16 %v5619
  %v6239 = vunpack.c.l.b16 %v5620
  %v6240 = vunpack.c.h.b16 %v5620
  %v6241 = vunpack.c.l.b16 %v5621
  %v6242 = vunpack.c.h.b16 %v5621
  %v6243 = vunpack.c.l.b16 %v5622
  %v6244 = vunpack.c.h.b16 %v5622
  %v6245 = vunpack.c.l.b16 %v5623
  %v6246 = vunpack.c.h.b16 %v5623
  %v6247 = vunpack.c.l.b16 %v5624
  %v6248 = vunpack.c.h.b16 %v5624
  %v6249 = vunpack.c.l.b16 %v5625
  %v6250 = vunpack.c.h.b16 %v5625
  %v6251 = vunpack.c.l.b16 %v5626
  %v6252 = vunpack.c.h.b16 %v5626
  %v6253 = vunpack.c.l.b16 %v5627
  %v6254 = vunpack.c.h.b16 %v5627
  %v6255 = vunpack.c.l.b16 %v5628
  %v6256 = vunpack.c.h.b16 %v5628
  %v6257 = vunpack.c.l.b16 %v5629
  %v6258 = vunpack.c.h.b16 %v5629
  %v6259 = vunpack.c.l.b16 %v5630
  %v6260 = vunpack.c.h.b16 %v5630
  %v6261 = vunpack.c.l.b16 %v5631
  %v6262 = vunpack.c.h.b16 %v5631
  %v6263 = vunpack.c.l.b16 %v5632
  %v6264 = vunpack.c.h.b16 %v5632
  %v6265 = vunpack.c.l.b16 %v5633
  %v6266 = vunpack.c.h.b16 %v5633
  %v6267 = vunpack.c.l.b16 %v5634
  %v6268 = vunpack.c.h.b16 %v5634
  %v6269 = vunpack.c.l.b16 %v5635
  %v6270 = vunpack.c.h.b16 %v5635
  %v6271 = vunpack.c.l.b16 %v5636
  %v6272 = vunpack.c.h.b16 %v5636
  %v6273 = vunpack.c.l.b16 %v5637
  %v6274 = vunpack.c.h.b16 %v5637
  %v6275 = vunpack.c.l.b16 %v5638
  %v6276 = vunpack.c.h.b16 %v5638
  %v6277 = vunpack.c.l.b16 %v5639
  %v6278 = vunpack.c.h.b16 %v5639
  %v6279 = vunpack.c.l.b16 %v5640
  %v6280 = vunpack.c.h.b16 %v5640
  %v6281 = vunpack.c.l.b16 %v5641
  %v6282 = vunpack.c.h.b16 %v5641
  %v6283 = vunpack.c.l.b16 %v5642
  %v6284 = vunpack.c.h.b16 %v5642
  %v6285 = vunpack.c.l.b16 %v5643
  %v6286 = vunpack.c.h.b16 %v5643
  %v6287 = vunpack.c.l.b16 %v5644
  %v6288 = vunpack.c.h.b16 %v5644
  %v6289 = vunpack.c.l.b16 %v5645
  %v6290 = vunpack.c.h.b16 %v5645
  %v6291 = vunpack.c.l.b16 %v5646
  %v6292 = vunpack.c.h.b16 %v5646
  %v6293 = vunpack.c.l.b16 %v5647
  %v6294 = vunpack.c.h.b16 %v5647
  %v6295 = vunpack.c.l.b16 %v5648
  %v6296 = vunpack.c.h.b16 %v5648
  %v6297 = vunpack.c.l.b16 %v5649
  %v6298 = vunpack.c.h.b16 %v5649
  %v6299 = vunpack.c.l.b16 %v5650
  %v6300 = vunpack.c.h.b16 %v5650
  %v6301 = vunpack.c.l.b16 %v5651
  %v6302 = vunpack.c.h.b16 %v5651
  %v6303 = vunpack.c.l.b16 %v5652
  %v6304 = vunpack.c.h.b16 %v5652
  %v6305 = vunpack.c.l.b16 %v5653
  %v6306 = vunpack.c.h.b16 %v5653
  %v6307 = vunpack.c.l.b16 %v5654
  %v6308 = vunpack.c.h.b16 %v5654
  %v6309 = vunpack.c.l.b16 %v5655
  %v6310 = vunpack.c.h.b16 %v5655
  %v6311 = vunpack.c.l.b16 %v5656
  %v6312 = vunpack.c.h.b16 %v5656
  %v6313 = vunpack.c.l.b16 %v5657
  %v6314 = vunpack.c.h.b16 %v5657
  %v6315 = vunpack.c.l.b16 %v5658
  %v6316 = vunpack.c.h.b16 %v5658
  %v6317 = vunpack.c.l.b16 %v5659
  %v6318 = vunpack.c.h.b16 %v5659
  %v6319 = vunpack.c.l.b16 %v5660
  %v6320 = vunpack.c.h.b16 %v5660
  %v6321 = vunpack.c.l.b16 %v5661
  %v6322 = vunpack.c.h.b16 %v5661
  %v6323 = vunpack.c.l.b16 %v5662
  %v6324 = vunpack.c.h.b16 %v5662
  %v6325 = vunpack.c.l.b16 %v5663
  %v6326 = vunpack.c.h.b16 %v5663
  %v6327 = vunpack.c.l.b16 %v5664
  %v6328 = vunpack.c.h.b16 %v5664
  %v6329 = vunpack.c.l.b16 %v5665
  %v6330 = vunpack.c.h.b16 %v5665
  %v6331 = vunpack.c.l.b16 %v5666
  %v6332 = vunpack.c.h.b16 %v5666
  %v6333 = vunpack.c.l.b16 %v5667
  %v6334 = vunpack.c.h.b16 %v5667
  %v6335 = vunpack.c.l.b16 %v5668
  %v6336 = vunpack.c.h.b16 %v5668
  %v6337 = vunpack.c.l.b16 %v5669
  %v6338 = vunpack.c.h.b16 %v5669
  %v6339 = vunpack.c.l.b16 %v5670
  %v6340 = vunpack.c.h.b16 %v5670
  %v6341 = vunpack.c.l.b16 %v5671
  %v6342 = vunpack.c.h.b16 %v5671
  %v6343 = vunpack.c.l.b16 %v5672
  %v6344 = vunpack.c.h.b16 %v5672
  %v6345 = vunpack.c.l.b16 %v5673
  %v6346 = vunpack.c.h.b16 %v5673
  %v6347 = vunpack.c.l.b16 %v5674
  %v6348 = vunpack.c.h.b16 %v5674
  %v6349 = vunpack.c.l.b16 %v5675
  %v6350 = vunpack.c.h.b16 %v5675
  %v6351 = vunpack.c.l.b16 %v5676
  %v6352 = vunpack.c.h.b16 %v5676
  %v6353 = vunpack.c.l.b16 %v5677
  %v6354 = vunpack.c.h.b16 %v5677
  %v6355 = vunpack.c.l.b16 %v5678
  %v6356 = vunpack.c.h.b16 %v5678
  %v6357 = vunpack.c.l.b16 %v5679
  %v6358 = vunpack.c.h.b16 %v5679
  %v6359 = vunpack.c.l.b16 %v5680
  %v6360 = vunpack.c.h.b16 %v5680
  %v6361 = vunpack.c.l.b16 %v5681
  %v6362 = vunpack.c.h.b16 %v5681
  %v6363 = vunpack.c.l.b16 %v5682
  %v6364 = vunpack.c.h.b16 %v5682
  %v6365 = vunpack.c.l.b16 %v5683
  %v6366 = vunpack.c.h.b16 %v5683
  %v6367 = vunpack.c.l.b16 %v5684
  %v6368 = vunpack.c.h.b16 %v5684
  %v6369 = vunpack.c.l.b16 %v5685
  %v6370 = vunpack.c.h.b16 %v5685
  %v6371 = vunpack.c.l.b16 %v5686
  %v6372 = vunpack.c.h.b16 %v5686
  %v6373 = vunpack.c.l.b16 %v5687
  %v6374 = vunpack.c.h.b16 %v5687
  %v6375 = vunpack.c.l.b16 %v5688
  %v6376 = vunpack.c.h.b16 %v5688
  %v6377 = vunpack.c.l.b16 %v5689
  %v6378 = vunpack.c.h.b16 %v5689
  %v6379 = vunpack.c.l.b16 %v5690
  %v6380 = vunpack.c.h.b16 %v5690
  %v6381 = vunpack.c.l.b16 %v5691
  %v6382 = vunpack.c.h.b16 %v5691
  %v6383 = vunpack.c.l.b16 %v5692
  %v6384 = vunpack.c.h.b16 %v5692
  %v6385 = vunpack.c.l.b16 %v5693
  %v6386 = vunpack.c.h.b16 %v5693
  %v6387 = vunpack.c.l.b16 %v5694
  %v6388 = vunpack.c.h.b16 %v5694
  %v6389 = vunpack.c.l.b16 %v5695
  %v6390 = vunpack.c.h.b16 %v5695
  %v6391 = vunpack.c.l.b16 %v5696
  %v6392 = vunpack.c.h.b16 %v5696
  %v6393 = vunpack.c.l.b16 %v5697
  %v6394 = vunpack.c.h.b16 %v5697
  %v6395 = vunpack.c.l.b16 %v5698
  %v6396 = vunpack.c.h.b16 %v5698
  %v6397 = vunpack.c.l.b16 %v5699
  %v6398 = vunpack.c.h.b16 %v5699
  %v6399 = vunpack.c.l.b16 %v5700
  %v6400 = vunpack.c.h.b16 %v5700
  %v6401 = vunpack.c.l.b16 %v5701
  %v6402 = vunpack.c.h.b16 %v5701
  %v6403 = vunpack.c.l.b16 %v5702
  %v6404 = vunpack.c.h.b16 %v5702
  %v6405 = vunpack.c.l.b16 %v5703
  %v6406 = vunpack.c.h.b16 %v5703
  %v6407 = vunpack.c.l.b16 %v5704
  %v6408 = vunpack.c.h.b16 %v5704
  %v6409 = vunpack.c.l.b16 %v5705
  %v6410 = vunpack.c.h.b16 %v5705
  %v6411 = vunpack.c.l.b16 %v5706
  %v6412 = vunpack.c.h.b16 %v5706
  %v6413 = vunpack.c.l.b16 %v5707
  %v6414 = vunpack.c.h.b16 %v5707
  %v6415 = vunpack.c.l.b16 %v5708
  %v6416 = vunpack.c.h.b16 %v5708
  %v6417 = vunpack.c.l.b16 %v5709
  %v6418 = vunpack.c.h.b16 %v5709
  %v6419 = vunpack.c.l.b16 %v5710
  %v6420 = vunpack.c.h.b16 %v5710
  %v6421 = vunpack.c.l.b16 %v5711
  %v6422 = vunpack.c.h.b16 %v5711
  %v6423 = vunpack.c.l.b16 %v5712
  %v6424 = vunpack.c.h.b16 %v5712
  %v6425 = vunpack.c.l.b16 %v5713
  %v6426 = vunpack.c.h.b16 %v5713
  %v6427 = vunpack.c.l.b16 %v5714
  %v6428 = vunpack.c.h.b16 %v5714
  %v6429 = vunpack.c.l.b16 %v5715
  %v6430 = vunpack.c.h.b16 %v5715
  %v6431 = vunpack.c.l.b16 %v5716
  %v6432 = vunpack.c.h.b16 %v5716
  %v6433 = vunpack.c.l.b16 %v5717
  %v6434 = vunpack.c.h.b16 %v5717
  %v6435 = vunpack.c.l.b16 %v5718
  %v6436 = vunpack.c.h.b16 %v5718
  %v6437 = vunpack.c.l.b16 %v5719
  %v6438 = vunpack.c.h.b16 %v5719
  %v6439 = vunpack.c.l.b16 %v5720
  %v6440 = vunpack.c.h.b16 %v5720
  %v6441 = vunpack.c.l.b16 %v5721
  %v6442 = vunpack.c.h.b16 %v5721
  %v6443 = vunpack.c.l.b16 %v5722
  %v6444 = vunpack.c.h.b16 %v5722
  %v6445 = vunpack.c.l.b16 %v5723
  %v6446 = vunpack.c.h.b16 %v5723
  %v6447 = vunpack.c.l.b16 %v5724
  %v6448 = vunpack.c.h.b16 %v5724
  %v6449 = vunpack.c.l.b16 %v5725
  %v6450 = vunpack.c.h.b16 %v5725
  %v6451 = vunpack.c.l.b16 %v5726
  %v6452 = vunpack.c.h.b16 %v5726
  %v6453 = vunpack.c.l.b16 %v5727
  %v6454 = vunpack.c.h.b16 %v5727
  %v6455 = vunpack.c.l.b16 %v5728
  %v6456 = vunpack.c.h.b16 %v5728
  %v6457 = vunpack.c.l.b16 %v5729
  %v6458 = vunpack.c.h.b16 %v5729
  %v6459 = vunpack.c.l.b16 %v5730
  %v6460 = vunpack.c.h.b16 %v5730
  %v6461 = vunpack.c.l.b16 %v5731
  %v6462 = vunpack.c.h.b16 %v5731
  %v6463 = vunpack.c.l.b16 %v5732
  %v6464 = vunpack.c.h.b16 %v5732
  %v6465 = vunpack.c.l.b16 %v5733
  %v6466 = vunpack.c.h.b16 %v5733
  %v6467 = vunpack.c.l.b16 %v5734
  %v6468 = vunpack.c.h.b16 %v5734
  %v6469 = vunpack.c.l.b16 %v5735
  %v6470 = vunpack.c.h.b16 %v5735
  %v6471 = vunpack.c.l.b16 %v5736
  %v6472 = vunpack.c.h.b16 %v5736
  %v6473 = vunpack.c.l.b16 %v5737
  %v6474 = vunpack.c.h.b16 %v5737
  %v6475 = vunpack.c.l.b16 %v5738
  %v6476 = vunpack.c.h.b16 %v5738
  %v6477 = vunpack.c.l.b16 %v5739
  %v6478 = vunpack.c.h.b16 %v5739
  %v6479 = vunpack.c.l.b16 %v5740
  %v6480 = vunpack.c.h.b16 %v5740
  %v6481 = vunpack.c.l.b16 %v5741
  %v6482 = vunpack.c.h.b16 %v5741
  %v6483 = vunpack.c.l.b16 %v5742
  %v6484 = vunpack.c.h.b16 %v5742
  %v6485 = vunpack.c.l.b16 %v5743
  %v6486 = vunpack.c.h.b16 %v5743
  %v6487 = vunpack.c.l.b16 %v5744
  %v6488 = vunpack.c.h.b16 %v5744
  %v6489 = vunpack.c.l.b16 %v5745
  %v6490 = vunpack.c.h.b16 %v5745
  %v6491 = vunpack.c.l.b16 %v5746
  %v6492 = vunpack.c.h.b16 %v5746
  %v6493 = vunpack.c.l.b16 %v5747
  %v6494 = vunpack.c.h.b16 %v5747
  %v6495 = vunpack.c.l.b16 %v5748
  %v6496 = vunpack.c.h.b16 %v5748
  %v6497 = vunpack.c.l.b16 %v5749
  %v6498 = vunpack.c.h.b16 %v5749
  %v6499 = vunpack.c.l.b16 %v5750
  %v6500 = vunpack.c.h.b16 %v5750
  %v6501 = vunpack.c.l.b16 %v5751
  %v6502 = vunpack.c.h.b16 %v5751
  %v6503 = vunpack.c.l.b16 %v5752
  %v6504 = vunpack.c.h.b16 %v5752
  %v6505 = vunpack.c.l.b16 %v5753
  %v6506 = vunpack.c.h.b16 %v5753
  %v6507 = vunpack.c.l.b16 %v5754
  %v6508 = vunpack.c.h.b16 %v5754
  %v6509 = vunpack.c.l.b16 %v5755
  %v6510 = vunpack.c.h.b16 %v5755
  %v6511 = vunpack.c.l.b16 %v5756
  %v6512 = vunpack.c.h.b16 %v5756
  %v6513 = vunpack.c.l.b16 %v5757
  %v6514 = vunpack.c.h.b16 %v5757
  %v6515 = vunpack.c.l.b16 %v5758
  %v6516 = vunpack.c.h.b16 %v5758
  %v6517 = vunpack.c.l.b16 %v5759
  %v6518 = vunpack.c.h.b16 %v5759
  %v6519 = vunpack.c.l.b16 %v5760
  %v6520 = vunpack.c.h.b16 %v5760
  %v6521 = vunpack.c.l.b16 %v5761
  %v6522 = vunpack.c.h.b16 %v5761
  %v6523 = vunpack.c.l.b16 %v5762
  %v6524 = vunpack.c.h.b16 %v5762
  %v6525 = vunpack.c.l.b16 %v5763
  %v6526 = vunpack.c.h.b16 %v5763
  %v6527 = vunpack.c.l.b16 %v5764
  %v6528 = vunpack.c.h.b16 %v5764
  %v6529 = vunpack.c.l.b16 %v5765
  %v6530 = vunpack.c.h.b16 %v5765
  %v6531 = vunpack.c.l.b16 %v5766
  %v6532 = vunpack.c.h.b16 %v5766
  %v6533 = vunpack.c.l.b16 %v5767
  %v6534 = vunpack.c.h.b16 %v5767
  %v6535 = vunpack.c.l.b16 %v5768
  %v6536 = vunpack.c.h.b16 %v5768
  %v6537 = vpack.c.b16 %v6033, %v6025
  %v6538 = vpack.c.b16 %v6034, %v6026
  %v6539 = vpack.c.b16 %v6035, %v6027
  %v6540 = vpack.c.b16 %v6036, %v6028
  %v6541 = vpack.c.b16 %v6037, %v6029
  %v6542 = vpack.c.b16 %v6038, %v6030
  %v6543 = vpack.c.b16 %v6039, %v6031
  %v6544 = vpack.c.b16 %v6040, %v6032
  %v6545 = vpack.c.b16 %v6049, %v6041
  %v6546 = vpack.c.b16 %v6050, %v6042
  %v6547 = vpack.c.b16 %v6051, %v6043
  %v6548 = vpack.c.b16 %v6052, %v6044
  %v6549 = vpack.c.b16 %v6053, %v6045
  %v6550 = vpack.c.b16 %v6054, %v6046
  %v6551 = vpack.c.b16 %v6055, %v6047
  %v6552 = vpack.c.b16 %v6056, %v6048
  %v6553 = vpack.c.b16 %v6065, %v6057
  %v6554 = vpack.c.b16 %v6066, %v6058
  %v6555 = vpack.c.b16 %v6067, %v6059
  %v6556 = vpack.c.b16 %v6068, %v6060
  %v6557 = vpack.c.b16 %v6069, %v6061
  %v6558 = vpack.c.b16 %v6070, %v6062
  %v6559 = vpack.c.b16 %v6071, %v6063
  %v6560 = vpack.c.b16 %v6072, %v6064
  %v6561 = vpack.c.b16 %v6081, %v6073
  %v6562 = vpack.c.b16 %v6082, %v6074
  %v6563 = vpack.c.b16 %v6083, %v6075
  %v6564 = vpack.c.b16 %v6084, %v6076
  %v6565 = vpack.c.b16 %v6085, %v6077
  %v6566 = vpack.c.b16 %v6086, %v6078
  %v6567 = vpack.c.b16 %v6087, %v6079
  %v6568 = vpack.c.b16 %v6088, %v6080
  %v6569 = vpack.c.b16 %v6097, %v6089
  %v6570 = vpack.c.b16 %v6098, %v6090
  %v6571 = vpack.c.b16 %v6099, %v6091
  %v6572 = vpack.c.b16 %v6100, %v6092
  %v6573 = vpack.c.b16 %v6101, %v6093
  %v6574 = vpack.c.b16 %v6102, %v6094
  %v6575 = vpack.c.b16 %v6103, %v6095
  %v6576 = vpack.c.b16 %v6104, %v6096
  %v6577 = vpack.c.b16 %v6113, %v6105
  %v6578 = vpack.c.b16 %v6114, %v6106
  %v6579 = vpack.c.b16 %v6115, %v6107
  %v6580 = vpack.c.b16 %v6116, %v6108
  %v6581 = vpack.c.b16 %v6117, %v6109
  %v6582 = vpack.c.b16 %v6118, %v6110
  %v6583 = vpack.c.b16 %v6119, %v6111
  %v6584 = vpack.c.b16 %v6120, %v6112
  %v6585 = vpack.c.b16 %v6129, %v6121
  %v6586 = vpack.c.b16 %v6130, %v6122
  %v6587 = vpack.c.b16 %v6131, %v6123
  %v6588 = vpack.c.b16 %v6132, %v6124
  %v6589 = vpack.c.b16 %v6133, %v6125
  %v6590 = vpack.c.b16 %v6134, %v6126
  %v6591 = vpack.c.b16 %v6135, %v6127
  %v6592 = vpack.c.b16 %v6136, %v6128
  %v6593 = vpack.c.b16 %v6145, %v6137
  %v6594 = vpack.c.b16 %v6146, %v6138
  %v6595 = vpack.c.b16 %v6147, %v6139
  %v6596 = vpack.c.b16 %v6148, %v6140
  %v6597 = vpack.c.b16 %v6149, %v6141
  %v6598 = vpack.c.b16 %v6150, %v6142
  %v6599 = vpack.c.b16 %v6151, %v6143
  %v6600 = vpack.c.b16 %v6152, %v6144
  %v6601 = vpack.c.b16 %v6161, %v6153
  %v6602 = vpack.c.b16 %v6162, %v6154
  %v6603 = vpack.c.b16 %v6163, %v6155
  %v6604 = vpack.c.b16 %v6164, %v6156
  %v6605 = vpack.c.b16 %v6165, %v6157
  %v6606 = vpack.c.b16 %v6166, %v6158
  %v6607 = vpack.c.b16 %v6167, %v6159
  %v6608 = vpack.c.b16 %v6168, %v6160
  %v6609 = vpack.c.b16 %v6177, %v6169
  %v6610 = vpack.c.b16 %v6178, %v6170
  %v6611 = vpack.c.b16 %v6179, %v6171
  %v6612 = vpack.c.b16 %v6180, %v6172
  %v6613 = vpack.c.b16 %v6181, %v6173
  %v6614 = vpack.c.b16 %v6182, %v6174
  %v6615 = vpack.c.b16 %v6183, %v6175
  %v6616 = vpack.c.b16 %v6184, %v6176
  %v6617 = vpack.c.b16 %v6193, %v6185
  %v6618 = vpack.c.b16 %v6194, %v6186
  %v6619 = vpack.c.b16 %v6195, %v6187
  %v6620 = vpack.c.b16 %v6196, %v6188
  %v6621 = vpack.c.b16 %v6197, %v6189
  %v6622 = vpack.c.b16 %v6198, %v6190
  %v6623 = vpack.c.b16 %v6199, %v6191
  %v6624 = vpack.c.b16 %v6200, %v6192
  %v6625 = vpack.c.b16 %v6209, %v6201
  %v6626 = vpack.c.b16 %v6210, %v6202
  %v6627 = vpack.c.b16 %v6211, %v6203
  %v6628 = vpack.c.b16 %v6212, %v6204
  %v6629 = vpack.c.b16 %v6213, %v6205
  %v6630 = vpack.c.b16 %v6214, %v6206
  %v6631 = vpack.c.b16 %v6215, %v6207
  %v6632 = vpack.c.b16 %v6216, %v6208
  %v6633 = vpack.c.b16 %v6225, %v6217
  %v6634 = vpack.c.b16 %v6226, %v6218
  %v6635 = vpack.c.b16 %v6227, %v6219
  %v6636 = vpack.c.b16 %v6228, %v6220
  %v6637 = vpack.c.b16 %v6229, %v6221
  %v6638 = vpack.c.b16 %v6230, %v6222
  %v6639 = vpack.c.b16 %v6231, %v6223
  %v6640 = vpack.c.b16 %v6232, %v6224
  %v6641 = vpack.c.b16 %v6241, %v6233
  %v6642 = vpack.c.b16 %v6242, %v6234
  %v6643 = vpack.c.b16 %v6243, %v6235
  %v6644 = vpack.c.b16 %v6244, %v6236
  %v6645 = vpack.c.b16 %v6245, %v6237
  %v6646 = vpack.c.b16 %v6246, %v6238
  %v6647 = vpack.c.b16 %v6247, %v6239
  %v6648 = vpack.c.b16 %v6248, %v6240
  %v6649 = vpack.c.b16 %v6257, %v6249
  %v6650 = vpack.c.b16 %v6258, %v6250
  %v6651 = vpack.c.b16 %v6259, %v6251
  %v6652 = vpack.c.b16 %v6260, %v6252
  %v6653 = vpack.c.b16 %v6261, %v6253
  %v6654 = vpack.c.b16 %v6262, %v6254
  %v6655 = vpack.c.b16 %v6263, %v6255
  %v6656 = vpack.c.b16 %v6264, %v6256
  %v6657 = vpack.c.b16 %v6273, %v6265
  %v6658 = vpack.c.b16 %v6274, %v6266
  %v6659 = vpack.c.b16 %v6275, %v6267
  %v6660 = vpack.c.b16 %v6276, %v6268
  %v6661 = vpack.c.b16 %v6277, %v6269
  %v6662 = vpack.c.b16 %v6278, %v6270
  %v6663 = vpack.c.b16 %v6279, %v6271
  %v6664 = vpack.c.b16 %v6280, %v6272
  %v6665 = vpack.c.b16 %v6289, %v6281
  %v6666 = vpack.c.b16 %v6290, %v6282
  %v6667 = vpack.c.b16 %v6291, %v6283
  %v6668 = vpack.c.b16 %v6292, %v6284
  %v6669 = vpack.c.b16 %v6293, %v6285
  %v6670 = vpack.c.b16 %v6294, %v6286
  %v6671 = vpack.c.b16 %v6295, %v6287
  %v6672 = vpack.c.b16 %v6296, %v6288
  %v6673 = vpack.c.b16 %v6305, %v6297
  %v6674 = vpack.c.b16 %v6306, %v6298
  %v6675 = vpack.c.b16 %v6307, %v6299
  %v6676 = vpack.c.b16 %v6308, %v6300
  %v6677 = vpack.c.b16 %v6309, %v6301
  %v6678 = vpack.c.b16 %v6310, %v6302
  %v6679 = vpack.c.b16 %v6311, %v6303
  %v6680 = vpack.c.b16 %v6312, %v6304
  %v6681 = vpack.c.b16 %v6321, %v6313
  %v6682 = vpack.c.b16 %v6322, %v6314
  %v6683 = vpack.c.b16 %v6323, %v6315
  %v6684 = vpack.c.b16 %v6324, %v6316
  %v6685 = vpack.c.b16 %v6325, %v6317
  %v6686 = vpack.c.b16 %v6326, %v6318
  %v6687 = vpack.c.b16 %v6327, %v6319
  %v6688 = vpack.c.b16 %v6328, %v6320
  %v6689 = vpack.c.b16 %v6337, %v6329
  %v6690 = vpack.c.b16 %v6338, %v6330
  %v6691 = vpack.c.b16 %v6339, %v6331
  %v6692 = vpack.c.b16 %v6340, %v6332
  %v6693 = vpack.c.b16 %v6341, %v6333
  %v6694 = vpack.c.b16 %v6342, %v6334
  %v6695 = vpack.c.b16 %v6343, %v6335
  %v6696 = vpack.c.b16 %v6344, %v6336
  %v6697 = vpack.c.b16 %v6353, %v6345
  %v6698 = vpack.c.b16 %v6354, %v6346
  %v6699 = vpack.c.b16 %v6355, %v6347
  %v6700 = vpack.c.b16 %v6356, %v6348
  %v6701 = vpack.c.b16 %v6357, %v6349
  %v6702 = vpack.c.b16 %v6358, %v6350
  %v6703 = vpack.c.b16 %v6359, %v6351
  %v6704 = vpack.c.b16 %v6360, %v6352
  %v6705 = vpack.c.b16 %v6369, %v6361
  %v6706 = vpack.c.b16 %v6370, %v6362
  %v6707 = vpack.c.b16 %v6371, %v6363
  %v6708 = vpack.c.b16 %v6372, %v6364
  %v6709 = vpack.c.b16 %v6373, %v6365
  %v6710 = vpack.c.b16 %v6374, %v6366
  %v6711 = vpack.c.b16 %v6375, %v6367
  %v6712 = vpack.c.b16 %v6376, %v6368
  %v6713 = vpack.c.b16 %v6385, %v6377
  %v6714 = vpack.c.b16 %v6386, %v6378
  %v6715 = vpack.c.b16 %v6387, %v6379
  %v6716 = vpack.c.b16 %v6388, %v6380
  %v6717 = vpack.c.b16 %v6389, %v6381
  %v6718 = vpack.c.b16 %v6390, %v6382
  %v6719 = vpack.c.b16 %v6391, %v6383
  %v6720 = vpack.c.b16 %v6392, %v6384
  %v6721 = vpack.c.b16 %v6401, %v6393
  %v6722 = vpack.c.b16 %v6402, %v6394
  %v6723 = vpack.c.b16 %v6403, %v6395
  %v6724 = vpack.c.b16 %v6404, %v6396
  %v6725 = vpack.c.b16 %v6405, %v6397
  %v6726 = vpack.c.b16 %v6406, %v6398
  %v6727 = vpack.c.b16 %v6407, %v6399
  %v6728 = vpack.c.b16 %v6408, %v6400
  %v6729 = vpack.c.b16 %v6417, %v6409
  %v6730 = vpack.c.b16 %v6418, %v6410
  %v6731 = vpack.c.b16 %v6419, %v6411
  %v6732 = vpack.c.b16 %v6420, %v6412
  %v6733 = vpack.c.b16 %v6421, %v6413
  %v6734 = vpack.c.b16 %v6422, %v6414
  %v6735 = vpack.c.b16 %v6423, %v6415
  %v6736 = vpack.c.b16 %v6424, %v6416
  %v6737 = vpack.c.b16 %v6433, %v6425
  %v6738 = vpack.c.b16 %v6434, %v6426
  %v6739 = vpack.c.b16 %v6435, %v6427
  %v6740 = vpack.c.b16 %v6436, %v6428
  %v6741 = vpack.c.b16 %v6437, %v6429
  %v6742 = vpack.c.b16 %v6438, %v6430
  %v6743 = vpack.c.b16 %v6439, %v6431
  %v6744 = vpack.c.b16 %v6440, %v6432
  %v6745 = vpack.c.b16 %v6449, %v6441
  %v6746 = vpack.c.b16 %v6450, %v6442
  %v6747 = vpack.c.b16 %v6451, %v6443
  %v6748 = vpack.c.b16 %v6452, %v6444
  %v6749 = vpack.c.b16 %v6453, %v6445
  %v6750 = vpack.c.b16 %v6454, %v6446
  %v6751 = vpack.c.b16 %v6455, %v6447
  %v6752 = vpack.c.b16 %v6456, %v6448
  %v6753 = vpack.c.b16 %v6465, %v6457
  %v6754 = vpack.c.b16 %v6466, %v6458
  %v6755 = vpack.c.b16 %v6467, %v6459
  %v6756 = vpack.c.b16 %v6468, %v6460
  %v6757 = vpack.c.b16 %v6469, %v6461
  %v6758 = vpack.c.b16 %v6470, %v6462
  %v6759 = vpack.c.b16 %v6471, %v6463
  %v6760 = vpack.c.b16 %v6472, %v6464
  %v6761 = vpack.c.b16 %v6481, %v6473
  %v6762 = vpack.c.b16 %v6482, %v6474
  %v6763 = vpack.c.b16 %v6483, %v6475
  %v6764 = vpack.c.b16 %v6484, %v6476
  %v6765 = vpack.c.b16 %v6485, %v6477
  %v6766 = vpack.c.b16 %v6486, %v6478
  %v6767 = vpack.c.b16 %v6487, %v6479
  %v6768 = vpack.c.b16 %v6488, %v6480
  %v6769 = vpack.c.b16 %v6497, %v6489
  %v6770 = vpack.c.b16 %v6498, %v6490
  %v6771 = vpack.c.b16 %v6499, %v6491
  %v6772 = vpack.c.b16 %v6500, %v6492
  %v6773 = vpack.c.b16 %v6501, %v6493
  %v6774 = vpack.c.b16 %v6502, %v6494
  %v6775 = vpack.c.b16 %v6503, %v6495
  %v6776 = vpack.c.b16 %v6504, %v6496
  %v6777 = vpack.c.b16 %v6513, %v6505
  %v6778 = vpack.c.b16 %v6514, %v6506
  %v6779 = vpack.c.b16 %v6515, %v6507
  %v6780 = vpack.c.b16 %v6516, %v6508
  %v6781 = vpack.c.b16 %v6517, %v6509
  %v6782 = vpack.c.b16 %v6518, %v6510
  %v6783 = vpack.c.b16 %v6519, %v6511
  %v6784 = vpack.c.b16 %v6520, %v6512
  %v6785 = vpack.c.b16 %v6529, %v6521
  %v6786 = vpack.c.b16 %v6530, %v6522
  %v6787 = vpack.c.b16 %v6531, %v6523
  %v6788 = vpack.c.b16 %v6532, %v6524
  %v6789 = vpack.c.b16 %v6533, %v6525
  %v6790 = vpack.c.b16 %v6534, %v6526
  %v6791 = vpack.c.b16 %v6535, %v6527
  %v6792 = vpack.c.b16 %v6536, %v6528
  %7049 = vmatpush.bf16.msra.mxu0 %v6593
  %7050 = vmatpush.bf16.msra.mxu0 %v6585
  %7051 = vmatpush.bf16.msra.mxu0 %v6577
  %7052 = vmatpush.bf16.msra.mxu0 %v6569
  %7053 = vmatpush.bf16.msra.mxu0 %v6561
  %7054 = vmatpush.bf16.msra.mxu0 %v6553
  %7055 = vmatpush.bf16.msra.mxu0 %v6545
  %7056 = vmatpush.bf16.msra.mxu0 %v6537
  %7057 = vmatmul.bf16.gmra.mxu0 %v2091
  %v7058 = vpop.f32.mrf.mxu0
  %v7059 = vadd.f32 0.0, %v7058
  %v7060 = vpop.f32.mrf.mxu0
  %v7061 = vadd.f32 0.0, %v7060
  %7062 = vdwg.mxu0
  %7063 = vmatpush.bf16.msra.mxu0 %v6657
  %7064 = vmatpush.bf16.msra.mxu0 %v6649
  %7065 = vmatpush.bf16.msra.mxu0 %v6641
  %7066 = vmatpush.bf16.msra.mxu0 %v6633
  %7067 = vmatpush.bf16.msra.mxu0 %v6625
  %7068 = vmatpush.bf16.msra.mxu0 %v6617
  %7069 = vmatpush.bf16.msra.mxu0 %v6609
  %7070 = vmatpush.bf16.msra.mxu0 %v6601
  %7071 = vmatmul.bf16.gmra.mxu0 %v2092
  %v7072 = vpop.f32.mrf.mxu0
  %v7073 = vadd.f32 %v7059, %v7072
  %v7074 = vpop.f32.mrf.mxu0
  %v7075 = vadd.f32 %v7061, %v7074
  %7076 = vdwg.mxu0
  %7077 = vmatpush.bf16.msra.mxu0 %v6721
  %7078 = vmatpush.bf16.msra.mxu0 %v6713
  %7079 = vmatpush.bf16.msra.mxu0 %v6705
  %7080 = vmatpush.bf16.msra.mxu0 %v6697
  %7081 = vmatpush.bf16.msra.mxu0 %v6689
  %7082 = vmatpush.bf16.msra.mxu0 %v6681
  %7083 = vmatpush.bf16.msra.mxu0 %v6673
  %7084 = vmatpush.bf16.msra.mxu0 %v6665
  %7085 = vmatmul.bf16.gmra.mxu0 %v2093
  %v7086 = vpop.f32.mrf.mxu0
  %v7087 = vadd.f32 %v7073, %v7086
  %v7088 = vpop.f32.mrf.mxu0
  %v7089 = vadd.f32 %v7075, %v7088
  %7090 = vdwg.mxu0
  %7091 = vmatpush.bf16.msra.mxu0 %v6785
  %7092 = vmatpush.bf16.msra.mxu0 %v6777
  %7093 = vmatpush.bf16.msra.mxu0 %v6769
  %7094 = vmatpush.bf16.msra.mxu0 %v6761
  %7095 = vmatpush.bf16.msra.mxu0 %v6753
  %7096 = vmatpush.bf16.msra.mxu0 %v6745
  %7097 = vmatpush.bf16.msra.mxu0 %v6737
  %7098 = vmatpush.bf16.msra.mxu0 %v6729
  %7099 = vmatmul.bf16.gmra.mxu0 %v2094
  %v7100 = vpop.f32.mrf.mxu0
  %v7101 = vadd.f32 %v7087, %v7100
  %v7102 = vpop.f32.mrf.mxu0
  %v7103 = vadd.f32 %v7089, %v7102
  %7104 = vdwg.mxu0
  %7105 = vmatpush.bf16.msra.mxu0 %v6594
  %7106 = vmatpush.bf16.msra.mxu0 %v6586
  %7107 = vmatpush.bf16.msra.mxu0 %v6578
  %7108 = vmatpush.bf16.msra.mxu0 %v6570
  %7109 = vmatpush.bf16.msra.mxu0 %v6562
  %7110 = vmatpush.bf16.msra.mxu0 %v6554
  %7111 = vmatpush.bf16.msra.mxu0 %v6546
  %7112 = vmatpush.bf16.msra.mxu0 %v6538
  %7113 = vmatmul.bf16.gmra.mxu0 %v2091
  %v7114 = vpop.f32.mrf.mxu0
  %v7115 = vadd.f32 0.0, %v7114
  %v7116 = vpop.f32.mrf.mxu0
  %v7117 = vadd.f32 0.0, %v7116
  %7118 = vdwg.mxu0
  %7119 = vmatpush.bf16.msra.mxu0 %v6658
  %7120 = vmatpush.bf16.msra.mxu0 %v6650
  %7121 = vmatpush.bf16.msra.mxu0 %v6642
  %7122 = vmatpush.bf16.msra.mxu0 %v6634
  %7123 = vmatpush.bf16.msra.mxu0 %v6626
  %7124 = vmatpush.bf16.msra.mxu0 %v6618
  %7125 = vmatpush.bf16.msra.mxu0 %v6610
  %7126 = vmatpush.bf16.msra.mxu0 %v6602
  %7127 = vmatmul.bf16.gmra.mxu0 %v2092
  %v7128 = vpop.f32.mrf.mxu0
  %v7129 = vadd.f32 %v7115, %v7128
  %v7130 = vpop.f32.mrf.mxu0
  %v7131 = vadd.f32 %v7117, %v7130
  %7132 = vdwg.mxu0
  %7133 = vmatpush.bf16.msra.mxu0 %v6722
  %7134 = vmatpush.bf16.msra.mxu0 %v6714
  %7135 = vmatpush.bf16.msra.mxu0 %v6706
  %7136 = vmatpush.bf16.msra.mxu0 %v6698
  %7137 = vmatpush.bf16.msra.mxu0 %v6690
  %7138 = vmatpush.bf16.msra.mxu0 %v6682
  %7139 = vmatpush.bf16.msra.mxu0 %v6674
  %7140 = vmatpush.bf16.msra.mxu0 %v6666
  %7141 = vmatmul.bf16.gmra.mxu0 %v2093
  %v7142 = vpop.f32.mrf.mxu0
  %v7143 = vadd.f32 %v7129, %v7142
  %v7144 = vpop.f32.mrf.mxu0
  %v7145 = vadd.f32 %v7131, %v7144
  %7146 = vdwg.mxu0
  %7147 = vmatpush.bf16.msra.mxu0 %v6786
  %7148 = vmatpush.bf16.msra.mxu0 %v6778
  %7149 = vmatpush.bf16.msra.mxu0 %v6770
  %7150 = vmatpush.bf16.msra.mxu0 %v6762
  %7151 = vmatpush.bf16.msra.mxu0 %v6754
  %7152 = vmatpush.bf16.msra.mxu0 %v6746
  %7153 = vmatpush.bf16.msra.mxu0 %v6738
  %7154 = vmatpush.bf16.msra.mxu0 %v6730
  %7155 = vmatmul.bf16.gmra.mxu0 %v2094
  %v7156 = vpop.f32.mrf.mxu0
  %v7157 = vadd.f32 %v7143, %v7156
  %v7158 = vpop.f32.mrf.mxu0
  %v7159 = vadd.f32 %v7145, %v7158
  %7160 = vdwg.mxu0
  %7161 = vmatpush.bf16.msra.mxu0 %v6595
  %7162 = vmatpush.bf16.msra.mxu0 %v6587
  %7163 = vmatpush.bf16.msra.mxu0 %v6579
  %7164 = vmatpush.bf16.msra.mxu0 %v6571
  %7165 = vmatpush.bf16.msra.mxu0 %v6563
  %7166 = vmatpush.bf16.msra.mxu0 %v6555
  %7167 = vmatpush.bf16.msra.mxu0 %v6547
  %7168 = vmatpush.bf16.msra.mxu0 %v6539
  %7169 = vmatmul.bf16.gmra.mxu0 %v2091
  %v7170 = vpop.f32.mrf.mxu0
  %v7171 = vadd.f32 0.0, %v7170
  %v7172 = vpop.f32.mrf.mxu0
  %v7173 = vadd.f32 0.0, %v7172
  %7174 = vdwg.mxu0
  %7175 = vmatpush.bf16.msra.mxu0 %v6659
  %7176 = vmatpush.bf16.msra.mxu0 %v6651
  %7177 = vmatpush.bf16.msra.mxu0 %v6643
  %7178 = vmatpush.bf16.msra.mxu0 %v6635
  %7179 = vmatpush.bf16.msra.mxu0 %v6627
  %7180 = vmatpush.bf16.msra.mxu0 %v6619
  %7181 = vmatpush.bf16.msra.mxu0 %v6611
  %7182 = vmatpush.bf16.msra.mxu0 %v6603
  %7183 = vmatmul.bf16.gmra.mxu0 %v2092
  %v7184 = vpop.f32.mrf.mxu0
  %v7185 = vadd.f32 %v7171, %v7184
  %v7186 = vpop.f32.mrf.mxu0
  %v7187 = vadd.f32 %v7173, %v7186
  %7188 = vdwg.mxu0
  %7189 = vmatpush.bf16.msra.mxu0 %v6723
  %7190 = vmatpush.bf16.msra.mxu0 %v6715
  %7191 = vmatpush.bf16.msra.mxu0 %v6707
  %7192 = vmatpush.bf16.msra.mxu0 %v6699
  %7193 = vmatpush.bf16.msra.mxu0 %v6691
  %7194 = vmatpush.bf16.msra.mxu0 %v6683
  %7195 = vmatpush.bf16.msra.mxu0 %v6675
  %7196 = vmatpush.bf16.msra.mxu0 %v6667
  %7197 = vmatmul.bf16.gmra.mxu0 %v2093
  %v7198 = vpop.f32.mrf.mxu0
  %v7199 = vadd.f32 %v7185, %v7198
  %v7200 = vpop.f32.mrf.mxu0
  %v7201 = vadd.f32 %v7187, %v7200
  %7202 = vdwg.mxu0
  %7203 = vmatpush.bf16.msra.mxu0 %v6787
  %7204 = vmatpush.bf16.msra.mxu0 %v6779
  %7205 = vmatpush.bf16.msra.mxu0 %v6771
  %7206 = vmatpush.bf16.msra.mxu0 %v6763
  %7207 = vmatpush.bf16.msra.mxu0 %v6755
  %7208 = vmatpush.bf16.msra.mxu0 %v6747
  %7209 = vmatpush.bf16.msra.mxu0 %v6739
  %7210 = vmatpush.bf16.msra.mxu0 %v6731
  %7211 = vmatmul.bf16.gmra.mxu0 %v2094
  %v7212 = vpop.f32.mrf.mxu0
  %v7213 = vadd.f32 %v7199, %v7212
  %v7214 = vpop.f32.mrf.mxu0
  %v7215 = vadd.f32 %v7201, %v7214
  %7216 = vdwg.mxu0
  %7217 = vmatpush.bf16.msra.mxu0 %v6596
  %7218 = vmatpush.bf16.msra.mxu0 %v6588
  %7219 = vmatpush.bf16.msra.mxu0 %v6580
  %7220 = vmatpush.bf16.msra.mxu0 %v6572
  %7221 = vmatpush.bf16.msra.mxu0 %v6564
  %7222 = vmatpush.bf16.msra.mxu0 %v6556
  %7223 = vmatpush.bf16.msra.mxu0 %v6548
  %7224 = vmatpush.bf16.msra.mxu0 %v6540
  %7225 = vmatmul.bf16.gmra.mxu0 %v2091
  %v7226 = vpop.f32.mrf.mxu0
  %v7227 = vadd.f32 0.0, %v7226
  %v7228 = vpop.f32.mrf.mxu0
  %v7229 = vadd.f32 0.0, %v7228
  %7230 = vdwg.mxu0
  %7231 = vmatpush.bf16.msra.mxu0 %v6660
  %7232 = vmatpush.bf16.msra.mxu0 %v6652
  %7233 = vmatpush.bf16.msra.mxu0 %v6644
  %7234 = vmatpush.bf16.msra.mxu0 %v6636
  %7235 = vmatpush.bf16.msra.mxu0 %v6628
  %7236 = vmatpush.bf16.msra.mxu0 %v6620
  %7237 = vmatpush.bf16.msra.mxu0 %v6612
  %7238 = vmatpush.bf16.msra.mxu0 %v6604
  %7239 = vmatmul.bf16.gmra.mxu0 %v2092
  %v7240 = vpop.f32.mrf.mxu0
  %v7241 = vadd.f32 %v7227, %v7240
  %v7242 = vpop.f32.mrf.mxu0
  %v7243 = vadd.f32 %v7229, %v7242
  %7244 = vdwg.mxu0
  %7245 = vmatpush.bf16.msra.mxu0 %v6724
  %7246 = vmatpush.bf16.msra.mxu0 %v6716
  %7247 = vmatpush.bf16.msra.mxu0 %v6708
  %7248 = vmatpush.bf16.msra.mxu0 %v6700
  %7249 = vmatpush.bf16.msra.mxu0 %v6692
  %7250 = vmatpush.bf16.msra.mxu0 %v6684
  %7251 = vmatpush.bf16.msra.mxu0 %v6676
  %7252 = vmatpush.bf16.msra.mxu0 %v6668
  %7253 = vmatmul.bf16.gmra.mxu0 %v2093
  %v7254 = vpop.f32.mrf.mxu0
  %v7255 = vadd.f32 %v7241, %v7254
  %v7256 = vpop.f32.mrf.mxu0
  %v7257 = vadd.f32 %v7243, %v7256
  %7258 = vdwg.mxu0
  %7259 = vmatpush.bf16.msra.mxu0 %v6788
  %7260 = vmatpush.bf16.msra.mxu0 %v6780
  %7261 = vmatpush.bf16.msra.mxu0 %v6772
  %7262 = vmatpush.bf16.msra.mxu0 %v6764
  %7263 = vmatpush.bf16.msra.mxu0 %v6756
  %7264 = vmatpush.bf16.msra.mxu0 %v6748
  %7265 = vmatpush.bf16.msra.mxu0 %v6740
  %7266 = vmatpush.bf16.msra.mxu0 %v6732
  %7267 = vmatmul.bf16.gmra.mxu0 %v2094
  %v7268 = vpop.f32.mrf.mxu0
  %v7269 = vadd.f32 %v7255, %v7268
  %v7270 = vpop.f32.mrf.mxu0
  %v7271 = vadd.f32 %v7257, %v7270
  %7272 = vdwg.mxu0
  %7273 = vmatpush.bf16.msra.mxu0 %v6597
  %7274 = vmatpush.bf16.msra.mxu0 %v6589
  %7275 = vmatpush.bf16.msra.mxu0 %v6581
  %7276 = vmatpush.bf16.msra.mxu0 %v6573
  %7277 = vmatpush.bf16.msra.mxu0 %v6565
  %7278 = vmatpush.bf16.msra.mxu0 %v6557
  %7279 = vmatpush.bf16.msra.mxu0 %v6549
  %7280 = vmatpush.bf16.msra.mxu0 %v6541
  %7281 = vmatmul.bf16.gmra.mxu0 %v2091
  %v7282 = vpop.f32.mrf.mxu0
  %v7283 = vadd.f32 0.0, %v7282
  %v7284 = vpop.f32.mrf.mxu0
  %v7285 = vadd.f32 0.0, %v7284
  %7286 = vdwg.mxu0
  %7287 = vmatpush.bf16.msra.mxu0 %v6661
  %7288 = vmatpush.bf16.msra.mxu0 %v6653
  %7289 = vmatpush.bf16.msra.mxu0 %v6645
  %7290 = vmatpush.bf16.msra.mxu0 %v6637
  %7291 = vmatpush.bf16.msra.mxu0 %v6629
  %7292 = vmatpush.bf16.msra.mxu0 %v6621
  %7293 = vmatpush.bf16.msra.mxu0 %v6613
  %7294 = vmatpush.bf16.msra.mxu0 %v6605
  %7295 = vmatmul.bf16.gmra.mxu0 %v2092
  %v7296 = vpop.f32.mrf.mxu0
  %v7297 = vadd.f32 %v7283, %v7296
  %v7298 = vpop.f32.mrf.mxu0
  %v7299 = vadd.f32 %v7285, %v7298
  %7300 = vdwg.mxu0
  %7301 = vmatpush.bf16.msra.mxu0 %v6725
  %7302 = vmatpush.bf16.msra.mxu0 %v6717
  %7303 = vmatpush.bf16.msra.mxu0 %v6709
  %7304 = vmatpush.bf16.msra.mxu0 %v6701
  %7305 = vmatpush.bf16.msra.mxu0 %v6693
  %7306 = vmatpush.bf16.msra.mxu0 %v6685
  %7307 = vmatpush.bf16.msra.mxu0 %v6677
  %7308 = vmatpush.bf16.msra.mxu0 %v6669
  %7309 = vmatmul.bf16.gmra.mxu0 %v2093
  %v7310 = vpop.f32.mrf.mxu0
  %v7311 = vadd.f32 %v7297, %v7310
  %v7312 = vpop.f32.mrf.mxu0
  %v7313 = vadd.f32 %v7299, %v7312
  %7314 = vdwg.mxu0
  %7315 = vmatpush.bf16.msra.mxu0 %v6789
  %7316 = vmatpush.bf16.msra.mxu0 %v6781
  %7317 = vmatpush.bf16.msra.mxu0 %v6773
  %7318 = vmatpush.bf16.msra.mxu0 %v6765
  %7319 = vmatpush.bf16.msra.mxu0 %v6757
  %7320 = vmatpush.bf16.msra.mxu0 %v6749
  %7321 = vmatpush.bf16.msra.mxu0 %v6741
  %7322 = vmatpush.bf16.msra.mxu0 %v6733
  %7323 = vmatmul.bf16.gmra.mxu0 %v2094
  %v7324 = vpop.f32.mrf.mxu0
  %v7325 = vadd.f32 %v7311, %v7324
  %v7326 = vpop.f32.mrf.mxu0
  %v7327 = vadd.f32 %v7313, %v7326
  %7328 = vdwg.mxu0
  %7329 = vmatpush.bf16.msra.mxu0 %v6598
  %7330 = vmatpush.bf16.msra.mxu0 %v6590
  %7331 = vmatpush.bf16.msra.mxu0 %v6582
  %7332 = vmatpush.bf16.msra.mxu0 %v6574
  %7333 = vmatpush.bf16.msra.mxu0 %v6566
  %7334 = vmatpush.bf16.msra.mxu0 %v6558
  %7335 = vmatpush.bf16.msra.mxu0 %v6550
  %7336 = vmatpush.bf16.msra.mxu0 %v6542
  %7337 = vmatmul.bf16.gmra.mxu0 %v2091
  %v7338 = vpop.f32.mrf.mxu0
  %v7339 = vadd.f32 0.0, %v7338
  %v7340 = vpop.f32.mrf.mxu0
  %v7341 = vadd.f32 0.0, %v7340
  %7342 = vdwg.mxu0
  %7343 = vmatpush.bf16.msra.mxu0 %v6662
  %7344 = vmatpush.bf16.msra.mxu0 %v6654
  %7345 = vmatpush.bf16.msra.mxu0 %v6646
  %7346 = vmatpush.bf16.msra.mxu0 %v6638
  %7347 = vmatpush.bf16.msra.mxu0 %v6630
  %7348 = vmatpush.bf16.msra.mxu0 %v6622
  %7349 = vmatpush.bf16.msra.mxu0 %v6614
  %7350 = vmatpush.bf16.msra.mxu0 %v6606
  %7351 = vmatmul.bf16.gmra.mxu0 %v2092
  %v7352 = vpop.f32.mrf.mxu0
  %v7353 = vadd.f32 %v7339, %v7352
  %v7354 = vpop.f32.mrf.mxu0
  %v7355 = vadd.f32 %v7341, %v7354
  %7356 = vdwg.mxu0
  %7357 = vmatpush.bf16.msra.mxu0 %v6726
  %7358 = vmatpush.bf16.msra.mxu0 %v6718
  %7359 = vmatpush.bf16.msra.mxu0 %v6710
  %7360 = vmatpush.bf16.msra.mxu0 %v6702
  %7361 = vmatpush.bf16.msra.mxu0 %v6694
  %7362 = vmatpush.bf16.msra.mxu0 %v6686
  %7363 = vmatpush.bf16.msra.mxu0 %v6678
  %7364 = vmatpush.bf16.msra.mxu0 %v6670
  %7365 = vmatmul.bf16.gmra.mxu0 %v2093
  %v7366 = vpop.f32.mrf.mxu0
  %v7367 = vadd.f32 %v7353, %v7366
  %v7368 = vpop.f32.mrf.mxu0
  %v7369 = vadd.f32 %v7355, %v7368
  %7370 = vdwg.mxu0
  %7371 = vmatpush.bf16.msra.mxu0 %v6790
  %7372 = vmatpush.bf16.msra.mxu0 %v6782
  %7373 = vmatpush.bf16.msra.mxu0 %v6774
  %7374 = vmatpush.bf16.msra.mxu0 %v6766
  %7375 = vmatpush.bf16.msra.mxu0 %v6758
  %7376 = vmatpush.bf16.msra.mxu0 %v6750
  %7377 = vmatpush.bf16.msra.mxu0 %v6742
  %7378 = vmatpush.bf16.msra.mxu0 %v6734
  %7379 = vmatmul.bf16.gmra.mxu0 %v2094
  %v7380 = vpop.f32.mrf.mxu0
  %v7381 = vadd.f32 %v7367, %v7380
  %v7382 = vpop.f32.mrf.mxu0
  %v7383 = vadd.f32 %v7369, %v7382
  %7384 = vdwg.mxu0
  %7385 = vmatpush.bf16.msra.mxu0 %v6599
  %7386 = vmatpush.bf16.msra.mxu0 %v6591
  %7387 = vmatpush.bf16.msra.mxu0 %v6583
  %7388 = vmatpush.bf16.msra.mxu0 %v6575
  %7389 = vmatpush.bf16.msra.mxu0 %v6567
  %7390 = vmatpush.bf16.msra.mxu0 %v6559
  %7391 = vmatpush.bf16.msra.mxu0 %v6551
  %7392 = vmatpush.bf16.msra.mxu0 %v6543
  %7393 = vmatmul.bf16.gmra.mxu0 %v2091
  %v7394 = vpop.f32.mrf.mxu0
  %v7395 = vadd.f32 0.0, %v7394
  %v7396 = vpop.f32.mrf.mxu0
  %v7397 = vadd.f32 0.0, %v7396
  %7398 = vdwg.mxu0
  %7399 = vmatpush.bf16.msra.mxu0 %v6663
  %7400 = vmatpush.bf16.msra.mxu0 %v6655
  %7401 = vmatpush.bf16.msra.mxu0 %v6647
  %7402 = vmatpush.bf16.msra.mxu0 %v6639
  %7403 = vmatpush.bf16.msra.mxu0 %v6631
  %7404 = vmatpush.bf16.msra.mxu0 %v6623
  %7405 = vmatpush.bf16.msra.mxu0 %v6615
  %7406 = vmatpush.bf16.msra.mxu0 %v6607
  %7407 = vmatmul.bf16.gmra.mxu0 %v2092
  %v7408 = vpop.f32.mrf.mxu0
  %v7409 = vadd.f32 %v7395, %v7408
  %v7410 = vpop.f32.mrf.mxu0
  %v7411 = vadd.f32 %v7397, %v7410
  %7412 = vdwg.mxu0
  %7413 = vmatpush.bf16.msra.mxu0 %v6727
  %7414 = vmatpush.bf16.msra.mxu0 %v6719
  %7415 = vmatpush.bf16.msra.mxu0 %v6711
  %7416 = vmatpush.bf16.msra.mxu0 %v6703
  %7417 = vmatpush.bf16.msra.mxu0 %v6695
  %7418 = vmatpush.bf16.msra.mxu0 %v6687
  %7419 = vmatpush.bf16.msra.mxu0 %v6679
  %7420 = vmatpush.bf16.msra.mxu0 %v6671
  %7421 = vmatmul.bf16.gmra.mxu0 %v2093
  %v7422 = vpop.f32.mrf.mxu0
  %v7423 = vadd.f32 %v7409, %v7422
  %v7424 = vpop.f32.mrf.mxu0
  %v7425 = vadd.f32 %v7411, %v7424
  %7426 = vdwg.mxu0
  %7427 = vmatpush.bf16.msra.mxu0 %v6791
  %7428 = vmatpush.bf16.msra.mxu0 %v6783
  %7429 = vmatpush.bf16.msra.mxu0 %v6775
  %7430 = vmatpush.bf16.msra.mxu0 %v6767
  %7431 = vmatpush.bf16.msra.mxu0 %v6759
  %7432 = vmatpush.bf16.msra.mxu0 %v6751
  %7433 = vmatpush.bf16.msra.mxu0 %v6743
  %7434 = vmatpush.bf16.msra.mxu0 %v6735
  %7435 = vmatmul.bf16.gmra.mxu0 %v2094
  %v7436 = vpop.f32.mrf.mxu0
  %v7437 = vadd.f32 %v7423, %v7436
  %v7438 = vpop.f32.mrf.mxu0
  %v7439 = vadd.f32 %v7425, %v7438
  %7440 = vdwg.mxu0
  %7441 = vmatpush.bf16.msra.mxu0 %v6600
  %7442 = vmatpush.bf16.msra.mxu0 %v6592
  %7443 = vmatpush.bf16.msra.mxu0 %v6584
  %7444 = vmatpush.bf16.msra.mxu0 %v6576
  %7445 = vmatpush.bf16.msra.mxu0 %v6568
  %7446 = vmatpush.bf16.msra.mxu0 %v6560
  %7447 = vmatpush.bf16.msra.mxu0 %v6552
  %7448 = vmatpush.bf16.msra.mxu0 %v6544
  %7449 = vmatmul.bf16.gmra.mxu0 %v2091
  %v7450 = vpop.f32.mrf.mxu0
  %v7451 = vadd.f32 0.0, %v7450
  %v7452 = vpop.f32.mrf.mxu0
  %v7453 = vadd.f32 0.0, %v7452
  %7454 = vdwg.mxu0
  %7455 = vmatpush.bf16.msra.mxu0 %v6664
  %7456 = vmatpush.bf16.msra.mxu0 %v6656
  %7457 = vmatpush.bf16.msra.mxu0 %v6648
  %7458 = vmatpush.bf16.msra.mxu0 %v6640
  %7459 = vmatpush.bf16.msra.mxu0 %v6632
  %7460 = vmatpush.bf16.msra.mxu0 %v6624
  %7461 = vmatpush.bf16.msra.mxu0 %v6616
  %7462 = vmatpush.bf16.msra.mxu0 %v6608
  %7463 = vmatmul.bf16.gmra.mxu0 %v2092
  %v7464 = vpop.f32.mrf.mxu0
  %v7465 = vadd.f32 %v7451, %v7464
  %v7466 = vpop.f32.mrf.mxu0
  %v7467 = vadd.f32 %v7453, %v7466
  %7468 = vdwg.mxu0
  %7469 = vmatpush.bf16.msra.mxu0 %v6728
  %7470 = vmatpush.bf16.msra.mxu0 %v6720
  %7471 = vmatpush.bf16.msra.mxu0 %v6712
  %7472 = vmatpush.bf16.msra.mxu0 %v6704
  %7473 = vmatpush.bf16.msra.mxu0 %v6696
  %7474 = vmatpush.bf16.msra.mxu0 %v6688
  %7475 = vmatpush.bf16.msra.mxu0 %v6680
  %7476 = vmatpush.bf16.msra.mxu0 %v6672
  %7477 = vmatmul.bf16.gmra.mxu0 %v2093
  %v7478 = vpop.f32.mrf.mxu0
  %v7479 = vadd.f32 %v7465, %v7478
  %v7480 = vpop.f32.mrf.mxu0
  %v7481 = vadd.f32 %v7467, %v7480
  %7482 = vdwg.mxu0
  %7483 = vmatpush.bf16.msra.mxu0 %v6792
  %7484 = vmatpush.bf16.msra.mxu0 %v6784
  %7485 = vmatpush.bf16.msra.mxu0 %v6776
  %7486 = vmatpush.bf16.msra.mxu0 %v6768
  %7487 = vmatpush.bf16.msra.mxu0 %v6760
  %7488 = vmatpush.bf16.msra.mxu0 %v6752
  %7489 = vmatpush.bf16.msra.mxu0 %v6744
  %7490 = vmatpush.bf16.msra.mxu0 %v6736
  %7491 = vmatmul.bf16.gmra.mxu0 %v2094
  %v7492 = vpop.f32.mrf.mxu0
  %v7493 = vadd.f32 %v7479, %v7492
  %v7494 = vpop.f32.mrf.mxu0
  %v7495 = vadd.f32 %v7481, %v7494
  %7496 = vdwg.mxu0
  %v7625 = vunpack.c.l.b16 %v5385
  %v7626 = vunpack.c.h.b16 %v5385
  %v7627 = vunpack.c.l.b16 %v5386
  %v7628 = vunpack.c.h.b16 %v5386
  %v7629 = vunpack.c.l.b16 %v5387
  %v7630 = vunpack.c.h.b16 %v5387
  %v7631 = vunpack.c.l.b16 %v5388
  %v7632 = vunpack.c.h.b16 %v5388
  %v7633 = vunpack.c.l.b16 %v5389
  %v7634 = vunpack.c.h.b16 %v5389
  %v7635 = vunpack.c.l.b16 %v5390
  %v7636 = vunpack.c.h.b16 %v5390
  %v7637 = vunpack.c.l.b16 %v5391
  %v7638 = vunpack.c.h.b16 %v5391
  %v7639 = vunpack.c.l.b16 %v5392
  %v7640 = vunpack.c.h.b16 %v5392
  %v7641 = vunpack.c.l.b16 %v5393
  %v7642 = vunpack.c.h.b16 %v5393
  %v7643 = vunpack.c.l.b16 %v5394
  %v7644 = vunpack.c.h.b16 %v5394
  %v7645 = vunpack.c.l.b16 %v5395
  %v7646 = vunpack.c.h.b16 %v5395
  %v7647 = vunpack.c.l.b16 %v5396
  %v7648 = vunpack.c.h.b16 %v5396
  %v7649 = vunpack.c.l.b16 %v5397
  %v7650 = vunpack.c.h.b16 %v5397
  %v7651 = vunpack.c.l.b16 %v5398
  %v7652 = vunpack.c.h.b16 %v5398
  %v7653 = vunpack.c.l.b16 %v5399
  %v7654 = vunpack.c.h.b16 %v5399
  %v7655 = vunpack.c.l.b16 %v5400
  %v7656 = vunpack.c.h.b16 %v5400
  %v7657 = vunpack.c.l.b16 %v5401
  %v7658 = vunpack.c.h.b16 %v5401
  %v7659 = vunpack.c.l.b16 %v5402
  %v7660 = vunpack.c.h.b16 %v5402
  %v7661 = vunpack.c.l.b16 %v5403
  %v7662 = vunpack.c.h.b16 %v5403
  %v7663 = vunpack.c.l.b16 %v5404
  %v7664 = vunpack.c.h.b16 %v5404
  %v7665 = vunpack.c.l.b16 %v5405
  %v7666 = vunpack.c.h.b16 %v5405
  %v7667 = vunpack.c.l.b16 %v5406
  %v7668 = vunpack.c.h.b16 %v5406
  %v7669 = vunpack.c.l.b16 %v5407
  %v7670 = vunpack.c.h.b16 %v5407
  %v7671 = vunpack.c.l.b16 %v5408
  %v7672 = vunpack.c.h.b16 %v5408
  %v7673 = vunpack.c.l.b16 %v5409
  %v7674 = vunpack.c.h.b16 %v5409
  %v7675 = vunpack.c.l.b16 %v5410
  %v7676 = vunpack.c.h.b16 %v5410
  %v7677 = vunpack.c.l.b16 %v5411
  %v7678 = vunpack.c.h.b16 %v5411
  %v7679 = vunpack.c.l.b16 %v5412
  %v7680 = vunpack.c.h.b16 %v5412
  %v7681 = vunpack.c.l.b16 %v5413
  %v7682 = vunpack.c.h.b16 %v5413
  %v7683 = vunpack.c.l.b16 %v5414
  %v7684 = vunpack.c.h.b16 %v5414
  %v7685 = vunpack.c.l.b16 %v5415
  %v7686 = vunpack.c.h.b16 %v5415
  %v7687 = vunpack.c.l.b16 %v5416
  %v7688 = vunpack.c.h.b16 %v5416
  %v7689 = vunpack.c.l.b16 %v5417
  %v7690 = vunpack.c.h.b16 %v5417
  %v7691 = vunpack.c.l.b16 %v5418
  %v7692 = vunpack.c.h.b16 %v5418
  %v7693 = vunpack.c.l.b16 %v5419
  %v7694 = vunpack.c.h.b16 %v5419
  %v7695 = vunpack.c.l.b16 %v5420
  %v7696 = vunpack.c.h.b16 %v5420
  %v7697 = vunpack.c.l.b16 %v5421
  %v7698 = vunpack.c.h.b16 %v5421
  %v7699 = vunpack.c.l.b16 %v5422
  %v7700 = vunpack.c.h.b16 %v5422
  %v7701 = vunpack.c.l.b16 %v5423
  %v7702 = vunpack.c.h.b16 %v5423
  %v7703 = vunpack.c.l.b16 %v5424
  %v7704 = vunpack.c.h.b16 %v5424
  %v7705 = vunpack.c.l.b16 %v5425
  %v7706 = vunpack.c.h.b16 %v5425
  %v7707 = vunpack.c.l.b16 %v5426
  %v7708 = vunpack.c.h.b16 %v5426
  %v7709 = vunpack.c.l.b16 %v5427
  %v7710 = vunpack.c.h.b16 %v5427
  %v7711 = vunpack.c.l.b16 %v5428
  %v7712 = vunpack.c.h.b16 %v5428
  %v7713 = vunpack.c.l.b16 %v5429
  %v7714 = vunpack.c.h.b16 %v5429
  %v7715 = vunpack.c.l.b16 %v5430
  %v7716 = vunpack.c.h.b16 %v5430
  %v7717 = vunpack.c.l.b16 %v5431
  %v7718 = vunpack.c.h.b16 %v5431
  %v7719 = vunpack.c.l.b16 %v5432
  %v7720 = vunpack.c.h.b16 %v5432
  %v7721 = vunpack.c.l.b16 %v5433
  %v7722 = vunpack.c.h.b16 %v5433
  %v7723 = vunpack.c.l.b16 %v5434
  %v7724 = vunpack.c.h.b16 %v5434
  %v7725 = vunpack.c.l.b16 %v5435
  %v7726 = vunpack.c.h.b16 %v5435
  %v7727 = vunpack.c.l.b16 %v5436
  %v7728 = vunpack.c.h.b16 %v5436
  %v7729 = vunpack.c.l.b16 %v5437
  %v7730 = vunpack.c.h.b16 %v5437
  %v7731 = vunpack.c.l.b16 %v5438
  %v7732 = vunpack.c.h.b16 %v5438
  %v7733 = vunpack.c.l.b16 %v5439
  %v7734 = vunpack.c.h.b16 %v5439
  %v7735 = vunpack.c.l.b16 %v5440
  %v7736 = vunpack.c.h.b16 %v5440
  %v7737 = vunpack.c.l.b16 %v5441
  %v7738 = vunpack.c.h.b16 %v5441
  %v7739 = vunpack.c.l.b16 %v5442
  %v7740 = vunpack.c.h.b16 %v5442
  %v7741 = vunpack.c.l.b16 %v5443
  %v7742 = vunpack.c.h.b16 %v5443
  %v7743 = vunpack.c.l.b16 %v5444
  %v7744 = vunpack.c.h.b16 %v5444
  %v7745 = vunpack.c.l.b16 %v5445
  %v7746 = vunpack.c.h.b16 %v5445
  %v7747 = vunpack.c.l.b16 %v5446
  %v7748 = vunpack.c.h.b16 %v5446
  %v7749 = vunpack.c.l.b16 %v5447
  %v7750 = vunpack.c.h.b16 %v5447
  %v7751 = vunpack.c.l.b16 %v5448
  %v7752 = vunpack.c.h.b16 %v5448
  %v7753 = vunpack.c.l.b16 %v5449
  %v7754 = vunpack.c.h.b16 %v5449
  %v7755 = vunpack.c.l.b16 %v5450
  %v7756 = vunpack.c.h.b16 %v5450
  %v7757 = vunpack.c.l.b16 %v5451
  %v7758 = vunpack.c.h.b16 %v5451
  %v7759 = vunpack.c.l.b16 %v5452
  %v7760 = vunpack.c.h.b16 %v5452
  %v7761 = vunpack.c.l.b16 %v5453
  %v7762 = vunpack.c.h.b16 %v5453
  %v7763 = vunpack.c.l.b16 %v5454
  %v7764 = vunpack.c.h.b16 %v5454
  %v7765 = vunpack.c.l.b16 %v5455
  %v7766 = vunpack.c.h.b16 %v5455
  %v7767 = vunpack.c.l.b16 %v5456
  %v7768 = vunpack.c.h.b16 %v5456
  %v7769 = vunpack.c.l.b16 %v5457
  %v7770 = vunpack.c.h.b16 %v5457
  %v7771 = vunpack.c.l.b16 %v5458
  %v7772 = vunpack.c.h.b16 %v5458
  %v7773 = vunpack.c.l.b16 %v5459
  %v7774 = vunpack.c.h.b16 %v5459
  %v7775 = vunpack.c.l.b16 %v5460
  %v7776 = vunpack.c.h.b16 %v5460
  %v7777 = vunpack.c.l.b16 %v5461
  %v7778 = vunpack.c.h.b16 %v5461
  %v7779 = vunpack.c.l.b16 %v5462
  %v7780 = vunpack.c.h.b16 %v5462
  %v7781 = vunpack.c.l.b16 %v5463
  %v7782 = vunpack.c.h.b16 %v5463
  %v7783 = vunpack.c.l.b16 %v5464
  %v7784 = vunpack.c.h.b16 %v5464
  %v7785 = vunpack.c.l.b16 %v5465
  %v7786 = vunpack.c.h.b16 %v5465
  %v7787 = vunpack.c.l.b16 %v5466
  %v7788 = vunpack.c.h.b16 %v5466
  %v7789 = vunpack.c.l.b16 %v5467
  %v7790 = vunpack.c.h.b16 %v5467
  %v7791 = vunpack.c.l.b16 %v5468
  %v7792 = vunpack.c.h.b16 %v5468
  %v7793 = vunpack.c.l.b16 %v5469
  %v7794 = vunpack.c.h.b16 %v5469
  %v7795 = vunpack.c.l.b16 %v5470
  %v7796 = vunpack.c.h.b16 %v5470
  %v7797 = vunpack.c.l.b16 %v5471
  %v7798 = vunpack.c.h.b16 %v5471
  %v7799 = vunpack.c.l.b16 %v5472
  %v7800 = vunpack.c.h.b16 %v5472
  %v7801 = vunpack.c.l.b16 %v5473
  %v7802 = vunpack.c.h.b16 %v5473
  %v7803 = vunpack.c.l.b16 %v5474
  %v7804 = vunpack.c.h.b16 %v5474
  %v7805 = vunpack.c.l.b16 %v5475
  %v7806 = vunpack.c.h.b16 %v5475
  %v7807 = vunpack.c.l.b16 %v5476
  %v7808 = vunpack.c.h.b16 %v5476
  %v7809 = vunpack.c.l.b16 %v5477
  %v7810 = vunpack.c.h.b16 %v5477
  %v7811 = vunpack.c.l.b16 %v5478
  %v7812 = vunpack.c.h.b16 %v5478
  %v7813 = vunpack.c.l.b16 %v5479
  %v7814 = vunpack.c.h.b16 %v5479
  %v7815 = vunpack.c.l.b16 %v5480
  %v7816 = vunpack.c.h.b16 %v5480
  %v7817 = vunpack.c.l.b16 %v5481
  %v7818 = vunpack.c.h.b16 %v5481
  %v7819 = vunpack.c.l.b16 %v5482
  %v7820 = vunpack.c.h.b16 %v5482
  %v7821 = vunpack.c.l.b16 %v5483
  %v7822 = vunpack.c.h.b16 %v5483
  %v7823 = vunpack.c.l.b16 %v5484
  %v7824 = vunpack.c.h.b16 %v5484
  %v7825 = vunpack.c.l.b16 %v5485
  %v7826 = vunpack.c.h.b16 %v5485
  %v7827 = vunpack.c.l.b16 %v5486
  %v7828 = vunpack.c.h.b16 %v5486
  %v7829 = vunpack.c.l.b16 %v5487
  %v7830 = vunpack.c.h.b16 %v5487
  %v7831 = vunpack.c.l.b16 %v5488
  %v7832 = vunpack.c.h.b16 %v5488
  %v7833 = vunpack.c.l.b16 %v5489
  %v7834 = vunpack.c.h.b16 %v5489
  %v7835 = vunpack.c.l.b16 %v5490
  %v7836 = vunpack.c.h.b16 %v5490
  %v7837 = vunpack.c.l.b16 %v5491
  %v7838 = vunpack.c.h.b16 %v5491
  %v7839 = vunpack.c.l.b16 %v5492
  %v7840 = vunpack.c.h.b16 %v5492
  %v7841 = vunpack.c.l.b16 %v5493
  %v7842 = vunpack.c.h.b16 %v5493
  %v7843 = vunpack.c.l.b16 %v5494
  %v7844 = vunpack.c.h.b16 %v5494
  %v7845 = vunpack.c.l.b16 %v5495
  %v7846 = vunpack.c.h.b16 %v5495
  %v7847 = vunpack.c.l.b16 %v5496
  %v7848 = vunpack.c.h.b16 %v5496
  %v7849 = vunpack.c.l.b16 %v5497
  %v7850 = vunpack.c.h.b16 %v5497
  %v7851 = vunpack.c.l.b16 %v5498
  %v7852 = vunpack.c.h.b16 %v5498
  %v7853 = vunpack.c.l.b16 %v5499
  %v7854 = vunpack.c.h.b16 %v5499
  %v7855 = vunpack.c.l.b16 %v5500
  %v7856 = vunpack.c.h.b16 %v5500
  %v7857 = vunpack.c.l.b16 %v5501
  %v7858 = vunpack.c.h.b16 %v5501
  %v7859 = vunpack.c.l.b16 %v5502
  %v7860 = vunpack.c.h.b16 %v5502
  %v7861 = vunpack.c.l.b16 %v5503
  %v7862 = vunpack.c.h.b16 %v5503
  %v7863 = vunpack.c.l.b16 %v5504
  %v7864 = vunpack.c.h.b16 %v5504
  %v7865 = vunpack.c.l.b16 %v5505
  %v7866 = vunpack.c.h.b16 %v5505
  %v7867 = vunpack.c.l.b16 %v5506
  %v7868 = vunpack.c.h.b16 %v5506
  %v7869 = vunpack.c.l.b16 %v5507
  %v7870 = vunpack.c.h.b16 %v5507
  %v7871 = vunpack.c.l.b16 %v5508
  %v7872 = vunpack.c.h.b16 %v5508
  %v7873 = vunpack.c.l.b16 %v5509
  %v7874 = vunpack.c.h.b16 %v5509
  %v7875 = vunpack.c.l.b16 %v5510
  %v7876 = vunpack.c.h.b16 %v5510
  %v7877 = vunpack.c.l.b16 %v5511
  %v7878 = vunpack.c.h.b16 %v5511
  %v7879 = vunpack.c.l.b16 %v5512
  %v7880 = vunpack.c.h.b16 %v5512
  %v7881 = vpack.c.b16 %v7633, %v7625
  %v7882 = vpack.c.b16 %v7634, %v7626
  %v7883 = vpack.c.b16 %v7635, %v7627
  %v7884 = vpack.c.b16 %v7636, %v7628
  %v7885 = vpack.c.b16 %v7637, %v7629
  %v7886 = vpack.c.b16 %v7638, %v7630
  %v7887 = vpack.c.b16 %v7639, %v7631
  %v7888 = vpack.c.b16 %v7640, %v7632
  %v7889 = vpack.c.b16 %v7649, %v7641
  %v7890 = vpack.c.b16 %v7650, %v7642
  %v7891 = vpack.c.b16 %v7651, %v7643
  %v7892 = vpack.c.b16 %v7652, %v7644
  %v7893 = vpack.c.b16 %v7653, %v7645
  %v7894 = vpack.c.b16 %v7654, %v7646
  %v7895 = vpack.c.b16 %v7655, %v7647
  %v7896 = vpack.c.b16 %v7656, %v7648
  %v7897 = vpack.c.b16 %v7665, %v7657
  %v7898 = vpack.c.b16 %v7666, %v7658
  %v7899 = vpack.c.b16 %v7667, %v7659
  %v7900 = vpack.c.b16 %v7668, %v7660
  %v7901 = vpack.c.b16 %v7669, %v7661
  %v7902 = vpack.c.b16 %v7670, %v7662
  %v7903 = vpack.c.b16 %v7671, %v7663
  %v7904 = vpack.c.b16 %v7672, %v7664
  %v7905 = vpack.c.b16 %v7681, %v7673
  %v7906 = vpack.c.b16 %v7682, %v7674
  %v7907 = vpack.c.b16 %v7683, %v7675
  %v7908 = vpack.c.b16 %v7684, %v7676
  %v7909 = vpack.c.b16 %v7685, %v7677
  %v7910 = vpack.c.b16 %v7686, %v7678
  %v7911 = vpack.c.b16 %v7687, %v7679
  %v7912 = vpack.c.b16 %v7688, %v7680
  %v7913 = vpack.c.b16 %v7697, %v7689
  %v7914 = vpack.c.b16 %v7698, %v7690
  %v7915 = vpack.c.b16 %v7699, %v7691
  %v7916 = vpack.c.b16 %v7700, %v7692
  %v7917 = vpack.c.b16 %v7701, %v7693
  %v7918 = vpack.c.b16 %v7702, %v7694
  %v7919 = vpack.c.b16 %v7703, %v7695
  %v7920 = vpack.c.b16 %v7704, %v7696
  %v7921 = vpack.c.b16 %v7713, %v7705
  %v7922 = vpack.c.b16 %v7714, %v7706
  %v7923 = vpack.c.b16 %v7715, %v7707
  %v7924 = vpack.c.b16 %v7716, %v7708
  %v7925 = vpack.c.b16 %v7717, %v7709
  %v7926 = vpack.c.b16 %v7718, %v7710
  %v7927 = vpack.c.b16 %v7719, %v7711
  %v7928 = vpack.c.b16 %v7720, %v7712
  %v7929 = vpack.c.b16 %v7729, %v7721
  %v7930 = vpack.c.b16 %v7730, %v7722
  %v7931 = vpack.c.b16 %v7731, %v7723
  %v7932 = vpack.c.b16 %v7732, %v7724
  %v7933 = vpack.c.b16 %v7733, %v7725
  %v7934 = vpack.c.b16 %v7734, %v7726
  %v7935 = vpack.c.b16 %v7735, %v7727
  %v7936 = vpack.c.b16 %v7736, %v7728
  %v7937 = vpack.c.b16 %v7745, %v7737
  %v7938 = vpack.c.b16 %v7746, %v7738
  %v7939 = vpack.c.b16 %v7747, %v7739
  %v7940 = vpack.c.b16 %v7748, %v7740
  %v7941 = vpack.c.b16 %v7749, %v7741
  %v7942 = vpack.c.b16 %v7750, %v7742
  %v7943 = vpack.c.b16 %v7751, %v7743
  %v7944 = vpack.c.b16 %v7752, %v7744
  %v7945 = vpack.c.b16 %v7761, %v7753
  %v7946 = vpack.c.b16 %v7762, %v7754
  %v7947 = vpack.c.b16 %v7763, %v7755
  %v7948 = vpack.c.b16 %v7764, %v7756
  %v7949 = vpack.c.b16 %v7765, %v7757
  %v7950 = vpack.c.b16 %v7766, %v7758
  %v7951 = vpack.c.b16 %v7767, %v7759
  %v7952 = vpack.c.b16 %v7768, %v7760
  %v7953 = vpack.c.b16 %v7777, %v7769
  %v7954 = vpack.c.b16 %v7778, %v7770
  %v7955 = vpack.c.b16 %v7779, %v7771
  %v7956 = vpack.c.b16 %v7780, %v7772
  %v7957 = vpack.c.b16 %v7781, %v7773
  %v7958 = vpack.c.b16 %v7782, %v7774
  %v7959 = vpack.c.b16 %v7783, %v7775
  %v7960 = vpack.c.b16 %v7784, %v7776
  %v7961 = vpack.c.b16 %v7793, %v7785
  %v7962 = vpack.c.b16 %v7794, %v7786
  %v7963 = vpack.c.b16 %v7795, %v7787
  %v7964 = vpack.c.b16 %v7796, %v7788
  %v7965 = vpack.c.b16 %v7797, %v7789
  %v7966 = vpack.c.b16 %v7798, %v7790
  %v7967 = vpack.c.b16 %v7799, %v7791
  %v7968 = vpack.c.b16 %v7800, %v7792
  %v7969 = vpack.c.b16 %v7809, %v7801
  %v7970 = vpack.c.b16 %v7810, %v7802
  %v7971 = vpack.c.b16 %v7811, %v7803
  %v7972 = vpack.c.b16 %v7812, %v7804
  %v7973 = vpack.c.b16 %v7813, %v7805
  %v7974 = vpack.c.b16 %v7814, %v7806
  %v7975 = vpack.c.b16 %v7815, %v7807
  %v7976 = vpack.c.b16 %v7816, %v7808
  %v7977 = vpack.c.b16 %v7825, %v7817
  %v7978 = vpack.c.b16 %v7826, %v7818
  %v7979 = vpack.c.b16 %v7827, %v7819
  %v7980 = vpack.c.b16 %v7828, %v7820
  %v7981 = vpack.c.b16 %v7829, %v7821
  %v7982 = vpack.c.b16 %v7830, %v7822
  %v7983 = vpack.c.b16 %v7831, %v7823
  %v7984 = vpack.c.b16 %v7832, %v7824
  %v7985 = vpack.c.b16 %v7841, %v7833
  %v7986 = vpack.c.b16 %v7842, %v7834
  %v7987 = vpack.c.b16 %v7843, %v7835
  %v7988 = vpack.c.b16 %v7844, %v7836
  %v7989 = vpack.c.b16 %v7845, %v7837
  %v7990 = vpack.c.b16 %v7846, %v7838
  %v7991 = vpack.c.b16 %v7847, %v7839
  %v7992 = vpack.c.b16 %v7848, %v7840
  %v7993 = vpack.c.b16 %v7857, %v7849
  %v7994 = vpack.c.b16 %v7858, %v7850
  %v7995 = vpack.c.b16 %v7859, %v7851
  %v7996 = vpack.c.b16 %v7860, %v7852
  %v7997 = vpack.c.b16 %v7861, %v7853
  %v7998 = vpack.c.b16 %v7862, %v7854
  %v7999 = vpack.c.b16 %v7863, %v7855
  %v8000 = vpack.c.b16 %v7864, %v7856
  %v8001 = vpack.c.b16 %v7873, %v7865
  %v8002 = vpack.c.b16 %v7874, %v7866
  %v8003 = vpack.c.b16 %v7875, %v7867
  %v8004 = vpack.c.b16 %v7876, %v7868
  %v8005 = vpack.c.b16 %v7877, %v7869
  %v8006 = vpack.c.b16 %v7878, %v7870
  %v8007 = vpack.c.b16 %v7879, %v7871
  %v8008 = vpack.c.b16 %v7880, %v7872
  %8137 = vmatpush.bf16.msra.mxu0 %v7937
  %8138 = vmatpush.bf16.msra.mxu0 %v7929
  %8139 = vmatpush.bf16.msra.mxu0 %v7921
  %8140 = vmatpush.bf16.msra.mxu0 %v7913
  %8141 = vmatpush.bf16.msra.mxu0 %v7905
  %8142 = vmatpush.bf16.msra.mxu0 %v7897
  %8143 = vmatpush.bf16.msra.mxu0 %v7889
  %8144 = vmatpush.bf16.msra.mxu0 %v7881
  %8145 = vmatmul.bf16.gmra.mxu0 %v5383
  %v8146 = vpop.f32.mrf.mxu0
  %v8147 = vadd.f32 %v7101, %v8146
  %v8148 = vpop.f32.mrf.mxu0
  %v8149 = vadd.f32 %v7103, %v8148
  %8150 = vdwg.mxu0
  %8151 = vmatpush.bf16.msra.mxu0 %v8001
  %8152 = vmatpush.bf16.msra.mxu0 %v7993
  %8153 = vmatpush.bf16.msra.mxu0 %v7985
  %8154 = vmatpush.bf16.msra.mxu0 %v7977
  %8155 = vmatpush.bf16.msra.mxu0 %v7969
  %8156 = vmatpush.bf16.msra.mxu0 %v7961
  %8157 = vmatpush.bf16.msra.mxu0 %v7953
  %8158 = vmatpush.bf16.msra.mxu0 %v7945
  %8159 = vmatmul.bf16.gmra.mxu0 %v5384
  %v8160 = vpop.f32.mrf.mxu0
  %v8161 = vadd.f32 %v8147, %v8160
  %v8162 = vpop.f32.mrf.mxu0
  %v8163 = vadd.f32 %v8149, %v8162
  %8164 = vdwg.mxu0
  %8165 = vmatpush.bf16.msra.mxu0 %v7938
  %8166 = vmatpush.bf16.msra.mxu0 %v7930
  %8167 = vmatpush.bf16.msra.mxu0 %v7922
  %8168 = vmatpush.bf16.msra.mxu0 %v7914
  %8169 = vmatpush.bf16.msra.mxu0 %v7906
  %8170 = vmatpush.bf16.msra.mxu0 %v7898
  %8171 = vmatpush.bf16.msra.mxu0 %v7890
  %8172 = vmatpush.bf16.msra.mxu0 %v7882
  %8173 = vmatmul.bf16.gmra.mxu0 %v5383
  %v8174 = vpop.f32.mrf.mxu0
  %v8175 = vadd.f32 %v7157, %v8174
  %v8176 = vpop.f32.mrf.mxu0
  %v8177 = vadd.f32 %v7159, %v8176
  %8178 = vdwg.mxu0
  %8179 = vmatpush.bf16.msra.mxu0 %v8002
  %8180 = vmatpush.bf16.msra.mxu0 %v7994
  %8181 = vmatpush.bf16.msra.mxu0 %v7986
  %8182 = vmatpush.bf16.msra.mxu0 %v7978
  %8183 = vmatpush.bf16.msra.mxu0 %v7970
  %8184 = vmatpush.bf16.msra.mxu0 %v7962
  %8185 = vmatpush.bf16.msra.mxu0 %v7954
  %8186 = vmatpush.bf16.msra.mxu0 %v7946
  %8187 = vmatmul.bf16.gmra.mxu0 %v5384
  %v8188 = vpop.f32.mrf.mxu0
  %v8189 = vadd.f32 %v8175, %v8188
  %v8190 = vpop.f32.mrf.mxu0
  %v8191 = vadd.f32 %v8177, %v8190
  %8192 = vdwg.mxu0
  %8193 = vmatpush.bf16.msra.mxu0 %v7939
  %8194 = vmatpush.bf16.msra.mxu0 %v7931
  %8195 = vmatpush.bf16.msra.mxu0 %v7923
  %8196 = vmatpush.bf16.msra.mxu0 %v7915
  %8197 = vmatpush.bf16.msra.mxu0 %v7907
  %8198 = vmatpush.bf16.msra.mxu0 %v7899
  %8199 = vmatpush.bf16.msra.mxu0 %v7891
  %8200 = vmatpush.bf16.msra.mxu0 %v7883
  %8201 = vmatmul.bf16.gmra.mxu0 %v5383
  %v8202 = vpop.f32.mrf.mxu0
  %v8203 = vadd.f32 %v7213, %v8202
  %v8204 = vpop.f32.mrf.mxu0
  %v8205 = vadd.f32 %v7215, %v8204
  %8206 = vdwg.mxu0
  %8207 = vmatpush.bf16.msra.mxu0 %v8003
  %8208 = vmatpush.bf16.msra.mxu0 %v7995
  %8209 = vmatpush.bf16.msra.mxu0 %v7987
  %8210 = vmatpush.bf16.msra.mxu0 %v7979
  %8211 = vmatpush.bf16.msra.mxu0 %v7971
  %8212 = vmatpush.bf16.msra.mxu0 %v7963
  %8213 = vmatpush.bf16.msra.mxu0 %v7955
  %8214 = vmatpush.bf16.msra.mxu0 %v7947
  %8215 = vmatmul.bf16.gmra.mxu0 %v5384
  %v8216 = vpop.f32.mrf.mxu0
  %v8217 = vadd.f32 %v8203, %v8216
  %v8218 = vpop.f32.mrf.mxu0
  %v8219 = vadd.f32 %v8205, %v8218
  %8220 = vdwg.mxu0
  %8221 = vmatpush.bf16.msra.mxu0 %v7940
  %8222 = vmatpush.bf16.msra.mxu0 %v7932
  %8223 = vmatpush.bf16.msra.mxu0 %v7924
  %8224 = vmatpush.bf16.msra.mxu0 %v7916
  %8225 = vmatpush.bf16.msra.mxu0 %v7908
  %8226 = vmatpush.bf16.msra.mxu0 %v7900
  %8227 = vmatpush.bf16.msra.mxu0 %v7892
  %8228 = vmatpush.bf16.msra.mxu0 %v7884
  %8229 = vmatmul.bf16.gmra.mxu0 %v5383
  %v8230 = vpop.f32.mrf.mxu0
  %v8231 = vadd.f32 %v7269, %v8230
  %v8232 = vpop.f32.mrf.mxu0
  %v8233 = vadd.f32 %v7271, %v8232
  %8234 = vdwg.mxu0
  %8235 = vmatpush.bf16.msra.mxu0 %v8004
  %8236 = vmatpush.bf16.msra.mxu0 %v7996
  %8237 = vmatpush.bf16.msra.mxu0 %v7988
  %8238 = vmatpush.bf16.msra.mxu0 %v7980
  %8239 = vmatpush.bf16.msra.mxu0 %v7972
  %8240 = vmatpush.bf16.msra.mxu0 %v7964
  %8241 = vmatpush.bf16.msra.mxu0 %v7956
  %8242 = vmatpush.bf16.msra.mxu0 %v7948
  %8243 = vmatmul.bf16.gmra.mxu0 %v5384
  %v8244 = vpop.f32.mrf.mxu0
  %v8245 = vadd.f32 %v8231, %v8244
  %v8246 = vpop.f32.mrf.mxu0
  %v8247 = vadd.f32 %v8233, %v8246
  %8248 = vdwg.mxu0
  %8249 = vmatpush.bf16.msra.mxu0 %v7941
  %8250 = vmatpush.bf16.msra.mxu0 %v7933
  %8251 = vmatpush.bf16.msra.mxu0 %v7925
  %8252 = vmatpush.bf16.msra.mxu0 %v7917
  %8253 = vmatpush.bf16.msra.mxu0 %v7909
  %8254 = vmatpush.bf16.msra.mxu0 %v7901
  %8255 = vmatpush.bf16.msra.mxu0 %v7893
  %8256 = vmatpush.bf16.msra.mxu0 %v7885
  %8257 = vmatmul.bf16.gmra.mxu0 %v5383
  %v8258 = vpop.f32.mrf.mxu0
  %v8259 = vadd.f32 %v7325, %v8258
  %v8260 = vpop.f32.mrf.mxu0
  %v8261 = vadd.f32 %v7327, %v8260
  %8262 = vdwg.mxu0
  %8263 = vmatpush.bf16.msra.mxu0 %v8005
  %8264 = vmatpush.bf16.msra.mxu0 %v7997
  %8265 = vmatpush.bf16.msra.mxu0 %v7989
  %8266 = vmatpush.bf16.msra.mxu0 %v7981
  %8267 = vmatpush.bf16.msra.mxu0 %v7973
  %8268 = vmatpush.bf16.msra.mxu0 %v7965
  %8269 = vmatpush.bf16.msra.mxu0 %v7957
  %8270 = vmatpush.bf16.msra.mxu0 %v7949
  %8271 = vmatmul.bf16.gmra.mxu0 %v5384
  %v8272 = vpop.f32.mrf.mxu0
  %v8273 = vadd.f32 %v8259, %v8272
  %v8274 = vpop.f32.mrf.mxu0
  %v8275 = vadd.f32 %v8261, %v8274
  %8276 = vdwg.mxu0
  %8277 = vmatpush.bf16.msra.mxu0 %v7942
  %8278 = vmatpush.bf16.msra.mxu0 %v7934
  %8279 = vmatpush.bf16.msra.mxu0 %v7926
  %8280 = vmatpush.bf16.msra.mxu0 %v7918
  %8281 = vmatpush.bf16.msra.mxu0 %v7910
  %8282 = vmatpush.bf16.msra.mxu0 %v7902
  %8283 = vmatpush.bf16.msra.mxu0 %v7894
  %8284 = vmatpush.bf16.msra.mxu0 %v7886
  %8285 = vmatmul.bf16.gmra.mxu0 %v5383
  %v8286 = vpop.f32.mrf.mxu0
  %v8287 = vadd.f32 %v7381, %v8286
  %v8288 = vpop.f32.mrf.mxu0
  %v8289 = vadd.f32 %v7383, %v8288
  %8290 = vdwg.mxu0
  %8291 = vmatpush.bf16.msra.mxu0 %v8006
  %8292 = vmatpush.bf16.msra.mxu0 %v7998
  %8293 = vmatpush.bf16.msra.mxu0 %v7990
  %8294 = vmatpush.bf16.msra.mxu0 %v7982
  %8295 = vmatpush.bf16.msra.mxu0 %v7974
  %8296 = vmatpush.bf16.msra.mxu0 %v7966
  %8297 = vmatpush.bf16.msra.mxu0 %v7958
  %8298 = vmatpush.bf16.msra.mxu0 %v7950
  %8299 = vmatmul.bf16.gmra.mxu0 %v5384
  %v8300 = vpop.f32.mrf.mxu0
  %v8301 = vadd.f32 %v8287, %v8300
  %v8302 = vpop.f32.mrf.mxu0
  %v8303 = vadd.f32 %v8289, %v8302
  %8304 = vdwg.mxu0
  %8305 = vmatpush.bf16.msra.mxu0 %v7943
  %8306 = vmatpush.bf16.msra.mxu0 %v7935
  %8307 = vmatpush.bf16.msra.mxu0 %v7927
  %8308 = vmatpush.bf16.msra.mxu0 %v7919
  %8309 = vmatpush.bf16.msra.mxu0 %v7911
  %8310 = vmatpush.bf16.msra.mxu0 %v7903
  %8311 = vmatpush.bf16.msra.mxu0 %v7895
  %8312 = vmatpush.bf16.msra.mxu0 %v7887
  %8313 = vmatmul.bf16.gmra.mxu0 %v5383
  %v8314 = vpop.f32.mrf.mxu0
  %v8315 = vadd.f32 %v7437, %v8314
  %v8316 = vpop.f32.mrf.mxu0
  %v8317 = vadd.f32 %v7439, %v8316
  %8318 = vdwg.mxu0
  %8319 = vmatpush.bf16.msra.mxu0 %v8007
  %8320 = vmatpush.bf16.msra.mxu0 %v7999
  %8321 = vmatpush.bf16.msra.mxu0 %v7991
  %8322 = vmatpush.bf16.msra.mxu0 %v7983
  %8323 = vmatpush.bf16.msra.mxu0 %v7975
  %8324 = vmatpush.bf16.msra.mxu0 %v7967
  %8325 = vmatpush.bf16.msra.mxu0 %v7959
  %8326 = vmatpush.bf16.msra.mxu0 %v7951
  %8327 = vmatmul.bf16.gmra.mxu0 %v5384
  %v8328 = vpop.f32.mrf.mxu0
  %v8329 = vadd.f32 %v8315, %v8328
  %v8330 = vpop.f32.mrf.mxu0
  %v8331 = vadd.f32 %v8317, %v8330
  %8332 = vdwg.mxu0
  %8333 = vmatpush.bf16.msra.mxu0 %v7944
  %8334 = vmatpush.bf16.msra.mxu0 %v7936
  %8335 = vmatpush.bf16.msra.mxu0 %v7928
  %8336 = vmatpush.bf16.msra.mxu0 %v7920
  %8337 = vmatpush.bf16.msra.mxu0 %v7912
  %8338 = vmatpush.bf16.msra.mxu0 %v7904
  %8339 = vmatpush.bf16.msra.mxu0 %v7896
  %8340 = vmatpush.bf16.msra.mxu0 %v7888
  %8341 = vmatmul.bf16.gmra.mxu0 %v5383
  %v8342 = vpop.f32.mrf.mxu0
  %v8343 = vadd.f32 %v7493, %v8342
  %v8344 = vpop.f32.mrf.mxu0
  %v8345 = vadd.f32 %v7495, %v8344
  %8346 = vdwg.mxu0
  %8347 = vmatpush.bf16.msra.mxu0 %v8008
  %8348 = vmatpush.bf16.msra.mxu0 %v8000
  %8349 = vmatpush.bf16.msra.mxu0 %v7992
  %8350 = vmatpush.bf16.msra.mxu0 %v7984
  %8351 = vmatpush.bf16.msra.mxu0 %v7976
  %8352 = vmatpush.bf16.msra.mxu0 %v7968
  %8353 = vmatpush.bf16.msra.mxu0 %v7960
  %8354 = vmatpush.bf16.msra.mxu0 %v7952
  %8355 = vmatmul.bf16.gmra.mxu0 %v5384
  %v8356 = vpop.f32.mrf.mxu0
  %v8357 = vadd.f32 %v8343, %v8356
  %v8358 = vpop.f32.mrf.mxu0
  %v8359 = vadd.f32 %v8345, %v8358
  %8360 = vdwg.mxu0
  %v8361 = vld [vmem:[%s11] sm:$0xff]
  %v8363 = vperm.slane %v8361, 0
  %v8364 = vperm.slane %v8361, 1
  %v8365 = vperm.slane %v8361, 2
  %v8366 = vperm.slane %v8361, 3
  %v8367 = vperm.slane %v8361, 4
  %v8368 = vperm.slane %v8361, 5
  %v8369 = vperm.slane %v8361, 6
  %v8370 = vperm.slane %v8361, 7
  %v8379 = vadd.f32 %v8161, %v8363
  %v8380 = vadd.f32 %v8189, %v8364
  %v8381 = vadd.f32 %v8217, %v8365
  %v8382 = vadd.f32 %v8245, %v8366
  %v8383 = vadd.f32 %v8273, %v8367
  %v8384 = vadd.f32 %v8301, %v8368
  %v8385 = vadd.f32 %v8329, %v8369
  %v8386 = vadd.f32 %v8357, %v8370
  %v8387 = vadd.f32 %v8163, %v8363
  %v8388 = vadd.f32 %v8191, %v8364
  %v8389 = vadd.f32 %v8219, %v8365
  %v8390 = vadd.f32 %v8247, %v8366
  %v8391 = vadd.f32 %v8275, %v8367
  %v8392 = vadd.f32 %v8303, %v8368
  %v8393 = vadd.f32 %v8331, %v8369
  %v8394 = vadd.f32 %v8359, %v8370
  %v8395 = vpack.c.bf16 %v8380, %v8379
  %v8396 = vpack.c.bf16 %v8382, %v8381
  %v8397 = vpack.c.bf16 %v8384, %v8383
  %v8398 = vpack.c.bf16 %v8386, %v8385
  %v8399 = vpack.c.bf16 %v8388, %v8387
  %v8400 = vpack.c.bf16 %v8390, %v8389
  %v8401 = vpack.c.bf16 %v8392, %v8391
  %v8402 = vpack.c.bf16 %v8394, %v8393
  %8403 = vst [vmem:[%s12] sm:$0xff] %v8395
  %8404 = vst [vmem:[%s12 + $0x8] sm:$0xff] %v8396
  %8405 = vst [vmem:[%s12 + $0x10] sm:$0xff] %v8397
  %8406 = vst [vmem:[%s12 + $0x18] sm:$0xff] %v8398
  %8407 = vst [vmem:[%s12 + $0x20] sm:$0xff] %v8399
  %8408 = vst [vmem:[%s12 + $0x28] sm:$0xff] %v8400
  %8409 = vst [vmem:[%s12 + $0x30] sm:$0xff] %v8401
  %8410 = vst [vmem:[%s12 + $0x38] sm:$0xff] %v8402
  // Predicated region
  $region50: #{tablenet_forward.4} parent=0 // pred_check
    _
  $region51: #{tablenet_forward.4} parent=0 // pred_check_branch
    %8412 = sbr.rel (0) target = $region53
  $region52: #{tablenet_forward.4} parent=0 // pred_region
    _
  $region53: #{tablenet_forward.4} parent=0 // pred_fallthru
    _
  // Predicated region
  $region54: #{tablenet_forward.4} parent=0 // pred_check
    _
  $region55: #{tablenet_forward.4} parent=0 // pred_check_branch
    %8414 = sbr.rel (0) target = $region57
  $region56: #{tablenet_forward.4} parent=0 // pred_region
    _
  $region57: #{tablenet_forward.4} parent=0 // pred_fallthru
    _

</llo_original>
